<compile_context>
chip_gen: v6e
topology: v6e:2x2x1
jax: 0.10.0
libtpu: 0.0.40
codegen_flags: <defaults>
</compile_context>

<pallas_src>
import functools

import jax
import jax.numpy as jnp
from jax.experimental import pallas as pl
from jax.experimental.pallas import tpu as pltpu

F32 = jnp.float32
BF16 = jnp.bfloat16

# model_cfg dims: h_in=16, chi_in=2, e_in=32, xi_in=1, c_in=16, rho_in=2
#                 h=32, chi=4, e=16, xi=2, c=16, rho=4, num_layers=2
H_IN, H = 16, 32
CHI_IN, CHI = 2, 4
E_IN, EH = 32, 16
XI_IN, XIH = 1, 2
C_IN, CH = 16, 16
RHO_IN, RHO = 2, 4
NUM_LAYERS = 2
EPS = 1e-8

NODE_SLAB = H + CHI * 3 + CH + RHO          # [h | chi_flat | c_on_nodes | |rho|_on_nodes]
EDGE_SLAB = EH + XIH                        # [e | |xi|]
NODE_HCHI = H + CHI * 3                     # [h | chi_flat]


# ------------------------------------------------------------------ pallas glue

def _full_block(shape):
    nd = len(shape)
    return pl.BlockSpec(shape, lambda i, _nd=nd: (0,) * _nd)


def _fused_call(body, inputs, out_shapes):
    """Single grid=(1,) pallas_call; all operands are whole-array VMEM blocks."""
    inputs = list(inputs)
    out_shapes = tuple(out_shapes)
    n_in = len(inputs)

    def kernel(*refs):
        body(refs[:n_in], refs[n_in:])

    return pl.pallas_call(
        kernel,
        out_shape=out_shapes,
        grid=(1,),
        in_specs=[_full_block(a.shape) for a in inputs],
        out_specs=tuple(_full_block(s.shape) for s in out_shapes),
        compiler_params=pltpu.CompilerParams(
            dimension_semantics=("arbitrary",)),
    )(*inputs)


def _call_stage(body, data, weights, out_shapes):
    """Pass a weight pytree into a fused kernel; refs are re-assembled inside."""
    wflat, treedef = jax.tree_util.tree_flatten(weights)
    n_data = len(data)

    def wrapped(in_refs, out_refs):
        d = in_refs[:n_data]
        w = jax.tree_util.tree_unflatten(treedef, list(in_refs[n_data:]))
        body(d, w, out_refs)

    return _fused_call(wrapped, list(data) + wflat, out_shapes)


# ------------------------------------------------------------------ in-kernel helpers

def _silu(x):
    return x * jax.nn.sigmoid(x)


def _mm(a, w):
    """Dense Linear matmul: bf16 MXU operands, f32 accumulation."""
    return jnp.dot(a.astype(BF16), w[...].astype(BF16),
                   preferred_element_type=F32)


def _mmask(mask, feats):
    """Exact (f32) masked matmul used for gathers / segment reductions."""
    return jnp.dot(mask, feats, preferred_element_type=F32)


def _mlp2_k(x, w, name):
    """nn.Sequential(Linear, SiLU, Linear, SiLU)."""
    hdn = _silu(_mm(x, w[name + '_w1']) + w[name + '_b1'][...])
    return _silu(_mm(hdn, w[name + '_w2']) + w[name + '_b2'][...])


def _onehot_rows(ids_col_ref, n_cols):
    """ids_col (R,1) int32 -> (R, n_cols) gather matrix: m[r,c] = (ids[r]==c)."""
    rows = ids_col_ref.shape[0]
    iota = jax.lax.broadcasted_iota(jnp.int32, (rows, n_cols), 1)
    return (iota == ids_col_ref[...]).astype(F32)


def _onehot_cols(ids_row_ref, n_rows):
    """ids_row (1,C) int32 -> (n_rows, C) scatter matrix: m[s,c] = (ids[c]==s)."""
    cols = ids_row_ref.shape[1]
    iota = jax.lax.broadcasted_iota(jnp.int32, (n_rows, cols), 0)
    return (iota == ids_row_ref[...]).astype(F32)


def _normalize(v):
    return v / (jnp.sqrt(jnp.sum(v * v, axis=-1, keepdims=True)) + EPS)


def _cross(u, v):
    ux, uy, uz = u[:, 0:1], u[:, 1:2], u[:, 2:3]
    vx, vy, vz = v[:, 0:1], v[:, 1:2], v[:, 2:3]
    return jnp.concatenate([uy * vz - uz * vy,
                            uz * vx - ux * vz,
                            ux * vy - uy * vx], axis=-1)


def _channel_norms(vflat, nch):
    """(R, nch*3) flattened vector channels -> (R, nch) rotation-invariant norms."""
    cols = [jnp.sqrt(jnp.sum(vflat[:, 3 * v:3 * v + 3] ** 2, axis=-1, keepdims=True) + EPS)
            for v in range(nch)]
    return jnp.concatenate(cols, axis=-1)


# ------------------------------------------------------------------ stage 1: embedding

def _embed_body(data, w, outs, *, N, C, G):
    (x_ref, pos_ref, chiraw_ref, batch_row, batch_col, n2s_row, n2s_col,
     src_col, dst_col, cb_col, first_col, last_col) = data
    node_out, edge_out = outs

    x = x_ref[...]
    pos = pos_ref[...]

    # masks built once from int ids; shared by every gather/segment-mean using them
    m_gb = _onehot_cols(batch_row, G)        # (G,N) graph <- node
    m_ng = _onehot_rows(batch_col, G)        # (N,G) node  <- graph
    m_cn = _onehot_cols(n2s_row, C)          # (C,N) cell  <- node
    m_nc = _onehot_rows(n2s_col, C)          # (N,C) node  <- cell
    m_src = _onehot_rows(src_col, N)         # (E,N)
    m_dst = _onehot_rows(dst_col, N)         # (E,N)
    m_cb = _onehot_rows(cb_col, G)           # (C,G)
    m_first = _onehot_rows(first_col, N)     # (C,N)
    m_last = _onehot_rows(last_col, N)       # (C,N)

    cnt_g = jnp.maximum(jnp.sum(m_gb, axis=1, keepdims=True), 1.0)
    cnt_c = jnp.maximum(jnp.sum(m_cn, axis=1, keepdims=True), 1.0)

    # ---- node scalar backbones: bb_h / bb_sse_h share x -> fused first layer ----
    hid = _silu(_mm(x, w['bbsh_w1']) + w['bbsh_b1'][...])             # (N,64)
    h = _silu(_mm(hid[:, :H], w['bbh_w2']) + w['bbh_b2'][...])        # (N,32)
    h_sse = _silu(_mm(hid[:, H:], w['bbs_w2']) + w['bbs_b2'][...])    # (N,32)
    chi = _mm(chiraw_ref[...], w['bbchi_k'])                          # (N,12) equivariant

    # ---- centralize + 'graph_embedding': one shared masked matmul over `batch` ----
    pooled_g = _mmask(m_gb, jnp.concatenate([pos, h_sse], axis=-1)) / cnt_g   # (G,35)
    pos_centroid = pooled_g[:, :3]
    graph_emb = pooled_g[:, 3:]
    posc = pos - _mmask(m_ng, pos_centroid)                           # centered positions

    # ---- per-cell pooling over node_to_sse (shared mask): centroid + raw scalars ----
    pooled_c = _mmask(m_cn, jnp.concatenate([posc, x], axis=-1)) / cnt_c      # (C,19)
    cell_cent = pooled_c[:, :3]
    c_raw = pooled_c[:, 3:]                                           # (C,16)

    # ---- rank-2 frames (Gram-Schmidt over cell geometry) ----
    # TODO(synk): exact `localize` is library-internal; rank-0/1 frames omitted
    # because the stand-in interaction/GCP use invariant channel norms instead.
    v1 = _mmask(m_first, posc) - cell_cent
    v2 = _mmask(m_last, posc) - cell_cent
    a2 = _normalize(v1)
    b2 = _normalize(v2 - jnp.sum(v2 * a2, axis=-1, keepdims=True) * a2)
    c2 = _cross(a2, b2)
    rho_raw = jnp.concatenate([v1, v2], axis=-1)                      # (C,6)

    # ---- edge features: MLP2([x_src, x_dst]) with split weights; dense matmuls
    #      hoisted before the gather (E >= N) ----
    xa = _mm(x, w['bbe_w1a'])
    xb = _mm(x, w['bbe_w1b'])
    e_hid = _silu(_mmask(m_src, xa) + _mmask(m_dst, xb) + w['bbe_b1'][...])
    e = _silu(_mm(e_hid, w['bbe_w2']) + w['bbe_b2'][...])             # (E,16)

    dpos = _mmask(m_src - m_dst, posc)                                # pos[src]-pos[dst]
    xi = _mm(dpos, w['bbxi_k'])                                       # (E,6) -> 2 channels
    xi_inv = _channel_norms(xi, XIH)                                  # (E,2)

    # ---- SSE / TPP embedding path ----
    sse_s_tpp = _mlp2_k(c_raw, w, 'tppc')                             # (C,16)
    sse_v_tpp = _mm(rho_raw, w['tppv_k'])                             # (C,12)
    sse_emb = _mmask(m_cb, graph_emb)                                 # (C,32) broadcast per cell

    pre_s = _mlp2_k(sse_emb, w, 'ssp')                                # sse_scalar_pre_recon
    ss_hid = _silu(_mm(sse_s_tpp, w['ssd_w1a']) + _mm(pre_s, w['ssd_w1b'])
                   + w['ssd_b1'][...])                                # sse_scalar_down (split)
    c_feat = _silu(_mm(ss_hid, w['ssd_w2']) + w['ssd_b2'][...])       # (C,16)

    vec_local = _mlp2_k(sse_emb, w, 'svp')                            # (C,12) local coeffs
    # tensorize: local frame coefficients -> global vectors with frames2
    cols = []
    for v in range(RHO):
        co = vec_local[:, 3 * v:3 * v + 3]
        cols.append(co[:, 0:1] * a2 + co[:, 1:2] * b2 + co[:, 2:3] * c2)
    vec_global = jnp.concatenate(cols, axis=-1)                       # (C,12)

    sv_hid = _silu(_mm(vec_global, w['svd_w1a']) + _mm(sse_v_tpp, w['svd_w1b'])
                   + w['svd_b1'][...])                                # sse_vec_down (split, kron)
    rho_flat = _silu(_mm(sv_hid, w['svd_w2']) + w['svd_b2'][...])     # (C,12)
    rho_inv = _channel_norms(rho_flat, RHO)                           # (C,4)

    # broadcast cell features to nodes (shared mask, fused feature dims)
    cell_on_nodes = _mmask(m_nc, jnp.concatenate([c_feat, rho_inv], axis=-1))  # (N,20)

    node_out[...] = jnp.concatenate([h, chi, cell_on_nodes], axis=-1)  # (N,64)
    edge_out[...] = jnp.concatenate([e, xi_inv], axis=-1)              # (E,18)


# ------------------------------------------------------------------ stage 2: interaction layers

def _layers_body(data, w, outs, *, N):
    # TODO(synk): TCPInteractions internals unknown; simplified residual message
    # passing consuming node/edge/cell scalar features + invariant vector norms.
    node_ref, edge_ref, src_col, dst_col, dst_row = data
    (out_ref,) = outs

    node = node_ref[...]
    h = node[:, :H]
    chi = node[:, H:H + CHI * 3]
    c_nodes = node[:, H + CHI * 3:H + CHI * 3 + CH]
    rho_nodes = node[:, H + CHI * 3 + CH:]
    edge = edge_ref[...]
    e = edge[:, :EH]
    xi_inv = edge[:, EH:]

    # masks built once, reused by every layer
    m_src = _onehot_rows(src_col, N)                                  # (E,N)
    m_dst = _onehot_rows(dst_col, N)
    m_scat = _onehot_cols(dst_row, N)                                 # (N,E)
    cnt = jnp.maximum(jnp.sum(m_scat, axis=1, keepdims=True), 1.0)

    for l in range(NUM_LAYERS):
        # message MLP: split-weight form (no (E,80) concat); node-side dense
        # matmuls hoisted before the edge gather
        pa = _mm(h, w['msg_wa'][l])
        pb = _mm(h, w['msg_wb'][l])
        m_hid = _silu(_mmask(m_src, pa) + _mmask(m_dst, pb)
                      + _mm(e, w['msg_wc'][l]) + _mm(xi_inv, w['msg_wd'][l])
                      + w['msg_b1'][l])
        msg = _silu(_mm(m_hid, w['msg_w2'][l]) + w['msg_b2'][l])      # (E,32)
        agg = _mmask(m_scat, msg) / cnt                               # scatter-mean -> nodes

        u_hid = _silu(_mm(h, w['upd_wa'][l]) + _mm(agg, w['upd_wb'][l])
                      + _mm(c_nodes, w['upd_wc'][l]) + _mm(rho_nodes, w['upd_wd'][l])
                      + w['upd_b1'][l])
        h = h + _silu(_mm(u_hid, w['upd_w2'][l]) + w['upd_b2'][l])
        chi = chi + _mm(chi, w['chi_k'][l])                           # equivariant channel mix

    out_ref[...] = jnp.concatenate([h, chi], axis=-1)                 # (N,44)


# ------------------------------------------------------------------ stage 3: projection + readout

def _project_body(data, w, outs, *, G):
    node_ref, batch_row = data
    node_out, graph_out = outs

    nd = node_ref[...]
    h = nd[:, :H]
    chi = nd[:, H:]

    # GCPLayerNorm: standard LN on scalars, RMS-style norm over vector channels
    mu = jnp.mean(h, axis=-1, keepdims=True)
    var = jnp.mean((h - mu) ** 2, axis=-1, keepdims=True)
    h_ln = (h - mu) * jax.lax.rsqrt(var + 1e-5) * w['ln_g'][...] + w['ln_b'][...]

    chan_sq = jnp.concatenate(
        [jnp.sum(chi[:, 3 * v:3 * v + 3] ** 2, axis=-1, keepdims=True) for v in range(CHI)],
        axis=-1)                                                       # (N,4)
    scale = jax.lax.rsqrt(jnp.mean(chan_sq, axis=-1, keepdims=True) + EPS)
    # TODO(synk): GCP's frame-based scalarization replaced by rotation-invariant
    # channel norms of the normalized vector features.
    chi_norms = jnp.sqrt(chan_sq * (scale ** 2) + EPS)                 # (N,4)

    node_emb = _silu(_mm(h_ln, w['gcp_wh']) + _mm(chi_norms, w['gcp_wc'])
                     + w['gcp_b'][...])                                # (N,32)
    node_out[...] = node_emb

    # readout: mean pooling over graphs (TODO(synk): module_cfg.pool assumed 'mean')
    m_gb = _onehot_cols(batch_row, G)
    cnt = jnp.maximum(jnp.sum(m_gb, axis=1, keepdims=True), 1.0)
    graph_out[...] = _mmask(m_gb, node_emb) / cnt


# ------------------------------------------------------------------ parameters

def init_params(key):
    ks = iter(jax.random.split(key, 64))

    def lin(din, dout):
        kw, kb = jax.random.split(next(ks))
        wgt = jax.random.normal(kw, (din, dout), F32) / jnp.sqrt(float(din))
        bia = 0.01 * jax.random.normal(kb, (dout,), F32)
        return wgt, bia

    def add_mlp2(dest, name, din, dh, dout):
        w1, b1 = lin(din, dh)
        w2, b2 = lin(dh, dout)
        dest[name + '_w1'] = w1.astype(BF16)
        dest[name + '_b1'] = b1.reshape(1, -1)
        dest[name + '_w2'] = w2.astype(BF16)
        dest[name + '_b2'] = b2.reshape(1, -1)

    def vec_kron(din, dout):
        wv = jax.random.normal(next(ks), (din, dout), F32) / jnp.sqrt(float(din))
        return jnp.kron(wv, jnp.eye(3, dtype=F32)).astype(BF16)

    eye3 = jnp.eye(3, dtype=F32)

    # ---- stage 1 (backbone encoders + TPP + sse_* blocks) ----
    embed = {}
    bh_w1, bh_b1 = lin(H_IN, H)
    bs_w1, bs_b1 = lin(H_IN, H)
    embed['bbsh_w1'] = jnp.concatenate([bh_w1, bs_w1], axis=1).astype(BF16)    # fused (16,64)
    embed['bbsh_b1'] = jnp.concatenate([bh_b1, bs_b1]).reshape(1, -1)
    bh_w2, bh_b2 = lin(H, H)
    embed['bbh_w2'] = bh_w2.astype(BF16); embed['bbh_b2'] = bh_b2.reshape(1, -1)
    bs_w2, bs_b2 = lin(H, H)
    embed['bbs_w2'] = bs_w2.astype(BF16); embed['bbs_b2'] = bs_b2.reshape(1, -1)
    embed['bbchi_k'] = vec_kron(CHI_IN, CHI)                                   # (6,12)
    be_w1, be_b1 = lin(E_IN, EH)                                               # split over [x_src|x_dst]
    embed['bbe_w1a'] = be_w1[:H_IN].astype(BF16)
    embed['bbe_w1b'] = be_w1[H_IN:].astype(BF16)
    embed['bbe_b1'] = be_b1.reshape(1, -1)
    be_w2, be_b2 = lin(EH, EH)
    embed['bbe_w2'] = be_w2.astype(BF16); embed['bbe_b2'] = be_b2.reshape(1, -1)
    embed['bbxi_k'] = vec_kron(XI_IN, XIH)                                     # (3,6)
    add_mlp2(embed, 'tppc', C_IN, CH, CH)                                      # TPPEmbedding scalar
    embed['tppv_k'] = vec_kron(RHO_IN, RHO)                                    # TPPEmbedding vector
    add_mlp2(embed, 'ssp', H, CH, CH)                                          # sse_scalar_pre_recon
    sd_w1, sd_b1 = lin(CH * 2, CH)                                             # sse_scalar_down (split)
    embed['ssd_w1a'] = sd_w1[:CH].astype(BF16)
    embed['ssd_w1b'] = sd_w1[CH:].astype(BF16)
    embed['ssd_b1'] = sd_b1.reshape(1, -1)
    sd_w2, sd_b2 = lin(CH, CH)
    embed['ssd_w2'] = sd_w2.astype(BF16); embed['ssd_b2'] = sd_b2.reshape(1, -1)
    add_mlp2(embed, 'svp', H, RHO * 3, RHO * 3)                                # sse_vec_pre_recon
    vd_w1, vd_b1 = lin(RHO * 2, RHO)                                           # sse_vec_down (split, kron)
    vd_w2, vd_b2 = lin(RHO, RHO)
    embed['svd_w1a'] = jnp.kron(vd_w1[:RHO], eye3).astype(BF16)
    embed['svd_w1b'] = jnp.kron(vd_w1[RHO:], eye3).astype(BF16)
    embed['svd_b1'] = jnp.repeat(vd_b1, 3).reshape(1, -1)
    embed['svd_w2'] = jnp.kron(vd_w2, eye3).astype(BF16)
    embed['svd_b2'] = jnp.repeat(vd_b2, 3).reshape(1, -1)
    # pr_vec_pre_recon / pr_vec_post_recon exist in __init__ but are unused in
    # forward -> intentionally not materialized (dead-compute removal).

    # ---- stage 2 (interaction layers; weights stacked along a leading layer axis) ----
    msg_parts = {'wa': [], 'wb': [], 'wc': [], 'wd': [], 'b1': [], 'w2': [], 'b2': []}
    upd_parts = {'wa': [], 'wb': [], 'wc': [], 'wd': [], 'b1': [], 'w2': [], 'b2': []}
    chi_ks = []
    msg_in = H + H + EH + XIH
    upd_in = H + H + CH + RHO
    for _ in range(NUM_LAYERS):
        w1, b1 = lin(msg_in, H)
        w2, b2 = lin(H, H)
        msg_parts['wa'].append(w1[:H]); msg_parts['wb'].append(w1[H:2 * H])
        msg_parts['wc'].append(w1[2 * H:2 * H + EH]); msg_parts['wd'].append(w1[2 * H + EH:])
        msg_parts['b1'].append(b1.reshape(1, -1))
        msg_parts['w2'].append(w2); msg_parts['b2'].append(b2.reshape(1, -1))
        w1, b1 = lin(upd_in, H)
        w2, b2 = lin(H, H)
        upd_parts['wa'].append(w1[:H]); upd_parts['wb'].append(w1[H:2 * H])
        upd_parts['wc'].append(w1[2 * H:2 * H + CH]); upd_parts['wd'].append(w1[2 * H + CH:])
        upd_parts['b1'].append(b1.reshape(1, -1))
        upd_parts['w2'].append(w2); upd_parts['b2'].append(b2.reshape(1, -1))
        cm = 0.1 * jax.random.normal(next(ks), (CHI, CHI), F32)
        chi_ks.append(jnp.kron(cm, eye3))
    layers = {}
    for prefix, parts in (('msg', msg_parts), ('upd', upd_parts)):
        for k, vs in parts.items():
            arr = jnp.stack(vs)
            layers[prefix + '_' + k] = arr.astype(BF16) if k[0] == 'w' else arr
    layers['chi_k'] = jnp.stack(chi_ks).astype(BF16)

    # ---- stage 3 (GCPLayerNorm + GCP scalar projection) ----
    project = {'ln_g': jnp.ones((1, H), F32), 'ln_b': jnp.zeros((1, H), F32)}
    gw, gb = lin(H + CHI, H)
    project['gcp_wh'] = gw[:H].astype(BF16)
    project['gcp_wc'] = gw[H:].astype(BF16)
    project['gcp_b'] = gb.reshape(1, -1)

    return {'embed': embed, 'layers': layers, 'project': project}


# ------------------------------------------------------------------ forward

def topotein_forward(p, x, pos, edge_index, batch, node_to_sse, num_graphs, num_cells):
    N = x.shape[0]
    E = edge_index.shape[1]
    C = int(num_cells)
    G = int(num_graphs)
    i32 = jnp.int32
    src, dst = edge_index[0], edge_index[1]

    # raw rank-0 vector features (neighbor displacements), flattened channel-major
    chi_raw = jnp.concatenate([jnp.roll(pos, -1, axis=0) - pos,
                               pos - jnp.roll(pos, 1, axis=0)], axis=-1)       # (N,6)

    nodes_per_cell = N // C
    first = jnp.arange(C, dtype=i32) * nodes_per_cell
    last = first + (nodes_per_cell - 1)
    cell_batch = batch[first]

    data1 = [
        x.astype(F32), pos.astype(F32), chi_raw.astype(F32),
        batch.reshape(1, N).astype(i32), batch.reshape(N, 1).astype(i32),
        node_to_sse.reshape(1, N).astype(i32), node_to_sse.reshape(N, 1).astype(i32),
        src.reshape(E, 1).astype(i32), dst.reshape(E, 1).astype(i32),
        cell_batch.reshape(C, 1).astype(i32),
        first.reshape(C, 1), last.reshape(C, 1),
    ]
    node_slab, edge_slab = _call_stage(
        functools.partial(_embed_body, N=N, C=C, G=G),
        data1, p['embed'],
        [jax.ShapeDtypeStruct((N, NODE_SLAB), F32),
         jax.ShapeDtypeStruct((E, EDGE_SLAB), F32)])

    data2 = [node_slab, edge_slab,
             src.reshape(E, 1).astype(i32), dst.reshape(E, 1).astype(i32),
             dst.reshape(1, E).astype(i32)]
    (node_hchi,) = _call_stage(
        functools.partial(_layers_body, N=N),
        data2, p['layers'],
        [jax.ShapeDtypeStruct((N, NODE_HCHI), F32)])

    data3 = [node_hchi, batch.reshape(1, N).astype(i32)]
    node_embedding, graph_embedding = _call_stage(
        functools.partial(_project_body, G=G),
        data3, p['project'],
        [jax.ShapeDtypeStruct((N, H), F32),
         jax.ShapeDtypeStruct((G, H), F32)])

    return {'node_embedding': node_embedding, 'graph_embedding': graph_embedding}


# ------------------------------------------------------------------ main

if __name__ == "__main__":
    key = jax.random.PRNGKey(0)
    G, N, C = 2, 16, 4
    nodes_per_graph = N // G
    nodes_per_cell = N // C

    k_pos, k_x = jax.random.split(key)
    pos = jax.random.normal(k_pos, (N, 3), F32)
    x = jax.random.normal(k_x, (N, H_IN), F32)
    batch = jnp.repeat(jnp.arange(G, dtype=jnp.int32), nodes_per_graph)        # (N,)
    node_to_sse = jnp.repeat(jnp.arange(C, dtype=jnp.int32), nodes_per_cell)   # batch.N0_2

    # bidirectional chain edges within each graph -> E = 2N = 32
    idx = jnp.arange(N, dtype=jnp.int32)
    nxt = jnp.where((idx + 1) % nodes_per_graph == 0, idx - (nodes_per_graph - 1), idx + 1)
    src = jnp.concatenate([idx, nxt])
    dst = jnp.concatenate([nxt, idx])
    edge_index = jnp.stack([src, dst], axis=0)                                 # (2,32)

    params = init_params(jax.random.PRNGKey(42))
    fwd = jax.jit(topotein_forward, static_argnums=(6, 7))
    out = fwd(params, x, pos, edge_index, batch, node_to_sse, G, C)
    jax.block_until_ready(out)

    assert out['node_embedding'].shape == (N, H)
    assert out['graph_embedding'].shape == (G, H)
    assert bool(jnp.all(jnp.isfinite(out['node_embedding'])))
    assert bool(jnp.all(jnp.isfinite(out['graph_embedding'])))
    print("KERNEL_OK")
</pallas_src>

<mosaic_0001>
module attributes {stable_mosaic.version = 11 : i64} {
  func.func @kernel(%arg0: i32, %arg1: memref<16x44xf32, #tpu.memory_space<vmem>>, %arg2: memref<1x16xi32, #tpu.memory_space<vmem>>, %arg3: memref<1x32xf32, #tpu.memory_space<vmem>>, %arg4: memref<4x32xbf16, #tpu.memory_space<vmem>>, %arg5: memref<32x32xbf16, #tpu.memory_space<vmem>>, %arg6: memref<1x32xf32, #tpu.memory_space<vmem>>, %arg7: memref<1x32xf32, #tpu.memory_space<vmem>>, %arg8: memref<16x32xf32, #tpu.memory_space<vmem>>, %arg9: memref<2x32xf32, #tpu.memory_space<vmem>>) attributes {dimension_semantics = [#tpu.dimension_semantics<arbitrary>], iteration_bounds = array<i64: 1>, scalar_prefetch = 0 : i64, scratch_operands = 0 : i64, tpu.core_type = #tpu.core_type<tc>, window_params = [{pipeline_mode = #tpu.pipeline_mode<synchronous>, transform_indices = @transform_0, window_bounds = array<i64: 16, 44>}, {pipeline_mode = #tpu.pipeline_mode<synchronous>, transform_indices = @transform_1, window_bounds = array<i64: 1, 16>}, {pipeline_mode = #tpu.pipeline_mode<synchronous>, transform_indices = @transform_2, window_bounds = array<i64: 1, 32>}, {pipeline_mode = #tpu.pipeline_mode<synchronous>, transform_indices = @transform_3, window_bounds = array<i64: 4, 32>}, {pipeline_mode = #tpu.pipeline_mode<synchronous>, transform_indices = @transform_4, window_bounds = array<i64: 32, 32>}, {pipeline_mode = #tpu.pipeline_mode<synchronous>, transform_indices = @transform_5, window_bounds = array<i64: 1, 32>}, {pipeline_mode = #tpu.pipeline_mode<synchronous>, transform_indices = @transform_6, window_bounds = array<i64: 1, 32>}, {pipeline_mode = #tpu.pipeline_mode<synchronous>, transform_indices = @transform_7, window_bounds = array<i64: 16, 32>}, {pipeline_mode = #tpu.pipeline_mode<synchronous>, transform_indices = @transform_8, window_bounds = array<i64: 2, 32>}]} {
    %c0 = arith.constant 0 : index
    %c0_0 = arith.constant 0 : index
    %0 = vector.load %arg1[%c0, %c0_0] : memref<16x44xf32, #tpu.memory_space<vmem>>, vector<16x44xf32>
    %1 = vector.extract_strided_slice %0 {offsets = [0, 0], sizes = [16, 32], strides = [1, 1]} : vector<16x44xf32> to vector<16x32xf32>
    %2 = vector.extract_strided_slice %0 {offsets = [0, 32], sizes = [16, 12], strides = [1, 1]} : vector<16x44xf32> to vector<16x12xf32>
    %cst = arith.constant dense<0.000000e+00> : vector<16xf32>
    %3 = vector.multi_reduction <add>, %1, %cst [1] : vector<16x32xf32> to vector<16xf32>
    %4 = vector.shape_cast %3 : vector<16xf32> to vector<16x1xf32>
    %cst_1 = arith.constant 3.200000e+01 : f32
    %5 = vector.broadcast %cst_1 : f32 to vector<16x1xf32>
    %6 = arith.divf %4, %5 : vector<16x1xf32>
    %7 = vector.broadcast %6 : vector<16x1xf32> to vector<16x32xf32>
    %8 = arith.subf %1, %7 : vector<16x32xf32>
    %9 = arith.mulf %8, %8 : vector<16x32xf32>
    %cst_2 = arith.constant dense<0.000000e+00> : vector<16xf32>
    %10 = vector.multi_reduction <add>, %9, %cst_2 [1] : vector<16x32xf32> to vector<16xf32>
    %11 = vector.shape_cast %10 : vector<16xf32> to vector<16x1xf32>
    %cst_3 = arith.constant 3.200000e+01 : f32
    %12 = vector.broadcast %cst_3 : f32 to vector<16x1xf32>
    %13 = arith.divf %11, %12 : vector<16x1xf32>
    %14 = vector.broadcast %6 : vector<16x1xf32> to vector<16x32xf32>
    %15 = arith.subf %1, %14 : vector<16x32xf32>
    %cst_4 = arith.constant 9.99999974E-6 : f32
    %16 = vector.broadcast %cst_4 : f32 to vector<16x1xf32>
    %17 = arith.addf %13, %16 : vector<16x1xf32>
    %18 = math.rsqrt %17 : vector<16x1xf32>
    %19 = vector.broadcast %18 : vector<16x1xf32> to vector<16x32xf32>
    %20 = arith.mulf %15, %19 : vector<16x32xf32>
    %c0_5 = arith.constant 0 : index
    %c0_6 = arith.constant 0 : index
    %21 = vector.load %arg7[%c0_5, %c0_6] : memref<1x32xf32, #tpu.memory_space<vmem>>, vector<1x32xf32>
    %22 = vector.broadcast %21 : vector<1x32xf32> to vector<16x32xf32>
    %23 = arith.mulf %20, %22 : vector<16x32xf32>
    %c0_7 = arith.constant 0 : index
    %c0_8 = arith.constant 0 : index
    %24 = vector.load %arg6[%c0_7, %c0_8] : memref<1x32xf32, #tpu.memory_space<vmem>>, vector<1x32xf32>
    %25 = vector.broadcast %24 : vector<1x32xf32> to vector<16x32xf32>
    %26 = arith.addf %23, %25 : vector<16x32xf32>
    %27 = vector.extract_strided_slice %2 {offsets = [0, 0], sizes = [16, 3], strides = [1, 1]} : vector<16x12xf32> to vector<16x3xf32>
    %28 = arith.mulf %27, %27 : vector<16x3xf32>
    %cst_9 = arith.constant dense<0.000000e+00> : vector<16xf32>
    %29 = vector.multi_reduction <add>, %28, %cst_9 [1] : vector<16x3xf32> to vector<16xf32>
    %30 = vector.shape_cast %29 : vector<16xf32> to vector<16x1xf32>
    %31 = vector.extract_strided_slice %2 {offsets = [0, 3], sizes = [16, 3], strides = [1, 1]} : vector<16x12xf32> to vector<16x3xf32>
    %32 = arith.mulf %31, %31 : vector<16x3xf32>
    %cst_10 = arith.constant dense<0.000000e+00> : vector<16xf32>
    %33 = vector.multi_reduction <add>, %32, %cst_10 [1] : vector<16x3xf32> to vector<16xf32>
    %34 = vector.shape_cast %33 : vector<16xf32> to vector<16x1xf32>
    %35 = vector.extract_strided_slice %2 {offsets = [0, 6], sizes = [16, 3], strides = [1, 1]} : vector<16x12xf32> to vector<16x3xf32>
    %36 = arith.mulf %35, %35 : vector<16x3xf32>
    %cst_11 = arith.constant dense<0.000000e+00> : vector<16xf32>
    %37 = vector.multi_reduction <add>, %36, %cst_11 [1] : vector<16x3xf32> to vector<16xf32>
    %38 = vector.shape_cast %37 : vector<16xf32> to vector<16x1xf32>
    %39 = vector.extract_strided_slice %2 {offsets = [0, 9], sizes = [16, 3], strides = [1, 1]} : vector<16x12xf32> to vector<16x3xf32>
    %40 = arith.mulf %39, %39 : vector<16x3xf32>
    %cst_12 = arith.constant dense<0.000000e+00> : vector<16xf32>
    %41 = vector.multi_reduction <add>, %40, %cst_12 [1] : vector<16x3xf32> to vector<16xf32>
    %42 = vector.shape_cast %41 : vector<16xf32> to vector<16x1xf32>
    %43 = tpu.concatenate %30, %34, %38, %42 in 1 : vector<16x1xf32>, vector<16x1xf32>, vector<16x1xf32>, vector<16x1xf32> -> vector<16x4xf32>
    %cst_13 = arith.constant dense<0.000000e+00> : vector<16xf32>
    %44 = vector.multi_reduction <add>, %43, %cst_13 [1] : vector<16x4xf32> to vector<16xf32>
    %45 = vector.shape_cast %44 : vector<16xf32> to vector<16x1xf32>
    %cst_14 = arith.constant 4.000000e+00 : f32
    %46 = vector.broadcast %cst_14 : f32 to vector<16x1xf32>
    %47 = arith.divf %45, %46 : vector<16x1xf32>
    %cst_15 = arith.constant 9.99999993E-9 : f32
    %48 = vector.broadcast %cst_15 : f32 to vector<16x1xf32>
    %49 = arith.addf %47, %48 : vector<16x1xf32>
    %50 = math.rsqrt %49 : vector<16x1xf32>
    %51 = arith.mulf %50, %50 : vector<16x1xf32>
    %52 = vector.broadcast %51 : vector<16x1xf32> to vector<16x4xf32>
    %53 = arith.mulf %43, %52 : vector<16x4xf32>
    %cst_16 = arith.constant 9.99999993E-9 : f32
    %54 = vector.broadcast %cst_16 : f32 to vector<16x4xf32>
    %55 = arith.addf %53, %54 : vector<16x4xf32>
    %56 = math.sqrt %55 : vector<16x4xf32>
    %57 = arith.truncf %26 : vector<16x32xf32> to vector<16x32xbf16>
    %c0_17 = arith.constant 0 : index
    %c0_18 = arith.constant 0 : index
    %58 = vector.load %arg5[%c0_17, %c0_18] : memref<32x32xbf16, #tpu.memory_space<vmem>>, vector<32x32xbf16>
    %cst_19 = arith.constant dense<0.000000e+00> : vector<16x32xf32>
    %59 = tpu.matmul %57, %58, %cst_19 {dimension_numbers = #tpu.dot_dimension_numbers<[1], [0], [0], [1], [0, 0, 1, 1], [], []>} : vector<16x32xbf16>, vector<32x32xbf16>, vector<16x32xf32> -> vector<16x32xf32>
    %60 = arith.truncf %56 : vector<16x4xf32> to vector<16x4xbf16>
    %c0_20 = arith.constant 0 : index
    %c0_21 = arith.constant 0 : index
    %61 = vector.load %arg4[%c0_20, %c0_21] : memref<4x32xbf16, #tpu.memory_space<vmem>>, vector<4x32xbf16>
    %cst_22 = arith.constant dense<0.000000e+00> : vector<16x32xf32>
    %62 = tpu.matmul %60, %61, %cst_22 {dimension_numbers = #tpu.dot_dimension_numbers<[1], [0], [0], [1], [0, 0, 1, 1], [], []>} : vector<16x4xbf16>, vector<4x32xbf16>, vector<16x32xf32> -> vector<16x32xf32>
    %63 = arith.addf %59, %62 : vector<16x32xf32>
    %c0_23 = arith.constant 0 : index
    %c0_24 = arith.constant 0 : index
    %64 = vector.load %arg3[%c0_23, %c0_24] : memref<1x32xf32, #tpu.memory_space<vmem>>, vector<1x32xf32>
    %65 = vector.broadcast %64 : vector<1x32xf32> to vector<16x32xf32>
    %66 = arith.addf %63, %65 : vector<16x32xf32>
    %67 = arith.negf %66 : vector<16x32xf32>
    %68 = math.exp %67 : vector<16x32xf32>
    %cst_25 = arith.constant 1.000000e+00 : f32
    %69 = vector.broadcast %cst_25 : f32 to vector<16x32xf32>
    %70 = arith.addf %69, %68 : vector<16x32xf32>
    %71 = arith.divf %69, %70 : vector<16x32xf32>
    %72 = arith.mulf %66, %71 : vector<16x32xf32>
    %c0_26 = arith.constant 0 : index
    %c0_27 = arith.constant 0 : index
    %73 = vector.load %arg8[%c0_26, %c0_27] : memref<16x32xf32, #tpu.memory_space<vmem>>, vector<16x32xf32>
    tpu.vector_store %arg8[%c0_26, %c0_27], %72 {strides = array<i32>} : memref<16x32xf32, #tpu.memory_space<vmem>>, vector<16x32xf32>,
    %74 = tpu.iota {dimensions = array<i32: 0>} : vector<2x16xi32>
    %c0_28 = arith.constant 0 : index
    %c0_29 = arith.constant 0 : index
    %75 = vector.load %arg2[%c0_28, %c0_29] : memref<1x16xi32, #tpu.memory_space<vmem>>, vector<1x16xi32>
    %76 = vector.broadcast %75 : vector<1x16xi32> to vector<2x16xi32>
    %77 = arith.cmpi eq, %74, %76 : vector<2x16xi32>
    %78 = arith.extui %77 : vector<2x16xi1> to vector<2x16xi32>
    %79 = arith.sitofp %78 : vector<2x16xi32> to vector<2x16xf32>
    %cst_30 = arith.constant dense<0.000000e+00> : vector<2xf32>
    %80 = vector.multi_reduction <add>, %79, %cst_30 [1] : vector<2x16xf32> to vector<2xf32>
    %81 = vector.shape_cast %80 : vector<2xf32> to vector<2x1xf32>
    %cst_31 = arith.constant 1.000000e+00 : f32
    %82 = vector.broadcast %cst_31 : f32 to vector<2x1xf32>
    %83 = arith.maximumf %81, %82 : vector<2x1xf32>
    %cst_32 = arith.constant dense<0.000000e+00> : vector<2x32xf32>
    %84 = tpu.matmul %79, %72, %cst_32 {dimension_numbers = #tpu.dot_dimension_numbers<[1], [0], [0], [1], [0, 0, 1, 1], [], []>} : vector<2x16xf32>, vector<16x32xf32>, vector<2x32xf32> -> vector<2x32xf32>
    %85 = vector.broadcast %83 : vector<2x1xf32> to vector<2x32xf32>
    %86 = arith.divf %84, %85 : vector<2x32xf32>
    %c0_33 = arith.constant 0 : index
    %c0_34 = arith.constant 0 : index
    %87 = vector.load %arg9[%c0_33, %c0_34] : memref<2x32xf32, #tpu.memory_space<vmem>>, vector<2x32xf32>
    tpu.vector_store %arg9[%c0_33, %c0_34], %86 {strides = array<i32>} : memref<2x32xf32, #tpu.memory_space<vmem>>, vector<2x32xf32>,
    return
  }
  func.func @transform_0(%arg0: i32) -> (i32, i32) {
    %c0_i32 = arith.constant 0 : i32
    %c0_i32_0 = arith.constant 0 : i32
    %c0_i32_1 = arith.constant 0 : i32
    return %c0_i32, %c0_i32_0 : i32, i32
  }
  func.func @transform_1(%arg0: i32) -> (i32, i32) {
    %c0_i32 = arith.constant 0 : i32
    %c0_i32_0 = arith.constant 0 : i32
    %c0_i32_1 = arith.constant 0 : i32
    return %c0_i32, %c0_i32_0 : i32, i32
  }
  func.func @transform_2(%arg0: i32) -> (i32, i32) {
    %c0_i32 = arith.constant 0 : i32
    %c0_i32_0 = arith.constant 0 : i32
    %c0_i32_1 = arith.constant 0 : i32
    return %c0_i32, %c0_i32_0 : i32, i32
  }
  func.func @transform_3(%arg0: i32) -> (i32, i32) {
    %c0_i32 = arith.constant 0 : i32
    %c0_i32_0 = arith.constant 0 : i32
    %c0_i32_1 = arith.constant 0 : i32
    return %c0_i32, %c0_i32_0 : i32, i32
  }
  func.func @transform_4(%arg0: i32) -> (i32, i32) {
    %c0_i32 = arith.constant 0 : i32
    %c0_i32_0 = arith.constant 0 : i32
    %c0_i32_1 = arith.constant 0 : i32
    return %c0_i32, %c0_i32_0 : i32, i32
  }
  func.func @transform_5(%arg0: i32) -> (i32, i32) {
    %c0_i32 = arith.constant 0 : i32
    %c0_i32_0 = arith.constant 0 : i32
    %c0_i32_1 = arith.constant 0 : i32
    return %c0_i32, %c0_i32_0 : i32, i32
  }
  func.func @transform_6(%arg0: i32) -> (i32, i32) {
    %c0_i32 = arith.constant 0 : i32
    %c0_i32_0 = arith.constant 0 : i32
    %c0_i32_1 = arith.constant 0 : i32
    return %c0_i32, %c0_i32_0 : i32, i32
  }
  func.func @transform_7(%arg0: i32) -> (i32, i32) {
    %c0_i32 = arith.constant 0 : i32
    %c0_i32_0 = arith.constant 0 : i32
    %c0_i32_1 = arith.constant 0 : i32
    return %c0_i32, %c0_i32_0 : i32, i32
  }
  func.func @transform_8(%arg0: i32) -> (i32, i32) {
    %c0_i32 = arith.constant 0 : i32
    %c0_i32_0 = arith.constant 0 : i32
    %c0_i32_1 = arith.constant 0 : i32
    return %c0_i32, %c0_i32_0 : i32, i32
  }
}

module attributes {stable_mosaic.version = 11 : i64} {
  func.func @kernel(%arg0: i32, %arg1: memref<16x16xf32, #tpu.memory_space<vmem>>, %arg2: memref<16x3xf32, #tpu.memory_space<vmem>>, %arg3: memref<16x6xf32, #tpu.memory_space<vmem>>, %arg4: memref<1x16xi32, #tpu.memory_space<vmem>>, %arg5: memref<16x1xi32, #tpu.memory_space<vmem>>, %arg6: memref<1x16xi32, #tpu.memory_space<vmem>>, %arg7: memref<16x1xi32, #tpu.memory_space<vmem>>, %arg8: memref<32x1xi32, #tpu.memory_space<vmem>>, %arg9: memref<32x1xi32, #tpu.memory_space<vmem>>, %arg10: memref<4x1xi32, #tpu.memory_space<vmem>>, %arg11: memref<4x1xi32, #tpu.memory_space<vmem>>, %arg12: memref<4x1xi32, #tpu.memory_space<vmem>>, %arg13: memref<6x12xbf16, #tpu.memory_space<vmem>>, %arg14: memref<1x16xf32, #tpu.memory_space<vmem>>, %arg15: memref<1x16xf32, #tpu.memory_space<vmem>>, %arg16: memref<16x16xbf16, #tpu.memory_space<vmem>>, %arg17: memref<16x16xbf16, #tpu.memory_space<vmem>>, %arg18: memref<16x16xbf16, #tpu.memory_space<vmem>>, %arg19: memref<1x32xf32, #tpu.memory_space<vmem>>, %arg20: memref<32x32xbf16, #tpu.memory_space<vmem>>, %arg21: memref<1x32xf32, #tpu.memory_space<vmem>>, %arg22: memref<32x32xbf16, #tpu.memory_space<vmem>>, %arg23: memref<1x64xf32, #tpu.memory_space<vmem>>, %arg24: memref<16x64xbf16, #tpu.memory_space<vmem>>, %arg25: memref<3x6xbf16, #tpu.memory_space<vmem>>, %arg26: memref<1x16xf32, #tpu.memory_space<vmem>>, %arg27: memref<1x16xf32, #tpu.memory_space<vmem>>, %arg28: memref<16x16xbf16, #tpu.memory_space<vmem>>, %arg29: memref<16x16xbf16, #tpu.memory_space<vmem>>, %arg30: memref<16x16xbf16, #tpu.memory_space<vmem>>, %arg31: memref<1x16xf32, #tpu.memory_space<vmem>>, %arg32: memref<1x16xf32, #tpu.memory_space<vmem>>, %arg33: memref<32x16xbf16, #tpu.memory_space<vmem>>, %arg34: memref<16x16xbf16, #tpu.memory_space<vmem>>, %arg35: memref<1x12xf32, #tpu.memory_space<vmem>>, %arg36: memref<1x12xf32, #tpu.memory_space<vmem>>, %arg37: memref<12x12xbf16, #tpu.memory_space<vmem>>, %arg38: memref<12x12xbf16, #tpu.memory_space<vmem>>, %arg39: memref<12x12xbf16, #tpu.memory_space<vmem>>, %arg40: memref<1x12xf32, #tpu.memory_space<vmem>>, %arg41: memref<1x12xf32, #tpu.memory_space<vmem>>, %arg42: memref<32x12xbf16, #tpu.memory_space<vmem>>, %arg43: memref<12x12xbf16, #tpu.memory_space<vmem>>, %arg44: memref<1x16xf32, #tpu.memory_space<vmem>>, %arg45: memref<1x16xf32, #tpu.memory_space<vmem>>, %arg46: memref<16x16xbf16, #tpu.memory_space<vmem>>, %arg47: memref<16x16xbf16, #tpu.memory_space<vmem>>, %arg48: memref<6x12xbf16, #tpu.memory_space<vmem>>, %arg49: memref<16x64xf32, #tpu.memory_space<vmem>>, %arg50: memref<32x18xf32, #tpu.memory_space<vmem>>) attributes {dimension_semantics = [#tpu.dimension_semantics<arbitrary>], iteration_bounds = array<i64: 1>, scalar_prefetch = 0 : i64, scratch_operands = 0 : i64, tpu.core_type = #tpu.core_type<tc>, window_params = [{pipeline_mode = #tpu.pipeline_mode<synchronous>, transform_indices = @transform_0, window_bounds = array<i64: 16, 16>}, {pipeline_mode = #tpu.pipeline_mode<synchronous>, transform_indices = @transform_1, window_bounds = array<i64: 16, 3>}, {pipeline_mode = #tpu.pipeline_mode<synchronous>, transform_indices = @transform_2, window_bounds = array<i64: 16, 6>}, {pipeline_mode = #tpu.pipeline_mode<synchronous>, transform_indices = @transform_3, window_bounds = array<i64: 1, 16>}, {pipeline_mode = #tpu.pipeline_mode<synchronous>, transform_indices = @transform_4, window_bounds = array<i64: 16, 1>}, {pipeline_mode = #tpu.pipeline_mode<synchronous>, transform_indices = @transform_5, window_bounds = array<i64: 1, 16>}, {pipeline_mode = #tpu.pipeline_mode<synchronous>, transform_indices = @transform_6, window_bounds = array<i64: 16, 1>}, {pipeline_mode = #tpu.pipeline_mode<synchronous>, transform_indices = @transform_7, window_bounds = array<i64: 32, 1>}, {pipeline_mode = #tpu.pipeline_mode<synchronous>, transform_indices = @transform_8, window_bounds = array<i64: 32, 1>}, {pipeline_mode = #tpu.pipeline_mode<synchronous>, transform_indices = @transform_9, window_bounds = array<i64: 4, 1>}, {pipeline_mode = #tpu.pipeline_mode<synchronous>, transform_indices = @transform_10, window_bounds = array<i64: 4, 1>}, {pipeline_mode = #tpu.pipeline_mode<synchronous>, transform_indices = @transform_11, window_bounds = array<i64: 4, 1>}, {pipeline_mode = #tpu.pipeline_mode<synchronous>, transform_indices = @transform_12, window_bounds = array<i64: 6, 12>}, {pipeline_mode = #tpu.pipeline_mode<synchronous>, transform_indices = @transform_13, window_bounds = array<i64: 1, 16>}, {pipeline_mode = #tpu.pipeline_mode<synchronous>, transform_indices = @transform_14, window_bounds = array<i64: 1, 16>}, {pipeline_mode = #tpu.pipeline_mode<synchronous>, transform_indices = @transform_15, window_bounds = array<i64: 16, 16>}, {pipeline_mode = #tpu.pipeline_mode<synchronous>, transform_indices = @transform_16, window_bounds = array<i64: 16, 16>}, {pipeline_mode = #tpu.pipeline_mode<synchronous>, transform_indices = @transform_17, window_bounds = array<i64: 16, 16>}, {pipeline_mode = #tpu.pipeline_mode<synchronous>, transform_indices = @transform_18, window_bounds = array<i64: 1, 32>}, {pipeline_mode = #tpu.pipeline_mode<synchronous>, transform_indices = @transform_19, window_bounds = array<i64: 32, 32>}, {pipeline_mode = #tpu.pipeline_mode<synchronous>, transform_indices = @transform_20, window_bounds = array<i64: 1, 32>}, {pipeline_mode = #tpu.pipeline_mode<synchronous>, transform_indices = @transform_21, window_bounds = array<i64: 32, 32>}, {pipeline_mode = #tpu.pipeline_mode<synchronous>, transform_indices = @transform_22, window_bounds = array<i64: 1, 64>}, {pipeline_mode = #tpu.pipeline_mode<synchronous>, transform_indices = @transform_23, window_bounds = array<i64: 16, 64>}, {pipeline_mode = #tpu.pipeline_mode<synchronous>, transform_indices = @transform_24, window_bounds = array<i64: 3, 6>}, {pipeline_mode = #tpu.pipeline_mode<synchronous>, transform_indices = @transform_25, window_bounds = array<i64: 1, 16>}, {pipeline_mode = #tpu.pipeline_mode<synchronous>, transform_indices = @transform_26, window_bounds = array<i64: 1, 16>}, {pipeline_mode = #tpu.pipeline_mode<synchronous>, transform_indices = @transform_27, window_bounds = array<i64: 16, 16>}, {pipeline_mode = #tpu.pipeline_mode<synchronous>, transform_indices = @transform_28, window_bounds = array<i64: 16, 16>}, {pipeline_mode = #tpu.pipeline_mode<synchronous>, transform_indices = @transform_29, window_bounds = array<i64: 16, 16>}, {pipeline_mode = #tpu.pipeline_mode<synchronous>, transform_indices = @transform_30, window_bounds = array<i64: 1, 16>}, {pipeline_mode = #tpu.pipeline_mode<synchronous>, transform_indices = @transform_31, window_bounds = array<i64: 1, 16>}, {pipeline_mode = #tpu.pipeline_mode<synchronous>, transform_indices = @transform_32, window_bounds = array<i64: 32, 16>}, {pipeline_mode = #tpu.pipeline_mode<synchronous>, transform_indices = @transform_33, window_bounds = array<i64: 16, 16>}, {pipeline_mode = #tpu.pipeline_mode<synchronous>, transform_indices = @transform_34, window_bounds = array<i64: 1, 12>}, {pipeline_mode = #tpu.pipeline_mode<synchronous>, transform_indices = @transform_35, window_bounds = array<i64: 1, 12>}, {pipeline_mode = #tpu.pipeline_mode<synchronous>, transform_indices = @transform_36, window_bounds = array<i64: 12, 12>}, {pipeline_mode = #tpu.pipeline_mode<synchronous>, transform_indices = @transform_37, window_bounds = array<i64: 12, 12>}, {pipeline_mode = #tpu.pipeline_mode<synchronous>, transform_indices = @transform_38, window_bounds = array<i64: 12, 12>}, {pipeline_mode = #tpu.pipeline_mode<synchronous>, transform_indices = @transform_39, window_bounds = array<i64: 1, 12>}, {pipeline_mode = #tpu.pipeline_mode<synchronous>, transform_indices = @transform_40, window_bounds = array<i64: 1, 12>}, {pipeline_mode = #tpu.pipeline_mode<synchronous>, transform_indices = @transform_41, window_bounds = array<i64: 32, 12>}, {pipeline_mode = #tpu.pipeline_mode<synchronous>, transform_indices = @transform_42, window_bounds = array<i64: 12, 12>}, {pipeline_mode = #tpu.pipeline_mode<synchronous>, transform_indices = @transform_43, window_bounds = array<i64: 1, 16>}, {pipeline_mode = #tpu.pipeline_mode<synchronous>, transform_indices = @transform_44, window_bounds = array<i64: 1, 16>}, {pipeline_mode = #tpu.pipeline_mode<synchronous>, transform_indices = @transform_45, window_bounds = array<i64: 16, 16>}, {pipeline_mode = #tpu.pipeline_mode<synchronous>, transform_indices = @transform_46, window_bounds = array<i64: 16, 16>}, {pipeline_mode = #tpu.pipeline_mode<synchronous>, transform_indices = @transform_47, window_bounds = array<i64: 6, 12>}, {pipeline_mode = #tpu.pipeline_mode<synchronous>, transform_indices = @transform_48, window_bounds = array<i64: 16, 64>}, {pipeline_mode = #tpu.pipeline_mode<synchronous>, transform_indices = @transform_49, window_bounds = array<i64: 32, 18>}]} {
    %c0 = arith.constant 0 : index
    %c0_0 = arith.constant 0 : index
    %0 = vector.load %arg1[%c0, %c0_0] : memref<16x16xf32, #tpu.memory_space<vmem>>, vector<16x16xf32>
    %c0_1 = arith.constant 0 : index
    %c0_2 = arith.constant 0 : index
    %1 = vector.load %arg2[%c0_1, %c0_2] : memref<16x3xf32, #tpu.memory_space<vmem>>, vector<16x3xf32>
    %2 = tpu.iota {dimensions = array<i32: 0>} : vector<2x16xi32>
    %c0_3 = arith.constant 0 : index
    %c0_4 = arith.constant 0 : index
    %3 = vector.load %arg4[%c0_3, %c0_4] : memref<1x16xi32, #tpu.memory_space<vmem>>, vector<1x16xi32>
    %4 = vector.broadcast %3 : vector<1x16xi32> to vector<2x16xi32>
    %5 = arith.cmpi eq, %2, %4 : vector<2x16xi32>
    %6 = arith.extui %5 : vector<2x16xi1> to vector<2x16xi32>
    %7 = arith.sitofp %6 : vector<2x16xi32> to vector<2x16xf32>
    %8 = tpu.iota {dimensions = array<i32: 1>} : vector<16x2xi32>
    %c0_5 = arith.constant 0 : index
    %c0_6 = arith.constant 0 : index
    %9 = vector.load %arg5[%c0_5, %c0_6] : memref<16x1xi32, #tpu.memory_space<vmem>>, vector<16x1xi32>
    %10 = vector.broadcast %9 : vector<16x1xi32> to vector<16x2xi32>
    %11 = arith.cmpi eq, %8, %10 : vector<16x2xi32>
    %12 = arith.extui %11 : vector<16x2xi1> to vector<16x2xi32>
    %13 = arith.sitofp %12 : vector<16x2xi32> to vector<16x2xf32>
    %14 = tpu.iota {dimensions = array<i32: 0>} : vector<4x16xi32>
    %c0_7 = arith.constant 0 : index
    %c0_8 = arith.constant 0 : index
    %15 = vector.load %arg6[%c0_7, %c0_8] : memref<1x16xi32, #tpu.memory_space<vmem>>, vector<1x16xi32>
    %16 = vector.broadcast %15 : vector<1x16xi32> to vector<4x16xi32>
    %17 = arith.cmpi eq, %14, %16 : vector<4x16xi32>
    %18 = arith.extui %17 : vector<4x16xi1> to vector<4x16xi32>
    %19 = arith.sitofp %18 : vector<4x16xi32> to vector<4x16xf32>
    %20 = tpu.iota {dimensions = array<i32: 1>} : vector<16x4xi32>
    %c0_9 = arith.constant 0 : index
    %c0_10 = arith.constant 0 : index
    %21 = vector.load %arg7[%c0_9, %c0_10] : memref<16x1xi32, #tpu.memory_space<vmem>>, vector<16x1xi32>
    %22 = vector.broadcast %21 : vector<16x1xi32> to vector<16x4xi32>
    %23 = arith.cmpi eq, %20, %22 : vector<16x4xi32>
    %24 = arith.extui %23 : vector<16x4xi1> to vector<16x4xi32>
    %25 = arith.sitofp %24 : vector<16x4xi32> to vector<16x4xf32>
    %26 = tpu.iota {dimensions = array<i32: 1>} : vector<32x16xi32>
    %c0_11 = arith.constant 0 : index
    %c0_12 = arith.constant 0 : index
    %27 = vector.load %arg8[%c0_11, %c0_12] : memref<32x1xi32, #tpu.memory_space<vmem>>, vector<32x1xi32>
    %28 = vector.broadcast %27 : vector<32x1xi32> to vector<32x16xi32>
    %29 = arith.cmpi eq, %26, %28 : vector<32x16xi32>
    %30 = arith.extui %29 : vector<32x16xi1> to vector<32x16xi32>
    %31 = arith.sitofp %30 : vector<32x16xi32> to vector<32x16xf32>
    %32 = tpu.iota {dimensions = array<i32: 1>} : vector<32x16xi32>
    %c0_13 = arith.constant 0 : index
    %c0_14 = arith.constant 0 : index
    %33 = vector.load %arg9[%c0_13, %c0_14] : memref<32x1xi32, #tpu.memory_space<vmem>>, vector<32x1xi32>
    %34 = vector.broadcast %33 : vector<32x1xi32> to vector<32x16xi32>
    %35 = arith.cmpi eq, %32, %34 : vector<32x16xi32>
    %36 = arith.extui %35 : vector<32x16xi1> to vector<32x16xi32>
    %37 = arith.sitofp %36 : vector<32x16xi32> to vector<32x16xf32>
    %38 = tpu.iota {dimensions = array<i32: 1>} : vector<4x2xi32>
    %c0_15 = arith.constant 0 : index
    %c0_16 = arith.constant 0 : index
    %39 = vector.load %arg10[%c0_15, %c0_16] : memref<4x1xi32, #tpu.memory_space<vmem>>, vector<4x1xi32>
    %40 = vector.broadcast %39 : vector<4x1xi32> to vector<4x2xi32>
    %41 = arith.cmpi eq, %38, %40 : vector<4x2xi32>
    %42 = arith.extui %41 : vector<4x2xi1> to vector<4x2xi32>
    %43 = arith.sitofp %42 : vector<4x2xi32> to vector<4x2xf32>
    %44 = tpu.iota {dimensions = array<i32: 1>} : vector<4x16xi32>
    %c0_17 = arith.constant 0 : index
    %c0_18 = arith.constant 0 : index
    %45 = vector.load %arg11[%c0_17, %c0_18] : memref<4x1xi32, #tpu.memory_space<vmem>>, vector<4x1xi32>
    %46 = vector.broadcast %45 : vector<4x1xi32> to vector<4x16xi32>
    %47 = arith.cmpi eq, %44, %46 : vector<4x16xi32>
    %48 = arith.extui %47 : vector<4x16xi1> to vector<4x16xi32>
    %49 = arith.sitofp %48 : vector<4x16xi32> to vector<4x16xf32>
    %50 = tpu.iota {dimensions = array<i32: 1>} : vector<4x16xi32>
    %c0_19 = arith.constant 0 : index
    %c0_20 = arith.constant 0 : index
    %51 = vector.load %arg12[%c0_19, %c0_20] : memref<4x1xi32, #tpu.memory_space<vmem>>, vector<4x1xi32>
    %52 = vector.broadcast %51 : vector<4x1xi32> to vector<4x16xi32>
    %53 = arith.cmpi eq, %50, %52 : vector<4x16xi32>
    %54 = arith.extui %53 : vector<4x16xi1> to vector<4x16xi32>
    %55 = arith.sitofp %54 : vector<4x16xi32> to vector<4x16xf32>
    %cst = arith.constant dense<0.000000e+00> : vector<2xf32>
    %56 = vector.multi_reduction <add>, %7, %cst [1] : vector<2x16xf32> to vector<2xf32>
    %57 = vector.shape_cast %56 : vector<2xf32> to vector<2x1xf32>
    %cst_21 = arith.constant 1.000000e+00 : f32
    %58 = vector.broadcast %cst_21 : f32 to vector<2x1xf32>
    %59 = arith.maximumf %57, %58 : vector<2x1xf32>
    %cst_22 = arith.constant dense<0.000000e+00> : vector<4xf32>
    %60 = vector.multi_reduction <add>, %19, %cst_22 [1] : vector<4x16xf32> to vector<4xf32>
    %61 = vector.shape_cast %60 : vector<4xf32> to vector<4x1xf32>
    %cst_23 = arith.constant 1.000000e+00 : f32
    %62 = vector.broadcast %cst_23 : f32 to vector<4x1xf32>
    %63 = arith.maximumf %61, %62 : vector<4x1xf32>
    %64 = arith.truncf %0 : vector<16x16xf32> to vector<16x16xbf16>
    %c0_24 = arith.constant 0 : index
    %c0_25 = arith.constant 0 : index
    %65 = vector.load %arg24[%c0_24, %c0_25] : memref<16x64xbf16, #tpu.memory_space<vmem>>, vector<16x64xbf16>
    %cst_26 = arith.constant dense<0.000000e+00> : vector<16x64xf32>
    %66 = tpu.matmul %64, %65, %cst_26 {dimension_numbers = #tpu.dot_dimension_numbers<[1], [0], [0], [1], [0, 0, 1, 1], [], []>} : vector<16x16xbf16>, vector<16x64xbf16>, vector<16x64xf32> -> vector<16x64xf32>
    %c0_27 = arith.constant 0 : index
    %c0_28 = arith.constant 0 : index
    %67 = vector.load %arg23[%c0_27, %c0_28] : memref<1x64xf32, #tpu.memory_space<vmem>>, vector<1x64xf32>
    %68 = vector.broadcast %67 : vector<1x64xf32> to vector<16x64xf32>
    %69 = arith.addf %66, %68 : vector<16x64xf32>
    %70 = arith.negf %69 : vector<16x64xf32>
    %71 = math.exp %70 : vector<16x64xf32>
    %cst_29 = arith.constant 1.000000e+00 : f32
    %72 = vector.broadcast %cst_29 : f32 to vector<16x64xf32>
    %73 = arith.addf %72, %71 : vector<16x64xf32>
    %74 = arith.divf %72, %73 : vector<16x64xf32>
    %75 = arith.mulf %69, %74 : vector<16x64xf32>
    %76 = vector.extract_strided_slice %75 {offsets = [0, 0], sizes = [16, 32], strides = [1, 1]} : vector<16x64xf32> to vector<16x32xf32>
    %77 = arith.truncf %76 : vector<16x32xf32> to vector<16x32xbf16>
    %c0_30 = arith.constant 0 : index
    %c0_31 = arith.constant 0 : index
    %78 = vector.load %arg20[%c0_30, %c0_31] : memref<32x32xbf16, #tpu.memory_space<vmem>>, vector<32x32xbf16>
    %cst_32 = arith.constant dense<0.000000e+00> : vector<16x32xf32>
    %79 = tpu.matmul %77, %78, %cst_32 {dimension_numbers = #tpu.dot_dimension_numbers<[1], [0], [0], [1], [0, 0, 1, 1], [], []>} : vector<16x32xbf16>, vector<32x32xbf16>, vector<16x32xf32> -> vector<16x32xf32>
    %c0_33 = arith.constant 0 : index
    %c0_34 = arith.constant 0 : index
    %80 = vector.load %arg19[%c0_33, %c0_34] : memref<1x32xf32, #tpu.memory_space<vmem>>, vector<1x32xf32>
    %81 = vector.broadcast %80 : vector<1x32xf32> to vector<16x32xf32>
    %82 = arith.addf %79, %81 : vector<16x32xf32>
    %83 = arith.negf %82 : vector<16x32xf32>
    %84 = math.exp %83 : vector<16x32xf32>
    %cst_35 = arith.constant 1.000000e+00 : f32
    %85 = vector.broadcast %cst_35 : f32 to vector<16x32xf32>
    %86 = arith.addf %85, %84 : vector<16x32xf32>
    %87 = arith.divf %85, %86 : vector<16x32xf32>
    %88 = arith.mulf %82, %87 : vector<16x32xf32>
    %89 = vector.extract_strided_slice %75 {offsets = [0, 32], sizes = [16, 32], strides = [1, 1]} : vector<16x64xf32> to vector<16x32xf32>
    %90 = arith.truncf %89 : vector<16x32xf32> to vector<16x32xbf16>
    %c0_36 = arith.constant 0 : index
    %c0_37 = arith.constant 0 : index
    %91 = vector.load %arg22[%c0_36, %c0_37] : memref<32x32xbf16, #tpu.memory_space<vmem>>, vector<32x32xbf16>
    %cst_38 = arith.constant dense<0.000000e+00> : vector<16x32xf32>
    %92 = tpu.matmul %90, %91, %cst_38 {dimension_numbers = #tpu.dot_dimension_numbers<[1], [0], [0], [1], [0, 0, 1, 1], [], []>} : vector<16x32xbf16>, vector<32x32xbf16>, vector<16x32xf32> -> vector<16x32xf32>
    %c0_39 = arith.constant 0 : index
    %c0_40 = arith.constant 0 : index
    %93 = vector.load %arg21[%c0_39, %c0_40] : memref<1x32xf32, #tpu.memory_space<vmem>>, vector<1x32xf32>
    %94 = vector.broadcast %93 : vector<1x32xf32> to vector<16x32xf32>
    %95 = arith.addf %92, %94 : vector<16x32xf32>
    %96 = arith.negf %95 : vector<16x32xf32>
    %97 = math.exp %96 : vector<16x32xf32>
    %cst_41 = arith.constant 1.000000e+00 : f32
    %98 = vector.broadcast %cst_41 : f32 to vector<16x32xf32>
    %99 = arith.addf %98, %97 : vector<16x32xf32>
    %100 = arith.divf %98, %99 : vector<16x32xf32>
    %101 = arith.mulf %95, %100 : vector<16x32xf32>
    %c0_42 = arith.constant 0 : index
    %c0_43 = arith.constant 0 : index
    %102 = vector.load %arg3[%c0_42, %c0_43] : memref<16x6xf32, #tpu.memory_space<vmem>>, vector<16x6xf32>
    %103 = arith.truncf %102 : vector<16x6xf32> to vector<16x6xbf16>
    %c0_44 = arith.constant 0 : index
    %c0_45 = arith.constant 0 : index
    %104 = vector.load %arg13[%c0_44, %c0_45] : memref<6x12xbf16, #tpu.memory_space<vmem>>, vector<6x12xbf16>
    %cst_46 = arith.constant dense<0.000000e+00> : vector<16x12xf32>
    %105 = tpu.matmul %103, %104, %cst_46 {dimension_numbers = #tpu.dot_dimension_numbers<[1], [0], [0], [1], [0, 0, 1, 1], [], []>} : vector<16x6xbf16>, vector<6x12xbf16>, vector<16x12xf32> -> vector<16x12xf32>
    %106 = tpu.concatenate %1, %101 in 1 : vector<16x3xf32>, vector<16x32xf32> -> vector<16x35xf32>
    %cst_47 = arith.constant dense<0.000000e+00> : vector<2x35xf32>
    %107 = tpu.matmul %7, %106, %cst_47 {dimension_numbers = #tpu.dot_dimension_numbers<[1], [0], [0], [1], [0, 0, 1, 1], [], []>} : vector<2x16xf32>, vector<16x35xf32>, vector<2x35xf32> -> vector<2x35xf32>
    %108 = vector.broadcast %59 : vector<2x1xf32> to vector<2x35xf32>
    %109 = arith.divf %107, %108 : vector<2x35xf32>
    %110 = vector.extract_strided_slice %109 {offsets = [0, 0], sizes = [2, 3], strides = [1, 1]} : vector<2x35xf32> to vector<2x3xf32>
    %111 = vector.extract_strided_slice %109 {offsets = [0, 3], sizes = [2, 32], strides = [1, 1]} : vector<2x35xf32> to vector<2x32xf32>
    %cst_48 = arith.constant dense<0.000000e+00> : vector<16x3xf32>
    %112 = tpu.matmul %13, %110, %cst_48 {dimension_numbers = #tpu.dot_dimension_numbers<[1], [0], [0], [1], [0, 0, 1, 1], [], []>} : vector<16x2xf32>, vector<2x3xf32>, vector<16x3xf32> -> vector<16x3xf32>
    %113 = arith.subf %1, %112 : vector<16x3xf32>
    %114 = tpu.concatenate %113, %0 in 1 : vector<16x3xf32>, vector<16x16xf32> -> vector<16x19xf32>
    %cst_49 = arith.constant dense<0.000000e+00> : vector<4x19xf32>
    %115 = tpu.matmul %19, %114, %cst_49 {dimension_numbers = #tpu.dot_dimension_numbers<[1], [0], [0], [1], [0, 0, 1, 1], [], []>} : vector<4x16xf32>, vector<16x19xf32>, vector<4x19xf32> -> vector<4x19xf32>
    %116 = vector.broadcast %63 : vector<4x1xf32> to vector<4x19xf32>
    %117 = arith.divf %115, %116 : vector<4x19xf32>
    %118 = vector.extract_strided_slice %117 {offsets = [0, 0], sizes = [4, 3], strides = [1, 1]} : vector<4x19xf32> to vector<4x3xf32>
    %119 = vector.extract_strided_slice %117 {offsets = [0, 3], sizes = [4, 16], strides = [1, 1]} : vector<4x19xf32> to vector<4x16xf32>
    %cst_50 = arith.constant dense<0.000000e+00> : vector<4x3xf32>
    %120 = tpu.matmul %49, %113, %cst_50 {dimension_numbers = #tpu.dot_dimension_numbers<[1], [0], [0], [1], [0, 0, 1, 1], [], []>} : vector<4x16xf32>, vector<16x3xf32>, vector<4x3xf32> -> vector<4x3xf32>
    %121 = arith.subf %120, %118 : vector<4x3xf32>
    %cst_51 = arith.constant dense<0.000000e+00> : vector<4x3xf32>
    %122 = tpu.matmul %55, %113, %cst_51 {dimension_numbers = #tpu.dot_dimension_numbers<[1], [0], [0], [1], [0, 0, 1, 1], [], []>} : vector<4x16xf32>, vector<16x3xf32>, vector<4x3xf32> -> vector<4x3xf32>
    %123 = arith.subf %122, %118 : vector<4x3xf32>
    %124 = arith.mulf %121, %121 : vector<4x3xf32>
    %cst_52 = arith.constant dense<0.000000e+00> : vector<4xf32>
    %125 = vector.multi_reduction <add>, %124, %cst_52 [1] : vector<4x3xf32> to vector<4xf32>
    %126 = vector.shape_cast %125 : vector<4xf32> to vector<4x1xf32>
    %127 = math.sqrt %126 : vector<4x1xf32>
    %cst_53 = arith.constant 9.99999993E-9 : f32
    %128 = vector.broadcast %cst_53 : f32 to vector<4x1xf32>
    %129 = arith.addf %127, %128 : vector<4x1xf32>
    %130 = vector.broadcast %129 : vector<4x1xf32> to vector<4x3xf32>
    %131 = arith.divf %121, %130 : vector<4x3xf32>
    %132 = arith.mulf %123, %131 : vector<4x3xf32>
    %cst_54 = arith.constant dense<0.000000e+00> : vector<4xf32>
    %133 = vector.multi_reduction <add>, %132, %cst_54 [1] : vector<4x3xf32> to vector<4xf32>
    %134 = vector.shape_cast %133 : vector<4xf32> to vector<4x1xf32>
    %135 = vector.broadcast %134 : vector<4x1xf32> to vector<4x3xf32>
    %136 = arith.mulf %135, %131 : vector<4x3xf32>
    %137 = arith.subf %123, %136 : vector<4x3xf32>
    %138 = arith.mulf %137, %137 : vector<4x3xf32>
    %cst_55 = arith.constant dense<0.000000e+00> : vector<4xf32>
    %139 = vector.multi_reduction <add>, %138, %cst_55 [1] : vector<4x3xf32> to vector<4xf32>
    %140 = vector.shape_cast %139 : vector<4xf32> to vector<4x1xf32>
    %141 = math.sqrt %140 : vector<4x1xf32>
    %cst_56 = arith.constant 9.99999993E-9 : f32
    %142 = vector.broadcast %cst_56 : f32 to vector<4x1xf32>
    %143 = arith.addf %141, %142 : vector<4x1xf32>
    %144 = vector.broadcast %143 : vector<4x1xf32> to vector<4x3xf32>
    %145 = arith.divf %137, %144 : vector<4x3xf32>
    %146 = vector.extract_strided_slice %131 {offsets = [0, 0], sizes = [4, 1], strides = [1, 1]} : vector<4x3xf32> to vector<4x1xf32>
    %147 = vector.extract_strided_slice %131 {offsets = [0, 1], sizes = [4, 1], strides = [1, 1]} : vector<4x3xf32> to vector<4x1xf32>
    %148 = vector.extract_strided_slice %131 {offsets = [0, 2], sizes = [4, 1], strides = [1, 1]} : vector<4x3xf32> to vector<4x1xf32>
    %149 = vector.extract_strided_slice %145 {offsets = [0, 0], sizes = [4, 1], strides = [1, 1]} : vector<4x3xf32> to vector<4x1xf32>
    %150 = vector.extract_strided_slice %145 {offsets = [0, 1], sizes = [4, 1], strides = [1, 1]} : vector<4x3xf32> to vector<4x1xf32>
    %151 = vector.extract_strided_slice %145 {offsets = [0, 2], sizes = [4, 1], strides = [1, 1]} : vector<4x3xf32> to vector<4x1xf32>
    %152 = arith.mulf %147, %151 : vector<4x1xf32>
    %153 = arith.mulf %148, %150 : vector<4x1xf32>
    %154 = arith.subf %152, %153 : vector<4x1xf32>
    %155 = arith.mulf %148, %149 : vector<4x1xf32>
    %156 = arith.mulf %146, %151 : vector<4x1xf32>
    %157 = arith.subf %155, %156 : vector<4x1xf32>
    %158 = arith.mulf %146, %150 : vector<4x1xf32>
    %159 = arith.mulf %147, %149 : vector<4x1xf32>
    %160 = arith.subf %158, %159 : vector<4x1xf32>
    %161 = tpu.concatenate %154, %157, %160 in 1 : vector<4x1xf32>, vector<4x1xf32>, vector<4x1xf32> -> vector<4x3xf32>
    %162 = tpu.concatenate %121, %123 in 1 : vector<4x3xf32>, vector<4x3xf32> -> vector<4x6xf32>
    %163 = arith.truncf %0 : vector<16x16xf32> to vector<16x16xbf16>
    %c0_57 = arith.constant 0 : index
    %c0_58 = arith.constant 0 : index
    %164 = vector.load %arg16[%c0_57, %c0_58] : memref<16x16xbf16, #tpu.memory_space<vmem>>, vector<16x16xbf16>
    %cst_59 = arith.constant dense<0.000000e+00> : vector<16x16xf32>
    %165 = tpu.matmul %163, %164, %cst_59 {dimension_numbers = #tpu.dot_dimension_numbers<[1], [0], [0], [1], [0, 0, 1, 1], [], []>} : vector<16x16xbf16>, vector<16x16xbf16>, vector<16x16xf32> -> vector<16x16xf32>
    %166 = arith.truncf %0 : vector<16x16xf32> to vector<16x16xbf16>
    %c0_60 = arith.constant 0 : index
    %c0_61 = arith.constant 0 : index
    %167 = vector.load %arg17[%c0_60, %c0_61] : memref<16x16xbf16, #tpu.memory_space<vmem>>, vector<16x16xbf16>
    %cst_62 = arith.constant dense<0.000000e+00> : vector<16x16xf32>
    %168 = tpu.matmul %166, %167, %cst_62 {dimension_numbers = #tpu.dot_dimension_numbers<[1], [0], [0], [1], [0, 0, 1, 1], [], []>} : vector<16x16xbf16>, vector<16x16xbf16>, vector<16x16xf32> -> vector<16x16xf32>
    %cst_63 = arith.constant dense<0.000000e+00> : vector<32x16xf32>
    %169 = tpu.matmul %31, %165, %cst_63 {dimension_numbers = #tpu.dot_dimension_numbers<[1], [0], [0], [1], [0, 0, 1, 1], [], []>} : vector<32x16xf32>, vector<16x16xf32>, vector<32x16xf32> -> vector<32x16xf32>
    %cst_64 = arith.constant dense<0.000000e+00> : vector<32x16xf32>
    %170 = tpu.matmul %37, %168, %cst_64 {dimension_numbers = #tpu.dot_dimension_numbers<[1], [0], [0], [1], [0, 0, 1, 1], [], []>} : vector<32x16xf32>, vector<16x16xf32>, vector<32x16xf32> -> vector<32x16xf32>
    %171 = arith.addf %169, %170 : vector<32x16xf32>
    %c0_65 = arith.constant 0 : index
    %c0_66 = arith.constant 0 : index
    %172 = vector.load %arg14[%c0_65, %c0_66] : memref<1x16xf32, #tpu.memory_space<vmem>>, vector<1x16xf32>
    %173 = vector.broadcast %172 : vector<1x16xf32> to vector<32x16xf32>
    %174 = arith.addf %171, %173 : vector<32x16xf32>
    %175 = arith.negf %174 : vector<32x16xf32>
    %176 = math.exp %175 : vector<32x16xf32>
    %cst_67 = arith.constant 1.000000e+00 : f32
    %177 = vector.broadcast %cst_67 : f32 to vector<32x16xf32>
    %178 = arith.addf %177, %176 : vector<32x16xf32>
    %179 = arith.divf %177, %178 : vector<32x16xf32>
    %180 = arith.mulf %174, %179 : vector<32x16xf32>
    %181 = arith.truncf %180 : vector<32x16xf32> to vector<32x16xbf16>
    %c0_68 = arith.constant 0 : index
    %c0_69 = arith.constant 0 : index
    %182 = vector.load %arg18[%c0_68, %c0_69] : memref<16x16xbf16, #tpu.memory_space<vmem>>, vector<16x16xbf16>
    %cst_70 = arith.constant dense<0.000000e+00> : vector<32x16xf32>
    %183 = tpu.matmul %181, %182, %cst_70 {dimension_numbers = #tpu.dot_dimension_numbers<[1], [0], [0], [1], [0, 0, 1, 1], [], []>} : vector<32x16xbf16>, vector<16x16xbf16>, vector<32x16xf32> -> vector<32x16xf32>
    %c0_71 = arith.constant 0 : index
    %c0_72 = arith.constant 0 : index
    %184 = vector.load %arg15[%c0_71, %c0_72] : memref<1x16xf32, #tpu.memory_space<vmem>>, vector<1x16xf32>
    %185 = vector.broadcast %184 : vector<1x16xf32> to vector<32x16xf32>
    %186 = arith.addf %183, %185 : vector<32x16xf32>
    %187 = arith.negf %186 : vector<32x16xf32>
    %188 = math.exp %187 : vector<32x16xf32>
    %cst_73 = arith.constant 1.000000e+00 : f32
    %189 = vector.broadcast %cst_73 : f32 to vector<32x16xf32>
    %190 = arith.addf %189, %188 : vector<32x16xf32>
    %191 = arith.divf %189, %190 : vector<32x16xf32>
    %192 = arith.mulf %186, %191 : vector<32x16xf32>
    %193 = arith.subf %31, %37 : vector<32x16xf32>
    %cst_74 = arith.constant dense<0.000000e+00> : vector<32x3xf32>
    %194 = tpu.matmul %193, %113, %cst_74 {dimension_numbers = #tpu.dot_dimension_numbers<[1], [0], [0], [1], [0, 0, 1, 1], [], []>} : vector<32x16xf32>, vector<16x3xf32>, vector<32x3xf32> -> vector<32x3xf32>
    %195 = arith.truncf %194 : vector<32x3xf32> to vector<32x3xbf16>
    %c0_75 = arith.constant 0 : index
    %c0_76 = arith.constant 0 : index
    %196 = vector.load %arg25[%c0_75, %c0_76] : memref<3x6xbf16, #tpu.memory_space<vmem>>, vector<3x6xbf16>
    %cst_77 = arith.constant dense<0.000000e+00> : vector<32x6xf32>
    %197 = tpu.matmul %195, %196, %cst_77 {dimension_numbers = #tpu.dot_dimension_numbers<[1], [0], [0], [1], [0, 0, 1, 1], [], []>} : vector<32x3xbf16>, vector<3x6xbf16>, vector<32x6xf32> -> vector<32x6xf32>
    %198 = vector.extract_strided_slice %197 {offsets = [0, 0], sizes = [32, 3], strides = [1, 1]} : vector<32x6xf32> to vector<32x3xf32>
    %199 = arith.mulf %198, %198 : vector<32x3xf32>
    %cst_78 = arith.constant dense<0.000000e+00> : vector<32xf32>
    %200 = vector.multi_reduction <add>, %199, %cst_78 [1] : vector<32x3xf32> to vector<32xf32>
    %201 = vector.shape_cast %200 : vector<32xf32> to vector<32x1xf32>
    %cst_79 = arith.constant 9.99999993E-9 : f32
    %202 = vector.broadcast %cst_79 : f32 to vector<32x1xf32>
    %203 = arith.addf %201, %202 : vector<32x1xf32>
    %204 = math.sqrt %203 : vector<32x1xf32>
    %205 = vector.extract_strided_slice %197 {offsets = [0, 3], sizes = [32, 3], strides = [1, 1]} : vector<32x6xf32> to vector<32x3xf32>
    %206 = arith.mulf %205, %205 : vector<32x3xf32>
    %cst_80 = arith.constant dense<0.000000e+00> : vector<32xf32>
    %207 = vector.multi_reduction <add>, %206, %cst_80 [1] : vector<32x3xf32> to vector<32xf32>
    %208 = vector.shape_cast %207 : vector<32xf32> to vector<32x1xf32>
    %cst_81 = arith.constant 9.99999993E-9 : f32
    %209 = vector.broadcast %cst_81 : f32 to vector<32x1xf32>
    %210 = arith.addf %208, %209 : vector<32x1xf32>
    %211 = math.sqrt %210 : vector<32x1xf32>
    %212 = tpu.concatenate %204, %211 in 1 : vector<32x1xf32>, vector<32x1xf32> -> vector<32x2xf32>
    %213 = arith.truncf %119 : vector<4x16xf32> to vector<4x16xbf16>
    %c0_82 = arith.constant 0 : index
    %c0_83 = arith.constant 0 : index
    %214 = vector.load %arg46[%c0_82, %c0_83] : memref<16x16xbf16, #tpu.memory_space<vmem>>, vector<16x16xbf16>
    %cst_84 = arith.constant dense<0.000000e+00> : vector<4x16xf32>
    %215 = tpu.matmul %213, %214, %cst_84 {dimension_numbers = #tpu.dot_dimension_numbers<[1], [0], [0], [1], [0, 0, 1, 1], [], []>} : vector<4x16xbf16>, vector<16x16xbf16>, vector<4x16xf32> -> vector<4x16xf32>
    %c0_85 = arith.constant 0 : index
    %c0_86 = arith.constant 0 : index
    %216 = vector.load %arg44[%c0_85, %c0_86] : memref<1x16xf32, #tpu.memory_space<vmem>>, vector<1x16xf32>
    %217 = vector.broadcast %216 : vector<1x16xf32> to vector<4x16xf32>
    %218 = arith.addf %215, %217 : vector<4x16xf32>
    %219 = arith.negf %218 : vector<4x16xf32>
    %220 = math.exp %219 : vector<4x16xf32>
    %cst_87 = arith.constant 1.000000e+00 : f32
    %221 = vector.broadcast %cst_87 : f32 to vector<4x16xf32>
    %222 = arith.addf %221, %220 : vector<4x16xf32>
    %223 = arith.divf %221, %222 : vector<4x16xf32>
    %224 = arith.mulf %218, %223 : vector<4x16xf32>
    %225 = arith.truncf %224 : vector<4x16xf32> to vector<4x16xbf16>
    %c0_88 = arith.constant 0 : index
    %c0_89 = arith.constant 0 : index
    %226 = vector.load %arg47[%c0_88, %c0_89] : memref<16x16xbf16, #tpu.memory_space<vmem>>, vector<16x16xbf16>
    %cst_90 = arith.constant dense<0.000000e+00> : vector<4x16xf32>
    %227 = tpu.matmul %225, %226, %cst_90 {dimension_numbers = #tpu.dot_dimension_numbers<[1], [0], [0], [1], [0, 0, 1, 1], [], []>} : vector<4x16xbf16>, vector<16x16xbf16>, vector<4x16xf32> -> vector<4x16xf32>
    %c0_91 = arith.constant 0 : index
    %c0_92 = arith.constant 0 : index
    %228 = vector.load %arg45[%c0_91, %c0_92] : memref<1x16xf32, #tpu.memory_space<vmem>>, vector<1x16xf32>
    %229 = vector.broadcast %228 : vector<1x16xf32> to vector<4x16xf32>
    %230 = arith.addf %227, %229 : vector<4x16xf32>
    %231 = arith.negf %230 : vector<4x16xf32>
    %232 = math.exp %231 : vector<4x16xf32>
    %cst_93 = arith.constant 1.000000e+00 : f32
    %233 = vector.broadcast %cst_93 : f32 to vector<4x16xf32>
    %234 = arith.addf %233, %232 : vector<4x16xf32>
    %235 = arith.divf %233, %234 : vector<4x16xf32>
    %236 = arith.mulf %230, %235 : vector<4x16xf32>
    %237 = arith.truncf %162 : vector<4x6xf32> to vector<4x6xbf16>
    %c0_94 = arith.constant 0 : index
    %c0_95 = arith.constant 0 : index
    %238 = vector.load %arg48[%c0_94, %c0_95] : memref<6x12xbf16, #tpu.memory_space<vmem>>, vector<6x12xbf16>
    %cst_96 = arith.constant dense<0.000000e+00> : vector<4x12xf32>
    %239 = tpu.matmul %237, %238, %cst_96 {dimension_numbers = #tpu.dot_dimension_numbers<[1], [0], [0], [1], [0, 0, 1, 1], [], []>} : vector<4x6xbf16>, vector<6x12xbf16>, vector<4x12xf32> -> vector<4x12xf32>
    %cst_97 = arith.constant dense<0.000000e+00> : vector<4x32xf32>
    %240 = tpu.matmul %43, %111, %cst_97 {dimension_numbers = #tpu.dot_dimension_numbers<[1], [0], [0], [1], [0, 0, 1, 1], [], []>} : vector<4x2xf32>, vector<2x32xf32>, vector<4x32xf32> -> vector<4x32xf32>
    %241 = arith.truncf %240 : vector<4x32xf32> to vector<4x32xbf16>
    %c0_98 = arith.constant 0 : index
    %c0_99 = arith.constant 0 : index
    %242 = vector.load %arg33[%c0_98, %c0_99] : memref<32x16xbf16, #tpu.memory_space<vmem>>, vector<32x16xbf16>
    %cst_100 = arith.constant dense<0.000000e+00> : vector<4x16xf32>
    %243 = tpu.matmul %241, %242, %cst_100 {dimension_numbers = #tpu.dot_dimension_numbers<[1], [0], [0], [1], [0, 0, 1, 1], [], []>} : vector<4x32xbf16>, vector<32x16xbf16>, vector<4x16xf32> -> vector<4x16xf32>
    %c0_101 = arith.constant 0 : index
    %c0_102 = arith.constant 0 : index
    %244 = vector.load %arg31[%c0_101, %c0_102] : memref<1x16xf32, #tpu.memory_space<vmem>>, vector<1x16xf32>
    %245 = vector.broadcast %244 : vector<1x16xf32> to vector<4x16xf32>
    %246 = arith.addf %243, %245 : vector<4x16xf32>
    %247 = arith.negf %246 : vector<4x16xf32>
    %248 = math.exp %247 : vector<4x16xf32>
    %cst_103 = arith.constant 1.000000e+00 : f32
    %249 = vector.broadcast %cst_103 : f32 to vector<4x16xf32>
    %250 = arith.addf %249, %248 : vector<4x16xf32>
    %251 = arith.divf %249, %250 : vector<4x16xf32>
    %252 = arith.mulf %246, %251 : vector<4x16xf32>
    %253 = arith.truncf %252 : vector<4x16xf32> to vector<4x16xbf16>
    %c0_104 = arith.constant 0 : index
    %c0_105 = arith.constant 0 : index
    %254 = vector.load %arg34[%c0_104, %c0_105] : memref<16x16xbf16, #tpu.memory_space<vmem>>, vector<16x16xbf16>
    %cst_106 = arith.constant dense<0.000000e+00> : vector<4x16xf32>
    %255 = tpu.matmul %253, %254, %cst_106 {dimension_numbers = #tpu.dot_dimension_numbers<[1], [0], [0], [1], [0, 0, 1, 1], [], []>} : vector<4x16xbf16>, vector<16x16xbf16>, vector<4x16xf32> -> vector<4x16xf32>
    %c0_107 = arith.constant 0 : index
    %c0_108 = arith.constant 0 : index
    %256 = vector.load %arg32[%c0_107, %c0_108] : memref<1x16xf32, #tpu.memory_space<vmem>>, vector<1x16xf32>
    %257 = vector.broadcast %256 : vector<1x16xf32> to vector<4x16xf32>
    %258 = arith.addf %255, %257 : vector<4x16xf32>
    %259 = arith.negf %258 : vector<4x16xf32>
    %260 = math.exp %259 : vector<4x16xf32>
    %cst_109 = arith.constant 1.000000e+00 : f32
    %261 = vector.broadcast %cst_109 : f32 to vector<4x16xf32>
    %262 = arith.addf %261, %260 : vector<4x16xf32>
    %263 = arith.divf %261, %262 : vector<4x16xf32>
    %264 = arith.mulf %258, %263 : vector<4x16xf32>
    %265 = arith.truncf %236 : vector<4x16xf32> to vector<4x16xbf16>
    %c0_110 = arith.constant 0 : index
    %c0_111 = arith.constant 0 : index
    %266 = vector.load %arg28[%c0_110, %c0_111] : memref<16x16xbf16, #tpu.memory_space<vmem>>, vector<16x16xbf16>
    %cst_112 = arith.constant dense<0.000000e+00> : vector<4x16xf32>
    %267 = tpu.matmul %265, %266, %cst_112 {dimension_numbers = #tpu.dot_dimension_numbers<[1], [0], [0], [1], [0, 0, 1, 1], [], []>} : vector<4x16xbf16>, vector<16x16xbf16>, vector<4x16xf32> -> vector<4x16xf32>
    %268 = arith.truncf %264 : vector<4x16xf32> to vector<4x16xbf16>
    %c0_113 = arith.constant 0 : index
    %c0_114 = arith.constant 0 : index
    %269 = vector.load %arg29[%c0_113, %c0_114] : memref<16x16xbf16, #tpu.memory_space<vmem>>, vector<16x16xbf16>
    %cst_115 = arith.constant dense<0.000000e+00> : vector<4x16xf32>
    %270 = tpu.matmul %268, %269, %cst_115 {dimension_numbers = #tpu.dot_dimension_numbers<[1], [0], [0], [1], [0, 0, 1, 1], [], []>} : vector<4x16xbf16>, vector<16x16xbf16>, vector<4x16xf32> -> vector<4x16xf32>
    %271 = arith.addf %267, %270 : vector<4x16xf32>
    %c0_116 = arith.constant 0 : index
    %c0_117 = arith.constant 0 : index
    %272 = vector.load %arg26[%c0_116, %c0_117] : memref<1x16xf32, #tpu.memory_space<vmem>>, vector<1x16xf32>
    %273 = vector.broadcast %272 : vector<1x16xf32> to vector<4x16xf32>
    %274 = arith.addf %271, %273 : vector<4x16xf32>
    %275 = arith.negf %274 : vector<4x16xf32>
    %276 = math.exp %275 : vector<4x16xf32>
    %cst_118 = arith.constant 1.000000e+00 : f32
    %277 = vector.broadcast %cst_118 : f32 to vector<4x16xf32>
    %278 = arith.addf %277, %276 : vector<4x16xf32>
    %279 = arith.divf %277, %278 : vector<4x16xf32>
    %280 = arith.mulf %274, %279 : vector<4x16xf32>
    %281 = arith.truncf %280 : vector<4x16xf32> to vector<4x16xbf16>
    %c0_119 = arith.constant 0 : index
    %c0_120 = arith.constant 0 : index
    %282 = vector.load %arg30[%c0_119, %c0_120] : memref<16x16xbf16, #tpu.memory_space<vmem>>, vector<16x16xbf16>
    %cst_121 = arith.constant dense<0.000000e+00> : vector<4x16xf32>
    %283 = tpu.matmul %281, %282, %cst_121 {dimension_numbers = #tpu.dot_dimension_numbers<[1], [0], [0], [1], [0, 0, 1, 1], [], []>} : vector<4x16xbf16>, vector<16x16xbf16>, vector<4x16xf32> -> vector<4x16xf32>
    %c0_122 = arith.constant 0 : index
    %c0_123 = arith.constant 0 : index
    %284 = vector.load %arg27[%c0_122, %c0_123] : memref<1x16xf32, #tpu.memory_space<vmem>>, vector<1x16xf32>
    %285 = vector.broadcast %284 : vector<1x16xf32> to vector<4x16xf32>
    %286 = arith.addf %283, %285 : vector<4x16xf32>
    %287 = arith.negf %286 : vector<4x16xf32>
    %288 = math.exp %287 : vector<4x16xf32>
    %cst_124 = arith.constant 1.000000e+00 : f32
    %289 = vector.broadcast %cst_124 : f32 to vector<4x16xf32>
    %290 = arith.addf %289, %288 : vector<4x16xf32>
    %291 = arith.divf %289, %290 : vector<4x16xf32>
    %292 = arith.mulf %286, %291 : vector<4x16xf32>
    %293 = arith.truncf %240 : vector<4x32xf32> to vector<4x32xbf16>
    %c0_125 = arith.constant 0 : index
    %c0_126 = arith.constant 0 : index
    %294 = vector.load %arg42[%c0_125, %c0_126] : memref<32x12xbf16, #tpu.memory_space<vmem>>, vector<32x12xbf16>
    %cst_127 = arith.constant dense<0.000000e+00> : vector<4x12xf32>
    %295 = tpu.matmul %293, %294, %cst_127 {dimension_numbers = #tpu.dot_dimension_numbers<[1], [0], [0], [1], [0, 0, 1, 1], [], []>} : vector<4x32xbf16>, vector<32x12xbf16>, vector<4x12xf32> -> vector<4x12xf32>
    %c0_128 = arith.constant 0 : index
    %c0_129 = arith.constant 0 : index
    %296 = vector.load %arg40[%c0_128, %c0_129] : memref<1x12xf32, #tpu.memory_space<vmem>>, vector<1x12xf32>
    %297 = vector.broadcast %296 : vector<1x12xf32> to vector<4x12xf32>
    %298 = arith.addf %295, %297 : vector<4x12xf32>
    %299 = arith.negf %298 : vector<4x12xf32>
    %300 = math.exp %299 : vector<4x12xf32>
    %cst_130 = arith.constant 1.000000e+00 : f32
    %301 = vector.broadcast %cst_130 : f32 to vector<4x12xf32>
    %302 = arith.addf %301, %300 : vector<4x12xf32>
    %303 = arith.divf %301, %302 : vector<4x12xf32>
    %304 = arith.mulf %298, %303 : vector<4x12xf32>
    %305 = arith.truncf %304 : vector<4x12xf32> to vector<4x12xbf16>
    %c0_131 = arith.constant 0 : index
    %c0_132 = arith.constant 0 : index
    %306 = vector.load %arg43[%c0_131, %c0_132] : memref<12x12xbf16, #tpu.memory_space<vmem>>, vector<12x12xbf16>
    %cst_133 = arith.constant dense<0.000000e+00> : vector<4x12xf32>
    %307 = tpu.matmul %305, %306, %cst_133 {dimension_numbers = #tpu.dot_dimension_numbers<[1], [0], [0], [1], [0, 0, 1, 1], [], []>} : vector<4x12xbf16>, vector<12x12xbf16>, vector<4x12xf32> -> vector<4x12xf32>
    %c0_134 = arith.constant 0 : index
    %c0_135 = arith.constant 0 : index
    %308 = vector.load %arg41[%c0_134, %c0_135] : memref<1x12xf32, #tpu.memory_space<vmem>>, vector<1x12xf32>
    %309 = vector.broadcast %308 : vector<1x12xf32> to vector<4x12xf32>
    %310 = arith.addf %307, %309 : vector<4x12xf32>
    %311 = arith.negf %310 : vector<4x12xf32>
    %312 = math.exp %311 : vector<4x12xf32>
    %cst_136 = arith.constant 1.000000e+00 : f32
    %313 = vector.broadcast %cst_136 : f32 to vector<4x12xf32>
    %314 = arith.addf %313, %312 : vector<4x12xf32>
    %315 = arith.divf %313, %314 : vector<4x12xf32>
    %316 = arith.mulf %310, %315 : vector<4x12xf32>
    %317 = vector.extract_strided_slice %316 {offsets = [0, 0], sizes = [4, 3], strides = [1, 1]} : vector<4x12xf32> to vector<4x3xf32>
    %318 = vector.extract_strided_slice %317 {offsets = [0, 0], sizes = [4, 1], strides = [1, 1]} : vector<4x3xf32> to vector<4x1xf32>
    %319 = vector.broadcast %318 : vector<4x1xf32> to vector<4x3xf32>
    %320 = arith.mulf %319, %131 : vector<4x3xf32>
    %321 = vector.extract_strided_slice %317 {offsets = [0, 1], sizes = [4, 1], strides = [1, 1]} : vector<4x3xf32> to vector<4x1xf32>
    %322 = vector.broadcast %321 : vector<4x1xf32> to vector<4x3xf32>
    %323 = arith.mulf %322, %145 : vector<4x3xf32>
    %324 = arith.addf %320, %323 : vector<4x3xf32>
    %325 = vector.extract_strided_slice %317 {offsets = [0, 2], sizes = [4, 1], strides = [1, 1]} : vector<4x3xf32> to vector<4x1xf32>
    %326 = vector.broadcast %325 : vector<4x1xf32> to vector<4x3xf32>
    %327 = arith.mulf %326, %161 : vector<4x3xf32>
    %328 = arith.addf %324, %327 : vector<4x3xf32>
    %329 = vector.extract_strided_slice %316 {offsets = [0, 3], sizes = [4, 3], strides = [1, 1]} : vector<4x12xf32> to vector<4x3xf32>
    %330 = vector.extract_strided_slice %329 {offsets = [0, 0], sizes = [4, 1], strides = [1, 1]} : vector<4x3xf32> to vector<4x1xf32>
    %331 = vector.broadcast %330 : vector<4x1xf32> to vector<4x3xf32>
    %332 = arith.mulf %331, %131 : vector<4x3xf32>
    %333 = vector.extract_strided_slice %329 {offsets = [0, 1], sizes = [4, 1], strides = [1, 1]} : vector<4x3xf32> to vector<4x1xf32>
    %334 = vector.broadcast %333 : vector<4x1xf32> to vector<4x3xf32>
    %335 = arith.mulf %334, %145 : vector<4x3xf32>
    %336 = arith.addf %332, %335 : vector<4x3xf32>
    %337 = vector.extract_strided_slice %329 {offsets = [0, 2], sizes = [4, 1], strides = [1, 1]} : vector<4x3xf32> to vector<4x1xf32>
    %338 = vector.broadcast %337 : vector<4x1xf32> to vector<4x3xf32>
    %339 = arith.mulf %338, %161 : vector<4x3xf32>
    %340 = arith.addf %336, %339 : vector<4x3xf32>
    %341 = vector.extract_strided_slice %316 {offsets = [0, 6], sizes = [4, 3], strides = [1, 1]} : vector<4x12xf32> to vector<4x3xf32>
    %342 = vector.extract_strided_slice %341 {offsets = [0, 0], sizes = [4, 1], strides = [1, 1]} : vector<4x3xf32> to vector<4x1xf32>
    %343 = vector.broadcast %342 : vector<4x1xf32> to vector<4x3xf32>
    %344 = arith.mulf %343, %131 : vector<4x3xf32>
    %345 = vector.extract_strided_slice %341 {offsets = [0, 1], sizes = [4, 1], strides = [1, 1]} : vector<4x3xf32> to vector<4x1xf32>
    %346 = vector.broadcast %345 : vector<4x1xf32> to vector<4x3xf32>
    %347 = arith.mulf %346, %145 : vector<4x3xf32>
    %348 = arith.addf %344, %347 : vector<4x3xf32>
    %349 = vector.extract_strided_slice %341 {offsets = [0, 2], sizes = [4, 1], strides = [1, 1]} : vector<4x3xf32> to vector<4x1xf32>
    %350 = vector.broadcast %349 : vector<4x1xf32> to vector<4x3xf32>
    %351 = arith.mulf %350, %161 : vector<4x3xf32>
    %352 = arith.addf %348, %351 : vector<4x3xf32>
    %353 = vector.extract_strided_slice %316 {offsets = [0, 9], sizes = [4, 3], strides = [1, 1]} : vector<4x12xf32> to vector<4x3xf32>
    %354 = vector.extract_strided_slice %353 {offsets = [0, 0], sizes = [4, 1], strides = [1, 1]} : vector<4x3xf32> to vector<4x1xf32>
    %355 = vector.broadcast %354 : vector<4x1xf32> to vector<4x3xf32>
    %356 = arith.mulf %355, %131 : vector<4x3xf32>
    %357 = vector.extract_strided_slice %353 {offsets = [0, 1], sizes = [4, 1], strides = [1, 1]} : vector<4x3xf32> to vector<4x1xf32>
    %358 = vector.broadcast %357 : vector<4x1xf32> to vector<4x3xf32>
    %359 = arith.mulf %358, %145 : vector<4x3xf32>
    %360 = arith.addf %356, %359 : vector<4x3xf32>
    %361 = vector.extract_strided_slice %353 {offsets = [0, 2], sizes = [4, 1], strides = [1, 1]} : vector<4x3xf32> to vector<4x1xf32>
    %362 = vector.broadcast %361 : vector<4x1xf32> to vector<4x3xf32>
    %363 = arith.mulf %362, %161 : vector<4x3xf32>
    %364 = arith.addf %360, %363 : vector<4x3xf32>
    %365 = tpu.concatenate %328, %340, %352, %364 in 1 : vector<4x3xf32>, vector<4x3xf32>, vector<4x3xf32>, vector<4x3xf32> -> vector<4x12xf32>
    %366 = arith.truncf %365 : vector<4x12xf32> to vector<4x12xbf16>
    %c0_137 = arith.constant 0 : index
    %c0_138 = arith.constant 0 : index
    %367 = vector.load %arg37[%c0_137, %c0_138] : memref<12x12xbf16, #tpu.memory_space<vmem>>, vector<12x12xbf16>
    %cst_139 = arith.constant dense<0.000000e+00> : vector<4x12xf32>
    %368 = tpu.matmul %366, %367, %cst_139 {dimension_numbers = #tpu.dot_dimension_numbers<[1], [0], [0], [1], [0, 0, 1, 1], [], []>} : vector<4x12xbf16>, vector<12x12xbf16>, vector<4x12xf32> -> vector<4x12xf32>
    %369 = arith.truncf %239 : vector<4x12xf32> to vector<4x12xbf16>
    %c0_140 = arith.constant 0 : index
    %c0_141 = arith.constant 0 : index
    %370 = vector.load %arg38[%c0_140, %c0_141] : memref<12x12xbf16, #tpu.memory_space<vmem>>, vector<12x12xbf16>
    %cst_142 = arith.constant dense<0.000000e+00> : vector<4x12xf32>
    %371 = tpu.matmul %369, %370, %cst_142 {dimension_numbers = #tpu.dot_dimension_numbers<[1], [0], [0], [1], [0, 0, 1, 1], [], []>} : vector<4x12xbf16>, vector<12x12xbf16>, vector<4x12xf32> -> vector<4x12xf32>
    %372 = arith.addf %368, %371 : vector<4x12xf32>
    %c0_143 = arith.constant 0 : index
    %c0_144 = arith.constant 0 : index
    %373 = vector.load %arg35[%c0_143, %c0_144] : memref<1x12xf32, #tpu.memory_space<vmem>>, vector<1x12xf32>
    %374 = vector.broadcast %373 : vector<1x12xf32> to vector<4x12xf32>
    %375 = arith.addf %372, %374 : vector<4x12xf32>
    %376 = arith.negf %375 : vector<4x12xf32>
    %377 = math.exp %376 : vector<4x12xf32>
    %cst_145 = arith.constant 1.000000e+00 : f32
    %378 = vector.broadcast %cst_145 : f32 to vector<4x12xf32>
    %379 = arith.addf %378, %377 : vector<4x12xf32>
    %380 = arith.divf %378, %379 : vector<4x12xf32>
    %381 = arith.mulf %375, %380 : vector<4x12xf32>
    %382 = arith.truncf %381 : vector<4x12xf32> to vector<4x12xbf16>
    %c0_146 = arith.constant 0 : index
    %c0_147 = arith.constant 0 : index
    %383 = vector.load %arg39[%c0_146, %c0_147] : memref<12x12xbf16, #tpu.memory_space<vmem>>, vector<12x12xbf16>
    %cst_148 = arith.constant dense<0.000000e+00> : vector<4x12xf32>
    %384 = tpu.matmul %382, %383, %cst_148 {dimension_numbers = #tpu.dot_dimension_numbers<[1], [0], [0], [1], [0, 0, 1, 1], [], []>} : vector<4x12xbf16>, vector<12x12xbf16>, vector<4x12xf32> -> vector<4x12xf32>
    %c0_149 = arith.constant 0 : index
    %c0_150 = arith.constant 0 : index
    %385 = vector.load %arg36[%c0_149, %c0_150] : memref<1x12xf32, #tpu.memory_space<vmem>>, vector<1x12xf32>
    %386 = vector.broadcast %385 : vector<1x12xf32> to vector<4x12xf32>
    %387 = arith.addf %384, %386 : vector<4x12xf32>
    %388 = arith.negf %387 : vector<4x12xf32>
    %389 = math.exp %388 : vector<4x12xf32>
    %cst_151 = arith.constant 1.000000e+00 : f32
    %390 = vector.broadcast %cst_151 : f32 to vector<4x12xf32>
    %391 = arith.addf %390, %389 : vector<4x12xf32>
    %392 = arith.divf %390, %391 : vector<4x12xf32>
    %393 = arith.mulf %387, %392 : vector<4x12xf32>
    %394 = vector.extract_strided_slice %393 {offsets = [0, 0], sizes = [4, 3], strides = [1, 1]} : vector<4x12xf32> to vector<4x3xf32>
    %395 = arith.mulf %394, %394 : vector<4x3xf32>
    %cst_152 = arith.constant dense<0.000000e+00> : vector<4xf32>
    %396 = vector.multi_reduction <add>, %395, %cst_152 [1] : vector<4x3xf32> to vector<4xf32>
    %397 = vector.shape_cast %396 : vector<4xf32> to vector<4x1xf32>
    %cst_153 = arith.constant 9.99999993E-9 : f32
    %398 = vector.broadcast %cst_153 : f32 to vector<4x1xf32>
    %399 = arith.addf %397, %398 : vector<4x1xf32>
    %400 = math.sqrt %399 : vector<4x1xf32>
    %401 = vector.extract_strided_slice %393 {offsets = [0, 3], sizes = [4, 3], strides = [1, 1]} : vector<4x12xf32> to vector<4x3xf32>
    %402 = arith.mulf %401, %401 : vector<4x3xf32>
    %cst_154 = arith.constant dense<0.000000e+00> : vector<4xf32>
    %403 = vector.multi_reduction <add>, %402, %cst_154 [1] : vector<4x3xf32> to vector<4xf32>
    %404 = vector.shape_cast %403 : vector<4xf32> to vector<4x1xf32>
    %cst_155 = arith.constant 9.99999993E-9 : f32
    %405 = vector.broadcast %cst_155 : f32 to vector<4x1xf32>
    %406 = arith.addf %404, %405 : vector<4x1xf32>
    %407 = math.sqrt %406 : vector<4x1xf32>
    %408 = vector.extract_strided_slice %393 {offsets = [0, 6], sizes = [4, 3], strides = [1, 1]} : vector<4x12xf32> to vector<4x3xf32>
    %409 = arith.mulf %408, %408 : vector<4x3xf32>
    %cst_156 = arith.constant dense<0.000000e+00> : vector<4xf32>
    %410 = vector.multi_reduction <add>, %409, %cst_156 [1] : vector<4x3xf32> to vector<4xf32>
    %411 = vector.shape_cast %410 : vector<4xf32> to vector<4x1xf32>
    %cst_157 = arith.constant 9.99999993E-9 : f32
    %412 = vector.broadcast %cst_157 : f32 to vector<4x1xf32>
    %413 = arith.addf %411, %412 : vector<4x1xf32>
    %414 = math.sqrt %413 : vector<4x1xf32>
    %415 = vector.extract_strided_slice %393 {offsets = [0, 9], sizes = [4, 3], strides = [1, 1]} : vector<4x12xf32> to vector<4x3xf32>
    %416 = arith.mulf %415, %415 : vector<4x3xf32>
    %cst_158 = arith.constant dense<0.000000e+00> : vector<4xf32>
    %417 = vector.multi_reduction <add>, %416, %cst_158 [1] : vector<4x3xf32> to vector<4xf32>
    %418 = vector.shape_cast %417 : vector<4xf32> to vector<4x1xf32>
    %cst_159 = arith.constant 9.99999993E-9 : f32
    %419 = vector.broadcast %cst_159 : f32 to vector<4x1xf32>
    %420 = arith.addf %418, %419 : vector<4x1xf32>
    %421 = math.sqrt %420 : vector<4x1xf32>
    %422 = tpu.concatenate %400, %407, %414, %421 in 1 : vector<4x1xf32>, vector<4x1xf32>, vector<4x1xf32>, vector<4x1xf32> -> vector<4x4xf32>
    %423 = tpu.concatenate %292, %422 in 1 : vector<4x16xf32>, vector<4x4xf32> -> vector<4x20xf32>
    %cst_160 = arith.constant dense<0.000000e+00> : vector<16x20xf32>
    %424 = tpu.matmul %25, %423, %cst_160 {dimension_numbers = #tpu.dot_dimension_numbers<[1], [0], [0], [1], [0, 0, 1, 1], [], []>} : vector<16x4xf32>, vector<4x20xf32>, vector<16x20xf32> -> vector<16x20xf32>
    %425 = tpu.concatenate %88, %105, %424 in 1 : vector<16x32xf32>, vector<16x12xf32>, vector<16x20xf32> -> vector<16x64xf32>
    %c0_161 = arith.constant 0 : index
    %c0_162 = arith.constant 0 : index
    %426 = vector.load %arg49[%c0_161, %c0_162] : memref<16x64xf32, #tpu.memory_space<vmem>>, vector<16x64xf32>
    tpu.vector_store %arg49[%c0_161, %c0_162], %425 {strides = array<i32>} : memref<16x64xf32, #tpu.memory_space<vmem>>, vector<16x64xf32>,
    %427 = tpu.concatenate %192, %212 in 1 : vector<32x16xf32>, vector<32x2xf32> -> vector<32x18xf32>
    %c0_163 = arith.constant 0 : index
    %c0_164 = arith.constant 0 : index
    %428 = vector.load %arg50[%c0_163, %c0_164] : memref<32x18xf32, #tpu.memory_space<vmem>>, vector<32x18xf32>
    tpu.vector_store %arg50[%c0_163, %c0_164], %427 {strides = array<i32>} : memref<32x18xf32, #tpu.memory_space<vmem>>, vector<32x18xf32>,
    return
  }
  func.func @transform_0(%arg0: i32) -> (i32, i32) {
    %c0_i32 = arith.constant 0 : i32
    %c0_i32_0 = arith.constant 0 : i32
    %c0_i32_1 = arith.constant 0 : i32
    return %c0_i32, %c0_i32_0 : i32, i32
  }
  func.func @transform_1(%arg0: i32) -> (i32, i32) {
    %c0_i32 = arith.constant 0 : i32
    %c0_i32_0 = arith.constant 0 : i32
    %c0_i32_1 = arith.constant 0 : i32
    return %c0_i32, %c0_i32_0 : i32, i32
  }
  func.func @transform_2(%arg0: i32) -> (i32, i32) {
    %c0_i32 = arith.constant 0 : i32
    %c0_i32_0 = arith.constant 0 : i32
    %c0_i32_1 = arith.constant 0 : i32
    return %c0_i32, %c0_i32_0 : i32, i32
  }
  func.func @transform_3(%arg0: i32) -> (i32, i32) {
    %c0_i32 = arith.constant 0 : i32
    %c0_i32_0 = arith.constant 0 : i32
    %c0_i32_1 = arith.constant 0 : i32
    return %c0_i32, %c0_i32_0 : i32, i32
  }
  func.func @transform_4(%arg0: i32) -> (i32, i32) {
    %c0_i32 = arith.constant 0 : i32
    %c0_i32_0 = arith.constant 0 : i32
    %c0_i32_1 = arith.constant 0 : i32
    return %c0_i32, %c0_i32_0 : i32, i32
  }
  func.func @transform_5(%arg0: i32) -> (i32, i32) {
    %c0_i32 = arith.constant 0 : i32
    %c0_i32_0 = arith.constant 0 : i32
    %c0_i32_1 = arith.constant 0 : i32
    return %c0_i32, %c0_i32_0 : i32, i32
  }
  func.func @transform_6(%arg0: i32) -> (i32, i32) {
    %c0_i32 = arith.constant 0 : i32
    %c0_i32_0 = arith.constant 0 : i32
    %c0_i32_1 = arith.constant 0 : i32
    return %c0_i32, %c0_i32_0 : i32, i32
  }
  func.func @transform_7(%arg0: i32) -> (i32, i32) {
    %c0_i32 = arith.constant 0 : i32
    %c0_i32_0 = arith.constant 0 : i32
    %c0_i32_1 = arith.constant 0 : i32
    return %c0_i32, %c0_i32_0 : i32, i32
  }
  func.func @transform_8(%arg0: i32) -> (i32, i32) {
    %c0_i32 = arith.constant 0 : i32
    %c0_i32_0 = arith.constant 0 : i32
    %c0_i32_1 = arith.constant 0 : i32
    return %c0_i32, %c0_i32_0 : i32, i32
  }
  func.func @transform_9(%arg0: i32) -> (i32, i32) {
    %c0_i32 = arith.constant 0 : i32
    %c0_i32_0 = arith.constant 0 : i32
    %c0_i32_1 = arith.constant 0 : i32
    return %c0_i32, %c0_i32_0 : i32, i32
  }
  func.func @transform_10(%arg0: i32) -> (i32, i32) {
    %c0_i32 = arith.constant 0 : i32
    %c0_i32_0 = arith.constant 0 : i32
    %c0_i32_1 = arith.constant 0 : i32
    return %c0_i32, %c0_i32_0 : i32, i32
  }
  func.func @transform_11(%arg0: i32) -> (i32, i32) {
    %c0_i32 = arith.constant 0 : i32
    %c0_i32_0 = arith.constant 0 : i32
    %c0_i32_1 = arith.constant 0 : i32
    return %c0_i32, %c0_i32_0 : i32, i32
  }
  func.func @transform_12(%arg0: i32) -> (i32, i32) {
    %c0_i32 = arith.constant 0 : i32
    %c0_i32_0 = arith.constant 0 : i32
    %c0_i32_1 = arith.constant 0 : i32
    return %c0_i32, %c0_i32_0 : i32, i32
  }
  func.func @transform_13(%arg0: i32) -> (i32, i32) {
    %c0_i32 = arith.constant 0 : i32
    %c0_i32_0 = arith.constant 0 : i32
    %c0_i32_1 = arith.constant 0 : i32
    return %c0_i32, %c0_i32_0 : i32, i32
  }
  func.func @transform_14(%arg0: i32) -> (i32, i32) {
    %c0_i32 = arith.constant 0 : i32
    %c0_i32_0 = arith.constant 0 : i32
    %c0_i32_1 = arith.constant 0 : i32
    return %c0_i32, %c0_i32_0 : i32, i32
  }
  func.func @transform_15(%arg0: i32) -> (i32, i32) {
    %c0_i32 = arith.constant 0 : i32
    %c0_i32_0 = arith.constant 0 : i32
    %c0_i32_1 = arith.constant 0 : i32
    return %c0_i32, %c0_i32_0 : i32, i32
  }
  func.func @transform_16(%arg0: i32) -> (i32, i32) {
    %c0_i32 = arith.constant 0 : i32
    %c0_i32_0 = arith.constant 0 : i32
    %c0_i32_1 = arith.constant 0 : i32
    return %c0_i32, %c0_i32_0 : i32, i32
  }
  func.func @transform_17(%arg0: i32) -> (i32, i32) {
    %c0_i32 = arith.constant 0 : i32
    %c0_i32_0 = arith.constant 0 : i32
    %c0_i32_1 = arith.constant 0 : i32
    return %c0_i32, %c0_i32_0 : i32, i32
  }
  func.func @transform_18(%arg0: i32) -> (i32, i32) {
    %c0_i32 = arith.constant 0 : i32
    %c0_i32_0 = arith.constant 0 : i32
    %c0_i32_1 = arith.constant 0 : i32
    return %c0_i32, %c0_i32_0 : i32, i32
  }
  func.func @transform_19(%arg0: i32) -> (i32, i32) {
    %c0_i32 = arith.constant 0 : i32
    %c0_i32_0 = arith.constant 0 : i32
    %c0_i32_1 = arith.constant 0 : i32
    return %c0_i32, %c0_i32_0 : i32, i32
  }
  func.func @transform_20(%arg0: i32) -> (i32, i32) {
    %c0_i32 = arith.constant 0 : i32
    %c0_i32_0 = arith.constant 0 : i32
    %c0_i32_1 = arith.constant 0 : i32
    return %c0_i32, %c0_i32_0 : i32, i32
  }
  func.func @transform_21(%arg0: i32) -> (i32, i32) {
    %c0_i32 = arith.constant 0 : i32
    %c0_i32_0 = arith.constant 0 : i32
    %c0_i32_1 = arith.constant 0 : i32
    return %c0_i32, %c0_i32_0 : i32, i32
  }
  func.func @transform_22(%arg0: i32) -> (i32, i32) {
    %c0_i32 = arith.constant 0 : i32
    %c0_i32_0 = arith.constant 0 : i32
    %c0_i32_1 = arith.constant 0 : i32
    return %c0_i32, %c0_i32_0 : i32, i32
  }
  func.func @transform_23(%arg0: i32) -> (i32, i32) {
    %c0_i32 = arith.constant 0 : i32
    %c0_i32_0 = arith.constant 0 : i32
    %c0_i32_1 = arith.constant 0 : i32
    return %c0_i32, %c0_i32_0 : i32, i32
  }
  func.func @transform_24(%arg0: i32) -> (i32, i32) {
    %c0_i32 = arith.constant 0 : i32
    %c0_i32_0 = arith.constant 0 : i32
    %c0_i32_1 = arith.constant 0 : i32
    return %c0_i32, %c0_i32_0 : i32, i32
  }
  func.func @transform_25(%arg0: i32) -> (i32, i32) {
    %c0_i32 = arith.constant 0 : i32
    %c0_i32_0 = arith.constant 0 : i32
    %c0_i32_1 = arith.constant 0 : i32
    return %c0_i32, %c0_i32_0 : i32, i32
  }
  func.func @transform_26(%arg0: i32) -> (i32, i32) {
    %c0_i32 = arith.constant 0 : i32
    %c0_i32_0 = arith.constant 0 : i32
    %c0_i32_1 = arith.constant 0 : i32
    return %c0_i32, %c0_i32_0 : i32, i32
  }
  func.func @transform_27(%arg0: i32) -> (i32, i32) {
    %c0_i32 = arith.constant 0 : i32
    %c0_i32_0 = arith.constant 0 : i32
    %c0_i32_1 = arith.constant 0 : i32
    return %c0_i32, %c0_i32_0 : i32, i32
  }
  func.func @transform_28(%arg0: i32) -> (i32, i32) {
    %c0_i32 = arith.constant 0 : i32
    %c0_i32_0 = arith.constant 0 : i32
    %c0_i32_1 = arith.constant 0 : i32
    return %c0_i32, %c0_i32_0 : i32, i32
  }
  func.func @transform_29(%arg0: i32) -> (i32, i32) {
    %c0_i32 = arith.constant 0 : i32
    %c0_i32_0 = arith.constant 0 : i32
    %c0_i32_1 = arith.constant 0 : i32
    return %c0_i32, %c0_i32_0 : i32, i32
  }
  func.func @transform_30(%arg0: i32) -> (i32, i32) {
    %c0_i32 = arith.constant 0 : i32
    %c0_i32_0 = arith.constant 0 : i32
    %c0_i32_1 = arith.constant 0 : i32
    return %c0_i32, %c0_i32_0 : i32, i32
  }
  func.func @transform_31(%arg0: i32) -> (i32, i32) {
    %c0_i32 = arith.constant 0 : i32
    %c0_i32_0 = arith.constant 0 : i32
    %c0_i32_1 = arith.constant 0 : i32
    return %c0_i32, %c0_i32_0 : i32, i32
  }
  func.func @transform_32(%arg0: i32) -> (i32, i32) {
    %c0_i32 = arith.constant 0 : i32
    %c0_i32_0 = arith.constant 0 : i32
    %c0_i32_1 = arith.constant 0 : i32
    return %c0_i32, %c0_i32_0 : i32, i32
  }
  func.func @transform_33(%arg0: i32) -> (i32, i32) {
    %c0_i32 = arith.constant 0 : i32
    %c0_i32_0 = arith.constant 0 : i32
    %c0_i32_1 = arith.constant 0 : i32
    return %c0_i32, %c0_i32_0 : i32, i32
  }
  func.func @transform_34(%arg0: i32) -> (i32, i32) {
    %c0_i32 = arith.constant 0 : i32
    %c0_i32_0 = arith.constant 0 : i32
    %c0_i32_1 = arith.constant 0 : i32
    return %c0_i32, %c0_i32_0 : i32, i32
  }
  func.func @transform_35(%arg0: i32) -> (i32, i32) {
    %c0_i32 = arith.constant 0 : i32
    %c0_i32_0 = arith.constant 0 : i32
    %c0_i32_1 = arith.constant 0 : i32
    return %c0_i32, %c0_i32_0 : i32, i32
  }
  func.func @transform_36(%arg0: i32) -> (i32, i32) {
    %c0_i32 = arith.constant 0 : i32
    %c0_i32_0 = arith.constant 0 : i32
    %c0_i32_1 = arith.constant 0 : i32
    return %c0_i32, %c0_i32_0 : i32, i32
  }
  func.func @transform_37(%arg0: i32) -> (i32, i32) {
    %c0_i32 = arith.constant 0 : i32
    %c0_i32_0 = arith.constant 0 : i32
    %c0_i32_1 = arith.constant 0 : i32
    return %c0_i32, %c0_i32_0 : i32, i32
  }
  func.func @transform_38(%arg0: i32) -> (i32, i32) {
    %c0_i32 = arith.constant 0 : i32
    %c0_i32_0 = arith.constant 0 : i32
    %c0_i32_1 = arith.constant 0 : i32
    return %c0_i32, %c0_i32_0 : i32, i32
  }
  func.func @transform_39(%arg0: i32) -> (i32, i32) {
    %c0_i32 = arith.constant 0 : i32
    %c0_i32_0 = arith.constant 0 : i32
    %c0_i32_1 = arith.constant 0 : i32
    return %c0_i32, %c0_i32_0 : i32, i32
  }
  func.func @transform_40(%arg0: i32) -> (i32, i32) {
    %c0_i32 = arith.constant 0 : i32
    %c0_i32_0 = arith.constant 0 : i32
    %c0_i32_1 = arith.constant 0 : i32
    return %c0_i32, %c0_i32_0 : i32, i32
  }
  func.func @transform_41(%arg0: i32) -> (i32, i32) {
    %c0_i32 = arith.constant 0 : i32
    %c0_i32_0 = arith.constant 0 : i32
    %c0_i32_1 = arith.constant 0 : i32
    return %c0_i32, %c0_i32_0 : i32, i32
  }
  func.func @transform_42(%arg0: i32) -> (i32, i32) {
    %c0_i32 = arith.constant 0 : i32
    %c0_i32_0 = arith.constant 0 : i32
    %c0_i32_1 = arith.constant 0 : i32
    return %c0_i32, %c0_i32_0 : i32, i32
  }
  func.func @transform_43(%arg0: i32) -> (i32, i32) {
    %c0_i32 = arith.constant 0 : i32
    %c0_i32_0 = arith.constant 0 : i32
    %c0_i32_1 = arith.constant 0 : i32
    return %c0_i32, %c0_i32_0 : i32, i32
  }
  func.func @transform_44(%arg0: i32) -> (i32, i32) {
    %c0_i32 = arith.constant 0 : i32
    %c0_i32_0 = arith.constant 0 : i32
    %c0_i32_1 = arith.constant 0 : i32
    return %c0_i32, %c0_i32_0 : i32, i32
  }
  func.func @transform_45(%arg0: i32) -> (i32, i32) {
    %c0_i32 = arith.constant 0 : i32
    %c0_i32_0 = arith.constant 0 : i32
    %c0_i32_1 = arith.constant 0 : i32
    return %c0_i32, %c0_i32_0 : i32, i32
  }
  func.func @transform_46(%arg0: i32) -> (i32, i32) {
    %c0_i32 = arith.constant 0 : i32
    %c0_i32_0 = arith.constant 0 : i32
    %c0_i32_1 = arith.constant 0 : i32
    return %c0_i32, %c0_i32_0 : i32, i32
  }
  func.func @transform_47(%arg0: i32) -> (i32, i32) {
    %c0_i32 = arith.constant 0 : i32
    %c0_i32_0 = arith.constant 0 : i32
    %c0_i32_1 = arith.constant 0 : i32
    return %c0_i32, %c0_i32_0 : i32, i32
  }
  func.func @transform_48(%arg0: i32) -> (i32, i32) {
    %c0_i32 = arith.constant 0 : i32
    %c0_i32_0 = arith.constant 0 : i32
    %c0_i32_1 = arith.constant 0 : i32
    return %c0_i32, %c0_i32_0 : i32, i32
  }
  func.func @transform_49(%arg0: i32) -> (i32, i32) {
    %c0_i32 = arith.constant 0 : i32
    %c0_i32_0 = arith.constant 0 : i32
    %c0_i32_1 = arith.constant 0 : i32
    return %c0_i32, %c0_i32_0 : i32, i32
  }
}

module attributes {stable_mosaic.version = 11 : i64} {
  func.func @kernel(%arg0: i32, %arg1: memref<16x64xf32, #tpu.memory_space<vmem>>, %arg2: memref<32x18xf32, #tpu.memory_space<vmem>>, %arg3: memref<32x1xi32, #tpu.memory_space<vmem>>, %arg4: memref<32x1xi32, #tpu.memory_space<vmem>>, %arg5: memref<1x32xi32, #tpu.memory_space<vmem>>, %arg6: memref<2x12x12xbf16, #tpu.memory_space<vmem>>, %arg7: memref<2x1x32xf32, #tpu.memory_space<vmem>>, %arg8: memref<2x1x32xf32, #tpu.memory_space<vmem>>, %arg9: memref<2x32x32xbf16, #tpu.memory_space<vmem>>, %arg10: memref<2x32x32xbf16, #tpu.memory_space<vmem>>, %arg11: memref<2x32x32xbf16, #tpu.memory_space<vmem>>, %arg12: memref<2x16x32xbf16, #tpu.memory_space<vmem>>, %arg13: memref<2x2x32xbf16, #tpu.memory_space<vmem>>, %arg14: memref<2x1x32xf32, #tpu.memory_space<vmem>>, %arg15: memref<2x1x32xf32, #tpu.memory_space<vmem>>, %arg16: memref<2x32x32xbf16, #tpu.memory_space<vmem>>, %arg17: memref<2x32x32xbf16, #tpu.memory_space<vmem>>, %arg18: memref<2x32x32xbf16, #tpu.memory_space<vmem>>, %arg19: memref<2x16x32xbf16, #tpu.memory_space<vmem>>, %arg20: memref<2x4x32xbf16, #tpu.memory_space<vmem>>, %arg21: memref<16x44xf32, #tpu.memory_space<vmem>>) attributes {dimension_semantics = [#tpu.dimension_semantics<arbitrary>], iteration_bounds = array<i64: 1>, scalar_prefetch = 0 : i64, scratch_operands = 0 : i64, tpu.core_type = #tpu.core_type<tc>, window_params = [{pipeline_mode = #tpu.pipeline_mode<synchronous>, transform_indices = @transform_0, window_bounds = array<i64: 16, 64>}, {pipeline_mode = #tpu.pipeline_mode<synchronous>, transform_indices = @transform_1, window_bounds = array<i64: 32, 18>}, {pipeline_mode = #tpu.pipeline_mode<synchronous>, transform_indices = @transform_2, window_bounds = array<i64: 32, 1>}, {pipeline_mode = #tpu.pipeline_mode<synchronous>, transform_indices = @transform_3, window_bounds = array<i64: 32, 1>}, {pipeline_mode = #tpu.pipeline_mode<synchronous>, transform_indices = @transform_4, window_bounds = array<i64: 1, 32>}, {pipeline_mode = #tpu.pipeline_mode<synchronous>, transform_indices = @transform_5, window_bounds = array<i64: 2, 12, 12>}, {pipeline_mode = #tpu.pipeline_mode<synchronous>, transform_indices = @transform_6, window_bounds = array<i64: 2, 1, 32>}, {pipeline_mode = #tpu.pipeline_mode<synchronous>, transform_indices = @transform_7, window_bounds = array<i64: 2, 1, 32>}, {pipeline_mode = #tpu.pipeline_mode<synchronous>, transform_indices = @transform_8, window_bounds = array<i64: 2, 32, 32>}, {pipeline_mode = #tpu.pipeline_mode<synchronous>, transform_indices = @transform_9, window_bounds = array<i64: 2, 32, 32>}, {pipeline_mode = #tpu.pipeline_mode<synchronous>, transform_indices = @transform_10, window_bounds = array<i64: 2, 32, 32>}, {pipeline_mode = #tpu.pipeline_mode<synchronous>, transform_indices = @transform_11, window_bounds = array<i64: 2, 16, 32>}, {pipeline_mode = #tpu.pipeline_mode<synchronous>, transform_indices = @transform_12, window_bounds = array<i64: 2, 2, 32>}, {pipeline_mode = #tpu.pipeline_mode<synchronous>, transform_indices = @transform_13, window_bounds = array<i64: 2, 1, 32>}, {pipeline_mode = #tpu.pipeline_mode<synchronous>, transform_indices = @transform_14, window_bounds = array<i64: 2, 1, 32>}, {pipeline_mode = #tpu.pipeline_mode<synchronous>, transform_indices = @transform_15, window_bounds = array<i64: 2, 32, 32>}, {pipeline_mode = #tpu.pipeline_mode<synchronous>, transform_indices = @transform_16, window_bounds = array<i64: 2, 32, 32>}, {pipeline_mode = #tpu.pipeline_mode<synchronous>, transform_indices = @transform_17, window_bounds = array<i64: 2, 32, 32>}, {pipeline_mode = #tpu.pipeline_mode<synchronous>, transform_indices = @transform_18, window_bounds = array<i64: 2, 16, 32>}, {pipeline_mode = #tpu.pipeline_mode<synchronous>, transform_indices = @transform_19, window_bounds = array<i64: 2, 4, 32>}, {pipeline_mode = #tpu.pipeline_mode<synchronous>, transform_indices = @transform_20, window_bounds = array<i64: 16, 44>}]} {
    %c0 = arith.constant 0 : index
    %c0_0 = arith.constant 0 : index
    %0 = vector.load %arg1[%c0, %c0_0] : memref<16x64xf32, #tpu.memory_space<vmem>>, vector<16x64xf32>
    %1 = vector.extract_strided_slice %0 {offsets = [0, 0], sizes = [16, 32], strides = [1, 1]} : vector<16x64xf32> to vector<16x32xf32>
    %2 = vector.extract_strided_slice %0 {offsets = [0, 32], sizes = [16, 12], strides = [1, 1]} : vector<16x64xf32> to vector<16x12xf32>
    %3 = vector.extract_strided_slice %0 {offsets = [0, 44], sizes = [16, 16], strides = [1, 1]} : vector<16x64xf32> to vector<16x16xf32>
    %4 = vector.extract_strided_slice %0 {offsets = [0, 60], sizes = [16, 4], strides = [1, 1]} : vector<16x64xf32> to vector<16x4xf32>
    %c0_1 = arith.constant 0 : index
    %c0_2 = arith.constant 0 : index
    %5 = vector.load %arg2[%c0_1, %c0_2] : memref<32x18xf32, #tpu.memory_space<vmem>>, vector<32x18xf32>
    %6 = vector.extract_strided_slice %5 {offsets = [0, 0], sizes = [32, 16], strides = [1, 1]} : vector<32x18xf32> to vector<32x16xf32>
    %7 = vector.extract_strided_slice %5 {offsets = [0, 16], sizes = [32, 2], strides = [1, 1]} : vector<32x18xf32> to vector<32x2xf32>
    %8 = tpu.iota {dimensions = array<i32: 1>} : vector<32x16xi32>
    %c0_3 = arith.constant 0 : index
    %c0_4 = arith.constant 0 : index
    %9 = vector.load %arg3[%c0_3, %c0_4] : memref<32x1xi32, #tpu.memory_space<vmem>>, vector<32x1xi32>
    %10 = vector.broadcast %9 : vector<32x1xi32> to vector<32x16xi32>
    %11 = arith.cmpi eq, %8, %10 : vector<32x16xi32>
    %12 = arith.extui %11 : vector<32x16xi1> to vector<32x16xi32>
    %13 = arith.sitofp %12 : vector<32x16xi32> to vector<32x16xf32>
    %14 = tpu.iota {dimensions = array<i32: 1>} : vector<32x16xi32>
    %c0_5 = arith.constant 0 : index
    %c0_6 = arith.constant 0 : index
    %15 = vector.load %arg4[%c0_5, %c0_6] : memref<32x1xi32, #tpu.memory_space<vmem>>, vector<32x1xi32>
    %16 = vector.broadcast %15 : vector<32x1xi32> to vector<32x16xi32>
    %17 = arith.cmpi eq, %14, %16 : vector<32x16xi32>
    %18 = arith.extui %17 : vector<32x16xi1> to vector<32x16xi32>
    %19 = arith.sitofp %18 : vector<32x16xi32> to vector<32x16xf32>
    %20 = tpu.iota {dimensions = array<i32: 0>} : vector<16x32xi32>
    %c0_7 = arith.constant 0 : index
    %c0_8 = arith.constant 0 : index
    %21 = vector.load %arg5[%c0_7, %c0_8] : memref<1x32xi32, #tpu.memory_space<vmem>>, vector<1x32xi32>
    %22 = vector.broadcast %21 : vector<1x32xi32> to vector<16x32xi32>
    %23 = arith.cmpi eq, %20, %22 : vector<16x32xi32>
    %24 = arith.extui %23 : vector<16x32xi1> to vector<16x32xi32>
    %25 = arith.sitofp %24 : vector<16x32xi32> to vector<16x32xf32>
    %cst = arith.constant dense<0.000000e+00> : vector<16xf32>
    %26 = vector.multi_reduction <add>, %25, %cst [1] : vector<16x32xf32> to vector<16xf32>
    %27 = vector.shape_cast %26 : vector<16xf32> to vector<16x1xf32>
    %cst_9 = arith.constant 1.000000e+00 : f32
    %28 = vector.broadcast %cst_9 : f32 to vector<16x1xf32>
    %29 = arith.maximumf %27, %28 : vector<16x1xf32>
    %c0_10 = arith.constant 0 : index
    %c0_11 = arith.constant 0 : index
    %c0_12 = arith.constant 0 : index
    %30 = vector.load %arg10[%c0_10, %c0_11, %c0_12] : memref<2x32x32xbf16, #tpu.memory_space<vmem>>, vector<1x32x32xbf16>
    %31 = vector.shape_cast %30 : vector<1x32x32xbf16> to vector<32x32xbf16>
    %32 = arith.truncf %1 : vector<16x32xf32> to vector<16x32xbf16>
    %cst_13 = arith.constant dense<0.000000e+00> : vector<16x32xf32>
    %33 = tpu.matmul %32, %31, %cst_13 {dimension_numbers = #tpu.dot_dimension_numbers<[1], [0], [0], [1], [0, 0, 1, 1], [], []>} : vector<16x32xbf16>, vector<32x32xbf16>, vector<16x32xf32> -> vector<16x32xf32>
    %c0_14 = arith.constant 0 : index
    %c0_15 = arith.constant 0 : index
    %c0_16 = arith.constant 0 : index
    %34 = vector.load %arg11[%c0_14, %c0_15, %c0_16] : memref<2x32x32xbf16, #tpu.memory_space<vmem>>, vector<1x32x32xbf16>
    %35 = vector.shape_cast %34 : vector<1x32x32xbf16> to vector<32x32xbf16>
    %36 = arith.truncf %1 : vector<16x32xf32> to vector<16x32xbf16>
    %cst_17 = arith.constant dense<0.000000e+00> : vector<16x32xf32>
    %37 = tpu.matmul %36, %35, %cst_17 {dimension_numbers = #tpu.dot_dimension_numbers<[1], [0], [0], [1], [0, 0, 1, 1], [], []>} : vector<16x32xbf16>, vector<32x32xbf16>, vector<16x32xf32> -> vector<16x32xf32>
    %cst_18 = arith.constant dense<0.000000e+00> : vector<32x32xf32>
    %38 = tpu.matmul %13, %33, %cst_18 {dimension_numbers = #tpu.dot_dimension_numbers<[1], [0], [0], [1], [0, 0, 1, 1], [], []>} : vector<32x16xf32>, vector<16x32xf32>, vector<32x32xf32> -> vector<32x32xf32>
    %cst_19 = arith.constant dense<0.000000e+00> : vector<32x32xf32>
    %39 = tpu.matmul %19, %37, %cst_19 {dimension_numbers = #tpu.dot_dimension_numbers<[1], [0], [0], [1], [0, 0, 1, 1], [], []>} : vector<32x16xf32>, vector<16x32xf32>, vector<32x32xf32> -> vector<32x32xf32>
    %40 = arith.addf %38, %39 : vector<32x32xf32>
    %c0_20 = arith.constant 0 : index
    %c0_21 = arith.constant 0 : index
    %c0_22 = arith.constant 0 : index
    %41 = vector.load %arg12[%c0_20, %c0_21, %c0_22] : memref<2x16x32xbf16, #tpu.memory_space<vmem>>, vector<1x16x32xbf16>
    %42 = vector.shape_cast %41 : vector<1x16x32xbf16> to vector<16x32xbf16>
    %43 = arith.truncf %6 : vector<32x16xf32> to vector<32x16xbf16>
    %cst_23 = arith.constant dense<0.000000e+00> : vector<32x32xf32>
    %44 = tpu.matmul %43, %42, %cst_23 {dimension_numbers = #tpu.dot_dimension_numbers<[1], [0], [0], [1], [0, 0, 1, 1], [], []>} : vector<32x16xbf16>, vector<16x32xbf16>, vector<32x32xf32> -> vector<32x32xf32>
    %45 = arith.addf %40, %44 : vector<32x32xf32>
    %c0_24 = arith.constant 0 : index
    %c0_25 = arith.constant 0 : index
    %c0_26 = arith.constant 0 : index
    %46 = vector.load %arg13[%c0_24, %c0_25, %c0_26] : memref<2x2x32xbf16, #tpu.memory_space<vmem>>, vector<1x2x32xbf16>
    %47 = vector.shape_cast %46 : vector<1x2x32xbf16> to vector<2x32xbf16>
    %48 = arith.truncf %7 : vector<32x2xf32> to vector<32x2xbf16>
    %cst_27 = arith.constant dense<0.000000e+00> : vector<32x32xf32>
    %49 = tpu.matmul %48, %47, %cst_27 {dimension_numbers = #tpu.dot_dimension_numbers<[1], [0], [0], [1], [0, 0, 1, 1], [], []>} : vector<32x2xbf16>, vector<2x32xbf16>, vector<32x32xf32> -> vector<32x32xf32>
    %50 = arith.addf %45, %49 : vector<32x32xf32>
    %c0_28 = arith.constant 0 : index
    %c0_29 = arith.constant 0 : index
    %c0_30 = arith.constant 0 : index
    %51 = vector.load %arg7[%c0_28, %c0_29, %c0_30] : memref<2x1x32xf32, #tpu.memory_space<vmem>>, vector<1x1x32xf32>
    %52 = vector.shape_cast %51 : vector<1x1x32xf32> to vector<1x32xf32>
    %53 = vector.broadcast %52 : vector<1x32xf32> to vector<32x32xf32>
    %54 = arith.addf %50, %53 : vector<32x32xf32>
    %55 = arith.negf %54 : vector<32x32xf32>
    %56 = math.exp %55 : vector<32x32xf32>
    %cst_31 = arith.constant 1.000000e+00 : f32
    %57 = vector.broadcast %cst_31 : f32 to vector<32x32xf32>
    %58 = arith.addf %57, %56 : vector<32x32xf32>
    %59 = arith.divf %57, %58 : vector<32x32xf32>
    %60 = arith.mulf %54, %59 : vector<32x32xf32>
    %c0_32 = arith.constant 0 : index
    %c0_33 = arith.constant 0 : index
    %c0_34 = arith.constant 0 : index
    %61 = vector.load %arg9[%c0_32, %c0_33, %c0_34] : memref<2x32x32xbf16, #tpu.memory_space<vmem>>, vector<1x32x32xbf16>
    %62 = vector.shape_cast %61 : vector<1x32x32xbf16> to vector<32x32xbf16>
    %63 = arith.truncf %60 : vector<32x32xf32> to vector<32x32xbf16>
    %cst_35 = arith.constant dense<0.000000e+00> : vector<32x32xf32>
    %64 = tpu.matmul %63, %62, %cst_35 {dimension_numbers = #tpu.dot_dimension_numbers<[1], [0], [0], [1], [0, 0, 1, 1], [], []>} : vector<32x32xbf16>, vector<32x32xbf16>, vector<32x32xf32> -> vector<32x32xf32>
    %c0_36 = arith.constant 0 : index
    %c0_37 = arith.constant 0 : index
    %c0_38 = arith.constant 0 : index
    %65 = vector.load %arg8[%c0_36, %c0_37, %c0_38] : memref<2x1x32xf32, #tpu.memory_space<vmem>>, vector<1x1x32xf32>
    %66 = vector.shape_cast %65 : vector<1x1x32xf32> to vector<1x32xf32>
    %67 = vector.broadcast %66 : vector<1x32xf32> to vector<32x32xf32>
    %68 = arith.addf %64, %67 : vector<32x32xf32>
    %69 = arith.negf %68 : vector<32x32xf32>
    %70 = math.exp %69 : vector<32x32xf32>
    %cst_39 = arith.constant 1.000000e+00 : f32
    %71 = vector.broadcast %cst_39 : f32 to vector<32x32xf32>
    %72 = arith.addf %71, %70 : vector<32x32xf32>
    %73 = arith.divf %71, %72 : vector<32x32xf32>
    %74 = arith.mulf %68, %73 : vector<32x32xf32>
    %cst_40 = arith.constant dense<0.000000e+00> : vector<16x32xf32>
    %75 = tpu.matmul %25, %74, %cst_40 {dimension_numbers = #tpu.dot_dimension_numbers<[1], [0], [0], [1], [0, 0, 1, 1], [], []>} : vector<16x32xf32>, vector<32x32xf32>, vector<16x32xf32> -> vector<16x32xf32>
    %76 = vector.broadcast %29 : vector<16x1xf32> to vector<16x32xf32>
    %77 = arith.divf %75, %76 : vector<16x32xf32>
    %c0_41 = arith.constant 0 : index
    %c0_42 = arith.constant 0 : index
    %c0_43 = arith.constant 0 : index
    %78 = vector.load %arg17[%c0_41, %c0_42, %c0_43] : memref<2x32x32xbf16, #tpu.memory_space<vmem>>, vector<1x32x32xbf16>
    %79 = vector.shape_cast %78 : vector<1x32x32xbf16> to vector<32x32xbf16>
    %80 = arith.truncf %1 : vector<16x32xf32> to vector<16x32xbf16>
    %cst_44 = arith.constant dense<0.000000e+00> : vector<16x32xf32>
    %81 = tpu.matmul %80, %79, %cst_44 {dimension_numbers = #tpu.dot_dimension_numbers<[1], [0], [0], [1], [0, 0, 1, 1], [], []>} : vector<16x32xbf16>, vector<32x32xbf16>, vector<16x32xf32> -> vector<16x32xf32>
    %c0_45 = arith.constant 0 : index
    %c0_46 = arith.constant 0 : index
    %c0_47 = arith.constant 0 : index
    %82 = vector.load %arg18[%c0_45, %c0_46, %c0_47] : memref<2x32x32xbf16, #tpu.memory_space<vmem>>, vector<1x32x32xbf16>
    %83 = vector.shape_cast %82 : vector<1x32x32xbf16> to vector<32x32xbf16>
    %84 = arith.truncf %77 : vector<16x32xf32> to vector<16x32xbf16>
    %cst_48 = arith.constant dense<0.000000e+00> : vector<16x32xf32>
    %85 = tpu.matmul %84, %83, %cst_48 {dimension_numbers = #tpu.dot_dimension_numbers<[1], [0], [0], [1], [0, 0, 1, 1], [], []>} : vector<16x32xbf16>, vector<32x32xbf16>, vector<16x32xf32> -> vector<16x32xf32>
    %86 = arith.addf %81, %85 : vector<16x32xf32>
    %c0_49 = arith.constant 0 : index
    %c0_50 = arith.constant 0 : index
    %c0_51 = arith.constant 0 : index
    %87 = vector.load %arg19[%c0_49, %c0_50, %c0_51] : memref<2x16x32xbf16, #tpu.memory_space<vmem>>, vector<1x16x32xbf16>
    %88 = vector.shape_cast %87 : vector<1x16x32xbf16> to vector<16x32xbf16>
    %89 = arith.truncf %3 : vector<16x16xf32> to vector<16x16xbf16>
    %cst_52 = arith.constant dense<0.000000e+00> : vector<16x32xf32>
    %90 = tpu.matmul %89, %88, %cst_52 {dimension_numbers = #tpu.dot_dimension_numbers<[1], [0], [0], [1], [0, 0, 1, 1], [], []>} : vector<16x16xbf16>, vector<16x32xbf16>, vector<16x32xf32> -> vector<16x32xf32>
    %91 = arith.addf %86, %90 : vector<16x32xf32>
    %c0_53 = arith.constant 0 : index
    %c0_54 = arith.constant 0 : index
    %c0_55 = arith.constant 0 : index
    %92 = vector.load %arg20[%c0_53, %c0_54, %c0_55] : memref<2x4x32xbf16, #tpu.memory_space<vmem>>, vector<1x4x32xbf16>
    %93 = vector.shape_cast %92 : vector<1x4x32xbf16> to vector<4x32xbf16>
    %94 = arith.truncf %4 : vector<16x4xf32> to vector<16x4xbf16>
    %cst_56 = arith.constant dense<0.000000e+00> : vector<16x32xf32>
    %95 = tpu.matmul %94, %93, %cst_56 {dimension_numbers = #tpu.dot_dimension_numbers<[1], [0], [0], [1], [0, 0, 1, 1], [], []>} : vector<16x4xbf16>, vector<4x32xbf16>, vector<16x32xf32> -> vector<16x32xf32>
    %96 = arith.addf %91, %95 : vector<16x32xf32>
    %c0_57 = arith.constant 0 : index
    %c0_58 = arith.constant 0 : index
    %c0_59 = arith.constant 0 : index
    %97 = vector.load %arg14[%c0_57, %c0_58, %c0_59] : memref<2x1x32xf32, #tpu.memory_space<vmem>>, vector<1x1x32xf32>
    %98 = vector.shape_cast %97 : vector<1x1x32xf32> to vector<1x32xf32>
    %99 = vector.broadcast %98 : vector<1x32xf32> to vector<16x32xf32>
    %100 = arith.addf %96, %99 : vector<16x32xf32>
    %101 = arith.negf %100 : vector<16x32xf32>
    %102 = math.exp %101 : vector<16x32xf32>
    %cst_60 = arith.constant 1.000000e+00 : f32
    %103 = vector.broadcast %cst_60 : f32 to vector<16x32xf32>
    %104 = arith.addf %103, %102 : vector<16x32xf32>
    %105 = arith.divf %103, %104 : vector<16x32xf32>
    %106 = arith.mulf %100, %105 : vector<16x32xf32>
    %c0_61 = arith.constant 0 : index
    %c0_62 = arith.constant 0 : index
    %c0_63 = arith.constant 0 : index
    %107 = vector.load %arg16[%c0_61, %c0_62, %c0_63] : memref<2x32x32xbf16, #tpu.memory_space<vmem>>, vector<1x32x32xbf16>
    %108 = vector.shape_cast %107 : vector<1x32x32xbf16> to vector<32x32xbf16>
    %109 = arith.truncf %106 : vector<16x32xf32> to vector<16x32xbf16>
    %cst_64 = arith.constant dense<0.000000e+00> : vector<16x32xf32>
    %110 = tpu.matmul %109, %108, %cst_64 {dimension_numbers = #tpu.dot_dimension_numbers<[1], [0], [0], [1], [0, 0, 1, 1], [], []>} : vector<16x32xbf16>, vector<32x32xbf16>, vector<16x32xf32> -> vector<16x32xf32>
    %c0_65 = arith.constant 0 : index
    %c0_66 = arith.constant 0 : index
    %c0_67 = arith.constant 0 : index
    %111 = vector.load %arg15[%c0_65, %c0_66, %c0_67] : memref<2x1x32xf32, #tpu.memory_space<vmem>>, vector<1x1x32xf32>
    %112 = vector.shape_cast %111 : vector<1x1x32xf32> to vector<1x32xf32>
    %113 = vector.broadcast %112 : vector<1x32xf32> to vector<16x32xf32>
    %114 = arith.addf %110, %113 : vector<16x32xf32>
    %115 = arith.negf %114 : vector<16x32xf32>
    %116 = math.exp %115 : vector<16x32xf32>
    %cst_68 = arith.constant 1.000000e+00 : f32
    %117 = vector.broadcast %cst_68 : f32 to vector<16x32xf32>
    %118 = arith.addf %117, %116 : vector<16x32xf32>
    %119 = arith.divf %117, %118 : vector<16x32xf32>
    %120 = arith.mulf %114, %119 : vector<16x32xf32>
    %121 = arith.addf %1, %120 : vector<16x32xf32>
    %c0_69 = arith.constant 0 : index
    %c0_70 = arith.constant 0 : index
    %c0_71 = arith.constant 0 : index
    %122 = vector.load %arg6[%c0_69, %c0_70, %c0_71] : memref<2x12x12xbf16, #tpu.memory_space<vmem>>, vector<1x12x12xbf16>
    %123 = vector.shape_cast %122 : vector<1x12x12xbf16> to vector<12x12xbf16>
    %124 = arith.truncf %2 : vector<16x12xf32> to vector<16x12xbf16>
    %cst_72 = arith.constant dense<0.000000e+00> : vector<16x12xf32>
    %125 = tpu.matmul %124, %123, %cst_72 {dimension_numbers = #tpu.dot_dimension_numbers<[1], [0], [0], [1], [0, 0, 1, 1], [], []>} : vector<16x12xbf16>, vector<12x12xbf16>, vector<16x12xf32> -> vector<16x12xf32>
    %126 = arith.addf %2, %125 : vector<16x12xf32>
    %c1 = arith.constant 1 : index
    %c0_73 = arith.constant 0 : index
    %c0_74 = arith.constant 0 : index
    %127 = vector.load %arg10[%c1, %c0_73, %c0_74] : memref<2x32x32xbf16, #tpu.memory_space<vmem>>, vector<1x32x32xbf16>
    %128 = vector.shape_cast %127 : vector<1x32x32xbf16> to vector<32x32xbf16>
    %129 = arith.truncf %121 : vector<16x32xf32> to vector<16x32xbf16>
    %cst_75 = arith.constant dense<0.000000e+00> : vector<16x32xf32>
    %130 = tpu.matmul %129, %128, %cst_75 {dimension_numbers = #tpu.dot_dimension_numbers<[1], [0], [0], [1], [0, 0, 1, 1], [], []>} : vector<16x32xbf16>, vector<32x32xbf16>, vector<16x32xf32> -> vector<16x32xf32>
    %c1_76 = arith.constant 1 : index
    %c0_77 = arith.constant 0 : index
    %c0_78 = arith.constant 0 : index
    %131 = vector.load %arg11[%c1_76, %c0_77, %c0_78] : memref<2x32x32xbf16, #tpu.memory_space<vmem>>, vector<1x32x32xbf16>
    %132 = vector.shape_cast %131 : vector<1x32x32xbf16> to vector<32x32xbf16>
    %133 = arith.truncf %121 : vector<16x32xf32> to vector<16x32xbf16>
    %cst_79 = arith.constant dense<0.000000e+00> : vector<16x32xf32>
    %134 = tpu.matmul %133, %132, %cst_79 {dimension_numbers = #tpu.dot_dimension_numbers<[1], [0], [0], [1], [0, 0, 1, 1], [], []>} : vector<16x32xbf16>, vector<32x32xbf16>, vector<16x32xf32> -> vector<16x32xf32>
    %cst_80 = arith.constant dense<0.000000e+00> : vector<32x32xf32>
    %135 = tpu.matmul %13, %130, %cst_80 {dimension_numbers = #tpu.dot_dimension_numbers<[1], [0], [0], [1], [0, 0, 1, 1], [], []>} : vector<32x16xf32>, vector<16x32xf32>, vector<32x32xf32> -> vector<32x32xf32>
    %cst_81 = arith.constant dense<0.000000e+00> : vector<32x32xf32>
    %136 = tpu.matmul %19, %134, %cst_81 {dimension_numbers = #tpu.dot_dimension_numbers<[1], [0], [0], [1], [0, 0, 1, 1], [], []>} : vector<32x16xf32>, vector<16x32xf32>, vector<32x32xf32> -> vector<32x32xf32>
    %137 = arith.addf %135, %136 : vector<32x32xf32>
    %c1_82 = arith.constant 1 : index
    %c0_83 = arith.constant 0 : index
    %c0_84 = arith.constant 0 : index
    %138 = vector.load %arg12[%c1_82, %c0_83, %c0_84] : memref<2x16x32xbf16, #tpu.memory_space<vmem>>, vector<1x16x32xbf16>
    %139 = vector.shape_cast %138 : vector<1x16x32xbf16> to vector<16x32xbf16>
    %140 = arith.truncf %6 : vector<32x16xf32> to vector<32x16xbf16>
    %cst_85 = arith.constant dense<0.000000e+00> : vector<32x32xf32>
    %141 = tpu.matmul %140, %139, %cst_85 {dimension_numbers = #tpu.dot_dimension_numbers<[1], [0], [0], [1], [0, 0, 1, 1], [], []>} : vector<32x16xbf16>, vector<16x32xbf16>, vector<32x32xf32> -> vector<32x32xf32>
    %142 = arith.addf %137, %141 : vector<32x32xf32>
    %c1_86 = arith.constant 1 : index
    %c0_87 = arith.constant 0 : index
    %c0_88 = arith.constant 0 : index
    %143 = vector.load %arg13[%c1_86, %c0_87, %c0_88] : memref<2x2x32xbf16, #tpu.memory_space<vmem>>, vector<1x2x32xbf16>
    %144 = vector.shape_cast %143 : vector<1x2x32xbf16> to vector<2x32xbf16>
    %145 = arith.truncf %7 : vector<32x2xf32> to vector<32x2xbf16>
    %cst_89 = arith.constant dense<0.000000e+00> : vector<32x32xf32>
    %146 = tpu.matmul %145, %144, %cst_89 {dimension_numbers = #tpu.dot_dimension_numbers<[1], [0], [0], [1], [0, 0, 1, 1], [], []>} : vector<32x2xbf16>, vector<2x32xbf16>, vector<32x32xf32> -> vector<32x32xf32>
    %147 = arith.addf %142, %146 : vector<32x32xf32>
    %c1_90 = arith.constant 1 : index
    %c0_91 = arith.constant 0 : index
    %c0_92 = arith.constant 0 : index
    %148 = vector.load %arg7[%c1_90, %c0_91, %c0_92] : memref<2x1x32xf32, #tpu.memory_space<vmem>>, vector<1x1x32xf32>
    %149 = vector.shape_cast %148 : vector<1x1x32xf32> to vector<1x32xf32>
    %150 = vector.broadcast %149 : vector<1x32xf32> to vector<32x32xf32>
    %151 = arith.addf %147, %150 : vector<32x32xf32>
    %152 = arith.negf %151 : vector<32x32xf32>
    %153 = math.exp %152 : vector<32x32xf32>
    %cst_93 = arith.constant 1.000000e+00 : f32
    %154 = vector.broadcast %cst_93 : f32 to vector<32x32xf32>
    %155 = arith.addf %154, %153 : vector<32x32xf32>
    %156 = arith.divf %154, %155 : vector<32x32xf32>
    %157 = arith.mulf %151, %156 : vector<32x32xf32>
    %c1_94 = arith.constant 1 : index
    %c0_95 = arith.constant 0 : index
    %c0_96 = arith.constant 0 : index
    %158 = vector.load %arg9[%c1_94, %c0_95, %c0_96] : memref<2x32x32xbf16, #tpu.memory_space<vmem>>, vector<1x32x32xbf16>
    %159 = vector.shape_cast %158 : vector<1x32x32xbf16> to vector<32x32xbf16>
    %160 = arith.truncf %157 : vector<32x32xf32> to vector<32x32xbf16>
    %cst_97 = arith.constant dense<0.000000e+00> : vector<32x32xf32>
    %161 = tpu.matmul %160, %159, %cst_97 {dimension_numbers = #tpu.dot_dimension_numbers<[1], [0], [0], [1], [0, 0, 1, 1], [], []>} : vector<32x32xbf16>, vector<32x32xbf16>, vector<32x32xf32> -> vector<32x32xf32>
    %c1_98 = arith.constant 1 : index
    %c0_99 = arith.constant 0 : index
    %c0_100 = arith.constant 0 : index
    %162 = vector.load %arg8[%c1_98, %c0_99, %c0_100] : memref<2x1x32xf32, #tpu.memory_space<vmem>>, vector<1x1x32xf32>
    %163 = vector.shape_cast %162 : vector<1x1x32xf32> to vector<1x32xf32>
    %164 = vector.broadcast %163 : vector<1x32xf32> to vector<32x32xf32>
    %165 = arith.addf %161, %164 : vector<32x32xf32>
    %166 = arith.negf %165 : vector<32x32xf32>
    %167 = math.exp %166 : vector<32x32xf32>
    %cst_101 = arith.constant 1.000000e+00 : f32
    %168 = vector.broadcast %cst_101 : f32 to vector<32x32xf32>
    %169 = arith.addf %168, %167 : vector<32x32xf32>
    %170 = arith.divf %168, %169 : vector<32x32xf32>
    %171 = arith.mulf %165, %170 : vector<32x32xf32>
    %cst_102 = arith.constant dense<0.000000e+00> : vector<16x32xf32>
    %172 = tpu.matmul %25, %171, %cst_102 {dimension_numbers = #tpu.dot_dimension_numbers<[1], [0], [0], [1], [0, 0, 1, 1], [], []>} : vector<16x32xf32>, vector<32x32xf32>, vector<16x32xf32> -> vector<16x32xf32>
    %173 = vector.broadcast %29 : vector<16x1xf32> to vector<16x32xf32>
    %174 = arith.divf %172, %173 : vector<16x32xf32>
    %c1_103 = arith.constant 1 : index
    %c0_104 = arith.constant 0 : index
    %c0_105 = arith.constant 0 : index
    %175 = vector.load %arg17[%c1_103, %c0_104, %c0_105] : memref<2x32x32xbf16, #tpu.memory_space<vmem>>, vector<1x32x32xbf16>
    %176 = vector.shape_cast %175 : vector<1x32x32xbf16> to vector<32x32xbf16>
    %177 = arith.truncf %121 : vector<16x32xf32> to vector<16x32xbf16>
    %cst_106 = arith.constant dense<0.000000e+00> : vector<16x32xf32>
    %178 = tpu.matmul %177, %176, %cst_106 {dimension_numbers = #tpu.dot_dimension_numbers<[1], [0], [0], [1], [0, 0, 1, 1], [], []>} : vector<16x32xbf16>, vector<32x32xbf16>, vector<16x32xf32> -> vector<16x32xf32>
    %c1_107 = arith.constant 1 : index
    %c0_108 = arith.constant 0 : index
    %c0_109 = arith.constant 0 : index
    %179 = vector.load %arg18[%c1_107, %c0_108, %c0_109] : memref<2x32x32xbf16, #tpu.memory_space<vmem>>, vector<1x32x32xbf16>
    %180 = vector.shape_cast %179 : vector<1x32x32xbf16> to vector<32x32xbf16>
    %181 = arith.truncf %174 : vector<16x32xf32> to vector<16x32xbf16>
    %cst_110 = arith.constant dense<0.000000e+00> : vector<16x32xf32>
    %182 = tpu.matmul %181, %180, %cst_110 {dimension_numbers = #tpu.dot_dimension_numbers<[1], [0], [0], [1], [0, 0, 1, 1], [], []>} : vector<16x32xbf16>, vector<32x32xbf16>, vector<16x32xf32> -> vector<16x32xf32>
    %183 = arith.addf %178, %182 : vector<16x32xf32>
    %c1_111 = arith.constant 1 : index
    %c0_112 = arith.constant 0 : index
    %c0_113 = arith.constant 0 : index
    %184 = vector.load %arg19[%c1_111, %c0_112, %c0_113] : memref<2x16x32xbf16, #tpu.memory_space<vmem>>, vector<1x16x32xbf16>
    %185 = vector.shape_cast %184 : vector<1x16x32xbf16> to vector<16x32xbf16>
    %186 = arith.truncf %3 : vector<16x16xf32> to vector<16x16xbf16>
    %cst_114 = arith.constant dense<0.000000e+00> : vector<16x32xf32>
    %187 = tpu.matmul %186, %185, %cst_114 {dimension_numbers = #tpu.dot_dimension_numbers<[1], [0], [0], [1], [0, 0, 1, 1], [], []>} : vector<16x16xbf16>, vector<16x32xbf16>, vector<16x32xf32> -> vector<16x32xf32>
    %188 = arith.addf %183, %187 : vector<16x32xf32>
    %c1_115 = arith.constant 1 : index
    %c0_116 = arith.constant 0 : index
    %c0_117 = arith.constant 0 : index
    %189 = vector.load %arg20[%c1_115, %c0_116, %c0_117] : memref<2x4x32xbf16, #tpu.memory_space<vmem>>, vector<1x4x32xbf16>
    %190 = vector.shape_cast %189 : vector<1x4x32xbf16> to vector<4x32xbf16>
    %191 = arith.truncf %4 : vector<16x4xf32> to vector<16x4xbf16>
    %cst_118 = arith.constant dense<0.000000e+00> : vector<16x32xf32>
    %192 = tpu.matmul %191, %190, %cst_118 {dimension_numbers = #tpu.dot_dimension_numbers<[1], [0], [0], [1], [0, 0, 1, 1], [], []>} : vector<16x4xbf16>, vector<4x32xbf16>, vector<16x32xf32> -> vector<16x32xf32>
    %193 = arith.addf %188, %192 : vector<16x32xf32>
    %c1_119 = arith.constant 1 : index
    %c0_120 = arith.constant 0 : index
    %c0_121 = arith.constant 0 : index
    %194 = vector.load %arg14[%c1_119, %c0_120, %c0_121] : memref<2x1x32xf32, #tpu.memory_space<vmem>>, vector<1x1x32xf32>
    %195 = vector.shape_cast %194 : vector<1x1x32xf32> to vector<1x32xf32>
    %196 = vector.broadcast %195 : vector<1x32xf32> to vector<16x32xf32>
    %197 = arith.addf %193, %196 : vector<16x32xf32>
    %198 = arith.negf %197 : vector<16x32xf32>
    %199 = math.exp %198 : vector<16x32xf32>
    %cst_122 = arith.constant 1.000000e+00 : f32
    %200 = vector.broadcast %cst_122 : f32 to vector<16x32xf32>
    %201 = arith.addf %200, %199 : vector<16x32xf32>
    %202 = arith.divf %200, %201 : vector<16x32xf32>
    %203 = arith.mulf %197, %202 : vector<16x32xf32>
    %c1_123 = arith.constant 1 : index
    %c0_124 = arith.constant 0 : index
    %c0_125 = arith.constant 0 : index
    %204 = vector.load %arg16[%c1_123, %c0_124, %c0_125] : memref<2x32x32xbf16, #tpu.memory_space<vmem>>, vector<1x32x32xbf16>
    %205 = vector.shape_cast %204 : vector<1x32x32xbf16> to vector<32x32xbf16>
    %206 = arith.truncf %203 : vector<16x32xf32> to vector<16x32xbf16>
    %cst_126 = arith.constant dense<0.000000e+00> : vector<16x32xf32>
    %207 = tpu.matmul %206, %205, %cst_126 {dimension_numbers = #tpu.dot_dimension_numbers<[1], [0], [0], [1], [0, 0, 1, 1], [], []>} : vector<16x32xbf16>, vector<32x32xbf16>, vector<16x32xf32> -> vector<16x32xf32>
    %c1_127 = arith.constant 1 : index
    %c0_128 = arith.constant 0 : index
    %c0_129 = arith.constant 0 : index
    %208 = vector.load %arg15[%c1_127, %c0_128, %c0_129] : memref<2x1x32xf32, #tpu.memory_space<vmem>>, vector<1x1x32xf32>
    %209 = vector.shape_cast %208 : vector<1x1x32xf32> to vector<1x32xf32>
    %210 = vector.broadcast %209 : vector<1x32xf32> to vector<16x32xf32>
    %211 = arith.addf %207, %210 : vector<16x32xf32>
    %212 = arith.negf %211 : vector<16x32xf32>
    %213 = math.exp %212 : vector<16x32xf32>
    %cst_130 = arith.constant 1.000000e+00 : f32
    %214 = vector.broadcast %cst_130 : f32 to vector<16x32xf32>
    %215 = arith.addf %214, %213 : vector<16x32xf32>
    %216 = arith.divf %214, %215 : vector<16x32xf32>
    %217 = arith.mulf %211, %216 : vector<16x32xf32>
    %218 = arith.addf %121, %217 : vector<16x32xf32>
    %c1_131 = arith.constant 1 : index
    %c0_132 = arith.constant 0 : index
    %c0_133 = arith.constant 0 : index
    %219 = vector.load %arg6[%c1_131, %c0_132, %c0_133] : memref<2x12x12xbf16, #tpu.memory_space<vmem>>, vector<1x12x12xbf16>
    %220 = vector.shape_cast %219 : vector<1x12x12xbf16> to vector<12x12xbf16>
    %221 = arith.truncf %126 : vector<16x12xf32> to vector<16x12xbf16>
    %cst_134 = arith.constant dense<0.000000e+00> : vector<16x12xf32>
    %222 = tpu.matmul %221, %220, %cst_134 {dimension_numbers = #tpu.dot_dimension_numbers<[1], [0], [0], [1], [0, 0, 1, 1], [], []>} : vector<16x12xbf16>, vector<12x12xbf16>, vector<16x12xf32> -> vector<16x12xf32>
    %223 = arith.addf %126, %222 : vector<16x12xf32>
    %224 = tpu.concatenate %218, %223 in 1 : vector<16x32xf32>, vector<16x12xf32> -> vector<16x44xf32>
    %c0_135 = arith.constant 0 : index
    %c0_136 = arith.constant 0 : index
    %225 = vector.load %arg21[%c0_135, %c0_136] : memref<16x44xf32, #tpu.memory_space<vmem>>, vector<16x44xf32>
    tpu.vector_store %arg21[%c0_135, %c0_136], %224 {strides = array<i32>} : memref<16x44xf32, #tpu.memory_space<vmem>>, vector<16x44xf32>,
    return
  }
  func.func @transform_0(%arg0: i32) -> (i32, i32) {
    %c0_i32 = arith.constant 0 : i32
    %c0_i32_0 = arith.constant 0 : i32
    %c0_i32_1 = arith.constant 0 : i32
    return %c0_i32, %c0_i32_0 : i32, i32
  }
  func.func @transform_1(%arg0: i32) -> (i32, i32) {
    %c0_i32 = arith.constant 0 : i32
    %c0_i32_0 = arith.constant 0 : i32
    %c0_i32_1 = arith.constant 0 : i32
    return %c0_i32, %c0_i32_0 : i32, i32
  }
  func.func @transform_2(%arg0: i32) -> (i32, i32) {
    %c0_i32 = arith.constant 0 : i32
    %c0_i32_0 = arith.constant 0 : i32
    %c0_i32_1 = arith.constant 0 : i32
    return %c0_i32, %c0_i32_0 : i32, i32
  }
  func.func @transform_3(%arg0: i32) -> (i32, i32) {
    %c0_i32 = arith.constant 0 : i32
    %c0_i32_0 = arith.constant 0 : i32
    %c0_i32_1 = arith.constant 0 : i32
    return %c0_i32, %c0_i32_0 : i32, i32
  }
  func.func @transform_4(%arg0: i32) -> (i32, i32) {
    %c0_i32 = arith.constant 0 : i32
    %c0_i32_0 = arith.constant 0 : i32
    %c0_i32_1 = arith.constant 0 : i32
    return %c0_i32, %c0_i32_0 : i32, i32
  }
  func.func @transform_5(%arg0: i32) -> (i32, i32, i32) {
    %c0_i32 = arith.constant 0 : i32
    %c0_i32_0 = arith.constant 0 : i32
    %c0_i32_1 = arith.constant 0 : i32
    %c0_i32_2 = arith.constant 0 : i32
    return %c0_i32, %c0_i32_0, %c0_i32_1 : i32, i32, i32
  }
  func.func @transform_6(%arg0: i32) -> (i32, i32, i32) {
    %c0_i32 = arith.constant 0 : i32
    %c0_i32_0 = arith.constant 0 : i32
    %c0_i32_1 = arith.constant 0 : i32
    %c0_i32_2 = arith.constant 0 : i32
    return %c0_i32, %c0_i32_0, %c0_i32_1 : i32, i32, i32
  }
  func.func @transform_7(%arg0: i32) -> (i32, i32, i32) {
    %c0_i32 = arith.constant 0 : i32
    %c0_i32_0 = arith.constant 0 : i32
    %c0_i32_1 = arith.constant 0 : i32
    %c0_i32_2 = arith.constant 0 : i32
    return %c0_i32, %c0_i32_0, %c0_i32_1 : i32, i32, i32
  }
  func.func @transform_8(%arg0: i32) -> (i32, i32, i32) {
    %c0_i32 = arith.constant 0 : i32
    %c0_i32_0 = arith.constant 0 : i32
    %c0_i32_1 = arith.constant 0 : i32
    %c0_i32_2 = arith.constant 0 : i32
    return %c0_i32, %c0_i32_0, %c0_i32_1 : i32, i32, i32
  }
  func.func @transform_9(%arg0: i32) -> (i32, i32, i32) {
    %c0_i32 = arith.constant 0 : i32
    %c0_i32_0 = arith.constant 0 : i32
    %c0_i32_1 = arith.constant 0 : i32
    %c0_i32_2 = arith.constant 0 : i32
    return %c0_i32, %c0_i32_0, %c0_i32_1 : i32, i32, i32
  }
  func.func @transform_10(%arg0: i32) -> (i32, i32, i32) {
    %c0_i32 = arith.constant 0 : i32
    %c0_i32_0 = arith.constant 0 : i32
    %c0_i32_1 = arith.constant 0 : i32
    %c0_i32_2 = arith.constant 0 : i32
    return %c0_i32, %c0_i32_0, %c0_i32_1 : i32, i32, i32
  }
  func.func @transform_11(%arg0: i32) -> (i32, i32, i32) {
    %c0_i32 = arith.constant 0 : i32
    %c0_i32_0 = arith.constant 0 : i32
    %c0_i32_1 = arith.constant 0 : i32
    %c0_i32_2 = arith.constant 0 : i32
    return %c0_i32, %c0_i32_0, %c0_i32_1 : i32, i32, i32
  }
  func.func @transform_12(%arg0: i32) -> (i32, i32, i32) {
    %c0_i32 = arith.constant 0 : i32
    %c0_i32_0 = arith.constant 0 : i32
    %c0_i32_1 = arith.constant 0 : i32
    %c0_i32_2 = arith.constant 0 : i32
    return %c0_i32, %c0_i32_0, %c0_i32_1 : i32, i32, i32
  }
  func.func @transform_13(%arg0: i32) -> (i32, i32, i32) {
    %c0_i32 = arith.constant 0 : i32
    %c0_i32_0 = arith.constant 0 : i32
    %c0_i32_1 = arith.constant 0 : i32
    %c0_i32_2 = arith.constant 0 : i32
    return %c0_i32, %c0_i32_0, %c0_i32_1 : i32, i32, i32
  }
  func.func @transform_14(%arg0: i32) -> (i32, i32, i32) {
    %c0_i32 = arith.constant 0 : i32
    %c0_i32_0 = arith.constant 0 : i32
    %c0_i32_1 = arith.constant 0 : i32
    %c0_i32_2 = arith.constant 0 : i32
    return %c0_i32, %c0_i32_0, %c0_i32_1 : i32, i32, i32
  }
  func.func @transform_15(%arg0: i32) -> (i32, i32, i32) {
    %c0_i32 = arith.constant 0 : i32
    %c0_i32_0 = arith.constant 0 : i32
    %c0_i32_1 = arith.constant 0 : i32
    %c0_i32_2 = arith.constant 0 : i32
    return %c0_i32, %c0_i32_0, %c0_i32_1 : i32, i32, i32
  }
  func.func @transform_16(%arg0: i32) -> (i32, i32, i32) {
    %c0_i32 = arith.constant 0 : i32
    %c0_i32_0 = arith.constant 0 : i32
    %c0_i32_1 = arith.constant 0 : i32
    %c0_i32_2 = arith.constant 0 : i32
    return %c0_i32, %c0_i32_0, %c0_i32_1 : i32, i32, i32
  }
  func.func @transform_17(%arg0: i32) -> (i32, i32, i32) {
    %c0_i32 = arith.constant 0 : i32
    %c0_i32_0 = arith.constant 0 : i32
    %c0_i32_1 = arith.constant 0 : i32
    %c0_i32_2 = arith.constant 0 : i32
    return %c0_i32, %c0_i32_0, %c0_i32_1 : i32, i32, i32
  }
  func.func @transform_18(%arg0: i32) -> (i32, i32, i32) {
    %c0_i32 = arith.constant 0 : i32
    %c0_i32_0 = arith.constant 0 : i32
    %c0_i32_1 = arith.constant 0 : i32
    %c0_i32_2 = arith.constant 0 : i32
    return %c0_i32, %c0_i32_0, %c0_i32_1 : i32, i32, i32
  }
  func.func @transform_19(%arg0: i32) -> (i32, i32, i32) {
    %c0_i32 = arith.constant 0 : i32
    %c0_i32_0 = arith.constant 0 : i32
    %c0_i32_1 = arith.constant 0 : i32
    %c0_i32_2 = arith.constant 0 : i32
    return %c0_i32, %c0_i32_0, %c0_i32_1 : i32, i32, i32
  }
  func.func @transform_20(%arg0: i32) -> (i32, i32) {
    %c0_i32 = arith.constant 0 : i32
    %c0_i32_0 = arith.constant 0 : i32
    %c0_i32_1 = arith.constant 0 : i32
    return %c0_i32, %c0_i32_0 : i32, i32
  }
}

</mosaic_0001>

<llo_original>
// kernel: topotein_forward.5
$region0: #{topotein_forward.5}
  #allocation0 [shape = 'u32[]', space=smem, size = 0x4, offset = 0x4, fixed_abs, tag = 'smem constant byte address 0x4 - core index']
  #allocation1 [shape = 'u32[144,128]{1,0:T(1,128)}', space=vmem, size = 0x12000, scoped, tag = 'internal scratch']
  %s0 = inlined_call_operand.vmem [shape: f32[16,44], index: 0, kind: input, shape index: {}]
  %s1 = inlined_call_operand.vmem [shape: s32[1,16], index: 1, kind: input, shape index: {}]
  %s2 = inlined_call_operand.vmem [shape: f32[1,32], index: 2, kind: input, shape index: {}]
  %s3 = inlined_call_operand.vmem [shape: bf16[4,32], index: 3, kind: input, shape index: {}]
  %s4 = inlined_call_operand.vmem [shape: bf16[32,32], index: 4, kind: input, shape index: {}]
  %s5 = inlined_call_operand.vmem [shape: f32[1,32], index: 5, kind: input, shape index: {}]
  %s6 = inlined_call_operand.vmem [shape: f32[1,32], index: 6, kind: input, shape index: {}]
  %s7 = inlined_call_operand.hbm [shape: f32[16,32], index: 7, kind: output, shape index: {0}]
  %s8 = inlined_call_operand.hbm [shape: f32[2,32], index: 8, kind: output, shape index: {1}]
  %9 = xla_tuple %s7, %s8
  %s10 = sld [smem:[#allocation0]]
  $region46: #{topotein_forward.5} parent=0
    _
  %s12 = ssub.s32 1, %s10
  %s13 = scalar_select 0, %s12, %s10
  $region1: #{topotein_forward.5} parent=0
    #allocation2 [shape = 'u8[8192]{0}', space=vmem, size = 0x2000, scoped, tag = 'output window, operand 0, single buffered']
    #allocation3 [shape = 's32[1]{0}', space=sflag, size = 0x4, scoped, tag = 'scoped memory for topotein_forward.5']
    #allocation4 [shape = 'u8[1024]{0}', space=vmem, size = 0x400, scoped, tag = 'output window, operand 1, single buffered']
    #allocation5 [shape = 's32[1]{0}', space=sflag, size = 0x4, scoped, tag = 'scoped memory for topotein_forward.5']
    %14 = vsyncpa [#allocation3], 0
    %15 = vsyncpa [#allocation5], 0
    // Predicated region
    $region2: #{topotein_forward.5} parent=1 // pred_check
      _
    $region3: #{topotein_forward.5} parent=1 // pred_check_branch
      %17 = sbr.rel (0) target = $region5
    $region4: #{topotein_forward.5} parent=1 // pred_region
      _
    $region5: #{topotein_forward.5} parent=1 // pred_fallthru
      _
    // Predicated region
    $region6: #{topotein_forward.5} parent=1 // pred_check
      _
    $region7: #{topotein_forward.5} parent=1 // pred_check_branch
      %19 = sbr.rel (0) target = $region9
    $region8: #{topotein_forward.5} parent=1 // pred_region
      _
    $region9: #{topotein_forward.5} parent=1 // pred_fallthru
      _
    // Predicated region
    $region10: #{topotein_forward.5} parent=1 // pred_check
      _
    $region11: #{topotein_forward.5} parent=1 // pred_check_branch
      %21 = sbr.rel (0) target = $region13
    $region12: #{topotein_forward.5} parent=1 // pred_region
      _
    $region13: #{topotein_forward.5} parent=1 // pred_fallthru
      _
    // Predicated region
    $region14: #{topotein_forward.5} parent=1 // pred_check
      _
    $region15: #{topotein_forward.5} parent=1 // pred_check_branch
      %23 = sbr.rel (0) target = $region17
    $region16: #{topotein_forward.5} parent=1 // pred_region
      _
    $region17: #{topotein_forward.5} parent=1 // pred_fallthru
      _
    // Predicated region
    $region18: #{topotein_forward.5} parent=1 // pred_check
      _
    $region19: #{topotein_forward.5} parent=1 // pred_check_branch
      %25 = sbr.rel (0) target = $region21
    $region20: #{topotein_forward.5} parent=1 // pred_region
      _
    $region21: #{topotein_forward.5} parent=1 // pred_fallthru
      _
    // Predicated region
    $region22: #{topotein_forward.5} parent=1 // pred_check
      _
    $region23: #{topotein_forward.5} parent=1 // pred_check_branch
      %27 = sbr.rel (0) target = $region25
    $region24: #{topotein_forward.5} parent=1 // pred_region
      _
    $region25: #{topotein_forward.5} parent=1 // pred_fallthru
      _
    // Predicated region
    $region26: #{topotein_forward.5} parent=1 // pred_check
      _
    $region27: #{topotein_forward.5} parent=1 // pred_check_branch
      %29 = sbr.rel (0) target = $region29
    $region28: #{topotein_forward.5} parent=1 // pred_region
      _
    $region29: #{topotein_forward.5} parent=1 // pred_fallthru
      _
    %v31 = vld [vmem:[%s0] sm:$0xff]
    %v32 = vld [vmem:[%s0 + $0x8] sm:$0xff]
    %vm33 = vcmask 261120
    %v34 = vsel %vm33, %v31, 0.0
    %35 = vadd.xlane.f32.xlu0 %v34
    %v36 = vpop.xlane.xlu0 %35
    %v37 = vsel %vm33, %v32, 0.0
    %38 = vadd.xlane.f32.xlu0 %v37
    %v39 = vpop.xlane.xlu0 %38
    %v40 = vrcp.pop 32.0
    %v41 = vmul.f32 %v36, %v40
    %v42 = vmul.f32 %v39, %v40
    %v43 = vsub.f32 %v31, %v41
    %v44 = vsub.f32 %v32, %v42
    %v45 = vmul.f32 %v43, %v43
    %v46 = vmul.f32 %v44, %v44
    %v47 = vsel %vm33, %v45, 0.0
    %48 = vadd.xlane.f32.xlu0 %v47
    %v49 = vpop.xlane.xlu0 %48
    %v50 = vsel %vm33, %v46, 0.0
    %51 = vadd.xlane.f32.xlu0 %v50
    %v52 = vpop.xlane.xlu0 %51
    %v53 = vmul.f32 %v49, %v40
    %v54 = vmul.f32 %v52, %v40
    %v55 = vadd.f32 %v53, 1e-05
    %v56 = vadd.f32 %v54, 1e-05
    %v57 = vrsqrt.pop %v55
    %v58 = vrsqrt.pop %v56
    %v59 = vmul.f32 %v43, %v57
    %v60 = vmul.f32 %v44, %v58
    %v61 = vld [vmem:[%s6] sm:$0x1]
    %v63 = vlaneseq
    %v64 = vshrl.u32 %v63, 7
    %v65 = vsub.s32 0, %v64
    %v66 = vrot.slane %v61, %v65
    %v68 = vmul.f32 %v59, %v66
    %v69 = vmul.f32 %v60, %v66
    %v70 = vld [vmem:[%s5] sm:$0x1]
    %v72 = vlaneseq
    %v73 = vshrl.u32 %v72, 7
    %v74 = vsub.s32 0, %v73
    %v75 = vrot.slane %v70, %v74
    %v77 = vadd.f32 %v68, %v75
    %v78 = vadd.f32 %v69, %v75
    %v79 = vmul.f32 %v31, %v31
    %v80 = vmul.f32 %v32, %v32
    %83 = vrot.lane.b32.xlu0 %v79, 96
    %v84 = vpop.permute.xlu0 %83
    %85 = vrot.lane.b32.xlu0 %v80, 96
    %v86 = vpop.permute.xlu0 %85
    %vm89 = vcmask 23552
    %v90 = vsel %vm89, %v84, 0.0
    %91 = vadd.xlane.f32.xlu0 %v90
    %v92 = vpop.xlane.xlu0 %91
    %v93 = vsel %vm89, %v86, 0.0
    %94 = vadd.xlane.f32.xlu0 %v93
    %v95 = vpop.xlane.xlu0 %94
    %96 = vrot.lane.b32.xlu0 %v79, 93
    %v97 = vpop.permute.xlu0 %96
    %98 = vrot.lane.b32.xlu0 %v80, 93
    %v99 = vpop.permute.xlu0 %98
    %v102 = vsel %vm89, %v97, 0.0
    %103 = vadd.xlane.f32.xlu0 %v102
    %v104 = vpop.xlane.xlu0 %103
    %v105 = vsel %vm89, %v99, 0.0
    %106 = vadd.xlane.f32.xlu0 %v105
    %v107 = vpop.xlane.xlu0 %106
    %108 = vrot.lane.b32.xlu0 %v79, 90
    %v109 = vpop.permute.xlu0 %108
    %110 = vrot.lane.b32.xlu0 %v80, 90
    %v111 = vpop.permute.xlu0 %110
    %v114 = vsel %vm89, %v109, 0.0
    %115 = vadd.xlane.f32.xlu0 %v114
    %v116 = vpop.xlane.xlu0 %115
    %v117 = vsel %vm89, %v111, 0.0
    %118 = vadd.xlane.f32.xlu0 %v117
    %v119 = vpop.xlane.xlu0 %118
    %120 = vrot.lane.b32.xlu0 %v79, 87
    %v121 = vpop.permute.xlu0 %120
    %122 = vrot.lane.b32.xlu0 %v80, 87
    %v123 = vpop.permute.xlu0 %122
    %v126 = vsel %vm89, %v121, 0.0
    %127 = vadd.xlane.f32.xlu0 %v126
    %v128 = vpop.xlane.xlu0 %127
    %v129 = vsel %vm89, %v123, 0.0
    %130 = vadd.xlane.f32.xlu0 %v129
    %v131 = vpop.xlane.xlu0 %130
    %vm132 = vcmask 7168
    %v133 = vsel %vm132, %v92, %v104
    %v134 = vsel %vm132, %v95, %v107
    %vm135 = vcmask 15360
    %v136 = vsel %vm135, %v133, %v116
    %v137 = vsel %vm135, %v134, %v119
    %v138 = vsel %vm89, %v136, %v128
    %v139 = vsel %vm89, %v137, %v131
    %vm140 = vcmask 31744
    %v141 = vsel %vm140, %v138, 0.0
    %142 = vadd.xlane.f32.xlu0 %v141
    %v143 = vpop.xlane.xlu0 %142
    %v144 = vsel %vm140, %v139, 0.0
    %145 = vadd.xlane.f32.xlu0 %v144
    %v146 = vpop.xlane.xlu0 %145
    %v147 = vrcp.pop 4.0
    %v148 = vmul.f32 %v143, %v147
    %v149 = vmul.f32 %v146, %v147
    %v150 = vadd.f32 %v148, 1e-08
    %v151 = vadd.f32 %v149, 1e-08
    %v152 = vrsqrt.pop %v150
    %v153 = vrsqrt.pop %v151
    %v154 = vmul.f32 %v152, %v152
    %v155 = vmul.f32 %v153, %v153
    %v156 = vmul.f32 %v138, %v154
    %v157 = vmul.f32 %v139, %v155
    %v158 = vadd.f32 %v156, 1e-08
    %v159 = vadd.f32 %v157, 1e-08
    %v160 = vrsqrt.pop %v158
    %v161 = vmul.f32 %v158, %v160
    %vm162 = vcmp.eq.f32.partialorder %v158, inf
    %v163 = vsel %vm162, %v158, %v161
    %vm164 = vcmp.eq.f32.partialorder %v158, 0.0
    %v165 = vand.u32 %v158, 2147483648
    %v166 = vsel %vm164, %v165, %v163
    %v167 = vrsqrt.pop %v159
    %v168 = vmul.f32 %v159, %v167
    %vm169 = vcmp.eq.f32.partialorder %v159, inf
    %v170 = vsel %vm169, %v159, %v168
    %vm171 = vcmp.eq.f32.partialorder %v159, 0.0
    %v172 = vand.u32 %v159, 2147483648
    %v173 = vsel %vm171, %v172, %v170
    %v174 = vpack.c.bf16 %v78, %v77
    %v175 = vld [vmem:[%s4] sm:$0xf]
    %v176 = vld [vmem:[%s4 + $0x4] sm:$0xf]
    %v177 = vld [vmem:[%s4 + $0x8] sm:$0xf]
    %v178 = vld [vmem:[%s4 + $0xc] sm:$0xf]
    %v179 = vpack.c.bf16 %v173, %v166
    %v180 = vld [vmem:[%s3] sm:$0x3]
    %v182 = vsel %vm140, %v179, 0
    %vm184 = vcmask 1041408
    %v186 = vsel %vm184, %v180, 0
    %188 = vmatprep.subr.bf16.mxu0 0
    %189 = vmatpush1.bf16.msra.mxu0 0
    %190 = vmatprep.subr.bf16.mxu0 0
    %191 = vmatpush1.bf16.msra.mxu0 0
    %192 = vmatprep.subr.bf16.mxu0 0
    %193 = vmatpush1.bf16.msra.mxu0 0
    %194 = vmatprep.subr.bf16.mxu0 0
    %195 = vmatpush1.bf16.msra.mxu0 0
    %196 = vmatprep.subr.bf16.mxu0 0
    %197 = vmatpush1.bf16.msra.mxu0 0
    %198 = vmatprep.subr.bf16.mxu0 0
    %199 = vmatpush1.bf16.msra.mxu0 0
    %200 = vmatprep.subr.bf16.mxu0 0
    %201 = vmatpush1.bf16.msra.mxu0 0
    %202 = vmatprep.subr.bf16.mxu0 0
    %203 = vmatpush1.bf16.msra.mxu0 %v186
    %204 = vmatprep.subr.bf16.mxu0 0
    %205 = vmatpush2.bf16.msra.mxu0 0
    %206 = vmatprep.subr.bf16.mxu0 0
    %207 = vmatpush2.bf16.msra.mxu0 0
    %208 = vmatprep.subr.bf16.mxu0 0
    %209 = vmatpush2.bf16.msra.mxu0 0
    %210 = vmatprep.subr.bf16.mxu0 0
    %211 = vmatpush2.bf16.msra.mxu0 0
    %212 = vmatprep.subr.bf16.mxu0 0
    %213 = vmatpush2.bf16.msra.mxu0 0
    %214 = vmatprep.subr.bf16.mxu0 0
    %215 = vmatpush2.bf16.msra.mxu0 0
    %216 = vmatprep.subr.bf16.mxu0 0
    %217 = vmatpush2.bf16.msra.mxu0 0
    %218 = vmatprep.subr.bf16.mxu0 0
    %219 = vmatpush2.bf16.msra.mxu0 0
    %220 = vmatprep.mubr.bf16.mxu0 0
    %221 = vmatmul.mubr.bf16.gmra.mxu0 %v182
    %v222 = vpop.f32.mrf.mxu0
    %v223 = vadd.f32 0.0, %v222
    %v224 = vpop.f32.mrf.mxu0
    %v225 = vpop.f32.mrf.mxu0
    %v226 = vadd.f32 0.0, %v225
    %v227 = vpop.f32.mrf.mxu0
    %228 = vdwg.mxu0
    %v233 = vunpack.c.l.b16 %v175
    %v234 = vunpack.c.l.b16 %v176
    %v235 = vunpack.c.l.b16 %v177
    %v236 = vunpack.c.l.b16 %v178
    %v237 = vpack.c.b16 %v234, %v233
    %v238 = vpack.c.b16 %v236, %v235
    %v242 = vsel %vm33, %v174, 0
    %244 = vmatprep.subr.bf16.mxu0 0
    %245 = vmatpush1.bf16.msra.mxu0 0
    %246 = vmatprep.subr.bf16.mxu0 0
    %247 = vmatpush1.bf16.msra.mxu0 0
    %248 = vmatprep.subr.bf16.mxu0 0
    %249 = vmatpush1.bf16.msra.mxu0 0
    %250 = vmatprep.subr.bf16.mxu0 0
    %251 = vmatpush1.bf16.msra.mxu0 0
    %252 = vmatprep.subr.bf16.mxu0 0
    %253 = vmatpush1.bf16.msra.mxu0 0
    %254 = vmatprep.subr.bf16.mxu0 0
    %255 = vmatpush1.bf16.msra.mxu0 0
    %256 = vmatprep.subr.bf16.mxu0 0
    %257 = vmatpush1.bf16.msra.mxu0 %v238
    %258 = vmatprep.subr.bf16.mxu0 0
    %259 = vmatpush1.bf16.msra.mxu0 %v237
    %260 = vmatprep.subr.bf16.mxu0 0
    %261 = vmatpush2.bf16.msra.mxu0 0
    %262 = vmatprep.subr.bf16.mxu0 0
    %263 = vmatpush2.bf16.msra.mxu0 0
    %264 = vmatprep.subr.bf16.mxu0 0
    %265 = vmatpush2.bf16.msra.mxu0 0
    %266 = vmatprep.subr.bf16.mxu0 0
    %267 = vmatpush2.bf16.msra.mxu0 0
    %268 = vmatprep.subr.bf16.mxu0 0
    %269 = vmatpush2.bf16.msra.mxu0 0
    %270 = vmatprep.subr.bf16.mxu0 0
    %271 = vmatpush2.bf16.msra.mxu0 0
    %272 = vmatprep.subr.bf16.mxu0 0
    %273 = vmatpush2.bf16.msra.mxu0 0
    %274 = vmatprep.subr.bf16.mxu0 0
    %275 = vmatpush2.bf16.msra.mxu0 0
    %276 = vmatprep.mubr.bf16.mxu0 0
    %277 = vmatmul.mubr.bf16.gmra.mxu0 %v242
    %v278 = vpop.f32.mrf.mxu0
    %v279 = vadd.f32 %v223, %v278
    %v280 = vpop.f32.mrf.mxu0
    %v281 = vpop.f32.mrf.mxu0
    %v282 = vadd.f32 %v226, %v281
    %v283 = vpop.f32.mrf.mxu0
    %284 = vdwg.mxu0
    %v285 = vld [vmem:[%s2] sm:$0x1]
    %v287 = vlaneseq
    %v288 = vshrl.u32 %v287, 7
    %v289 = vsub.s32 0, %v288
    %v290 = vrot.slane %v285, %v289
    %v292 = vadd.f32 %v279, %v290
    %v293 = vadd.f32 %v282, %v290
    %v294 = vxor.u32 %v292, 2147483648
    %v295 = vxor.u32 %v293, 2147483648
    %v296 = vmul.f32 %v294, 1.442695
    %v297 = vpow.pop %v296
    %v298 = vmul.f32 %v295, 1.442695
    %v299 = vpow.pop %v298
    %v300 = vadd.f32 %v297, 1.0
    %v301 = vadd.f32 %v299, 1.0
    %v302 = vrcp.pop %v300
    %v303 = vmul.f32 1.0, %v302
    %v304 = vrcp.pop %v301
    %v305 = vmul.f32 1.0, %v304
    %v306 = vmul.f32 %v292, %v303
    %v307 = vmul.f32 %v293, %v305
    %308 = vst.msk [vmem:[#allocation2] sm:$0xff] %vm33, %v306
    %309 = vst.msk [vmem:[#allocation2 + $0x8] sm:$0xff] %vm33, %v307
    %v310 = vlaneseq
    %v311 = vshrl.u32 %v310, 7
    %v312 = vld [vmem:[%s1] sm:$0x1]
    %v313 = vlaneseq
    %v314 = vshrl.u32 %v313, 7
    %v315 = vsub.s32 0, %v314
    %v316 = vrot.slane %v312, %v315
    %vm317 = vcmp.eq.s32.totalorder %v311, %v316
    %v318 = vsel %vm317, 1, 0
    %v319 = vcvt.s32.f32 %v318
    %vm320 = vcmask 123904
    %v321 = vsel %vm320, %v319, 0.0
    %322 = vadd.xlane.f32.xlu0 %v321
    %v323 = vpop.xlane.xlu0 %322
    %v324 = vmax.f32 %v323, 1.0
    %vm325 = vcmask 130048
    %v327 = vsel %vm325, %v319, 0
    %329 = vmatprep.subr.mxu0 0.0
    %330 = vmatpush1.msra.mxu0 0.0
    %331 = vmatprep.subr.mxu0 0.0
    %332 = vmatpush1.msra.mxu0 0.0
    %333 = vmatprep.subr.mxu0 0.0
    %334 = vmatpush1.msra.mxu0 0.0
    %335 = vmatprep.subr.mxu0 0.0
    %336 = vmatpush1.msra.mxu0 0.0
    %337 = vmatprep.subr.mxu0 0.0
    %338 = vmatpush1.msra.mxu0 0.0
    %339 = vmatprep.subr.mxu0 0.0
    %340 = vmatpush1.msra.mxu0 0.0
    %341 = vmatprep.subr.mxu0 0.0
    %342 = vmatpush1.msra.mxu0 0.0
    %343 = vmatprep.subr.mxu0 0.0
    %344 = vmatpush1.msra.mxu0 0.0
    %345 = vmatprep.subr.mxu0 0.0
    %346 = vmatpush1.msra.mxu0 0.0
    %347 = vmatprep.subr.mxu0 0.0
    %348 = vmatpush1.msra.mxu0 0.0
    %349 = vmatprep.subr.mxu0 0.0
    %350 = vmatpush1.msra.mxu0 0.0
    %351 = vmatprep.subr.mxu0 0.0
    %352 = vmatpush1.msra.mxu0 0.0
    %353 = vmatprep.subr.mxu0 0.0
    %354 = vmatpush1.msra.mxu0 0.0
    %355 = vmatprep.subr.mxu0 0.0
    %356 = vmatpush1.msra.mxu0 0.0
    %357 = vmatprep.subr.mxu0 0.0
    %358 = vmatpush1.msra.mxu0 %v307
    %359 = vmatprep.subr.mxu0 0.0
    %360 = vmatpush1.msra.mxu0 %v306
    %361 = vmatprep.subr.mxu0 0.0
    %362 = vmatpush2.msra.mxu0 0.0
    %363 = vmatprep.subr.mxu0 0.0
    %364 = vmatpush2.msra.mxu0 0.0
    %365 = vmatprep.subr.mxu0 0.0
    %366 = vmatpush2.msra.mxu0 0.0
    %367 = vmatprep.subr.mxu0 0.0
    %368 = vmatpush2.msra.mxu0 0.0
    %369 = vmatprep.subr.mxu0 0.0
    %370 = vmatpush2.msra.mxu0 0.0
    %371 = vmatprep.subr.mxu0 0.0
    %372 = vmatpush2.msra.mxu0 0.0
    %373 = vmatprep.subr.mxu0 0.0
    %374 = vmatpush2.msra.mxu0 0.0
    %375 = vmatprep.subr.mxu0 0.0
    %376 = vmatpush2.msra.mxu0 0.0
    %377 = vmatprep.subr.mxu0 0.0
    %378 = vmatpush2.msra.mxu0 0.0
    %379 = vmatprep.subr.mxu0 0.0
    %380 = vmatpush2.msra.mxu0 0.0
    %381 = vmatprep.subr.mxu0 0.0
    %382 = vmatpush2.msra.mxu0 0.0
    %383 = vmatprep.subr.mxu0 0.0
    %384 = vmatpush2.msra.mxu0 0.0
    %385 = vmatprep.subr.mxu0 0.0
    %386 = vmatpush2.msra.mxu0 0.0
    %387 = vmatprep.subr.mxu0 0.0
    %388 = vmatpush2.msra.mxu0 0.0
    %389 = vmatprep.subr.mxu0 0.0
    %390 = vmatpush2.msra.mxu0 0.0
    %391 = vmatprep.subr.mxu0 0.0
    %392 = vmatpush2.msra.mxu0 0.0
    %393 = vmatprep.mubr.f32.mxu0 0.0
    %394 = vmatmul.mubr.f32.gmra.mxu0 %v327
    %v395 = vpop.f32.mrf.mxu0
    %v396 = vadd.f32 0.0, %v395
    %v397 = vpop.f32.mrf.mxu0
    %398 = vdwg.mxu0
    %v399 = vrcp.pop %v324
    %v400 = vmul.f32 %v396, %v399
    %vm401 = vcmask 254976
    %402 = vst.msk [vmem:[#allocation4] sm:$0x3] %vm401, %v400
    // Predicated region
    $region30: #{topotein_forward.5} parent=1 // pred_check
      _
    $region31: #{topotein_forward.5} parent=1 // pred_check_branch
      %404 = sbr.rel (0) target = $region33
    $region32: #{topotein_forward.5} parent=1 // pred_region
      %s406 = ssub.s32 256, 256
      %407 = vsyncadd [#allocation3], %s406
      %s408 = sshll.u32 [#allocation2], 4
      %s409 = int_to_ptr.vmem [resolvable:$true] %s408
      %414 = dma.vmem_to_hbm [thread:$0]  %s409, 256, %s7, [#allocation3], 128, 128, 8
    $region33: #{topotein_forward.5} parent=1 // pred_fallthru
      _
    // Predicated region
    $region34: #{topotein_forward.5} parent=1 // pred_check
      _
    $region35: #{topotein_forward.5} parent=1 // pred_check_branch
      %416 = sbr.rel (0) target = $region37
    $region36: #{topotein_forward.5} parent=1 // pred_region
      %s418 = ssub.s32 32, 32
      %419 = vsyncadd [#allocation5], %s418
      %s421 = sshll.u32 [#allocation4], 4
      %s422 = int_to_ptr.vmem [resolvable:$true] %s421
      %424 = dma.vmem_to_hbm [thread:$0]  %s422, 32, %s8, [#allocation5]
    $region37: #{topotein_forward.5} parent=1 // pred_fallthru
      _
    // Predicated region
    $region38: #{topotein_forward.5} parent=1 // pred_check
      _
    $region39: #{topotein_forward.5} parent=1 // pred_check_branch
      %426 = sbr.rel (0) target = $region41
    $region40: #{topotein_forward.5} parent=1 // pred_region
      %427 = dma.done [#allocation3], 256
    $region41: #{topotein_forward.5} parent=1 // pred_fallthru
      _
    // Predicated region
    $region42: #{topotein_forward.5} parent=1 // pred_check
      _
    $region43: #{topotein_forward.5} parent=1 // pred_check_branch
      %429 = sbr.rel (0) target = $region45
    $region44: #{topotein_forward.5} parent=1 // pred_region
      %430 = dma.done [#allocation5], 32
    $region45: #{topotein_forward.5} parent=1 // pred_fallthru
      _
    %431 = vsyncpa [#allocation3], 1
    %432 = vsyncpa [#allocation5], 1

// kernel: topotein_forward.4
$region0: #{topotein_forward.4}
  #allocation0 [shape = 'u32[]', space=smem, size = 0x4, offset = 0x4, fixed_abs, tag = 'smem constant byte address 0x4 - core index']
  #allocation1 [shape = 'u32[144,128]{1,0:T(1,128)}', space=vmem, size = 0x12000, scoped, tag = 'internal scratch']
  %s0 = inlined_call_operand.vmem [shape: f32[16,64], index: 0, kind: input, shape index: {}]
  %s1 = inlined_call_operand.vmem [shape: f32[32,18], index: 1, kind: input, shape index: {}]
  %s2 = inlined_call_operand.vmem [shape: s32[32,1], index: 2, kind: input, shape index: {}]
  %s3 = inlined_call_operand.vmem [shape: s32[32,1], index: 3, kind: input, shape index: {}]
  %s4 = inlined_call_operand.vmem [shape: s32[1,32], index: 4, kind: input, shape index: {}]
  %s5 = inlined_call_operand.vmem [shape: bf16[2,12,12], index: 5, kind: input, shape index: {}]
  %s6 = inlined_call_operand.vmem [shape: f32[2,1,32], index: 6, kind: input, shape index: {}]
  %s7 = inlined_call_operand.vmem [shape: f32[2,1,32], index: 7, kind: input, shape index: {}]
  %s8 = inlined_call_operand.vmem [shape: bf16[2,32,32], index: 8, kind: input, shape index: {}]
  %s9 = inlined_call_operand.vmem [shape: bf16[2,32,32], index: 9, kind: input, shape index: {}]
  %s10 = inlined_call_operand.vmem [shape: bf16[2,32,32], index: 10, kind: input, shape index: {}]
  %s11 = inlined_call_operand.vmem [shape: bf16[2,16,32], index: 11, kind: input, shape index: {}]
  %s12 = inlined_call_operand.vmem [shape: bf16[2,2,32], index: 12, kind: input, shape index: {}]
  %s13 = inlined_call_operand.vmem [shape: f32[2,1,32], index: 13, kind: input, shape index: {}]
  %s14 = inlined_call_operand.vmem [shape: f32[2,1,32], index: 14, kind: input, shape index: {}]
  %s15 = inlined_call_operand.vmem [shape: bf16[2,32,32], index: 15, kind: input, shape index: {}]
  %s16 = inlined_call_operand.vmem [shape: bf16[2,32,32], index: 16, kind: input, shape index: {}]
  %s17 = inlined_call_operand.vmem [shape: bf16[2,32,32], index: 17, kind: input, shape index: {}]
  %s18 = inlined_call_operand.vmem [shape: bf16[2,16,32], index: 18, kind: input, shape index: {}]
  %s19 = inlined_call_operand.vmem [shape: bf16[2,4,32], index: 19, kind: input, shape index: {}]
  %s20 = inlined_call_operand.vmem [shape: f32[16,44], index: 20, kind: output, shape index: {}]
  %s21 = sld [smem:[#allocation0]]
  $region90: #{topotein_forward.4} parent=0
    _
  %s23 = ssub.s32 1, %s21
  %s24 = scalar_select 0, %s23, %s21
  // Predicated region
  $region2: #{topotein_forward.4} parent=0 // pred_check
    _
  $region3: #{topotein_forward.4} parent=0 // pred_check_branch
    %26 = sbr.rel (0) target = $region5
  $region4: #{topotein_forward.4} parent=0 // pred_region
    _
  $region5: #{topotein_forward.4} parent=0 // pred_fallthru
    _
  // Predicated region
  $region6: #{topotein_forward.4} parent=0 // pred_check
    _
  $region7: #{topotein_forward.4} parent=0 // pred_check_branch
    %28 = sbr.rel (0) target = $region9
  $region8: #{topotein_forward.4} parent=0 // pred_region
    _
  $region9: #{topotein_forward.4} parent=0 // pred_fallthru
    _
  // Predicated region
  $region10: #{topotein_forward.4} parent=0 // pred_check
    _
  $region11: #{topotein_forward.4} parent=0 // pred_check_branch
    %30 = sbr.rel (0) target = $region13
  $region12: #{topotein_forward.4} parent=0 // pred_region
    _
  $region13: #{topotein_forward.4} parent=0 // pred_fallthru
    _
  // Predicated region
  $region14: #{topotein_forward.4} parent=0 // pred_check
    _
  $region15: #{topotein_forward.4} parent=0 // pred_check_branch
    %32 = sbr.rel (0) target = $region17
  $region16: #{topotein_forward.4} parent=0 // pred_region
    _
  $region17: #{topotein_forward.4} parent=0 // pred_fallthru
    _
  // Predicated region
  $region18: #{topotein_forward.4} parent=0 // pred_check
    _
  $region19: #{topotein_forward.4} parent=0 // pred_check_branch
    %34 = sbr.rel (0) target = $region21
  $region20: #{topotein_forward.4} parent=0 // pred_region
    _
  $region21: #{topotein_forward.4} parent=0 // pred_fallthru
    _
  // Predicated region
  $region22: #{topotein_forward.4} parent=0 // pred_check
    _
  $region23: #{topotein_forward.4} parent=0 // pred_check_branch
    %36 = sbr.rel (0) target = $region25
  $region24: #{topotein_forward.4} parent=0 // pred_region
    _
  $region25: #{topotein_forward.4} parent=0 // pred_fallthru
    _
  // Predicated region
  $region26: #{topotein_forward.4} parent=0 // pred_check
    _
  $region27: #{topotein_forward.4} parent=0 // pred_check_branch
    %38 = sbr.rel (0) target = $region29
  $region28: #{topotein_forward.4} parent=0 // pred_region
    _
  $region29: #{topotein_forward.4} parent=0 // pred_fallthru
    _
  // Predicated region
  $region30: #{topotein_forward.4} parent=0 // pred_check
    _
  $region31: #{topotein_forward.4} parent=0 // pred_check_branch
    %40 = sbr.rel (0) target = $region33
  $region32: #{topotein_forward.4} parent=0 // pred_region
    _
  $region33: #{topotein_forward.4} parent=0 // pred_fallthru
    _
  // Predicated region
  $region34: #{topotein_forward.4} parent=0 // pred_check
    _
  $region35: #{topotein_forward.4} parent=0 // pred_check_branch
    %42 = sbr.rel (0) target = $region37
  $region36: #{topotein_forward.4} parent=0 // pred_region
    _
  $region37: #{topotein_forward.4} parent=0 // pred_fallthru
    _
  // Predicated region
  $region38: #{topotein_forward.4} parent=0 // pred_check
    _
  $region39: #{topotein_forward.4} parent=0 // pred_check_branch
    %44 = sbr.rel (0) target = $region41
  $region40: #{topotein_forward.4} parent=0 // pred_region
    _
  $region41: #{topotein_forward.4} parent=0 // pred_fallthru
    _
  // Predicated region
  $region42: #{topotein_forward.4} parent=0 // pred_check
    _
  $region43: #{topotein_forward.4} parent=0 // pred_check_branch
    %46 = sbr.rel (0) target = $region45
  $region44: #{topotein_forward.4} parent=0 // pred_region
    _
  $region45: #{topotein_forward.4} parent=0 // pred_fallthru
    _
  // Predicated region
  $region46: #{topotein_forward.4} parent=0 // pred_check
    _
  $region47: #{topotein_forward.4} parent=0 // pred_check_branch
    %48 = sbr.rel (0) target = $region49
  $region48: #{topotein_forward.4} parent=0 // pred_region
    _
  $region49: #{topotein_forward.4} parent=0 // pred_fallthru
    _
  // Predicated region
  $region50: #{topotein_forward.4} parent=0 // pred_check
    _
  $region51: #{topotein_forward.4} parent=0 // pred_check_branch
    %50 = sbr.rel (0) target = $region53
  $region52: #{topotein_forward.4} parent=0 // pred_region
    _
  $region53: #{topotein_forward.4} parent=0 // pred_fallthru
    _
  // Predicated region
  $region54: #{topotein_forward.4} parent=0 // pred_check
    _
  $region55: #{topotein_forward.4} parent=0 // pred_check_branch
    %52 = sbr.rel (0) target = $region57
  $region56: #{topotein_forward.4} parent=0 // pred_region
    _
  $region57: #{topotein_forward.4} parent=0 // pred_fallthru
    _
  // Predicated region
  $region58: #{topotein_forward.4} parent=0 // pred_check
    _
  $region59: #{topotein_forward.4} parent=0 // pred_check_branch
    %54 = sbr.rel (0) target = $region61
  $region60: #{topotein_forward.4} parent=0 // pred_region
    _
  $region61: #{topotein_forward.4} parent=0 // pred_fallthru
    _
  // Predicated region
  $region62: #{topotein_forward.4} parent=0 // pred_check
    _
  $region63: #{topotein_forward.4} parent=0 // pred_check_branch
    %56 = sbr.rel (0) target = $region65
  $region64: #{topotein_forward.4} parent=0 // pred_region
    _
  $region65: #{topotein_forward.4} parent=0 // pred_fallthru
    _
  // Predicated region
  $region66: #{topotein_forward.4} parent=0 // pred_check
    _
  $region67: #{topotein_forward.4} parent=0 // pred_check_branch
    %58 = sbr.rel (0) target = $region69
  $region68: #{topotein_forward.4} parent=0 // pred_region
    _
  $region69: #{topotein_forward.4} parent=0 // pred_fallthru
    _
  // Predicated region
  $region70: #{topotein_forward.4} parent=0 // pred_check
    _
  $region71: #{topotein_forward.4} parent=0 // pred_check_branch
    %60 = sbr.rel (0) target = $region73
  $region72: #{topotein_forward.4} parent=0 // pred_region
    _
  $region73: #{topotein_forward.4} parent=0 // pred_fallthru
    _
  // Predicated region
  $region74: #{topotein_forward.4} parent=0 // pred_check
    _
  $region75: #{topotein_forward.4} parent=0 // pred_check_branch
    %62 = sbr.rel (0) target = $region77
  $region76: #{topotein_forward.4} parent=0 // pred_region
    _
  $region77: #{topotein_forward.4} parent=0 // pred_fallthru
    _
  // Predicated region
  $region78: #{topotein_forward.4} parent=0 // pred_check
    _
  $region79: #{topotein_forward.4} parent=0 // pred_check_branch
    %64 = sbr.rel (0) target = $region81
  $region80: #{topotein_forward.4} parent=0 // pred_region
    _
  $region81: #{topotein_forward.4} parent=0 // pred_fallthru
    _
  %v66 = vld [vmem:[%s0] sm:$0xff]
  %v67 = vld [vmem:[%s0 + $0x8] sm:$0xff]
  %v68 = vld [vmem:[%s1] sm:$0xff]
  %v69 = vld [vmem:[%s1 + $0x8] sm:$0xff]
  %v70 = vld [vmem:[%s1 + $0x10] sm:$0xff]
  %v71 = vld [vmem:[%s1 + $0x18] sm:$0xff]
  %v72 = vlaneseq
  %v73 = vand.u32 %v72, 127
  %v74 = vld [vmem:[%s2] sm:$0xff]
  %v75 = vld [vmem:[%s2 + $0x8] sm:$0xff]
  %v76 = vld [vmem:[%s2 + $0x10] sm:$0xff]
  %v77 = vld [vmem:[%s2 + $0x18] sm:$0xff]
  %78 = vset.pattern.permute.xlu0 0
  %79 = vperm.xlu0 %78, %v74
  %v80 = vpop.permute.xlu0 %79
  %81 = vset.pattern.permute.xlu0 0
  %82 = vperm.xlu0 %81, %v75
  %v83 = vpop.permute.xlu0 %82
  %84 = vset.pattern.permute.xlu0 0
  %85 = vperm.xlu0 %84, %v76
  %v86 = vpop.permute.xlu0 %85
  %87 = vset.pattern.permute.xlu0 0
  %88 = vperm.xlu0 %87, %v77
  %v89 = vpop.permute.xlu0 %88
  %vm90 = vcmp.eq.s32.totalorder %v73, %v80
  %vm91 = vcmp.eq.s32.totalorder %v73, %v83
  %vm92 = vcmp.eq.s32.totalorder %v73, %v86
  %vm93 = vcmp.eq.s32.totalorder %v73, %v89
  %v94 = vsel %vm90, 1, 0
  %v95 = vsel %vm91, 1, 0
  %v96 = vsel %vm92, 1, 0
  %v97 = vsel %vm93, 1, 0
  %v98 = vcvt.s32.f32 %v94
  %v99 = vcvt.s32.f32 %v95
  %v100 = vcvt.s32.f32 %v96
  %v101 = vcvt.s32.f32 %v97
  %v102 = vld [vmem:[%s3] sm:$0xff]
  %v103 = vld [vmem:[%s3 + $0x8] sm:$0xff]
  %v104 = vld [vmem:[%s3 + $0x10] sm:$0xff]
  %v105 = vld [vmem:[%s3 + $0x18] sm:$0xff]
  %106 = vset.pattern.permute.xlu0 0
  %107 = vperm.xlu0 %106, %v102
  %v108 = vpop.permute.xlu0 %107
  %109 = vset.pattern.permute.xlu0 0
  %110 = vperm.xlu0 %109, %v103
  %v111 = vpop.permute.xlu0 %110
  %112 = vset.pattern.permute.xlu0 0
  %113 = vperm.xlu0 %112, %v104
  %v114 = vpop.permute.xlu0 %113
  %115 = vset.pattern.permute.xlu0 0
  %116 = vperm.xlu0 %115, %v105
  %v117 = vpop.permute.xlu0 %116
  %vm118 = vcmp.eq.s32.totalorder %v73, %v108
  %vm119 = vcmp.eq.s32.totalorder %v73, %v111
  %vm120 = vcmp.eq.s32.totalorder %v73, %v114
  %vm121 = vcmp.eq.s32.totalorder %v73, %v117
  %v122 = vsel %vm118, 1, 0
  %v123 = vsel %vm119, 1, 0
  %v124 = vsel %vm120, 1, 0
  %v125 = vsel %vm121, 1, 0
  %v126 = vcvt.s32.f32 %v122
  %v127 = vcvt.s32.f32 %v123
  %v128 = vcvt.s32.f32 %v124
  %v129 = vcvt.s32.f32 %v125
  %v130 = vlaneseq
  %v131 = vshrl.u32 %v130, 7
  %v132 = vadd.s32 %v131, 8
  %v133 = vld [vmem:[%s4] sm:$0x1]
  %v134 = vlaneseq
  %v135 = vshrl.u32 %v134, 7
  %v136 = vsub.s32 0, %v135
  %v137 = vrot.slane %v133, %v136
  %vm138 = vcmp.eq.s32.totalorder %v131, %v137
  %vm139 = vcmp.eq.s32.totalorder %v132, %v137
  %v140 = vsel %vm138, 1, 0
  %v141 = vsel %vm139, 1, 0
  %v142 = vcvt.s32.f32 %v140
  %v143 = vcvt.s32.f32 %v141
  %vm144 = vcmask 261120
  %v145 = vsel %vm144, %v142, 0.0
  %146 = vadd.xlane.f32.xlu0 %v145
  %v147 = vpop.xlane.xlu0 %146
  %v148 = vsel %vm144, %v143, 0.0
  %149 = vadd.xlane.f32.xlu0 %v148
  %v150 = vpop.xlane.xlu0 %149
  %v151 = vmax.f32 %v147, 1.0
  %v152 = vmax.f32 %v150, 1.0
  %v153 = vld [vmem:[%s9] sm:$0xf]
  %v154 = vld [vmem:[%s9 + $0x4] sm:$0xf]
  %v155 = vld [vmem:[%s9 + $0x8] sm:$0xf]
  %v156 = vld [vmem:[%s9 + $0xc] sm:$0xf]
  %v157 = vpack.c.bf16 %v67, %v66
  %v162 = vunpack.c.l.b16 %v153
  %v163 = vunpack.c.l.b16 %v154
  %v164 = vunpack.c.l.b16 %v155
  %v165 = vunpack.c.l.b16 %v156
  %v166 = vpack.c.b16 %v163, %v162
  %v167 = vpack.c.b16 %v165, %v164
  %v171 = vsel %vm144, %v157, 0
  %173 = vmatprep.subr.bf16.mxu0 0
  %174 = vmatpush1.bf16.msra.mxu0 0
  %175 = vmatprep.subr.bf16.mxu0 0
  %176 = vmatpush1.bf16.msra.mxu0 0
  %177 = vmatprep.subr.bf16.mxu0 0
  %178 = vmatpush1.bf16.msra.mxu0 0
  %179 = vmatprep.subr.bf16.mxu0 0
  %180 = vmatpush1.bf16.msra.mxu0 0
  %181 = vmatprep.subr.bf16.mxu0 0
  %182 = vmatpush1.bf16.msra.mxu0 0
  %183 = vmatprep.subr.bf16.mxu0 0
  %184 = vmatpush1.bf16.msra.mxu0 0
  %185 = vmatprep.subr.bf16.mxu0 0
  %186 = vmatpush1.bf16.msra.mxu0 %v167
  %187 = vmatprep.subr.bf16.mxu0 0
  %188 = vmatpush1.bf16.msra.mxu0 %v166
  %189 = vmatprep.subr.bf16.mxu0 0
  %190 = vmatpush2.bf16.msra.mxu0 0
  %191 = vmatprep.subr.bf16.mxu0 0
  %192 = vmatpush2.bf16.msra.mxu0 0
  %193 = vmatprep.subr.bf16.mxu0 0
  %194 = vmatpush2.bf16.msra.mxu0 0
  %195 = vmatprep.subr.bf16.mxu0 0
  %196 = vmatpush2.bf16.msra.mxu0 0
  %197 = vmatprep.subr.bf16.mxu0 0
  %198 = vmatpush2.bf16.msra.mxu0 0
  %199 = vmatprep.subr.bf16.mxu0 0
  %200 = vmatpush2.bf16.msra.mxu0 0
  %201 = vmatprep.subr.bf16.mxu0 0
  %202 = vmatpush2.bf16.msra.mxu0 0
  %203 = vmatprep.subr.bf16.mxu0 0
  %204 = vmatpush2.bf16.msra.mxu0 0
  %205 = vmatprep.mubr.bf16.mxu0 0
  %206 = vmatmul.mubr.bf16.gmra.mxu0 %v171
  %v207 = vpop.f32.mrf.mxu0
  %v208 = vadd.f32 0.0, %v207
  %v209 = vpop.f32.mrf.mxu0
  %v210 = vpop.f32.mrf.mxu0
  %v211 = vadd.f32 0.0, %v210
  %v212 = vpop.f32.mrf.mxu0
  %213 = vdwg.mxu0
  %v214 = vld [vmem:[%s10] sm:$0xf]
  %v215 = vld [vmem:[%s10 + $0x4] sm:$0xf]
  %v216 = vld [vmem:[%s10 + $0x8] sm:$0xf]
  %v217 = vld [vmem:[%s10 + $0xc] sm:$0xf]
  %v222 = vunpack.c.l.b16 %v214
  %v223 = vunpack.c.l.b16 %v215
  %v224 = vunpack.c.l.b16 %v216
  %v225 = vunpack.c.l.b16 %v217
  %v226 = vpack.c.b16 %v223, %v222
  %v227 = vpack.c.b16 %v225, %v224
  %230 = vmatprep.subr.bf16.mxu0 0
  %231 = vmatpush1.bf16.msra.mxu0 0
  %232 = vmatprep.subr.bf16.mxu0 0
  %233 = vmatpush1.bf16.msra.mxu0 0
  %234 = vmatprep.subr.bf16.mxu0 0
  %235 = vmatpush1.bf16.msra.mxu0 0
  %236 = vmatprep.subr.bf16.mxu0 0
  %237 = vmatpush1.bf16.msra.mxu0 0
  %238 = vmatprep.subr.bf16.mxu0 0
  %239 = vmatpush1.bf16.msra.mxu0 0
  %240 = vmatprep.subr.bf16.mxu0 0
  %241 = vmatpush1.bf16.msra.mxu0 0
  %242 = vmatprep.subr.bf16.mxu0 0
  %243 = vmatpush1.bf16.msra.mxu0 %v227
  %244 = vmatprep.subr.bf16.mxu0 0
  %245 = vmatpush1.bf16.msra.mxu0 %v226
  %246 = vmatprep.subr.bf16.mxu0 0
  %247 = vmatpush2.bf16.msra.mxu0 0
  %248 = vmatprep.subr.bf16.mxu0 0
  %249 = vmatpush2.bf16.msra.mxu0 0
  %250 = vmatprep.subr.bf16.mxu0 0
  %251 = vmatpush2.bf16.msra.mxu0 0
  %252 = vmatprep.subr.bf16.mxu0 0
  %253 = vmatpush2.bf16.msra.mxu0 0
  %254 = vmatprep.subr.bf16.mxu0 0
  %255 = vmatpush2.bf16.msra.mxu0 0
  %256 = vmatprep.subr.bf16.mxu0 0
  %257 = vmatpush2.bf16.msra.mxu0 0
  %258 = vmatprep.subr.bf16.mxu0 0
  %259 = vmatpush2.bf16.msra.mxu0 0
  %260 = vmatprep.subr.bf16.mxu0 0
  %261 = vmatpush2.bf16.msra.mxu0 0
  %262 = vmatprep.mubr.bf16.mxu0 0
  %263 = vmatmul.mubr.bf16.gmra.mxu0 %v171
  %v264 = vpop.f32.mrf.mxu0
  %v265 = vadd.f32 0.0, %v264
  %v266 = vpop.f32.mrf.mxu0
  %v267 = vpop.f32.mrf.mxu0
  %v268 = vadd.f32 0.0, %v267
  %v269 = vpop.f32.mrf.mxu0
  %270 = vdwg.mxu0
  %vm271 = vcmask 130048
  %v273 = vsel %vm271, %v126, 0
  %v276 = vsel %vm271, %v127, 0
  %v279 = vsel %vm271, %v128, 0
  %v282 = vsel %vm271, %v129, 0
  %284 = vmatprep.subr.mxu0 0.0
  %285 = vmatpush1.msra.mxu0 0.0
  %286 = vmatprep.subr.mxu0 0.0
  %287 = vmatpush1.msra.mxu0 0.0
  %288 = vmatprep.subr.mxu0 0.0
  %289 = vmatpush1.msra.mxu0 0.0
  %290 = vmatprep.subr.mxu0 0.0
  %291 = vmatpush1.msra.mxu0 0.0
  %292 = vmatprep.subr.mxu0 0.0
  %293 = vmatpush1.msra.mxu0 0.0
  %294 = vmatprep.subr.mxu0 0.0
  %295 = vmatpush1.msra.mxu0 0.0
  %296 = vmatprep.subr.mxu0 0.0
  %297 = vmatpush1.msra.mxu0 0.0
  %298 = vmatprep.subr.mxu0 0.0
  %299 = vmatpush1.msra.mxu0 0.0
  %300 = vmatprep.subr.mxu0 0.0
  %301 = vmatpush1.msra.mxu0 0.0
  %302 = vmatprep.subr.mxu0 0.0
  %303 = vmatpush1.msra.mxu0 0.0
  %304 = vmatprep.subr.mxu0 0.0
  %305 = vmatpush1.msra.mxu0 0.0
  %306 = vmatprep.subr.mxu0 0.0
  %307 = vmatpush1.msra.mxu0 0.0
  %308 = vmatprep.subr.mxu0 0.0
  %309 = vmatpush1.msra.mxu0 0.0
  %310 = vmatprep.subr.mxu0 0.0
  %311 = vmatpush1.msra.mxu0 0.0
  %312 = vmatprep.subr.mxu0 0.0
  %313 = vmatpush1.msra.mxu0 %v268
  %314 = vmatprep.subr.mxu0 0.0
  %315 = vmatpush1.msra.mxu0 %v265
  %316 = vmatprep.subr.mxu0 0.0
  %317 = vmatpush2.msra.mxu0 0.0
  %318 = vmatprep.subr.mxu0 0.0
  %319 = vmatpush2.msra.mxu0 0.0
  %320 = vmatprep.subr.mxu0 0.0
  %321 = vmatpush2.msra.mxu0 0.0
  %322 = vmatprep.subr.mxu0 0.0
  %323 = vmatpush2.msra.mxu0 0.0
  %324 = vmatprep.subr.mxu0 0.0
  %325 = vmatpush2.msra.mxu0 0.0
  %326 = vmatprep.subr.mxu0 0.0
  %327 = vmatpush2.msra.mxu0 0.0
  %328 = vmatprep.subr.mxu0 0.0
  %329 = vmatpush2.msra.mxu0 0.0
  %330 = vmatprep.subr.mxu0 0.0
  %331 = vmatpush2.msra.mxu0 0.0
  %332 = vmatprep.subr.mxu0 0.0
  %333 = vmatpush2.msra.mxu0 0.0
  %334 = vmatprep.subr.mxu0 0.0
  %335 = vmatpush2.msra.mxu0 0.0
  %336 = vmatprep.subr.mxu0 0.0
  %337 = vmatpush2.msra.mxu0 0.0
  %338 = vmatprep.subr.mxu0 0.0
  %339 = vmatpush2.msra.mxu0 0.0
  %340 = vmatprep.subr.mxu0 0.0
  %341 = vmatpush2.msra.mxu0 0.0
  %342 = vmatprep.subr.mxu0 0.0
  %343 = vmatpush2.msra.mxu0 0.0
  %344 = vmatprep.subr.mxu0 0.0
  %345 = vmatpush2.msra.mxu0 0.0
  %346 = vmatprep.subr.mxu0 0.0
  %347 = vmatpush2.msra.mxu0 0.0
  %348 = vmatprep.mubr.f32.mxu0 0.0
  %349 = vmatmul.mubr.f32.gmra.mxu0 %v273
  %v350 = vpop.f32.mrf.mxu0
  %v351 = vadd.f32 0.0, %v350
  %v352 = vpop.f32.mrf.mxu0
  %353 = vmatprep.mubr.f32.mxu0 0.0
  %354 = vmatmul.mubr.f32.gmra.mxu0 %v276
  %v355 = vpop.f32.mrf.mxu0
  %v356 = vadd.f32 0.0, %v355
  %v357 = vpop.f32.mrf.mxu0
  %358 = vmatprep.mubr.f32.mxu0 0.0
  %359 = vmatmul.mubr.f32.gmra.mxu0 %v279
  %v360 = vpop.f32.mrf.mxu0
  %v361 = vadd.f32 0.0, %v360
  %v362 = vpop.f32.mrf.mxu0
  %363 = vmatprep.mubr.f32.mxu0 0.0
  %364 = vmatmul.mubr.f32.gmra.mxu0 %v282
  %v365 = vpop.f32.mrf.mxu0
  %v366 = vadd.f32 0.0, %v365
  %v367 = vpop.f32.mrf.mxu0
  %368 = vdwg.mxu0
  %v370 = vsel %vm271, %v98, 0
  %v373 = vsel %vm271, %v99, 0
  %v376 = vsel %vm271, %v100, 0
  %v379 = vsel %vm271, %v101, 0
  %381 = vmatprep.subr.mxu0 0.0
  %382 = vmatpush1.msra.mxu0 0.0
  %383 = vmatprep.subr.mxu0 0.0
  %384 = vmatpush1.msra.mxu0 0.0
  %385 = vmatprep.subr.mxu0 0.0
  %386 = vmatpush1.msra.mxu0 0.0
  %387 = vmatprep.subr.mxu0 0.0
  %388 = vmatpush1.msra.mxu0 0.0
  %389 = vmatprep.subr.mxu0 0.0
  %390 = vmatpush1.msra.mxu0 0.0
  %391 = vmatprep.subr.mxu0 0.0
  %392 = vmatpush1.msra.mxu0 0.0
  %393 = vmatprep.subr.mxu0 0.0
  %394 = vmatpush1.msra.mxu0 0.0
  %395 = vmatprep.subr.mxu0 0.0
  %396 = vmatpush1.msra.mxu0 0.0
  %397 = vmatprep.subr.mxu0 0.0
  %398 = vmatpush1.msra.mxu0 0.0
  %399 = vmatprep.subr.mxu0 0.0
  %400 = vmatpush1.msra.mxu0 0.0
  %401 = vmatprep.subr.mxu0 0.0
  %402 = vmatpush1.msra.mxu0 0.0
  %403 = vmatprep.subr.mxu0 0.0
  %404 = vmatpush1.msra.mxu0 0.0
  %405 = vmatprep.subr.mxu0 0.0
  %406 = vmatpush1.msra.mxu0 0.0
  %407 = vmatprep.subr.mxu0 0.0
  %408 = vmatpush1.msra.mxu0 0.0
  %409 = vmatprep.subr.mxu0 0.0
  %410 = vmatpush1.msra.mxu0 %v211
  %411 = vmatprep.subr.mxu0 0.0
  %412 = vmatpush1.msra.mxu0 %v208
  %413 = vmatprep.subr.mxu0 0.0
  %414 = vmatpush2.msra.mxu0 0.0
  %415 = vmatprep.subr.mxu0 0.0
  %416 = vmatpush2.msra.mxu0 0.0
  %417 = vmatprep.subr.mxu0 0.0
  %418 = vmatpush2.msra.mxu0 0.0
  %419 = vmatprep.subr.mxu0 0.0
  %420 = vmatpush2.msra.mxu0 0.0
  %421 = vmatprep.subr.mxu0 0.0
  %422 = vmatpush2.msra.mxu0 0.0
  %423 = vmatprep.subr.mxu0 0.0
  %424 = vmatpush2.msra.mxu0 0.0
  %425 = vmatprep.subr.mxu0 0.0
  %426 = vmatpush2.msra.mxu0 0.0
  %427 = vmatprep.subr.mxu0 0.0
  %428 = vmatpush2.msra.mxu0 0.0
  %429 = vmatprep.subr.mxu0 0.0
  %430 = vmatpush2.msra.mxu0 0.0
  %431 = vmatprep.subr.mxu0 0.0
  %432 = vmatpush2.msra.mxu0 0.0
  %433 = vmatprep.subr.mxu0 0.0
  %434 = vmatpush2.msra.mxu0 0.0
  %435 = vmatprep.subr.mxu0 0.0
  %436 = vmatpush2.msra.mxu0 0.0
  %437 = vmatprep.subr.mxu0 0.0
  %438 = vmatpush2.msra.mxu0 0.0
  %439 = vmatprep.subr.mxu0 0.0
  %440 = vmatpush2.msra.mxu0 0.0
  %441 = vmatprep.subr.mxu0 0.0
  %442 = vmatpush2.msra.mxu0 0.0
  %443 = vmatprep.subr.mxu0 0.0
  %444 = vmatpush2.msra.mxu0 0.0
  %445 = vmatprep.mubr.f32.mxu0 0.0
  %446 = vmatmul.mubr.f32.gmra.mxu0 %v370
  %v447 = vpop.f32.mrf.mxu0
  %v448 = vadd.f32 %v351, %v447
  %v449 = vpop.f32.mrf.mxu0
  %450 = vmatprep.mubr.f32.mxu0 0.0
  %451 = vmatmul.mubr.f32.gmra.mxu0 %v373
  %v452 = vpop.f32.mrf.mxu0
  %v453 = vadd.f32 %v356, %v452
  %v454 = vpop.f32.mrf.mxu0
  %455 = vmatprep.mubr.f32.mxu0 0.0
  %456 = vmatmul.mubr.f32.gmra.mxu0 %v376
  %v457 = vpop.f32.mrf.mxu0
  %v458 = vadd.f32 %v361, %v457
  %v459 = vpop.f32.mrf.mxu0
  %460 = vmatprep.mubr.f32.mxu0 0.0
  %461 = vmatmul.mubr.f32.gmra.mxu0 %v379
  %v462 = vpop.f32.mrf.mxu0
  %v463 = vadd.f32 %v366, %v462
  %v464 = vpop.f32.mrf.mxu0
  %465 = vdwg.mxu0
  %v466 = vld [vmem:[%s11] sm:$0xf]
  %v467 = vld [vmem:[%s11 + $0x4] sm:$0xf]
  %v468 = vpack.c.bf16 %v69, %v68
  %v469 = vpack.c.bf16 %v71, %v70
  %v472 = vunpack.c.l.b16 %v466
  %v473 = vunpack.c.l.b16 %v467
  %v474 = vpack.c.b16 %v473, %v472
  %v477 = vsel %vm271, %v468, 0
  %v480 = vsel %vm271, %v469, 0
  %482 = vmatprep.subr.bf16.mxu0 0
  %483 = vmatpush1.bf16.msra.mxu0 0
  %484 = vmatprep.subr.bf16.mxu0 0
  %485 = vmatpush1.bf16.msra.mxu0 0
  %486 = vmatprep.subr.bf16.mxu0 0
  %487 = vmatpush1.bf16.msra.mxu0 0
  %488 = vmatprep.subr.bf16.mxu0 0
  %489 = vmatpush1.bf16.msra.mxu0 0
  %490 = vmatprep.subr.bf16.mxu0 0
  %491 = vmatpush1.bf16.msra.mxu0 0
  %492 = vmatprep.subr.bf16.mxu0 0
  %493 = vmatpush1.bf16.msra.mxu0 0
  %494 = vmatprep.subr.bf16.mxu0 0
  %495 = vmatpush1.bf16.msra.mxu0 0
  %496 = vmatprep.subr.bf16.mxu0 0
  %497 = vmatpush1.bf16.msra.mxu0 %v474
  %498 = vmatprep.subr.bf16.mxu0 0
  %499 = vmatpush2.bf16.msra.mxu0 0
  %500 = vmatprep.subr.bf16.mxu0 0
  %501 = vmatpush2.bf16.msra.mxu0 0
  %502 = vmatprep.subr.bf16.mxu0 0
  %503 = vmatpush2.bf16.msra.mxu0 0
  %504 = vmatprep.subr.bf16.mxu0 0
  %505 = vmatpush2.bf16.msra.mxu0 0
  %506 = vmatprep.subr.bf16.mxu0 0
  %507 = vmatpush2.bf16.msra.mxu0 0
  %508 = vmatprep.subr.bf16.mxu0 0
  %509 = vmatpush2.bf16.msra.mxu0 0
  %510 = vmatprep.subr.bf16.mxu0 0
  %511 = vmatpush2.bf16.msra.mxu0 0
  %512 = vmatprep.subr.bf16.mxu0 0
  %513 = vmatpush2.bf16.msra.mxu0 0
  %514 = vmatprep.mubr.bf16.mxu0 0
  %515 = vmatmul.mubr.bf16.gmra.mxu0 %v477
  %v516 = vpop.f32.mrf.mxu0
  %v517 = vadd.f32 0.0, %v516
  %v518 = vpop.f32.mrf.mxu0
  %v519 = vpop.f32.mrf.mxu0
  %v520 = vadd.f32 0.0, %v519
  %v521 = vpop.f32.mrf.mxu0
  %522 = vmatprep.mubr.bf16.mxu0 0
  %523 = vmatmul.mubr.bf16.gmra.mxu0 %v480
  %v524 = vpop.f32.mrf.mxu0
  %v525 = vadd.f32 0.0, %v524
  %v526 = vpop.f32.mrf.mxu0
  %v527 = vpop.f32.mrf.mxu0
  %v528 = vadd.f32 0.0, %v527
  %v529 = vpop.f32.mrf.mxu0
  %530 = vdwg.mxu0
  %v531 = vadd.f32 %v448, %v517
  %v532 = vadd.f32 %v453, %v520
  %v533 = vadd.f32 %v458, %v525
  %v534 = vadd.f32 %v463, %v528
  %v535 = vld [vmem:[%s12] sm:$0x1]
  %538 = vrot.lane.b32.xlu0 %v468, 112
  %v539 = vpop.permute.xlu0 %538
  %540 = vrot.lane.b32.xlu0 %v469, 112
  %v541 = vpop.permute.xlu0 %540
  %vm542 = vcmask 15360
  %v544 = vsel %vm542, %v539, 0
  %v547 = vsel %vm542, %v541, 0
  %vm549 = vcmask 1040384
  %v551 = vsel %vm549, %v535, 0
  %553 = vmatprep.subr.bf16.mxu0 0
  %554 = vmatpush1.bf16.msra.mxu0 0
  %555 = vmatprep.subr.bf16.mxu0 0
  %556 = vmatpush1.bf16.msra.mxu0 0
  %557 = vmatprep.subr.bf16.mxu0 0
  %558 = vmatpush1.bf16.msra.mxu0 0
  %559 = vmatprep.subr.bf16.mxu0 0
  %560 = vmatpush1.bf16.msra.mxu0 0
  %561 = vmatprep.subr.bf16.mxu0 0
  %562 = vmatpush1.bf16.msra.mxu0 0
  %563 = vmatprep.subr.bf16.mxu0 0
  %564 = vmatpush1.bf16.msra.mxu0 0
  %565 = vmatprep.subr.bf16.mxu0 0
  %566 = vmatpush1.bf16.msra.mxu0 0
  %567 = vmatprep.subr.bf16.mxu0 0
  %568 = vmatpush1.bf16.msra.mxu0 %v551
  %569 = vmatprep.subr.bf16.mxu0 0
  %570 = vmatpush2.bf16.msra.mxu0 0
  %571 = vmatprep.subr.bf16.mxu0 0
  %572 = vmatpush2.bf16.msra.mxu0 0
  %573 = vmatprep.subr.bf16.mxu0 0
  %574 = vmatpush2.bf16.msra.mxu0 0
  %575 = vmatprep.subr.bf16.mxu0 0
  %576 = vmatpush2.bf16.msra.mxu0 0
  %577 = vmatprep.subr.bf16.mxu0 0
  %578 = vmatpush2.bf16.msra.mxu0 0
  %579 = vmatprep.subr.bf16.mxu0 0
  %580 = vmatpush2.bf16.msra.mxu0 0
  %581 = vmatprep.subr.bf16.mxu0 0
  %582 = vmatpush2.bf16.msra.mxu0 0
  %583 = vmatprep.subr.bf16.mxu0 0
  %584 = vmatpush2.bf16.msra.mxu0 0
  %585 = vmatprep.mubr.bf16.mxu0 0
  %586 = vmatmul.mubr.bf16.gmra.mxu0 %v544
  %v587 = vpop.f32.mrf.mxu0
  %v588 = vadd.f32 0.0, %v587
  %v589 = vpop.f32.mrf.mxu0
  %v590 = vpop.f32.mrf.mxu0
  %v591 = vadd.f32 0.0, %v590
  %v592 = vpop.f32.mrf.mxu0
  %593 = vmatprep.mubr.bf16.mxu0 0
  %594 = vmatmul.mubr.bf16.gmra.mxu0 %v547
  %v595 = vpop.f32.mrf.mxu0
  %v596 = vadd.f32 0.0, %v595
  %v597 = vpop.f32.mrf.mxu0
  %v598 = vpop.f32.mrf.mxu0
  %v599 = vadd.f32 0.0, %v598
  %v600 = vpop.f32.mrf.mxu0
  %601 = vdwg.mxu0
  %v602 = vadd.f32 %v531, %v588
  %v603 = vadd.f32 %v532, %v591
  %v604 = vadd.f32 %v533, %v596
  %v605 = vadd.f32 %v534, %v599
  %v606 = vld [vmem:[%s6] sm:$0x1]
  %v608 = vlaneseq
  %v609 = vshrl.u32 %v608, 7
  %v610 = vsub.s32 0, %v609
  %v611 = vrot.slane %v606, %v610
  %v613 = vadd.f32 %v602, %v611
  %v614 = vadd.f32 %v603, %v611
  %v615 = vadd.f32 %v604, %v611
  %v616 = vadd.f32 %v605, %v611
  %v617 = vxor.u32 %v613, 2147483648
  %v618 = vxor.u32 %v614, 2147483648
  %v619 = vxor.u32 %v615, 2147483648
  %v620 = vxor.u32 %v616, 2147483648
  %v621 = vmul.f32 %v617, 1.442695
  %v622 = vpow.pop %v621
  %v623 = vmul.f32 %v618, 1.442695
  %v624 = vpow.pop %v623
  %v625 = vmul.f32 %v619, 1.442695
  %v626 = vpow.pop %v625
  %v627 = vmul.f32 %v620, 1.442695
  %v628 = vpow.pop %v627
  %v629 = vadd.f32 %v622, 1.0
  %v630 = vadd.f32 %v624, 1.0
  %v631 = vadd.f32 %v626, 1.0
  %v632 = vadd.f32 %v628, 1.0
  %v633 = vrcp.pop %v629
  %v634 = vmul.f32 1.0, %v633
  %v635 = vrcp.pop %v630
  %v636 = vmul.f32 1.0, %v635
  %v637 = vrcp.pop %v631
  %v638 = vmul.f32 1.0, %v637
  %v639 = vrcp.pop %v632
  %v640 = vmul.f32 1.0, %v639
  %v641 = vmul.f32 %v613, %v634
  %v642 = vmul.f32 %v614, %v636
  %v643 = vmul.f32 %v615, %v638
  %v644 = vmul.f32 %v616, %v640
  %v645 = vld [vmem:[%s8] sm:$0xf]
  %v646 = vld [vmem:[%s8 + $0x4] sm:$0xf]
  %v647 = vld [vmem:[%s8 + $0x8] sm:$0xf]
  %v648 = vld [vmem:[%s8 + $0xc] sm:$0xf]
  %v649 = vpack.c.bf16 %v642, %v641
  %v650 = vpack.c.bf16 %v644, %v643
  %v651 = vld [vmem:[%s7] sm:$0x1]
  %v653 = vlaneseq
  %v654 = vshrl.u32 %v653, 7
  %v655 = vsub.s32 0, %v654
  %v656 = vrot.slane %v651, %v655
  %v662 = vunpack.c.l.b16 %v645
  %v663 = vunpack.c.l.b16 %v646
  %v664 = vunpack.c.l.b16 %v647
  %v665 = vunpack.c.l.b16 %v648
  %v666 = vpack.c.b16 %v663, %v662
  %v667 = vpack.c.b16 %v665, %v664
  %v671 = vsel %vm144, %v649, 0
  %v674 = vsel %vm144, %v650, 0
  %676 = vmatprep.subr.bf16.mxu0 0
  %677 = vmatpush1.bf16.msra.mxu0 0
  %678 = vmatprep.subr.bf16.mxu0 0
  %679 = vmatpush1.bf16.msra.mxu0 0
  %680 = vmatprep.subr.bf16.mxu0 0
  %681 = vmatpush1.bf16.msra.mxu0 0
  %682 = vmatprep.subr.bf16.mxu0 0
  %683 = vmatpush1.bf16.msra.mxu0 0
  %684 = vmatprep.subr.bf16.mxu0 0
  %685 = vmatpush1.bf16.msra.mxu0 0
  %686 = vmatprep.subr.bf16.mxu0 0
  %687 = vmatpush1.bf16.msra.mxu0 0
  %688 = vmatprep.subr.bf16.mxu0 0
  %689 = vmatpush1.bf16.msra.mxu0 %v667
  %690 = vmatprep.subr.bf16.mxu0 0
  %691 = vmatpush1.bf16.msra.mxu0 %v666
  %692 = vmatprep.subr.bf16.mxu0 0
  %693 = vmatpush2.bf16.msra.mxu0 0
  %694 = vmatprep.subr.bf16.mxu0 0
  %695 = vmatpush2.bf16.msra.mxu0 0
  %696 = vmatprep.subr.bf16.mxu0 0
  %697 = vmatpush2.bf16.msra.mxu0 0
  %698 = vmatprep.subr.bf16.mxu0 0
  %699 = vmatpush2.bf16.msra.mxu0 0
  %700 = vmatprep.subr.bf16.mxu0 0
  %701 = vmatpush2.bf16.msra.mxu0 0
  %702 = vmatprep.subr.bf16.mxu0 0
  %703 = vmatpush2.bf16.msra.mxu0 0
  %704 = vmatprep.subr.bf16.mxu0 0
  %705 = vmatpush2.bf16.msra.mxu0 0
  %706 = vmatprep.subr.bf16.mxu0 0
  %707 = vmatpush2.bf16.msra.mxu0 0
  %708 = vmatprep.mubr.bf16.mxu0 0
  %709 = vmatmul.mubr.bf16.gmra.mxu0 %v671
  %v710 = vpop.f32.mrf.mxu0
  %v711 = vadd.f32 %v656, %v710
  %v712 = vpop.f32.mrf.mxu0
  %v713 = vpop.f32.mrf.mxu0
  %v714 = vadd.f32 %v656, %v713
  %v715 = vpop.f32.mrf.mxu0
  %716 = vmatprep.mubr.bf16.mxu0 0
  %717 = vmatmul.mubr.bf16.gmra.mxu0 %v674
  %v718 = vpop.f32.mrf.mxu0
  %v719 = vadd.f32 %v656, %v718
  %v720 = vpop.f32.mrf.mxu0
  %v721 = vpop.f32.mrf.mxu0
  %v722 = vadd.f32 %v656, %v721
  %v723 = vpop.f32.mrf.mxu0
  %724 = vdwg.mxu0
  %v725 = vxor.u32 %v711, 2147483648
  %v726 = vxor.u32 %v714, 2147483648
  %v727 = vxor.u32 %v719, 2147483648
  %v728 = vxor.u32 %v722, 2147483648
  %v729 = vmul.f32 %v725, 1.442695
  %v730 = vpow.pop %v729
  %v731 = vmul.f32 %v726, 1.442695
  %v732 = vpow.pop %v731
  %v733 = vmul.f32 %v727, 1.442695
  %v734 = vpow.pop %v733
  %v735 = vmul.f32 %v728, 1.442695
  %v736 = vpow.pop %v735
  %v737 = vadd.f32 %v730, 1.0
  %v738 = vadd.f32 %v732, 1.0
  %v739 = vadd.f32 %v734, 1.0
  %v740 = vadd.f32 %v736, 1.0
  %v741 = vrcp.pop %v737
  %v742 = vmul.f32 1.0, %v741
  %v743 = vrcp.pop %v738
  %v744 = vmul.f32 1.0, %v743
  %v745 = vrcp.pop %v739
  %v746 = vmul.f32 1.0, %v745
  %v747 = vrcp.pop %v740
  %v748 = vmul.f32 1.0, %v747
  %v749 = vmul.f32 %v711, %v742
  %v750 = vmul.f32 %v714, %v744
  %v751 = vmul.f32 %v719, %v746
  %v752 = vmul.f32 %v722, %v748
  %v754 = vsel %vm144, %v142, 0
  %v757 = vsel %vm144, %v143, 0
  %759 = vmatprep.subr.mxu0 0.0
  %760 = vmatpush1.msra.mxu0 0.0
  %761 = vmatprep.subr.mxu0 0.0
  %762 = vmatpush1.msra.mxu0 0.0
  %763 = vmatprep.subr.mxu0 0.0
  %764 = vmatpush1.msra.mxu0 0.0
  %765 = vmatprep.subr.mxu0 0.0
  %766 = vmatpush1.msra.mxu0 0.0
  %767 = vmatprep.subr.mxu0 0.0
  %768 = vmatpush1.msra.mxu0 0.0
  %769 = vmatprep.subr.mxu0 0.0
  %770 = vmatpush1.msra.mxu0 0.0
  %771 = vmatprep.subr.mxu0 0.0
  %772 = vmatpush1.msra.mxu0 0.0
  %773 = vmatprep.subr.mxu0 0.0
  %774 = vmatpush1.msra.mxu0 0.0
  %775 = vmatprep.subr.mxu0 0.0
  %776 = vmatpush1.msra.mxu0 0.0
  %777 = vmatprep.subr.mxu0 0.0
  %778 = vmatpush1.msra.mxu0 0.0
  %779 = vmatprep.subr.mxu0 0.0
  %780 = vmatpush1.msra.mxu0 0.0
  %781 = vmatprep.subr.mxu0 0.0
  %782 = vmatpush1.msra.mxu0 0.0
  %783 = vmatprep.subr.mxu0 0.0
  %784 = vmatpush1.msra.mxu0 %v752
  %785 = vmatprep.subr.mxu0 0.0
  %786 = vmatpush1.msra.mxu0 %v751
  %787 = vmatprep.subr.mxu0 0.0
  %788 = vmatpush1.msra.mxu0 %v750
  %789 = vmatprep.subr.mxu0 0.0
  %790 = vmatpush1.msra.mxu0 %v749
  %791 = vmatprep.subr.mxu0 0.0
  %792 = vmatpush2.msra.mxu0 0.0
  %793 = vmatprep.subr.mxu0 0.0
  %794 = vmatpush2.msra.mxu0 0.0
  %795 = vmatprep.subr.mxu0 0.0
  %796 = vmatpush2.msra.mxu0 0.0
  %797 = vmatprep.subr.mxu0 0.0
  %798 = vmatpush2.msra.mxu0 0.0
  %799 = vmatprep.subr.mxu0 0.0
  %800 = vmatpush2.msra.mxu0 0.0
  %801 = vmatprep.subr.mxu0 0.0
  %802 = vmatpush2.msra.mxu0 0.0
  %803 = vmatprep.subr.mxu0 0.0
  %804 = vmatpush2.msra.mxu0 0.0
  %805 = vmatprep.subr.mxu0 0.0
  %806 = vmatpush2.msra.mxu0 0.0
  %807 = vmatprep.subr.mxu0 0.0
  %808 = vmatpush2.msra.mxu0 0.0
  %809 = vmatprep.subr.mxu0 0.0
  %810 = vmatpush2.msra.mxu0 0.0
  %811 = vmatprep.subr.mxu0 0.0
  %812 = vmatpush2.msra.mxu0 0.0
  %813 = vmatprep.subr.mxu0 0.0
  %814 = vmatpush2.msra.mxu0 0.0
  %815 = vmatprep.subr.mxu0 0.0
  %816 = vmatpush2.msra.mxu0 0.0
  %817 = vmatprep.subr.mxu0 0.0
  %818 = vmatpush2.msra.mxu0 0.0
  %819 = vmatprep.subr.mxu0 0.0
  %820 = vmatpush2.msra.mxu0 0.0
  %821 = vmatprep.subr.mxu0 0.0
  %822 = vmatpush2.msra.mxu0 0.0
  %823 = vmatprep.mubr.f32.mxu0 0.0
  %824 = vmatmul.mubr.f32.gmra.mxu0 %v754
  %v825 = vpop.f32.mrf.mxu0
  %v826 = vadd.f32 0.0, %v825
  %v827 = vpop.f32.mrf.mxu0
  %828 = vmatprep.mubr.f32.mxu0 0.0
  %829 = vmatmul.mubr.f32.gmra.mxu0 %v757
  %v830 = vpop.f32.mrf.mxu0
  %v831 = vadd.f32 0.0, %v830
  %v832 = vpop.f32.mrf.mxu0
  %833 = vdwg.mxu0
  %v834 = vrcp.pop %v151
  %v835 = vmul.f32 %v826, %v834
  %v836 = vrcp.pop %v152
  %v837 = vmul.f32 %v831, %v836
  %v838 = vld [vmem:[%s16] sm:$0xf]
  %v839 = vld [vmem:[%s16 + $0x4] sm:$0xf]
  %v840 = vld [vmem:[%s16 + $0x8] sm:$0xf]
  %v841 = vld [vmem:[%s16 + $0xc] sm:$0xf]
  %v842 = vld [vmem:[%s17] sm:$0xf]
  %v843 = vld [vmem:[%s17 + $0x4] sm:$0xf]
  %v844 = vld [vmem:[%s17 + $0x8] sm:$0xf]
  %v845 = vld [vmem:[%s17 + $0xc] sm:$0xf]
  %v846 = vpack.c.bf16 %v837, %v835
  %v851 = vunpack.c.l.b16 %v842
  %v852 = vunpack.c.l.b16 %v843
  %v853 = vunpack.c.l.b16 %v844
  %v854 = vunpack.c.l.b16 %v845
  %v855 = vpack.c.b16 %v852, %v851
  %v856 = vpack.c.b16 %v854, %v853
  %v860 = vsel %vm144, %v846, 0
  %862 = vmatprep.subr.bf16.mxu0 0
  %863 = vmatpush1.bf16.msra.mxu0 0
  %864 = vmatprep.subr.bf16.mxu0 0
  %865 = vmatpush1.bf16.msra.mxu0 0
  %866 = vmatprep.subr.bf16.mxu0 0
  %867 = vmatpush1.bf16.msra.mxu0 0
  %868 = vmatprep.subr.bf16.mxu0 0
  %869 = vmatpush1.bf16.msra.mxu0 0
  %870 = vmatprep.subr.bf16.mxu0 0
  %871 = vmatpush1.bf16.msra.mxu0 0
  %872 = vmatprep.subr.bf16.mxu0 0
  %873 = vmatpush1.bf16.msra.mxu0 0
  %874 = vmatprep.subr.bf16.mxu0 0
  %875 = vmatpush1.bf16.msra.mxu0 %v856
  %876 = vmatprep.subr.bf16.mxu0 0
  %877 = vmatpush1.bf16.msra.mxu0 %v855
  %878 = vmatprep.subr.bf16.mxu0 0
  %879 = vmatpush2.bf16.msra.mxu0 0
  %880 = vmatprep.subr.bf16.mxu0 0
  %881 = vmatpush2.bf16.msra.mxu0 0
  %882 = vmatprep.subr.bf16.mxu0 0
  %883 = vmatpush2.bf16.msra.mxu0 0
  %884 = vmatprep.subr.bf16.mxu0 0
  %885 = vmatpush2.bf16.msra.mxu0 0
  %886 = vmatprep.subr.bf16.mxu0 0
  %887 = vmatpush2.bf16.msra.mxu0 0
  %888 = vmatprep.subr.bf16.mxu0 0
  %889 = vmatpush2.bf16.msra.mxu0 0
  %890 = vmatprep.subr.bf16.mxu0 0
  %891 = vmatpush2.bf16.msra.mxu0 0
  %892 = vmatprep.subr.bf16.mxu0 0
  %893 = vmatpush2.bf16.msra.mxu0 0
  %894 = vmatprep.mubr.bf16.mxu0 0
  %895 = vmatmul.mubr.bf16.gmra.mxu0 %v860
  %v896 = vpop.f32.mrf.mxu0
  %v897 = vadd.f32 0.0, %v896
  %v898 = vpop.f32.mrf.mxu0
  %v899 = vpop.f32.mrf.mxu0
  %v900 = vadd.f32 0.0, %v899
  %v901 = vpop.f32.mrf.mxu0
  %902 = vdwg.mxu0
  %v907 = vunpack.c.l.b16 %v838
  %v908 = vunpack.c.l.b16 %v839
  %v909 = vunpack.c.l.b16 %v840
  %v910 = vunpack.c.l.b16 %v841
  %v911 = vpack.c.b16 %v908, %v907
  %v912 = vpack.c.b16 %v910, %v909
  %915 = vmatprep.subr.bf16.mxu0 0
  %916 = vmatpush1.bf16.msra.mxu0 0
  %917 = vmatprep.subr.bf16.mxu0 0
  %918 = vmatpush1.bf16.msra.mxu0 0
  %919 = vmatprep.subr.bf16.mxu0 0
  %920 = vmatpush1.bf16.msra.mxu0 0
  %921 = vmatprep.subr.bf16.mxu0 0
  %922 = vmatpush1.bf16.msra.mxu0 0
  %923 = vmatprep.subr.bf16.mxu0 0
  %924 = vmatpush1.bf16.msra.mxu0 0
  %925 = vmatprep.subr.bf16.mxu0 0
  %926 = vmatpush1.bf16.msra.mxu0 0
  %927 = vmatprep.subr.bf16.mxu0 0
  %928 = vmatpush1.bf16.msra.mxu0 %v912
  %929 = vmatprep.subr.bf16.mxu0 0
  %930 = vmatpush1.bf16.msra.mxu0 %v911
  %931 = vmatprep.subr.bf16.mxu0 0
  %932 = vmatpush2.bf16.msra.mxu0 0
  %933 = vmatprep.subr.bf16.mxu0 0
  %934 = vmatpush2.bf16.msra.mxu0 0
  %935 = vmatprep.subr.bf16.mxu0 0
  %936 = vmatpush2.bf16.msra.mxu0 0
  %937 = vmatprep.subr.bf16.mxu0 0
  %938 = vmatpush2.bf16.msra.mxu0 0
  %939 = vmatprep.subr.bf16.mxu0 0
  %940 = vmatpush2.bf16.msra.mxu0 0
  %941 = vmatprep.subr.bf16.mxu0 0
  %942 = vmatpush2.bf16.msra.mxu0 0
  %943 = vmatprep.subr.bf16.mxu0 0
  %944 = vmatpush2.bf16.msra.mxu0 0
  %945 = vmatprep.subr.bf16.mxu0 0
  %946 = vmatpush2.bf16.msra.mxu0 0
  %947 = vmatprep.mubr.bf16.mxu0 0
  %948 = vmatmul.mubr.bf16.gmra.mxu0 %v171
  %v949 = vpop.f32.mrf.mxu0
  %v950 = vadd.f32 %v897, %v949
  %v951 = vpop.f32.mrf.mxu0
  %v952 = vpop.f32.mrf.mxu0
  %v953 = vadd.f32 %v900, %v952
  %v954 = vpop.f32.mrf.mxu0
  %955 = vdwg.mxu0
  %v956 = vld [vmem:[%s18] sm:$0xf]
  %v957 = vld [vmem:[%s18 + $0x4] sm:$0xf]
  %959 = vrot.lane.b32.xlu0 %v157, 84
  %v960 = vpop.permute.xlu0 %959
  %v963 = vunpack.c.l.b16 %v956
  %v964 = vunpack.c.l.b16 %v957
  %v965 = vpack.c.b16 %v964, %v963
  %v968 = vsel %vm271, %v960, 0
  %970 = vmatprep.subr.bf16.mxu0 0
  %971 = vmatpush1.bf16.msra.mxu0 0
  %972 = vmatprep.subr.bf16.mxu0 0
  %973 = vmatpush1.bf16.msra.mxu0 0
  %974 = vmatprep.subr.bf16.mxu0 0
  %975 = vmatpush1.bf16.msra.mxu0 0
  %976 = vmatprep.subr.bf16.mxu0 0
  %977 = vmatpush1.bf16.msra.mxu0 0
  %978 = vmatprep.subr.bf16.mxu0 0
  %979 = vmatpush1.bf16.msra.mxu0 0
  %980 = vmatprep.subr.bf16.mxu0 0
  %981 = vmatpush1.bf16.msra.mxu0 0
  %982 = vmatprep.subr.bf16.mxu0 0
  %983 = vmatpush1.bf16.msra.mxu0 0
  %984 = vmatprep.subr.bf16.mxu0 0
  %985 = vmatpush1.bf16.msra.mxu0 %v965
  %986 = vmatprep.subr.bf16.mxu0 0
  %987 = vmatpush2.bf16.msra.mxu0 0
  %988 = vmatprep.subr.bf16.mxu0 0
  %989 = vmatpush2.bf16.msra.mxu0 0
  %990 = vmatprep.subr.bf16.mxu0 0
  %991 = vmatpush2.bf16.msra.mxu0 0
  %992 = vmatprep.subr.bf16.mxu0 0
  %993 = vmatpush2.bf16.msra.mxu0 0
  %994 = vmatprep.subr.bf16.mxu0 0
  %995 = vmatpush2.bf16.msra.mxu0 0
  %996 = vmatprep.subr.bf16.mxu0 0
  %997 = vmatpush2.bf16.msra.mxu0 0
  %998 = vmatprep.subr.bf16.mxu0 0
  %999 = vmatpush2.bf16.msra.mxu0 0
  %1000 = vmatprep.subr.bf16.mxu0 0
  %1001 = vmatpush2.bf16.msra.mxu0 0
  %1002 = vmatprep.mubr.bf16.mxu0 0
  %1003 = vmatmul.mubr.bf16.gmra.mxu0 %v968
  %v1004 = vpop.f32.mrf.mxu0
  %v1005 = vadd.f32 0.0, %v1004
  %v1006 = vpop.f32.mrf.mxu0
  %v1007 = vpop.f32.mrf.mxu0
  %v1008 = vadd.f32 0.0, %v1007
  %v1009 = vpop.f32.mrf.mxu0
  %1010 = vdwg.mxu0
  %v1011 = vadd.f32 %v950, %v1005
  %v1012 = vadd.f32 %v953, %v1008
  %v1013 = vld [vmem:[%s19] sm:$0x3]
  %1014 = vrot.lane.b32.xlu0 %v157, 68
  %v1015 = vpop.permute.xlu0 %1014
  %vm1016 = vcmask 31744
  %v1018 = vsel %vm1016, %v1015, 0
  %vm1020 = vcmask 1041408
  %v1022 = vsel %vm1020, %v1013, 0
  %1024 = vmatprep.subr.bf16.mxu0 0
  %1025 = vmatpush1.bf16.msra.mxu0 0
  %1026 = vmatprep.subr.bf16.mxu0 0
  %1027 = vmatpush1.bf16.msra.mxu0 0
  %1028 = vmatprep.subr.bf16.mxu0 0
  %1029 = vmatpush1.bf16.msra.mxu0 0
  %1030 = vmatprep.subr.bf16.mxu0 0
  %1031 = vmatpush1.bf16.msra.mxu0 0
  %1032 = vmatprep.subr.bf16.mxu0 0
  %1033 = vmatpush1.bf16.msra.mxu0 0
  %1034 = vmatprep.subr.bf16.mxu0 0
  %1035 = vmatpush1.bf16.msra.mxu0 0
  %1036 = vmatprep.subr.bf16.mxu0 0
  %1037 = vmatpush1.bf16.msra.mxu0 0
  %1038 = vmatprep.subr.bf16.mxu0 0
  %1039 = vmatpush1.bf16.msra.mxu0 %v1022
  %1040 = vmatprep.subr.bf16.mxu0 0
  %1041 = vmatpush2.bf16.msra.mxu0 0
  %1042 = vmatprep.subr.bf16.mxu0 0
  %1043 = vmatpush2.bf16.msra.mxu0 0
  %1044 = vmatprep.subr.bf16.mxu0 0
  %1045 = vmatpush2.bf16.msra.mxu0 0
  %1046 = vmatprep.subr.bf16.mxu0 0
  %1047 = vmatpush2.bf16.msra.mxu0 0
  %1048 = vmatprep.subr.bf16.mxu0 0
  %1049 = vmatpush2.bf16.msra.mxu0 0
  %1050 = vmatprep.subr.bf16.mxu0 0
  %1051 = vmatpush2.bf16.msra.mxu0 0
  %1052 = vmatprep.subr.bf16.mxu0 0
  %1053 = vmatpush2.bf16.msra.mxu0 0
  %1054 = vmatprep.subr.bf16.mxu0 0
  %1055 = vmatpush2.bf16.msra.mxu0 0
  %1056 = vmatprep.mubr.bf16.mxu0 0
  %1057 = vmatmul.mubr.bf16.gmra.mxu0 %v1018
  %v1058 = vpop.f32.mrf.mxu0
  %v1059 = vadd.f32 0.0, %v1058
  %v1060 = vpop.f32.mrf.mxu0
  %v1061 = vpop.f32.mrf.mxu0
  %v1062 = vadd.f32 0.0, %v1061
  %v1063 = vpop.f32.mrf.mxu0
  %1064 = vdwg.mxu0
  %v1065 = vadd.f32 %v1011, %v1059
  %v1066 = vadd.f32 %v1012, %v1062
  %v1067 = vld [vmem:[%s13] sm:$0x1]
  %v1069 = vlaneseq
  %v1070 = vshrl.u32 %v1069, 7
  %v1071 = vsub.s32 0, %v1070
  %v1072 = vrot.slane %v1067, %v1071
  %v1074 = vadd.f32 %v1065, %v1072
  %v1075 = vadd.f32 %v1066, %v1072
  %v1076 = vxor.u32 %v1074, 2147483648
  %v1077 = vxor.u32 %v1075, 2147483648
  %v1078 = vmul.f32 %v1076, 1.442695
  %v1079 = vpow.pop %v1078
  %v1080 = vmul.f32 %v1077, 1.442695
  %v1081 = vpow.pop %v1080
  %v1082 = vadd.f32 %v1079, 1.0
  %v1083 = vadd.f32 %v1081, 1.0
  %v1084 = vrcp.pop %v1082
  %v1085 = vmul.f32 1.0, %v1084
  %v1086 = vrcp.pop %v1083
  %v1087 = vmul.f32 1.0, %v1086
  %v1088 = vmul.f32 %v1074, %v1085
  %v1089 = vmul.f32 %v1075, %v1087
  %v1090 = vld [vmem:[%s15] sm:$0xf]
  %v1091 = vld [vmem:[%s15 + $0x4] sm:$0xf]
  %v1092 = vld [vmem:[%s15 + $0x8] sm:$0xf]
  %v1093 = vld [vmem:[%s15 + $0xc] sm:$0xf]
  %v1094 = vpack.c.bf16 %v1089, %v1088
  %v1095 = vld [vmem:[%s14] sm:$0x1]
  %v1097 = vlaneseq
  %v1098 = vshrl.u32 %v1097, 7
  %v1099 = vsub.s32 0, %v1098
  %v1100 = vrot.slane %v1095, %v1099
  %v1106 = vunpack.c.l.b16 %v1090
  %v1107 = vunpack.c.l.b16 %v1091
  %v1108 = vunpack.c.l.b16 %v1092
  %v1109 = vunpack.c.l.b16 %v1093
  %v1110 = vpack.c.b16 %v1107, %v1106
  %v1111 = vpack.c.b16 %v1109, %v1108
  %v1115 = vsel %vm144, %v1094, 0
  %1117 = vmatprep.subr.bf16.mxu0 0
  %1118 = vmatpush1.bf16.msra.mxu0 0
  %1119 = vmatprep.subr.bf16.mxu0 0
  %1120 = vmatpush1.bf16.msra.mxu0 0
  %1121 = vmatprep.subr.bf16.mxu0 0
  %1122 = vmatpush1.bf16.msra.mxu0 0
  %1123 = vmatprep.subr.bf16.mxu0 0
  %1124 = vmatpush1.bf16.msra.mxu0 0
  %1125 = vmatprep.subr.bf16.mxu0 0
  %1126 = vmatpush1.bf16.msra.mxu0 0
  %1127 = vmatprep.subr.bf16.mxu0 0
  %1128 = vmatpush1.bf16.msra.mxu0 0
  %1129 = vmatprep.subr.bf16.mxu0 0
  %1130 = vmatpush1.bf16.msra.mxu0 %v1111
  %1131 = vmatprep.subr.bf16.mxu0 0
  %1132 = vmatpush1.bf16.msra.mxu0 %v1110
  %1133 = vmatprep.subr.bf16.mxu0 0
  %1134 = vmatpush2.bf16.msra.mxu0 0
  %1135 = vmatprep.subr.bf16.mxu0 0
  %1136 = vmatpush2.bf16.msra.mxu0 0
  %1137 = vmatprep.subr.bf16.mxu0 0
  %1138 = vmatpush2.bf16.msra.mxu0 0
  %1139 = vmatprep.subr.bf16.mxu0 0
  %1140 = vmatpush2.bf16.msra.mxu0 0
  %1141 = vmatprep.subr.bf16.mxu0 0
  %1142 = vmatpush2.bf16.msra.mxu0 0
  %1143 = vmatprep.subr.bf16.mxu0 0
  %1144 = vmatpush2.bf16.msra.mxu0 0
  %1145 = vmatprep.subr.bf16.mxu0 0
  %1146 = vmatpush2.bf16.msra.mxu0 0
  %1147 = vmatprep.subr.bf16.mxu0 0
  %1148 = vmatpush2.bf16.msra.mxu0 0
  %1149 = vmatprep.mubr.bf16.mxu0 0
  %1150 = vmatmul.mubr.bf16.gmra.mxu0 %v1115
  %v1151 = vpop.f32.mrf.mxu0
  %v1152 = vadd.f32 %v1100, %v1151
  %v1153 = vpop.f32.mrf.mxu0
  %v1154 = vpop.f32.mrf.mxu0
  %v1155 = vadd.f32 %v1100, %v1154
  %v1156 = vpop.f32.mrf.mxu0
  %1157 = vdwg.mxu0
  %v1158 = vxor.u32 %v1152, 2147483648
  %v1159 = vxor.u32 %v1155, 2147483648
  %v1160 = vmul.f32 %v1158, 1.442695
  %v1161 = vpow.pop %v1160
  %v1162 = vmul.f32 %v1159, 1.442695
  %v1163 = vpow.pop %v1162
  %v1164 = vadd.f32 %v1161, 1.0
  %v1165 = vadd.f32 %v1163, 1.0
  %v1166 = vrcp.pop %v1164
  %v1167 = vmul.f32 1.0, %v1166
  %v1168 = vrcp.pop %v1165
  %v1169 = vmul.f32 1.0, %v1168
  %v1170 = vmul.f32 %v1152, %v1167
  %v1171 = vmul.f32 %v1155, %v1169
  %v1172 = vadd.f32 %v66, %v1170
  %v1173 = vadd.f32 %v67, %v1171
  %v1174 = vld [vmem:[%s5] sm:$0xf]
  %v1175 = vld [vmem:[%s5 + $0x4] sm:$0x3]
  %1176 = vrot.lane.b32.xlu0 %v157, 96
  %v1177 = vpop.permute.xlu0 %1176
  %v1180 = vunpack.c.l.b16 %v1174
  %v1181 = vunpack.c.l.b16 %v1175
  %v1182 = vpack.c.b16 %v1181, %v1180
  %vm1183 = vcmask 97280
  %v1185 = vsel %vm1183, %v1177, 0
  %vm1187 = vcmask 1045504
  %v1189 = vsel %vm1187, %v1182, 0
  %1191 = vmatprep.subr.bf16.mxu0 0
  %1192 = vmatpush1.bf16.msra.mxu0 0
  %1193 = vmatprep.subr.bf16.mxu0 0
  %1194 = vmatpush1.bf16.msra.mxu0 0
  %1195 = vmatprep.subr.bf16.mxu0 0
  %1196 = vmatpush1.bf16.msra.mxu0 0
  %1197 = vmatprep.subr.bf16.mxu0 0
  %1198 = vmatpush1.bf16.msra.mxu0 0
  %1199 = vmatprep.subr.bf16.mxu0 0
  %1200 = vmatpush1.bf16.msra.mxu0 0
  %1201 = vmatprep.subr.bf16.mxu0 0
  %1202 = vmatpush1.bf16.msra.mxu0 0
  %1203 = vmatprep.subr.bf16.mxu0 0
  %1204 = vmatpush1.bf16.msra.mxu0 0
  %1205 = vmatprep.subr.bf16.mxu0 0
  %1206 = vmatpush1.bf16.msra.mxu0 %v1189
  %1207 = vmatprep.subr.bf16.mxu0 0
  %1208 = vmatpush2.bf16.msra.mxu0 0
  %1209 = vmatprep.subr.bf16.mxu0 0
  %1210 = vmatpush2.bf16.msra.mxu0 0
  %1211 = vmatprep.subr.bf16.mxu0 0
  %1212 = vmatpush2.bf16.msra.mxu0 0
  %1213 = vmatprep.subr.bf16.mxu0 0
  %1214 = vmatpush2.bf16.msra.mxu0 0
  %1215 = vmatprep.subr.bf16.mxu0 0
  %1216 = vmatpush2.bf16.msra.mxu0 0
  %1217 = vmatprep.subr.bf16.mxu0 0
  %1218 = vmatpush2.bf16.msra.mxu0 0
  %1219 = vmatprep.subr.bf16.mxu0 0
  %1220 = vmatpush2.bf16.msra.mxu0 0
  %1221 = vmatprep.subr.bf16.mxu0 0
  %1222 = vmatpush2.bf16.msra.mxu0 0
  %1223 = vmatprep.mubr.bf16.mxu0 0
  %1224 = vmatmul.mubr.bf16.gmra.mxu0 %v1185
  %v1225 = vpop.f32.mrf.mxu0
  %v1226 = vadd.f32 0.0, %v1225
  %v1227 = vpop.f32.mrf.mxu0
  %v1228 = vpop.f32.mrf.mxu0
  %v1229 = vadd.f32 0.0, %v1228
  %v1230 = vpop.f32.mrf.mxu0
  %1231 = vdwg.mxu0
  %1234 = vrot.lane.b32.xlu0 %v1226, 32
  %v1235 = vpop.permute.xlu0 %1234
  %1236 = vrot.lane.b32.xlu0 %v1229, 32
  %v1237 = vpop.permute.xlu0 %1236
  %v1240 = vadd.f32 %v66, %v1235
  %v1241 = vadd.f32 %v67, %v1237
  %s1242 = scalar_lea.vmem %s9, 16
  %v1243 = vld [vmem:[%s1242] sm:$0xf]
  %v1244 = vld [vmem:[%s1242 + $0x4] sm:$0xf]
  %v1245 = vld [vmem:[%s1242 + $0x8] sm:$0xf]
  %v1246 = vld [vmem:[%s1242 + $0xc] sm:$0xf]
  %v1247 = vpack.c.bf16 %v1173, %v1172
  %v1252 = vunpack.c.l.b16 %v1243
  %v1253 = vunpack.c.l.b16 %v1244
  %v1254 = vunpack.c.l.b16 %v1245
  %v1255 = vunpack.c.l.b16 %v1246
  %v1256 = vpack.c.b16 %v1253, %v1252
  %v1257 = vpack.c.b16 %v1255, %v1254
  %v1261 = vsel %vm144, %v1247, 0
  %1263 = vmatprep.subr.bf16.mxu0 0
  %1264 = vmatpush1.bf16.msra.mxu0 0
  %1265 = vmatprep.subr.bf16.mxu0 0
  %1266 = vmatpush1.bf16.msra.mxu0 0
  %1267 = vmatprep.subr.bf16.mxu0 0
  %1268 = vmatpush1.bf16.msra.mxu0 0
  %1269 = vmatprep.subr.bf16.mxu0 0
  %1270 = vmatpush1.bf16.msra.mxu0 0
  %1271 = vmatprep.subr.bf16.mxu0 0
  %1272 = vmatpush1.bf16.msra.mxu0 0
  %1273 = vmatprep.subr.bf16.mxu0 0
  %1274 = vmatpush1.bf16.msra.mxu0 0
  %1275 = vmatprep.subr.bf16.mxu0 0
  %1276 = vmatpush1.bf16.msra.mxu0 %v1257
  %1277 = vmatprep.subr.bf16.mxu0 0
  %1278 = vmatpush1.bf16.msra.mxu0 %v1256
  %1279 = vmatprep.subr.bf16.mxu0 0
  %1280 = vmatpush2.bf16.msra.mxu0 0
  %1281 = vmatprep.subr.bf16.mxu0 0
  %1282 = vmatpush2.bf16.msra.mxu0 0
  %1283 = vmatprep.subr.bf16.mxu0 0
  %1284 = vmatpush2.bf16.msra.mxu0 0
  %1285 = vmatprep.subr.bf16.mxu0 0
  %1286 = vmatpush2.bf16.msra.mxu0 0
  %1287 = vmatprep.subr.bf16.mxu0 0
  %1288 = vmatpush2.bf16.msra.mxu0 0
  %1289 = vmatprep.subr.bf16.mxu0 0
  %1290 = vmatpush2.bf16.msra.mxu0 0
  %1291 = vmatprep.subr.bf16.mxu0 0
  %1292 = vmatpush2.bf16.msra.mxu0 0
  %1293 = vmatprep.subr.bf16.mxu0 0
  %1294 = vmatpush2.bf16.msra.mxu0 0
  %1295 = vmatprep.mubr.bf16.mxu0 0
  %1296 = vmatmul.mubr.bf16.gmra.mxu0 %v1261
  %v1297 = vpop.f32.mrf.mxu0
  %v1298 = vadd.f32 0.0, %v1297
  %v1299 = vpop.f32.mrf.mxu0
  %v1300 = vpop.f32.mrf.mxu0
  %v1301 = vadd.f32 0.0, %v1300
  %v1302 = vpop.f32.mrf.mxu0
  %1303 = vdwg.mxu0
  %s1304 = scalar_lea.vmem %s10, 16
  %v1305 = vld [vmem:[%s1304] sm:$0xf]
  %v1306 = vld [vmem:[%s1304 + $0x4] sm:$0xf]
  %v1307 = vld [vmem:[%s1304 + $0x8] sm:$0xf]
  %v1308 = vld [vmem:[%s1304 + $0xc] sm:$0xf]
  %v1313 = vunpack.c.l.b16 %v1305
  %v1314 = vunpack.c.l.b16 %v1306
  %v1315 = vunpack.c.l.b16 %v1307
  %v1316 = vunpack.c.l.b16 %v1308
  %v1317 = vpack.c.b16 %v1314, %v1313
  %v1318 = vpack.c.b16 %v1316, %v1315
  %1321 = vmatprep.subr.bf16.mxu0 0
  %1322 = vmatpush1.bf16.msra.mxu0 0
  %1323 = vmatprep.subr.bf16.mxu0 0
  %1324 = vmatpush1.bf16.msra.mxu0 0
  %1325 = vmatprep.subr.bf16.mxu0 0
  %1326 = vmatpush1.bf16.msra.mxu0 0
  %1327 = vmatprep.subr.bf16.mxu0 0
  %1328 = vmatpush1.bf16.msra.mxu0 0
  %1329 = vmatprep.subr.bf16.mxu0 0
  %1330 = vmatpush1.bf16.msra.mxu0 0
  %1331 = vmatprep.subr.bf16.mxu0 0
  %1332 = vmatpush1.bf16.msra.mxu0 0
  %1333 = vmatprep.subr.bf16.mxu0 0
  %1334 = vmatpush1.bf16.msra.mxu0 %v1318
  %1335 = vmatprep.subr.bf16.mxu0 0
  %1336 = vmatpush1.bf16.msra.mxu0 %v1317
  %1337 = vmatprep.subr.bf16.mxu0 0
  %1338 = vmatpush2.bf16.msra.mxu0 0
  %1339 = vmatprep.subr.bf16.mxu0 0
  %1340 = vmatpush2.bf16.msra.mxu0 0
  %1341 = vmatprep.subr.bf16.mxu0 0
  %1342 = vmatpush2.bf16.msra.mxu0 0
  %1343 = vmatprep.subr.bf16.mxu0 0
  %1344 = vmatpush2.bf16.msra.mxu0 0
  %1345 = vmatprep.subr.bf16.mxu0 0
  %1346 = vmatpush2.bf16.msra.mxu0 0
  %1347 = vmatprep.subr.bf16.mxu0 0
  %1348 = vmatpush2.bf16.msra.mxu0 0
  %1349 = vmatprep.subr.bf16.mxu0 0
  %1350 = vmatpush2.bf16.msra.mxu0 0
  %1351 = vmatprep.subr.bf16.mxu0 0
  %1352 = vmatpush2.bf16.msra.mxu0 0
  %1353 = vmatprep.mubr.bf16.mxu0 0
  %1354 = vmatmul.mubr.bf16.gmra.mxu0 %v1261
  %v1355 = vpop.f32.mrf.mxu0
  %v1356 = vadd.f32 0.0, %v1355
  %v1357 = vpop.f32.mrf.mxu0
  %v1358 = vpop.f32.mrf.mxu0
  %v1359 = vadd.f32 0.0, %v1358
  %v1360 = vpop.f32.mrf.mxu0
  %1361 = vdwg.mxu0
  %1362 = vmatprep.subr.mxu0 0.0
  %1363 = vmatpush1.msra.mxu0 0.0
  %1364 = vmatprep.subr.mxu0 0.0
  %1365 = vmatpush1.msra.mxu0 0.0
  %1366 = vmatprep.subr.mxu0 0.0
  %1367 = vmatpush1.msra.mxu0 0.0
  %1368 = vmatprep.subr.mxu0 0.0
  %1369 = vmatpush1.msra.mxu0 0.0
  %1370 = vmatprep.subr.mxu0 0.0
  %1371 = vmatpush1.msra.mxu0 0.0
  %1372 = vmatprep.subr.mxu0 0.0
  %1373 = vmatpush1.msra.mxu0 0.0
  %1374 = vmatprep.subr.mxu0 0.0
  %1375 = vmatpush1.msra.mxu0 0.0
  %1376 = vmatprep.subr.mxu0 0.0
  %1377 = vmatpush1.msra.mxu0 0.0
  %1378 = vmatprep.subr.mxu0 0.0
  %1379 = vmatpush1.msra.mxu0 0.0
  %1380 = vmatprep.subr.mxu0 0.0
  %1381 = vmatpush1.msra.mxu0 0.0
  %1382 = vmatprep.subr.mxu0 0.0
  %1383 = vmatpush1.msra.mxu0 0.0
  %1384 = vmatprep.subr.mxu0 0.0
  %1385 = vmatpush1.msra.mxu0 0.0
  %1386 = vmatprep.subr.mxu0 0.0
  %1387 = vmatpush1.msra.mxu0 0.0
  %1388 = vmatprep.subr.mxu0 0.0
  %1389 = vmatpush1.msra.mxu0 0.0
  %1390 = vmatprep.subr.mxu0 0.0
  %1391 = vmatpush1.msra.mxu0 %v1359
  %1392 = vmatprep.subr.mxu0 0.0
  %1393 = vmatpush1.msra.mxu0 %v1356
  %1394 = vmatprep.subr.mxu0 0.0
  %1395 = vmatpush2.msra.mxu0 0.0
  %1396 = vmatprep.subr.mxu0 0.0
  %1397 = vmatpush2.msra.mxu0 0.0
  %1398 = vmatprep.subr.mxu0 0.0
  %1399 = vmatpush2.msra.mxu0 0.0
  %1400 = vmatprep.subr.mxu0 0.0
  %1401 = vmatpush2.msra.mxu0 0.0
  %1402 = vmatprep.subr.mxu0 0.0
  %1403 = vmatpush2.msra.mxu0 0.0
  %1404 = vmatprep.subr.mxu0 0.0
  %1405 = vmatpush2.msra.mxu0 0.0
  %1406 = vmatprep.subr.mxu0 0.0
  %1407 = vmatpush2.msra.mxu0 0.0
  %1408 = vmatprep.subr.mxu0 0.0
  %1409 = vmatpush2.msra.mxu0 0.0
  %1410 = vmatprep.subr.mxu0 0.0
  %1411 = vmatpush2.msra.mxu0 0.0
  %1412 = vmatprep.subr.mxu0 0.0
  %1413 = vmatpush2.msra.mxu0 0.0
  %1414 = vmatprep.subr.mxu0 0.0
  %1415 = vmatpush2.msra.mxu0 0.0
  %1416 = vmatprep.subr.mxu0 0.0
  %1417 = vmatpush2.msra.mxu0 0.0
  %1418 = vmatprep.subr.mxu0 0.0
  %1419 = vmatpush2.msra.mxu0 0.0
  %1420 = vmatprep.subr.mxu0 0.0
  %1421 = vmatpush2.msra.mxu0 0.0
  %1422 = vmatprep.subr.mxu0 0.0
  %1423 = vmatpush2.msra.mxu0 0.0
  %1424 = vmatprep.subr.mxu0 0.0
  %1425 = vmatpush2.msra.mxu0 0.0
  %1426 = vmatprep.mubr.f32.mxu0 0.0
  %1427 = vmatmul.mubr.f32.gmra.mxu0 %v273
  %v1428 = vpop.f32.mrf.mxu0
  %v1429 = vadd.f32 0.0, %v1428
  %v1430 = vpop.f32.mrf.mxu0
  %1431 = vmatprep.mubr.f32.mxu0 0.0
  %1432 = vmatmul.mubr.f32.gmra.mxu0 %v276
  %v1433 = vpop.f32.mrf.mxu0
  %v1434 = vadd.f32 0.0, %v1433
  %v1435 = vpop.f32.mrf.mxu0
  %1436 = vmatprep.mubr.f32.mxu0 0.0
  %1437 = vmatmul.mubr.f32.gmra.mxu0 %v279
  %v1438 = vpop.f32.mrf.mxu0
  %v1439 = vadd.f32 0.0, %v1438
  %v1440 = vpop.f32.mrf.mxu0
  %1441 = vmatprep.mubr.f32.mxu0 0.0
  %1442 = vmatmul.mubr.f32.gmra.mxu0 %v282
  %v1443 = vpop.f32.mrf.mxu0
  %v1444 = vadd.f32 0.0, %v1443
  %v1445 = vpop.f32.mrf.mxu0
  %1446 = vdwg.mxu0
  %1447 = vmatprep.subr.mxu0 0.0
  %1448 = vmatpush1.msra.mxu0 0.0
  %1449 = vmatprep.subr.mxu0 0.0
  %1450 = vmatpush1.msra.mxu0 0.0
  %1451 = vmatprep.subr.mxu0 0.0
  %1452 = vmatpush1.msra.mxu0 0.0
  %1453 = vmatprep.subr.mxu0 0.0
  %1454 = vmatpush1.msra.mxu0 0.0
  %1455 = vmatprep.subr.mxu0 0.0
  %1456 = vmatpush1.msra.mxu0 0.0
  %1457 = vmatprep.subr.mxu0 0.0
  %1458 = vmatpush1.msra.mxu0 0.0
  %1459 = vmatprep.subr.mxu0 0.0
  %1460 = vmatpush1.msra.mxu0 0.0
  %1461 = vmatprep.subr.mxu0 0.0
  %1462 = vmatpush1.msra.mxu0 0.0
  %1463 = vmatprep.subr.mxu0 0.0
  %1464 = vmatpush1.msra.mxu0 0.0
  %1465 = vmatprep.subr.mxu0 0.0
  %1466 = vmatpush1.msra.mxu0 0.0
  %1467 = vmatprep.subr.mxu0 0.0
  %1468 = vmatpush1.msra.mxu0 0.0
  %1469 = vmatprep.subr.mxu0 0.0
  %1470 = vmatpush1.msra.mxu0 0.0
  %1471 = vmatprep.subr.mxu0 0.0
  %1472 = vmatpush1.msra.mxu0 0.0
  %1473 = vmatprep.subr.mxu0 0.0
  %1474 = vmatpush1.msra.mxu0 0.0
  %1475 = vmatprep.subr.mxu0 0.0
  %1476 = vmatpush1.msra.mxu0 %v1301
  %1477 = vmatprep.subr.mxu0 0.0
  %1478 = vmatpush1.msra.mxu0 %v1298
  %1479 = vmatprep.subr.mxu0 0.0
  %1480 = vmatpush2.msra.mxu0 0.0
  %1481 = vmatprep.subr.mxu0 0.0
  %1482 = vmatpush2.msra.mxu0 0.0
  %1483 = vmatprep.subr.mxu0 0.0
  %1484 = vmatpush2.msra.mxu0 0.0
  %1485 = vmatprep.subr.mxu0 0.0
  %1486 = vmatpush2.msra.mxu0 0.0
  %1487 = vmatprep.subr.mxu0 0.0
  %1488 = vmatpush2.msra.mxu0 0.0
  %1489 = vmatprep.subr.mxu0 0.0
  %1490 = vmatpush2.msra.mxu0 0.0
  %1491 = vmatprep.subr.mxu0 0.0
  %1492 = vmatpush2.msra.mxu0 0.0
  %1493 = vmatprep.subr.mxu0 0.0
  %1494 = vmatpush2.msra.mxu0 0.0
  %1495 = vmatprep.subr.mxu0 0.0
  %1496 = vmatpush2.msra.mxu0 0.0
  %1497 = vmatprep.subr.mxu0 0.0
  %1498 = vmatpush2.msra.mxu0 0.0
  %1499 = vmatprep.subr.mxu0 0.0
  %1500 = vmatpush2.msra.mxu0 0.0
  %1501 = vmatprep.subr.mxu0 0.0
  %1502 = vmatpush2.msra.mxu0 0.0
  %1503 = vmatprep.subr.mxu0 0.0
  %1504 = vmatpush2.msra.mxu0 0.0
  %1505 = vmatprep.subr.mxu0 0.0
  %1506 = vmatpush2.msra.mxu0 0.0
  %1507 = vmatprep.subr.mxu0 0.0
  %1508 = vmatpush2.msra.mxu0 0.0
  %1509 = vmatprep.subr.mxu0 0.0
  %1510 = vmatpush2.msra.mxu0 0.0
  %1511 = vmatprep.mubr.f32.mxu0 0.0
  %1512 = vmatmul.mubr.f32.gmra.mxu0 %v370
  %v1513 = vpop.f32.mrf.mxu0
  %v1514 = vadd.f32 %v1429, %v1513
  %v1515 = vpop.f32.mrf.mxu0
  %1516 = vmatprep.mubr.f32.mxu0 0.0
  %1517 = vmatmul.mubr.f32.gmra.mxu0 %v373
  %v1518 = vpop.f32.mrf.mxu0
  %v1519 = vadd.f32 %v1434, %v1518
  %v1520 = vpop.f32.mrf.mxu0
  %1521 = vmatprep.mubr.f32.mxu0 0.0
  %1522 = vmatmul.mubr.f32.gmra.mxu0 %v376
  %v1523 = vpop.f32.mrf.mxu0
  %v1524 = vadd.f32 %v1439, %v1523
  %v1525 = vpop.f32.mrf.mxu0
  %1526 = vmatprep.mubr.f32.mxu0 0.0
  %1527 = vmatmul.mubr.f32.gmra.mxu0 %v379
  %v1528 = vpop.f32.mrf.mxu0
  %v1529 = vadd.f32 %v1444, %v1528
  %v1530 = vpop.f32.mrf.mxu0
  %1531 = vdwg.mxu0
  %s1532 = scalar_lea.vmem %s11, 8
  %v1533 = vld [vmem:[%s1532] sm:$0xf]
  %v1534 = vld [vmem:[%s1532 + $0x4] sm:$0xf]
  %v1537 = vunpack.c.l.b16 %v1533
  %v1538 = vunpack.c.l.b16 %v1534
  %v1539 = vpack.c.b16 %v1538, %v1537
  %1541 = vmatprep.subr.bf16.mxu0 0
  %1542 = vmatpush1.bf16.msra.mxu0 0
  %1543 = vmatprep.subr.bf16.mxu0 0
  %1544 = vmatpush1.bf16.msra.mxu0 0
  %1545 = vmatprep.subr.bf16.mxu0 0
  %1546 = vmatpush1.bf16.msra.mxu0 0
  %1547 = vmatprep.subr.bf16.mxu0 0
  %1548 = vmatpush1.bf16.msra.mxu0 0
  %1549 = vmatprep.subr.bf16.mxu0 0
  %1550 = vmatpush1.bf16.msra.mxu0 0
  %1551 = vmatprep.subr.bf16.mxu0 0
  %1552 = vmatpush1.bf16.msra.mxu0 0
  %1553 = vmatprep.subr.bf16.mxu0 0
  %1554 = vmatpush1.bf16.msra.mxu0 0
  %1555 = vmatprep.subr.bf16.mxu0 0
  %1556 = vmatpush1.bf16.msra.mxu0 %v1539
  %1557 = vmatprep.subr.bf16.mxu0 0
  %1558 = vmatpush2.bf16.msra.mxu0 0
  %1559 = vmatprep.subr.bf16.mxu0 0
  %1560 = vmatpush2.bf16.msra.mxu0 0
  %1561 = vmatprep.subr.bf16.mxu0 0
  %1562 = vmatpush2.bf16.msra.mxu0 0
  %1563 = vmatprep.subr.bf16.mxu0 0
  %1564 = vmatpush2.bf16.msra.mxu0 0
  %1565 = vmatprep.subr.bf16.mxu0 0
  %1566 = vmatpush2.bf16.msra.mxu0 0
  %1567 = vmatprep.subr.bf16.mxu0 0
  %1568 = vmatpush2.bf16.msra.mxu0 0
  %1569 = vmatprep.subr.bf16.mxu0 0
  %1570 = vmatpush2.bf16.msra.mxu0 0
  %1571 = vmatprep.subr.bf16.mxu0 0
  %1572 = vmatpush2.bf16.msra.mxu0 0
  %1573 = vmatprep.mubr.bf16.mxu0 0
  %1574 = vmatmul.mubr.bf16.gmra.mxu0 %v477
  %v1575 = vpop.f32.mrf.mxu0
  %v1576 = vadd.f32 0.0, %v1575
  %v1577 = vpop.f32.mrf.mxu0
  %v1578 = vpop.f32.mrf.mxu0
  %v1579 = vadd.f32 0.0, %v1578
  %v1580 = vpop.f32.mrf.mxu0
  %1581 = vmatprep.mubr.bf16.mxu0 0
  %1582 = vmatmul.mubr.bf16.gmra.mxu0 %v480
  %v1583 = vpop.f32.mrf.mxu0
  %v1584 = vadd.f32 0.0, %v1583
  %v1585 = vpop.f32.mrf.mxu0
  %v1586 = vpop.f32.mrf.mxu0
  %v1587 = vadd.f32 0.0, %v1586
  %v1588 = vpop.f32.mrf.mxu0
  %1589 = vdwg.mxu0
  %v1590 = vadd.f32 %v1514, %v1576
  %v1591 = vadd.f32 %v1519, %v1579
  %v1592 = vadd.f32 %v1524, %v1584
  %v1593 = vadd.f32 %v1529, %v1587
  %s1594 = scalar_lea.vmem %s12, 1
  %v1595 = vld [vmem:[%s1594] sm:$0x1]
  %v1597 = vsel %vm549, %v1595, 0
  %1599 = vmatprep.subr.bf16.mxu0 0
  %1600 = vmatpush1.bf16.msra.mxu0 0
  %1601 = vmatprep.subr.bf16.mxu0 0
  %1602 = vmatpush1.bf16.msra.mxu0 0
  %1603 = vmatprep.subr.bf16.mxu0 0
  %1604 = vmatpush1.bf16.msra.mxu0 0
  %1605 = vmatprep.subr.bf16.mxu0 0
  %1606 = vmatpush1.bf16.msra.mxu0 0
  %1607 = vmatprep.subr.bf16.mxu0 0
  %1608 = vmatpush1.bf16.msra.mxu0 0
  %1609 = vmatprep.subr.bf16.mxu0 0
  %1610 = vmatpush1.bf16.msra.mxu0 0
  %1611 = vmatprep.subr.bf16.mxu0 0
  %1612 = vmatpush1.bf16.msra.mxu0 0
  %1613 = vmatprep.subr.bf16.mxu0 0
  %1614 = vmatpush1.bf16.msra.mxu0 %v1597
  %1615 = vmatprep.subr.bf16.mxu0 0
  %1616 = vmatpush2.bf16.msra.mxu0 0
  %1617 = vmatprep.subr.bf16.mxu0 0
  %1618 = vmatpush2.bf16.msra.mxu0 0
  %1619 = vmatprep.subr.bf16.mxu0 0
  %1620 = vmatpush2.bf16.msra.mxu0 0
  %1621 = vmatprep.subr.bf16.mxu0 0
  %1622 = vmatpush2.bf16.msra.mxu0 0
  %1623 = vmatprep.subr.bf16.mxu0 0
  %1624 = vmatpush2.bf16.msra.mxu0 0
  %1625 = vmatprep.subr.bf16.mxu0 0
  %1626 = vmatpush2.bf16.msra.mxu0 0
  %1627 = vmatprep.subr.bf16.mxu0 0
  %1628 = vmatpush2.bf16.msra.mxu0 0
  %1629 = vmatprep.subr.bf16.mxu0 0
  %1630 = vmatpush2.bf16.msra.mxu0 0
  %1631 = vmatprep.mubr.bf16.mxu0 0
  %1632 = vmatmul.mubr.bf16.gmra.mxu0 %v544
  %v1633 = vpop.f32.mrf.mxu0
  %v1634 = vadd.f32 0.0, %v1633
  %v1635 = vpop.f32.mrf.mxu0
  %v1636 = vpop.f32.mrf.mxu0
  %v1637 = vadd.f32 0.0, %v1636
  %v1638 = vpop.f32.mrf.mxu0
  %1639 = vmatprep.mubr.bf16.mxu0 0
  %1640 = vmatmul.mubr.bf16.gmra.mxu0 %v547
  %v1641 = vpop.f32.mrf.mxu0
  %v1642 = vadd.f32 0.0, %v1641
  %v1643 = vpop.f32.mrf.mxu0
  %v1644 = vpop.f32.mrf.mxu0
  %v1645 = vadd.f32 0.0, %v1644
  %v1646 = vpop.f32.mrf.mxu0
  %1647 = vdwg.mxu0
  %v1648 = vadd.f32 %v1590, %v1634
  %v1649 = vadd.f32 %v1591, %v1637
  %v1650 = vadd.f32 %v1592, %v1642
  %v1651 = vadd.f32 %v1593, %v1645
  %s1652 = scalar_lea.vmem %s6, 1
  %v1653 = vld [vmem:[%s1652] sm:$0x1]
  %v1655 = vlaneseq
  %v1656 = vshrl.u32 %v1655, 7
  %v1657 = vsub.s32 0, %v1656
  %v1658 = vrot.slane %v1653, %v1657
  %v1660 = vadd.f32 %v1648, %v1658
  %v1661 = vadd.f32 %v1649, %v1658
  %v1662 = vadd.f32 %v1650, %v1658
  %v1663 = vadd.f32 %v1651, %v1658
  %v1664 = vxor.u32 %v1660, 2147483648
  %v1665 = vxor.u32 %v1661, 2147483648
  %v1666 = vxor.u32 %v1662, 2147483648
  %v1667 = vxor.u32 %v1663, 2147483648
  %v1668 = vmul.f32 %v1664, 1.442695
  %v1669 = vpow.pop %v1668
  %v1670 = vmul.f32 %v1665, 1.442695
  %v1671 = vpow.pop %v1670
  %v1672 = vmul.f32 %v1666, 1.442695
  %v1673 = vpow.pop %v1672
  %v1674 = vmul.f32 %v1667, 1.442695
  %v1675 = vpow.pop %v1674
  %v1676 = vadd.f32 %v1669, 1.0
  %v1677 = vadd.f32 %v1671, 1.0
  %v1678 = vadd.f32 %v1673, 1.0
  %v1679 = vadd.f32 %v1675, 1.0
  %v1680 = vrcp.pop %v1676
  %v1681 = vmul.f32 1.0, %v1680
  %v1682 = vrcp.pop %v1677
  %v1683 = vmul.f32 1.0, %v1682
  %v1684 = vrcp.pop %v1678
  %v1685 = vmul.f32 1.0, %v1684
  %v1686 = vrcp.pop %v1679
  %v1687 = vmul.f32 1.0, %v1686
  %v1688 = vmul.f32 %v1660, %v1681
  %v1689 = vmul.f32 %v1661, %v1683
  %v1690 = vmul.f32 %v1662, %v1685
  %v1691 = vmul.f32 %v1663, %v1687
  %s1692 = scalar_lea.vmem %s8, 16
  %v1693 = vld [vmem:[%s1692] sm:$0xf]
  %v1694 = vld [vmem:[%s1692 + $0x4] sm:$0xf]
  %v1695 = vld [vmem:[%s1692 + $0x8] sm:$0xf]
  %v1696 = vld [vmem:[%s1692 + $0xc] sm:$0xf]
  %v1697 = vpack.c.bf16 %v1689, %v1688
  %v1698 = vpack.c.bf16 %v1691, %v1690
  %s1699 = scalar_lea.vmem %s7, 1
  %v1700 = vld [vmem:[%s1699] sm:$0x1]
  %v1702 = vlaneseq
  %v1703 = vshrl.u32 %v1702, 7
  %v1704 = vsub.s32 0, %v1703
  %v1705 = vrot.slane %v1700, %v1704
  %v1711 = vunpack.c.l.b16 %v1693
  %v1712 = vunpack.c.l.b16 %v1694
  %v1713 = vunpack.c.l.b16 %v1695
  %v1714 = vunpack.c.l.b16 %v1696
  %v1715 = vpack.c.b16 %v1712, %v1711
  %v1716 = vpack.c.b16 %v1714, %v1713
  %v1720 = vsel %vm144, %v1697, 0
  %v1723 = vsel %vm144, %v1698, 0
  %1725 = vmatprep.subr.bf16.mxu0 0
  %1726 = vmatpush1.bf16.msra.mxu0 0
  %1727 = vmatprep.subr.bf16.mxu0 0
  %1728 = vmatpush1.bf16.msra.mxu0 0
  %1729 = vmatprep.subr.bf16.mxu0 0
  %1730 = vmatpush1.bf16.msra.mxu0 0
  %1731 = vmatprep.subr.bf16.mxu0 0
  %1732 = vmatpush1.bf16.msra.mxu0 0
  %1733 = vmatprep.subr.bf16.mxu0 0
  %1734 = vmatpush1.bf16.msra.mxu0 0
  %1735 = vmatprep.subr.bf16.mxu0 0
  %1736 = vmatpush1.bf16.msra.mxu0 0
  %1737 = vmatprep.subr.bf16.mxu0 0
  %1738 = vmatpush1.bf16.msra.mxu0 %v1716
  %1739 = vmatprep.subr.bf16.mxu0 0
  %1740 = vmatpush1.bf16.msra.mxu0 %v1715
  %1741 = vmatprep.subr.bf16.mxu0 0
  %1742 = vmatpush2.bf16.msra.mxu0 0
  %1743 = vmatprep.subr.bf16.mxu0 0
  %1744 = vmatpush2.bf16.msra.mxu0 0
  %1745 = vmatprep.subr.bf16.mxu0 0
  %1746 = vmatpush2.bf16.msra.mxu0 0
  %1747 = vmatprep.subr.bf16.mxu0 0
  %1748 = vmatpush2.bf16.msra.mxu0 0
  %1749 = vmatprep.subr.bf16.mxu0 0
  %1750 = vmatpush2.bf16.msra.mxu0 0
  %1751 = vmatprep.subr.bf16.mxu0 0
  %1752 = vmatpush2.bf16.msra.mxu0 0
  %1753 = vmatprep.subr.bf16.mxu0 0
  %1754 = vmatpush2.bf16.msra.mxu0 0
  %1755 = vmatprep.subr.bf16.mxu0 0
  %1756 = vmatpush2.bf16.msra.mxu0 0
  %1757 = vmatprep.mubr.bf16.mxu0 0
  %1758 = vmatmul.mubr.bf16.gmra.mxu0 %v1720
  %v1759 = vpop.f32.mrf.mxu0
  %v1760 = vadd.f32 %v1705, %v1759
  %v1761 = vpop.f32.mrf.mxu0
  %v1762 = vpop.f32.mrf.mxu0
  %v1763 = vadd.f32 %v1705, %v1762
  %v1764 = vpop.f32.mrf.mxu0
  %1765 = vmatprep.mubr.bf16.mxu0 0
  %1766 = vmatmul.mubr.bf16.gmra.mxu0 %v1723
  %v1767 = vpop.f32.mrf.mxu0
  %v1768 = vadd.f32 %v1705, %v1767
  %v1769 = vpop.f32.mrf.mxu0
  %v1770 = vpop.f32.mrf.mxu0
  %v1771 = vadd.f32 %v1705, %v1770
  %v1772 = vpop.f32.mrf.mxu0
  %1773 = vdwg.mxu0
  %v1774 = vxor.u32 %v1760, 2147483648
  %v1775 = vxor.u32 %v1763, 2147483648
  %v1776 = vxor.u32 %v1768, 2147483648
  %v1777 = vxor.u32 %v1771, 2147483648
  %v1778 = vmul.f32 %v1774, 1.442695
  %v1779 = vpow.pop %v1778
  %v1780 = vmul.f32 %v1775, 1.442695
  %v1781 = vpow.pop %v1780
  %v1782 = vmul.f32 %v1776, 1.442695
  %v1783 = vpow.pop %v1782
  %v1784 = vmul.f32 %v1777, 1.442695
  %v1785 = vpow.pop %v1784
  %v1786 = vadd.f32 %v1779, 1.0
  %v1787 = vadd.f32 %v1781, 1.0
  %v1788 = vadd.f32 %v1783, 1.0
  %v1789 = vadd.f32 %v1785, 1.0
  %v1790 = vrcp.pop %v1786
  %v1791 = vmul.f32 1.0, %v1790
  %v1792 = vrcp.pop %v1787
  %v1793 = vmul.f32 1.0, %v1792
  %v1794 = vrcp.pop %v1788
  %v1795 = vmul.f32 1.0, %v1794
  %v1796 = vrcp.pop %v1789
  %v1797 = vmul.f32 1.0, %v1796
  %v1798 = vmul.f32 %v1760, %v1791
  %v1799 = vmul.f32 %v1763, %v1793
  %v1800 = vmul.f32 %v1768, %v1795
  %v1801 = vmul.f32 %v1771, %v1797
  %1802 = vmatprep.subr.mxu0 0.0
  %1803 = vmatpush1.msra.mxu0 0.0
  %1804 = vmatprep.subr.mxu0 0.0
  %1805 = vmatpush1.msra.mxu0 0.0
  %1806 = vmatprep.subr.mxu0 0.0
  %1807 = vmatpush1.msra.mxu0 0.0
  %1808 = vmatprep.subr.mxu0 0.0
  %1809 = vmatpush1.msra.mxu0 0.0
  %1810 = vmatprep.subr.mxu0 0.0
  %1811 = vmatpush1.msra.mxu0 0.0
  %1812 = vmatprep.subr.mxu0 0.0
  %1813 = vmatpush1.msra.mxu0 0.0
  %1814 = vmatprep.subr.mxu0 0.0
  %1815 = vmatpush1.msra.mxu0 0.0
  %1816 = vmatprep.subr.mxu0 0.0
  %1817 = vmatpush1.msra.mxu0 0.0
  %1818 = vmatprep.subr.mxu0 0.0
  %1819 = vmatpush1.msra.mxu0 0.0
  %1820 = vmatprep.subr.mxu0 0.0
  %1821 = vmatpush1.msra.mxu0 0.0
  %1822 = vmatprep.subr.mxu0 0.0
  %1823 = vmatpush1.msra.mxu0 0.0
  %1824 = vmatprep.subr.mxu0 0.0
  %1825 = vmatpush1.msra.mxu0 0.0
  %1826 = vmatprep.subr.mxu0 0.0
  %1827 = vmatpush1.msra.mxu0 %v1801
  %1828 = vmatprep.subr.mxu0 0.0
  %1829 = vmatpush1.msra.mxu0 %v1800
  %1830 = vmatprep.subr.mxu0 0.0
  %1831 = vmatpush1.msra.mxu0 %v1799
  %1832 = vmatprep.subr.mxu0 0.0
  %1833 = vmatpush1.msra.mxu0 %v1798
  %1834 = vmatprep.subr.mxu0 0.0
  %1835 = vmatpush2.msra.mxu0 0.0
  %1836 = vmatprep.subr.mxu0 0.0
  %1837 = vmatpush2.msra.mxu0 0.0
  %1838 = vmatprep.subr.mxu0 0.0
  %1839 = vmatpush2.msra.mxu0 0.0
  %1840 = vmatprep.subr.mxu0 0.0
  %1841 = vmatpush2.msra.mxu0 0.0
  %1842 = vmatprep.subr.mxu0 0.0
  %1843 = vmatpush2.msra.mxu0 0.0
  %1844 = vmatprep.subr.mxu0 0.0
  %1845 = vmatpush2.msra.mxu0 0.0
  %1846 = vmatprep.subr.mxu0 0.0
  %1847 = vmatpush2.msra.mxu0 0.0
  %1848 = vmatprep.subr.mxu0 0.0
  %1849 = vmatpush2.msra.mxu0 0.0
  %1850 = vmatprep.subr.mxu0 0.0
  %1851 = vmatpush2.msra.mxu0 0.0
  %1852 = vmatprep.subr.mxu0 0.0
  %1853 = vmatpush2.msra.mxu0 0.0
  %1854 = vmatprep.subr.mxu0 0.0
  %1855 = vmatpush2.msra.mxu0 0.0
  %1856 = vmatprep.subr.mxu0 0.0
  %1857 = vmatpush2.msra.mxu0 0.0
  %1858 = vmatprep.subr.mxu0 0.0
  %1859 = vmatpush2.msra.mxu0 0.0
  %1860 = vmatprep.subr.mxu0 0.0
  %1861 = vmatpush2.msra.mxu0 0.0
  %1862 = vmatprep.subr.mxu0 0.0
  %1863 = vmatpush2.msra.mxu0 0.0
  %1864 = vmatprep.subr.mxu0 0.0
  %1865 = vmatpush2.msra.mxu0 0.0
  %1866 = vmatprep.mubr.f32.mxu0 0.0
  %1867 = vmatmul.mubr.f32.gmra.mxu0 %v754
  %v1868 = vpop.f32.mrf.mxu0
  %v1869 = vadd.f32 0.0, %v1868
  %v1870 = vpop.f32.mrf.mxu0
  %1871 = vmatprep.mubr.f32.mxu0 0.0
  %1872 = vmatmul.mubr.f32.gmra.mxu0 %v757
  %v1873 = vpop.f32.mrf.mxu0
  %v1874 = vadd.f32 0.0, %v1873
  %v1875 = vpop.f32.mrf.mxu0
  %1876 = vdwg.mxu0
  %v1877 = vmul.f32 %v1869, %v834
  %v1878 = vmul.f32 %v1874, %v836
  %s1879 = scalar_lea.vmem %s16, 16
  %v1880 = vld [vmem:[%s1879] sm:$0xf]
  %v1881 = vld [vmem:[%s1879 + $0x4] sm:$0xf]
  %v1882 = vld [vmem:[%s1879 + $0x8] sm:$0xf]
  %v1883 = vld [vmem:[%s1879 + $0xc] sm:$0xf]
  %s1884 = scalar_lea.vmem %s17, 16
  %v1885 = vld [vmem:[%s1884] sm:$0xf]
  %v1886 = vld [vmem:[%s1884 + $0x4] sm:$0xf]
  %v1887 = vld [vmem:[%s1884 + $0x8] sm:$0xf]
  %v1888 = vld [vmem:[%s1884 + $0xc] sm:$0xf]
  %v1889 = vpack.c.bf16 %v1878, %v1877
  %v1894 = vunpack.c.l.b16 %v1885
  %v1895 = vunpack.c.l.b16 %v1886
  %v1896 = vunpack.c.l.b16 %v1887
  %v1897 = vunpack.c.l.b16 %v1888
  %v1898 = vpack.c.b16 %v1895, %v1894
  %v1899 = vpack.c.b16 %v1897, %v1896
  %v1903 = vsel %vm144, %v1889, 0
  %1905 = vmatprep.subr.bf16.mxu0 0
  %1906 = vmatpush1.bf16.msra.mxu0 0
  %1907 = vmatprep.subr.bf16.mxu0 0
  %1908 = vmatpush1.bf16.msra.mxu0 0
  %1909 = vmatprep.subr.bf16.mxu0 0
  %1910 = vmatpush1.bf16.msra.mxu0 0
  %1911 = vmatprep.subr.bf16.mxu0 0
  %1912 = vmatpush1.bf16.msra.mxu0 0
  %1913 = vmatprep.subr.bf16.mxu0 0
  %1914 = vmatpush1.bf16.msra.mxu0 0
  %1915 = vmatprep.subr.bf16.mxu0 0
  %1916 = vmatpush1.bf16.msra.mxu0 0
  %1917 = vmatprep.subr.bf16.mxu0 0
  %1918 = vmatpush1.bf16.msra.mxu0 %v1899
  %1919 = vmatprep.subr.bf16.mxu0 0
  %1920 = vmatpush1.bf16.msra.mxu0 %v1898
  %1921 = vmatprep.subr.bf16.mxu0 0
  %1922 = vmatpush2.bf16.msra.mxu0 0
  %1923 = vmatprep.subr.bf16.mxu0 0
  %1924 = vmatpush2.bf16.msra.mxu0 0
  %1925 = vmatprep.subr.bf16.mxu0 0
  %1926 = vmatpush2.bf16.msra.mxu0 0
  %1927 = vmatprep.subr.bf16.mxu0 0
  %1928 = vmatpush2.bf16.msra.mxu0 0
  %1929 = vmatprep.subr.bf16.mxu0 0
  %1930 = vmatpush2.bf16.msra.mxu0 0
  %1931 = vmatprep.subr.bf16.mxu0 0
  %1932 = vmatpush2.bf16.msra.mxu0 0
  %1933 = vmatprep.subr.bf16.mxu0 0
  %1934 = vmatpush2.bf16.msra.mxu0 0
  %1935 = vmatprep.subr.bf16.mxu0 0
  %1936 = vmatpush2.bf16.msra.mxu0 0
  %1937 = vmatprep.mubr.bf16.mxu0 0
  %1938 = vmatmul.mubr.bf16.gmra.mxu0 %v1903
  %v1939 = vpop.f32.mrf.mxu0
  %v1940 = vadd.f32 0.0, %v1939
  %v1941 = vpop.f32.mrf.mxu0
  %v1942 = vpop.f32.mrf.mxu0
  %v1943 = vadd.f32 0.0, %v1942
  %v1944 = vpop.f32.mrf.mxu0
  %1945 = vdwg.mxu0
  %v1950 = vunpack.c.l.b16 %v1880
  %v1951 = vunpack.c.l.b16 %v1881
  %v1952 = vunpack.c.l.b16 %v1882
  %v1953 = vunpack.c.l.b16 %v1883
  %v1954 = vpack.c.b16 %v1951, %v1950
  %v1955 = vpack.c.b16 %v1953, %v1952
  %1958 = vmatprep.subr.bf16.mxu0 0
  %1959 = vmatpush1.bf16.msra.mxu0 0
  %1960 = vmatprep.subr.bf16.mxu0 0
  %1961 = vmatpush1.bf16.msra.mxu0 0
  %1962 = vmatprep.subr.bf16.mxu0 0
  %1963 = vmatpush1.bf16.msra.mxu0 0
  %1964 = vmatprep.subr.bf16.mxu0 0
  %1965 = vmatpush1.bf16.msra.mxu0 0
  %1966 = vmatprep.subr.bf16.mxu0 0
  %1967 = vmatpush1.bf16.msra.mxu0 0
  %1968 = vmatprep.subr.bf16.mxu0 0
  %1969 = vmatpush1.bf16.msra.mxu0 0
  %1970 = vmatprep.subr.bf16.mxu0 0
  %1971 = vmatpush1.bf16.msra.mxu0 %v1955
  %1972 = vmatprep.subr.bf16.mxu0 0
  %1973 = vmatpush1.bf16.msra.mxu0 %v1954
  %1974 = vmatprep.subr.bf16.mxu0 0
  %1975 = vmatpush2.bf16.msra.mxu0 0
  %1976 = vmatprep.subr.bf16.mxu0 0
  %1977 = vmatpush2.bf16.msra.mxu0 0
  %1978 = vmatprep.subr.bf16.mxu0 0
  %1979 = vmatpush2.bf16.msra.mxu0 0
  %1980 = vmatprep.subr.bf16.mxu0 0
  %1981 = vmatpush2.bf16.msra.mxu0 0
  %1982 = vmatprep.subr.bf16.mxu0 0
  %1983 = vmatpush2.bf16.msra.mxu0 0
  %1984 = vmatprep.subr.bf16.mxu0 0
  %1985 = vmatpush2.bf16.msra.mxu0 0
  %1986 = vmatprep.subr.bf16.mxu0 0
  %1987 = vmatpush2.bf16.msra.mxu0 0
  %1988 = vmatprep.subr.bf16.mxu0 0
  %1989 = vmatpush2.bf16.msra.mxu0 0
  %1990 = vmatprep.mubr.bf16.mxu0 0
  %1991 = vmatmul.mubr.bf16.gmra.mxu0 %v1261
  %v1992 = vpop.f32.mrf.mxu0
  %v1993 = vadd.f32 %v1940, %v1992
  %v1994 = vpop.f32.mrf.mxu0
  %v1995 = vpop.f32.mrf.mxu0
  %v1996 = vadd.f32 %v1943, %v1995
  %v1997 = vpop.f32.mrf.mxu0
  %1998 = vdwg.mxu0
  %s1999 = scalar_lea.vmem %s18, 8
  %v2000 = vld [vmem:[%s1999] sm:$0xf]
  %v2001 = vld [vmem:[%s1999 + $0x4] sm:$0xf]
  %v2004 = vunpack.c.l.b16 %v2000
  %v2005 = vunpack.c.l.b16 %v2001
  %v2006 = vpack.c.b16 %v2005, %v2004
  %2008 = vmatprep.subr.bf16.mxu0 0
  %2009 = vmatpush1.bf16.msra.mxu0 0
  %2010 = vmatprep.subr.bf16.mxu0 0
  %2011 = vmatpush1.bf16.msra.mxu0 0
  %2012 = vmatprep.subr.bf16.mxu0 0
  %2013 = vmatpush1.bf16.msra.mxu0 0
  %2014 = vmatprep.subr.bf16.mxu0 0
  %2015 = vmatpush1.bf16.msra.mxu0 0
  %2016 = vmatprep.subr.bf16.mxu0 0
  %2017 = vmatpush1.bf16.msra.mxu0 0
  %2018 = vmatprep.subr.bf16.mxu0 0
  %2019 = vmatpush1.bf16.msra.mxu0 0
  %2020 = vmatprep.subr.bf16.mxu0 0
  %2021 = vmatpush1.bf16.msra.mxu0 0
  %2022 = vmatprep.subr.bf16.mxu0 0
  %2023 = vmatpush1.bf16.msra.mxu0 %v2006
  %2024 = vmatprep.subr.bf16.mxu0 0
  %2025 = vmatpush2.bf16.msra.mxu0 0
  %2026 = vmatprep.subr.bf16.mxu0 0
  %2027 = vmatpush2.bf16.msra.mxu0 0
  %2028 = vmatprep.subr.bf16.mxu0 0
  %2029 = vmatpush2.bf16.msra.mxu0 0
  %2030 = vmatprep.subr.bf16.mxu0 0
  %2031 = vmatpush2.bf16.msra.mxu0 0
  %2032 = vmatprep.subr.bf16.mxu0 0
  %2033 = vmatpush2.bf16.msra.mxu0 0
  %2034 = vmatprep.subr.bf16.mxu0 0
  %2035 = vmatpush2.bf16.msra.mxu0 0
  %2036 = vmatprep.subr.bf16.mxu0 0
  %2037 = vmatpush2.bf16.msra.mxu0 0
  %2038 = vmatprep.subr.bf16.mxu0 0
  %2039 = vmatpush2.bf16.msra.mxu0 0
  %2040 = vmatprep.mubr.bf16.mxu0 0
  %2041 = vmatmul.mubr.bf16.gmra.mxu0 %v968
  %v2042 = vpop.f32.mrf.mxu0
  %v2043 = vadd.f32 0.0, %v2042
  %v2044 = vpop.f32.mrf.mxu0
  %v2045 = vpop.f32.mrf.mxu0
  %v2046 = vadd.f32 0.0, %v2045
  %v2047 = vpop.f32.mrf.mxu0
  %2048 = vdwg.mxu0
  %v2049 = vadd.f32 %v1993, %v2043
  %v2050 = vadd.f32 %v1996, %v2046
  %s2051 = scalar_lea.vmem %s19, 2
  %v2052 = vld [vmem:[%s2051] sm:$0x3]
  %v2054 = vsel %vm1020, %v2052, 0
  %2056 = vmatprep.subr.bf16.mxu0 0
  %2057 = vmatpush1.bf16.msra.mxu0 0
  %2058 = vmatprep.subr.bf16.mxu0 0
  %2059 = vmatpush1.bf16.msra.mxu0 0
  %2060 = vmatprep.subr.bf16.mxu0 0
  %2061 = vmatpush1.bf16.msra.mxu0 0
  %2062 = vmatprep.subr.bf16.mxu0 0
  %2063 = vmatpush1.bf16.msra.mxu0 0
  %2064 = vmatprep.subr.bf16.mxu0 0
  %2065 = vmatpush1.bf16.msra.mxu0 0
  %2066 = vmatprep.subr.bf16.mxu0 0
  %2067 = vmatpush1.bf16.msra.mxu0 0
  %2068 = vmatprep.subr.bf16.mxu0 0
  %2069 = vmatpush1.bf16.msra.mxu0 0
  %2070 = vmatprep.subr.bf16.mxu0 0
  %2071 = vmatpush1.bf16.msra.mxu0 %v2054
  %2072 = vmatprep.subr.bf16.mxu0 0
  %2073 = vmatpush2.bf16.msra.mxu0 0
  %2074 = vmatprep.subr.bf16.mxu0 0
  %2075 = vmatpush2.bf16.msra.mxu0 0
  %2076 = vmatprep.subr.bf16.mxu0 0
  %2077 = vmatpush2.bf16.msra.mxu0 0
  %2078 = vmatprep.subr.bf16.mxu0 0
  %2079 = vmatpush2.bf16.msra.mxu0 0
  %2080 = vmatprep.subr.bf16.mxu0 0
  %2081 = vmatpush2.bf16.msra.mxu0 0
  %2082 = vmatprep.subr.bf16.mxu0 0
  %2083 = vmatpush2.bf16.msra.mxu0 0
  %2084 = vmatprep.subr.bf16.mxu0 0
  %2085 = vmatpush2.bf16.msra.mxu0 0
  %2086 = vmatprep.subr.bf16.mxu0 0
  %2087 = vmatpush2.bf16.msra.mxu0 0
  %2088 = vmatprep.mubr.bf16.mxu0 0
  %2089 = vmatmul.mubr.bf16.gmra.mxu0 %v1018
  %v2090 = vpop.f32.mrf.mxu0
  %v2091 = vadd.f32 0.0, %v2090
  %v2092 = vpop.f32.mrf.mxu0
  %v2093 = vpop.f32.mrf.mxu0
  %v2094 = vadd.f32 0.0, %v2093
  %v2095 = vpop.f32.mrf.mxu0
  %2096 = vdwg.mxu0
  %v2097 = vadd.f32 %v2049, %v2091
  %v2098 = vadd.f32 %v2050, %v2094
  %s2099 = scalar_lea.vmem %s13, 1
  %v2100 = vld [vmem:[%s2099] sm:$0x1]
  %v2102 = vlaneseq
  %v2103 = vshrl.u32 %v2102, 7
  %v2104 = vsub.s32 0, %v2103
  %v2105 = vrot.slane %v2100, %v2104
  %v2107 = vadd.f32 %v2097, %v2105
  %v2108 = vadd.f32 %v2098, %v2105
  %v2109 = vxor.u32 %v2107, 2147483648
  %v2110 = vxor.u32 %v2108, 2147483648
  %v2111 = vmul.f32 %v2109, 1.442695
  %v2112 = vpow.pop %v2111
  %v2113 = vmul.f32 %v2110, 1.442695
  %v2114 = vpow.pop %v2113
  %v2115 = vadd.f32 %v2112, 1.0
  %v2116 = vadd.f32 %v2114, 1.0
  %v2117 = vrcp.pop %v2115
  %v2118 = vmul.f32 1.0, %v2117
  %v2119 = vrcp.pop %v2116
  %v2120 = vmul.f32 1.0, %v2119
  %v2121 = vmul.f32 %v2107, %v2118
  %v2122 = vmul.f32 %v2108, %v2120
  %s2123 = scalar_lea.vmem %s15, 16
  %v2124 = vld [vmem:[%s2123] sm:$0xf]
  %v2125 = vld [vmem:[%s2123 + $0x4] sm:$0xf]
  %v2126 = vld [vmem:[%s2123 + $0x8] sm:$0xf]
  %v2127 = vld [vmem:[%s2123 + $0xc] sm:$0xf]
  %v2128 = vpack.c.bf16 %v2122, %v2121
  %s2129 = scalar_lea.vmem %s14, 1
  %v2130 = vld [vmem:[%s2129] sm:$0x1]
  %v2132 = vlaneseq
  %v2133 = vshrl.u32 %v2132, 7
  %v2134 = vsub.s32 0, %v2133
  %v2135 = vrot.slane %v2130, %v2134
  %v2141 = vunpack.c.l.b16 %v2124
  %v2142 = vunpack.c.l.b16 %v2125
  %v2143 = vunpack.c.l.b16 %v2126
  %v2144 = vunpack.c.l.b16 %v2127
  %v2145 = vpack.c.b16 %v2142, %v2141
  %v2146 = vpack.c.b16 %v2144, %v2143
  %v2150 = vsel %vm144, %v2128, 0
  %2152 = vmatprep.subr.bf16.mxu0 0
  %2153 = vmatpush1.bf16.msra.mxu0 0
  %2154 = vmatprep.subr.bf16.mxu0 0
  %2155 = vmatpush1.bf16.msra.mxu0 0
  %2156 = vmatprep.subr.bf16.mxu0 0
  %2157 = vmatpush1.bf16.msra.mxu0 0
  %2158 = vmatprep.subr.bf16.mxu0 0
  %2159 = vmatpush1.bf16.msra.mxu0 0
  %2160 = vmatprep.subr.bf16.mxu0 0
  %2161 = vmatpush1.bf16.msra.mxu0 0
  %2162 = vmatprep.subr.bf16.mxu0 0
  %2163 = vmatpush1.bf16.msra.mxu0 0
  %2164 = vmatprep.subr.bf16.mxu0 0
  %2165 = vmatpush1.bf16.msra.mxu0 %v2146
  %2166 = vmatprep.subr.bf16.mxu0 0
  %2167 = vmatpush1.bf16.msra.mxu0 %v2145
  %2168 = vmatprep.subr.bf16.mxu0 0
  %2169 = vmatpush2.bf16.msra.mxu0 0
  %2170 = vmatprep.subr.bf16.mxu0 0
  %2171 = vmatpush2.bf16.msra.mxu0 0
  %2172 = vmatprep.subr.bf16.mxu0 0
  %2173 = vmatpush2.bf16.msra.mxu0 0
  %2174 = vmatprep.subr.bf16.mxu0 0
  %2175 = vmatpush2.bf16.msra.mxu0 0
  %2176 = vmatprep.subr.bf16.mxu0 0
  %2177 = vmatpush2.bf16.msra.mxu0 0
  %2178 = vmatprep.subr.bf16.mxu0 0
  %2179 = vmatpush2.bf16.msra.mxu0 0
  %2180 = vmatprep.subr.bf16.mxu0 0
  %2181 = vmatpush2.bf16.msra.mxu0 0
  %2182 = vmatprep.subr.bf16.mxu0 0
  %2183 = vmatpush2.bf16.msra.mxu0 0
  %2184 = vmatprep.mubr.bf16.mxu0 0
  %2185 = vmatmul.mubr.bf16.gmra.mxu0 %v2150
  %v2186 = vpop.f32.mrf.mxu0
  %v2187 = vadd.f32 %v2135, %v2186
  %v2188 = vpop.f32.mrf.mxu0
  %v2189 = vpop.f32.mrf.mxu0
  %v2190 = vadd.f32 %v2135, %v2189
  %v2191 = vpop.f32.mrf.mxu0
  %2192 = vdwg.mxu0
  %v2193 = vxor.u32 %v2187, 2147483648
  %v2194 = vxor.u32 %v2190, 2147483648
  %v2195 = vmul.f32 %v2193, 1.442695
  %v2196 = vpow.pop %v2195
  %v2197 = vmul.f32 %v2194, 1.442695
  %v2198 = vpow.pop %v2197
  %v2199 = vadd.f32 %v2196, 1.0
  %v2200 = vadd.f32 %v2198, 1.0
  %v2201 = vrcp.pop %v2199
  %v2202 = vmul.f32 1.0, %v2201
  %v2203 = vrcp.pop %v2200
  %v2204 = vmul.f32 1.0, %v2203
  %v2205 = vmul.f32 %v2187, %v2202
  %v2206 = vmul.f32 %v2190, %v2204
  %v2207 = vadd.f32 %v1172, %v2205
  %v2208 = vadd.f32 %v1173, %v2206
  %s2209 = scalar_lea.vmem %s5, 8
  %v2210 = vld [vmem:[%s2209] sm:$0xf]
  %v2211 = vld [vmem:[%s2209 + $0x4] sm:$0x3]
  %v2212 = vpack.c.bf16 %v1241, %v1240
  %2214 = vrot.lane.b32.xlu0 %v2212, 96
  %v2215 = vpop.permute.xlu0 %2214
  %v2218 = vunpack.c.l.b16 %v2210
  %v2219 = vunpack.c.l.b16 %v2211
  %v2220 = vpack.c.b16 %v2219, %v2218
  %v2222 = vsel %vm1183, %v2215, 0
  %v2225 = vsel %vm1187, %v2220, 0
  %2227 = vmatprep.subr.bf16.mxu0 0
  %2228 = vmatpush1.bf16.msra.mxu0 0
  %2229 = vmatprep.subr.bf16.mxu0 0
  %2230 = vmatpush1.bf16.msra.mxu0 0
  %2231 = vmatprep.subr.bf16.mxu0 0
  %2232 = vmatpush1.bf16.msra.mxu0 0
  %2233 = vmatprep.subr.bf16.mxu0 0
  %2234 = vmatpush1.bf16.msra.mxu0 0
  %2235 = vmatprep.subr.bf16.mxu0 0
  %2236 = vmatpush1.bf16.msra.mxu0 0
  %2237 = vmatprep.subr.bf16.mxu0 0
  %2238 = vmatpush1.bf16.msra.mxu0 0
  %2239 = vmatprep.subr.bf16.mxu0 0
  %2240 = vmatpush1.bf16.msra.mxu0 0
  %2241 = vmatprep.subr.bf16.mxu0 0
  %2242 = vmatpush1.bf16.msra.mxu0 %v2225
  %2243 = vmatprep.subr.bf16.mxu0 0
  %2244 = vmatpush2.bf16.msra.mxu0 0
  %2245 = vmatprep.subr.bf16.mxu0 0
  %2246 = vmatpush2.bf16.msra.mxu0 0
  %2247 = vmatprep.subr.bf16.mxu0 0
  %2248 = vmatpush2.bf16.msra.mxu0 0
  %2249 = vmatprep.subr.bf16.mxu0 0
  %2250 = vmatpush2.bf16.msra.mxu0 0
  %2251 = vmatprep.subr.bf16.mxu0 0
  %2252 = vmatpush2.bf16.msra.mxu0 0
  %2253 = vmatprep.subr.bf16.mxu0 0
  %2254 = vmatpush2.bf16.msra.mxu0 0
  %2255 = vmatprep.subr.bf16.mxu0 0
  %2256 = vmatpush2.bf16.msra.mxu0 0
  %2257 = vmatprep.subr.bf16.mxu0 0
  %2258 = vmatpush2.bf16.msra.mxu0 0
  %2259 = vmatprep.mubr.bf16.mxu0 0
  %2260 = vmatmul.mubr.bf16.gmra.mxu0 %v2222
  %v2261 = vpop.f32.mrf.mxu0
  %v2262 = vadd.f32 0.0, %v2261
  %v2263 = vpop.f32.mrf.mxu0
  %v2264 = vpop.f32.mrf.mxu0
  %v2265 = vadd.f32 0.0, %v2264
  %v2266 = vpop.f32.mrf.mxu0
  %2267 = vdwg.mxu0
  %2270 = vrot.lane.b32.xlu0 %v2262, 32
  %v2271 = vpop.permute.xlu0 %2270
  %2272 = vrot.lane.b32.xlu0 %v2265, 32
  %v2273 = vpop.permute.xlu0 %2272
  %v2276 = vadd.f32 %v1240, %v2271
  %v2277 = vadd.f32 %v1241, %v2273
  %v2278 = vsel %vm144, %v2207, %v2276
  %v2279 = vsel %vm144, %v2208, %v2277
  %vm2280 = vcmask 359424
  %2281 = vst.msk [vmem:[%s20] sm:$0xff] %vm2280, %v2278
  %2282 = vst.msk [vmem:[%s20 + $0x8] sm:$0xff] %vm2280, %v2279
  // Predicated region
  $region82: #{topotein_forward.4} parent=0 // pred_check
    _
  $region83: #{topotein_forward.4} parent=0 // pred_check_branch
    %2284 = sbr.rel (0) target = $region85
  $region84: #{topotein_forward.4} parent=0 // pred_region
    _
  $region85: #{topotein_forward.4} parent=0 // pred_fallthru
    _
  // Predicated region
  $region86: #{topotein_forward.4} parent=0 // pred_check
    _
  $region87: #{topotein_forward.4} parent=0 // pred_check_branch
    %2286 = sbr.rel (0) target = $region89
  $region88: #{topotein_forward.4} parent=0 // pred_region
    _
  $region89: #{topotein_forward.4} parent=0 // pred_fallthru
    _

// kernel: topotein_forward.3
$region0: #{topotein_forward.3}
  #allocation0 [shape = 'u32[]', space=smem, size = 0x4, offset = 0x4, fixed_abs, tag = 'smem constant byte address 0x4 - core index']
  #allocation1 [shape = 'u32[144,128]{1,0:T(1,128)}', space=vmem, size = 0x12000, scoped, tag = 'internal scratch']
  %s0 = inlined_call_operand.smem [shape: u32[50], index: -1, kind: input, shape index: {}]
  %s1 = sld [smem:[%s0]]
  %s2 = scalar_lea.smem %s0, 1
  %s3 = sld [smem:[%s2]]
  %s4 = scalar_lea.smem %s0, 2
  %s5 = sld [smem:[%s4]]
  %s6 = scalar_lea.smem %s0, 3
  %s7 = sld [smem:[%s6]]
  %s8 = scalar_lea.smem %s0, 4
  %s9 = sld [smem:[%s8]]
  %s10 = scalar_lea.smem %s0, 5
  %s11 = sld [smem:[%s10]]
  %s12 = scalar_lea.smem %s0, 6
  %s13 = sld [smem:[%s12]]
  %s14 = scalar_lea.smem %s0, 7
  %s15 = sld [smem:[%s14]]
  %s16 = scalar_lea.smem %s0, 8
  %s17 = sld [smem:[%s16]]
  %s18 = scalar_lea.smem %s0, 9
  %s19 = sld [smem:[%s18]]
  %s20 = scalar_lea.smem %s0, 10
  %s21 = sld [smem:[%s20]]
  %s22 = scalar_lea.smem %s0, 11
  %s23 = sld [smem:[%s22]]
  %s24 = scalar_lea.smem %s0, 12
  %s25 = sld [smem:[%s24]]
  %s26 = scalar_lea.smem %s0, 13
  %s27 = sld [smem:[%s26]]
  %s28 = scalar_lea.smem %s0, 14
  %s29 = sld [smem:[%s28]]
  %s30 = scalar_lea.smem %s0, 15
  %s31 = sld [smem:[%s30]]
  %s32 = scalar_lea.smem %s0, 16
  %s33 = sld [smem:[%s32]]
  %s34 = scalar_lea.smem %s0, 17
  %s35 = sld [smem:[%s34]]
  %s36 = scalar_lea.smem %s0, 18
  %s37 = sld [smem:[%s36]]
  %s38 = scalar_lea.smem %s0, 19
  %s39 = sld [smem:[%s38]]
  %s40 = scalar_lea.smem %s0, 20
  %s41 = sld [smem:[%s40]]
  %s42 = scalar_lea.smem %s0, 21
  %s43 = sld [smem:[%s42]]
  %s44 = scalar_lea.smem %s0, 22
  %s45 = sld [smem:[%s44]]
  %s46 = scalar_lea.smem %s0, 23
  %s47 = sld [smem:[%s46]]
  %s48 = scalar_lea.smem %s0, 24
  %s49 = sld [smem:[%s48]]
  %s50 = scalar_lea.smem %s0, 25
  %s51 = sld [smem:[%s50]]
  %s52 = scalar_lea.smem %s0, 26
  %s53 = sld [smem:[%s52]]
  %s54 = scalar_lea.smem %s0, 27
  %s55 = sld [smem:[%s54]]
  %s56 = scalar_lea.smem %s0, 28
  %s57 = sld [smem:[%s56]]
  %s58 = scalar_lea.smem %s0, 29
  %s59 = sld [smem:[%s58]]
  %s60 = scalar_lea.smem %s0, 30
  %s61 = sld [smem:[%s60]]
  %s62 = scalar_lea.smem %s0, 31
  %s63 = sld [smem:[%s62]]
  %s64 = scalar_lea.smem %s0, 32
  %s65 = sld [smem:[%s64]]
  %s66 = scalar_lea.smem %s0, 33
  %s67 = sld [smem:[%s66]]
  %s68 = scalar_lea.smem %s0, 34
  %s69 = sld [smem:[%s68]]
  %s70 = scalar_lea.smem %s0, 35
  %s71 = sld [smem:[%s70]]
  %s72 = scalar_lea.smem %s0, 36
  %s73 = sld [smem:[%s72]]
  %s74 = scalar_lea.smem %s0, 37
  %s75 = sld [smem:[%s74]]
  %s76 = scalar_lea.smem %s0, 38
  %s77 = sld [smem:[%s76]]
  %s78 = scalar_lea.smem %s0, 39
  %s79 = sld [smem:[%s78]]
  %s80 = scalar_lea.smem %s0, 40
  %s81 = sld [smem:[%s80]]
  %s82 = scalar_lea.smem %s0, 41
  %s83 = sld [smem:[%s82]]
  %s84 = scalar_lea.smem %s0, 42
  %s85 = sld [smem:[%s84]]
  %s86 = scalar_lea.smem %s0, 43
  %s87 = sld [smem:[%s86]]
  %s88 = scalar_lea.smem %s0, 44
  %s89 = sld [smem:[%s88]]
  %s90 = scalar_lea.smem %s0, 45
  %s91 = sld [smem:[%s90]]
  %s92 = scalar_lea.smem %s0, 46
  %s93 = sld [smem:[%s92]]
  %s94 = scalar_lea.smem %s0, 47
  %s95 = sld [smem:[%s94]]
  %s96 = scalar_lea.smem %s0, 48
  %s97 = sld [smem:[%s96]]
  %s98 = scalar_lea.smem %s0, 49
  %s99 = sld [smem:[%s98]]
  %100 = xla_tuple %s97, %s99
  %s101 = sld [smem:[#allocation0]]
  $region246: #{topotein_forward.3} parent=0
    _
  %s103 = ssub.s32 1, %s101
  %s104 = scalar_select 0, %s103, %s101
  $region1: #{topotein_forward.3} parent=0
    #allocation2 [shape = 'u8[512]{0}', space=vmem, size = 0x400, scoped, tag = 'input window, operand 26, single buffered']
    #allocation3 [shape = 's32[1]{0}', space=sflag, size = 0x4, scoped, tag = 'scoped memory for topotein_forward.3']
    #allocation4 [shape = 'u8[512]{0}', space=vmem, size = 0x400, scoped, tag = 'input window, operand 30, single buffered']
    #allocation5 [shape = 's32[1]{0}', space=sflag, size = 0x4, scoped, tag = 'scoped memory for topotein_forward.3']
    #allocation6 [shape = 'u8[512]{0}', space=vmem, size = 0x400, scoped, tag = 'input window, operand 31, single buffered']
    #allocation7 [shape = 'u8[512]{0}', space=vmem, size = 0x400, scoped, tag = 'input window, operand 34, single buffered']
    #allocation8 [shape = 's32[1]{0}', space=sflag, size = 0x4, scoped, tag = 'scoped memory for topotein_forward.3']
    #allocation9 [shape = 'u8[512]{0}', space=vmem, size = 0x400, scoped, tag = 'input window, operand 35, single buffered']
    #allocation10 [shape = 'u8[512]{0}', space=vmem, size = 0x400, scoped, tag = 'input window, operand 39, single buffered']
    #allocation11 [shape = 's32[1]{0}', space=sflag, size = 0x4, scoped, tag = 'scoped memory for topotein_forward.3']
    #allocation12 [shape = 'u8[512]{0}', space=vmem, size = 0x400, scoped, tag = 'input window, operand 40, single buffered']
    #allocation13 [shape = 'u8[512]{0}', space=vmem, size = 0x400, scoped, tag = 'input window, operand 43, single buffered']
    #allocation14 [shape = 's32[1]{0}', space=sflag, size = 0x4, scoped, tag = 'scoped memory for topotein_forward.3']
    #allocation15 [shape = 'u8[512]{0}', space=vmem, size = 0x400, scoped, tag = 'input window, operand 44, single buffered']
    %105 = vsyncpa [#allocation3], 0
    %106 = vsyncpa [#allocation5], 0
    %107 = vsyncpa [#allocation8], 0
    %108 = vsyncpa [#allocation11], 0
    %109 = vsyncpa [#allocation14], 0
    // Predicated region
    $region2: #{topotein_forward.3} parent=1 // pred_check
      _
    $region3: #{topotein_forward.3} parent=1 // pred_check_branch
      %111 = sbr.rel (0) target = $region5
    $region4: #{topotein_forward.3} parent=1 // pred_region
      _
    $region5: #{topotein_forward.3} parent=1 // pred_fallthru
      _
    // Predicated region
    $region6: #{topotein_forward.3} parent=1 // pred_check
      _
    $region7: #{topotein_forward.3} parent=1 // pred_check_branch
      %113 = sbr.rel (0) target = $region9
    $region8: #{topotein_forward.3} parent=1 // pred_region
      _
    $region9: #{topotein_forward.3} parent=1 // pred_fallthru
      _
    // Predicated region
    $region10: #{topotein_forward.3} parent=1 // pred_check
      _
    $region11: #{topotein_forward.3} parent=1 // pred_check_branch
      %115 = sbr.rel (0) target = $region13
    $region12: #{topotein_forward.3} parent=1 // pred_region
      _
    $region13: #{topotein_forward.3} parent=1 // pred_fallthru
      _
    // Predicated region
    $region14: #{topotein_forward.3} parent=1 // pred_check
      _
    $region15: #{topotein_forward.3} parent=1 // pred_check_branch
      %117 = sbr.rel (0) target = $region17
    $region16: #{topotein_forward.3} parent=1 // pred_region
      _
    $region17: #{topotein_forward.3} parent=1 // pred_fallthru
      _
    // Predicated region
    $region18: #{topotein_forward.3} parent=1 // pred_check
      _
    $region19: #{topotein_forward.3} parent=1 // pred_check_branch
      %119 = sbr.rel (0) target = $region21
    $region20: #{topotein_forward.3} parent=1 // pred_region
      _
    $region21: #{topotein_forward.3} parent=1 // pred_fallthru
      _
    // Predicated region
    $region22: #{topotein_forward.3} parent=1 // pred_check
      _
    $region23: #{topotein_forward.3} parent=1 // pred_check_branch
      %121 = sbr.rel (0) target = $region25
    $region24: #{topotein_forward.3} parent=1 // pred_region
      _
    $region25: #{topotein_forward.3} parent=1 // pred_fallthru
      _
    // Predicated region
    $region26: #{topotein_forward.3} parent=1 // pred_check
      _
    $region27: #{topotein_forward.3} parent=1 // pred_check_branch
      %123 = sbr.rel (0) target = $region29
    $region28: #{topotein_forward.3} parent=1 // pred_region
      _
    $region29: #{topotein_forward.3} parent=1 // pred_fallthru
      _
    // Predicated region
    $region30: #{topotein_forward.3} parent=1 // pred_check
      _
    $region31: #{topotein_forward.3} parent=1 // pred_check_branch
      %125 = sbr.rel (0) target = $region33
    $region32: #{topotein_forward.3} parent=1 // pred_region
      _
    $region33: #{topotein_forward.3} parent=1 // pred_fallthru
      _
    // Predicated region
    $region34: #{topotein_forward.3} parent=1 // pred_check
      _
    $region35: #{topotein_forward.3} parent=1 // pred_check_branch
      %127 = sbr.rel (0) target = $region37
    $region36: #{topotein_forward.3} parent=1 // pred_region
      _
    $region37: #{topotein_forward.3} parent=1 // pred_fallthru
      _
    // Predicated region
    $region38: #{topotein_forward.3} parent=1 // pred_check
      _
    $region39: #{topotein_forward.3} parent=1 // pred_check_branch
      %129 = sbr.rel (0) target = $region41
    $region40: #{topotein_forward.3} parent=1 // pred_region
      _
    $region41: #{topotein_forward.3} parent=1 // pred_fallthru
      _
    // Predicated region
    $region42: #{topotein_forward.3} parent=1 // pred_check
      _
    $region43: #{topotein_forward.3} parent=1 // pred_check_branch
      %131 = sbr.rel (0) target = $region45
    $region44: #{topotein_forward.3} parent=1 // pred_region
      _
    $region45: #{topotein_forward.3} parent=1 // pred_fallthru
      _
    // Predicated region
    $region46: #{topotein_forward.3} parent=1 // pred_check
      _
    $region47: #{topotein_forward.3} parent=1 // pred_check_branch
      %133 = sbr.rel (0) target = $region49
    $region48: #{topotein_forward.3} parent=1 // pred_region
      _
    $region49: #{topotein_forward.3} parent=1 // pred_fallthru
      _
    // Predicated region
    $region50: #{topotein_forward.3} parent=1 // pred_check
      _
    $region51: #{topotein_forward.3} parent=1 // pred_check_branch
      %135 = sbr.rel (0) target = $region53
    $region52: #{topotein_forward.3} parent=1 // pred_region
      _
    $region53: #{topotein_forward.3} parent=1 // pred_fallthru
      _
    // Predicated region
    $region54: #{topotein_forward.3} parent=1 // pred_check
      _
    $region55: #{topotein_forward.3} parent=1 // pred_check_branch
      %137 = sbr.rel (0) target = $region57
    $region56: #{topotein_forward.3} parent=1 // pred_region
      _
    $region57: #{topotein_forward.3} parent=1 // pred_fallthru
      _
    // Predicated region
    $region58: #{topotein_forward.3} parent=1 // pred_check
      _
    $region59: #{topotein_forward.3} parent=1 // pred_check_branch
      %139 = sbr.rel (0) target = $region61
    $region60: #{topotein_forward.3} parent=1 // pred_region
      _
    $region61: #{topotein_forward.3} parent=1 // pred_fallthru
      _
    // Predicated region
    $region62: #{topotein_forward.3} parent=1 // pred_check
      _
    $region63: #{topotein_forward.3} parent=1 // pred_check_branch
      %141 = sbr.rel (0) target = $region65
    $region64: #{topotein_forward.3} parent=1 // pred_region
      _
    $region65: #{topotein_forward.3} parent=1 // pred_fallthru
      _
    // Predicated region
    $region66: #{topotein_forward.3} parent=1 // pred_check
      _
    $region67: #{topotein_forward.3} parent=1 // pred_check_branch
      %143 = sbr.rel (0) target = $region69
    $region68: #{topotein_forward.3} parent=1 // pred_region
      _
    $region69: #{topotein_forward.3} parent=1 // pred_fallthru
      _
    // Predicated region
    $region70: #{topotein_forward.3} parent=1 // pred_check
      _
    $region71: #{topotein_forward.3} parent=1 // pred_check_branch
      %145 = sbr.rel (0) target = $region73
    $region72: #{topotein_forward.3} parent=1 // pred_region
      _
    $region73: #{topotein_forward.3} parent=1 // pred_fallthru
      _
    // Predicated region
    $region74: #{topotein_forward.3} parent=1 // pred_check
      _
    $region75: #{topotein_forward.3} parent=1 // pred_check_branch
      %147 = sbr.rel (0) target = $region77
    $region76: #{topotein_forward.3} parent=1 // pred_region
      _
    $region77: #{topotein_forward.3} parent=1 // pred_fallthru
      _
    // Predicated region
    $region78: #{topotein_forward.3} parent=1 // pred_check
      _
    $region79: #{topotein_forward.3} parent=1 // pred_check_branch
      %149 = sbr.rel (0) target = $region81
    $region80: #{topotein_forward.3} parent=1 // pred_region
      _
    $region81: #{topotein_forward.3} parent=1 // pred_fallthru
      _
    // Predicated region
    $region82: #{topotein_forward.3} parent=1 // pred_check
      _
    $region83: #{topotein_forward.3} parent=1 // pred_check_branch
      %151 = sbr.rel (0) target = $region85
    $region84: #{topotein_forward.3} parent=1 // pred_region
      _
    $region85: #{topotein_forward.3} parent=1 // pred_fallthru
      _
    // Predicated region
    $region86: #{topotein_forward.3} parent=1 // pred_check
      _
    $region87: #{topotein_forward.3} parent=1 // pred_check_branch
      %153 = sbr.rel (0) target = $region89
    $region88: #{topotein_forward.3} parent=1 // pred_region
      _
    $region89: #{topotein_forward.3} parent=1 // pred_fallthru
      _
    // Predicated region
    $region90: #{topotein_forward.3} parent=1 // pred_check
      _
    $region91: #{topotein_forward.3} parent=1 // pred_check_branch
      %155 = sbr.rel (0) target = $region93
    $region92: #{topotein_forward.3} parent=1 // pred_region
      _
    $region93: #{topotein_forward.3} parent=1 // pred_fallthru
      _
    // Predicated region
    $region94: #{topotein_forward.3} parent=1 // pred_check
      _
    $region95: #{topotein_forward.3} parent=1 // pred_check_branch
      %157 = sbr.rel (0) target = $region97
    $region96: #{topotein_forward.3} parent=1 // pred_region
      _
    $region97: #{topotein_forward.3} parent=1 // pred_fallthru
      _
    // Predicated region
    $region98: #{topotein_forward.3} parent=1 // pred_check
      _
    $region99: #{topotein_forward.3} parent=1 // pred_check_branch
      %159 = sbr.rel (0) target = $region101
    $region100: #{topotein_forward.3} parent=1 // pred_region
      _
    $region101: #{topotein_forward.3} parent=1 // pred_fallthru
      _
    // Predicated region
    $region102: #{topotein_forward.3} parent=1 // pred_check
      _
    $region103: #{topotein_forward.3} parent=1 // pred_check_branch
      %161 = sbr.rel (0) target = $region105
    $region104: #{topotein_forward.3} parent=1 // pred_region
      _
    $region105: #{topotein_forward.3} parent=1 // pred_fallthru
      _
    // Predicated region
    $region106: #{topotein_forward.3} parent=1 // pred_check
      _
    $region107: #{topotein_forward.3} parent=1 // pred_check_branch
      %163 = sbr.rel (0) target = $region109
    $region108: #{topotein_forward.3} parent=1 // pred_region
      %s165 = ssub.s32 16, 16
      %166 = vsyncadd [#allocation3], %s165
      %s168 = sshll.u32 [#allocation2], 4
      %s169 = int_to_ptr.vmem [resolvable:$true] %s168
      %171 = dma.hbm_to_vmem [thread:$0]  %s53, 16, %s169, [#allocation3]
    $region109: #{topotein_forward.3} parent=1 // pred_fallthru
      _
    // Predicated region
    $region110: #{topotein_forward.3} parent=1 // pred_check
      _
    $region111: #{topotein_forward.3} parent=1 // pred_check_branch
      %173 = sbr.rel (0) target = $region113
    $region112: #{topotein_forward.3} parent=1 // pred_region
      _
    $region113: #{topotein_forward.3} parent=1 // pred_fallthru
      _
    // Predicated region
    $region114: #{topotein_forward.3} parent=1 // pred_check
      _
    $region115: #{topotein_forward.3} parent=1 // pred_check_branch
      %175 = sbr.rel (0) target = $region117
    $region116: #{topotein_forward.3} parent=1 // pred_region
      _
    $region117: #{topotein_forward.3} parent=1 // pred_fallthru
      _
    // Predicated region
    $region118: #{topotein_forward.3} parent=1 // pred_check
      _
    $region119: #{topotein_forward.3} parent=1 // pred_check_branch
      %177 = sbr.rel (0) target = $region121
    $region120: #{topotein_forward.3} parent=1 // pred_region
      _
    $region121: #{topotein_forward.3} parent=1 // pred_fallthru
      _
    // Predicated region
    $region122: #{topotein_forward.3} parent=1 // pred_check
      _
    $region123: #{topotein_forward.3} parent=1 // pred_check_branch
      %179 = sbr.rel (0) target = $region125
    $region124: #{topotein_forward.3} parent=1 // pred_region
      %s181 = ssub.s32 16, 16
      %182 = vsyncadd [#allocation5], %s181
      %s184 = sshll.u32 [#allocation4], 4
      %s185 = int_to_ptr.vmem [resolvable:$true] %s184
      %187 = dma.hbm_to_vmem [thread:$0]  %s61, 16, %s185, [#allocation5]
    $region125: #{topotein_forward.3} parent=1 // pred_fallthru
      _
    // Predicated region
    $region126: #{topotein_forward.3} parent=1 // pred_check
      _
    $region127: #{topotein_forward.3} parent=1 // pred_check_branch
      %189 = sbr.rel (0) target = $region129
    $region128: #{topotein_forward.3} parent=1 // pred_region
      %s191 = ssub.s32 16, 16
      %192 = vsyncadd [#allocation5], %s191
      %s194 = sshll.u32 [#allocation6], 4
      %s195 = int_to_ptr.vmem [resolvable:$true] %s194
      %197 = dma.hbm_to_vmem [thread:$0]  %s63, 16, %s195, [#allocation5]
    $region129: #{topotein_forward.3} parent=1 // pred_fallthru
      _
    // Predicated region
    $region130: #{topotein_forward.3} parent=1 // pred_check
      _
    $region131: #{topotein_forward.3} parent=1 // pred_check_branch
      %199 = sbr.rel (0) target = $region133
    $region132: #{topotein_forward.3} parent=1 // pred_region
      _
    $region133: #{topotein_forward.3} parent=1 // pred_fallthru
      _
    // Predicated region
    $region134: #{topotein_forward.3} parent=1 // pred_check
      _
    $region135: #{topotein_forward.3} parent=1 // pred_check_branch
      %201 = sbr.rel (0) target = $region137
    $region136: #{topotein_forward.3} parent=1 // pred_region
      _
    $region137: #{topotein_forward.3} parent=1 // pred_fallthru
      _
    // Predicated region
    $region138: #{topotein_forward.3} parent=1 // pred_check
      _
    $region139: #{topotein_forward.3} parent=1 // pred_check_branch
      %203 = sbr.rel (0) target = $region141
    $region140: #{topotein_forward.3} parent=1 // pred_region
      %s205 = ssub.s32 16, 16
      %206 = vsyncadd [#allocation8], %s205
      %s208 = sshll.u32 [#allocation7], 4
      %s209 = int_to_ptr.vmem [resolvable:$true] %s208
      %211 = dma.hbm_to_vmem [thread:$0]  %s69, 16, %s209, [#allocation8]
    $region141: #{topotein_forward.3} parent=1 // pred_fallthru
      _
    // Predicated region
    $region142: #{topotein_forward.3} parent=1 // pred_check
      _
    $region143: #{topotein_forward.3} parent=1 // pred_check_branch
      %213 = sbr.rel (0) target = $region145
    $region144: #{topotein_forward.3} parent=1 // pred_region
      %s215 = ssub.s32 16, 16
      %216 = vsyncadd [#allocation8], %s215
      %s218 = sshll.u32 [#allocation9], 4
      %s219 = int_to_ptr.vmem [resolvable:$true] %s218
      %221 = dma.hbm_to_vmem [thread:$0]  %s71, 16, %s219, [#allocation8]
    $region145: #{topotein_forward.3} parent=1 // pred_fallthru
      _
    // Predicated region
    $region146: #{topotein_forward.3} parent=1 // pred_check
      _
    $region147: #{topotein_forward.3} parent=1 // pred_check_branch
      %223 = sbr.rel (0) target = $region149
    $region148: #{topotein_forward.3} parent=1 // pred_region
      _
    $region149: #{topotein_forward.3} parent=1 // pred_fallthru
      _
    // Predicated region
    $region150: #{topotein_forward.3} parent=1 // pred_check
      _
    $region151: #{topotein_forward.3} parent=1 // pred_check_branch
      %225 = sbr.rel (0) target = $region153
    $region152: #{topotein_forward.3} parent=1 // pred_region
      _
    $region153: #{topotein_forward.3} parent=1 // pred_fallthru
      _
    // Predicated region
    $region154: #{topotein_forward.3} parent=1 // pred_check
      _
    $region155: #{topotein_forward.3} parent=1 // pred_check_branch
      %227 = sbr.rel (0) target = $region157
    $region156: #{topotein_forward.3} parent=1 // pred_region
      _
    $region157: #{topotein_forward.3} parent=1 // pred_fallthru
      _
    // Predicated region
    $region158: #{topotein_forward.3} parent=1 // pred_check
      _
    $region159: #{topotein_forward.3} parent=1 // pred_check_branch
      %229 = sbr.rel (0) target = $region161
    $region160: #{topotein_forward.3} parent=1 // pred_region
      %s231 = ssub.s32 16, 16
      %232 = vsyncadd [#allocation11], %s231
      %s234 = sshll.u32 [#allocation10], 4
      %s235 = int_to_ptr.vmem [resolvable:$true] %s234
      %237 = dma.hbm_to_vmem [thread:$0]  %s79, 16, %s235, [#allocation11]
    $region161: #{topotein_forward.3} parent=1 // pred_fallthru
      _
    // Predicated region
    $region162: #{topotein_forward.3} parent=1 // pred_check
      _
    $region163: #{topotein_forward.3} parent=1 // pred_check_branch
      %239 = sbr.rel (0) target = $region165
    $region164: #{topotein_forward.3} parent=1 // pred_region
      %s241 = ssub.s32 16, 16
      %242 = vsyncadd [#allocation11], %s241
      %s244 = sshll.u32 [#allocation12], 4
      %s245 = int_to_ptr.vmem [resolvable:$true] %s244
      %247 = dma.hbm_to_vmem [thread:$0]  %s81, 16, %s245, [#allocation11]
    $region165: #{topotein_forward.3} parent=1 // pred_fallthru
      _
    // Predicated region
    $region166: #{topotein_forward.3} parent=1 // pred_check
      _
    $region167: #{topotein_forward.3} parent=1 // pred_check_branch
      %249 = sbr.rel (0) target = $region169
    $region168: #{topotein_forward.3} parent=1 // pred_region
      _
    $region169: #{topotein_forward.3} parent=1 // pred_fallthru
      _
    // Predicated region
    $region170: #{topotein_forward.3} parent=1 // pred_check
      _
    $region171: #{topotein_forward.3} parent=1 // pred_check_branch
      %251 = sbr.rel (0) target = $region173
    $region172: #{topotein_forward.3} parent=1 // pred_region
      _
    $region173: #{topotein_forward.3} parent=1 // pred_fallthru
      _
    // Predicated region
    $region174: #{topotein_forward.3} parent=1 // pred_check
      _
    $region175: #{topotein_forward.3} parent=1 // pred_check_branch
      %253 = sbr.rel (0) target = $region177
    $region176: #{topotein_forward.3} parent=1 // pred_region
      %s255 = ssub.s32 16, 16
      %256 = vsyncadd [#allocation14], %s255
      %s258 = sshll.u32 [#allocation13], 4
      %s259 = int_to_ptr.vmem [resolvable:$true] %s258
      %261 = dma.hbm_to_vmem [thread:$0]  %s87, 16, %s259, [#allocation14]
    $region177: #{topotein_forward.3} parent=1 // pred_fallthru
      _
    // Predicated region
    $region178: #{topotein_forward.3} parent=1 // pred_check
      _
    $region179: #{topotein_forward.3} parent=1 // pred_check_branch
      %263 = sbr.rel (0) target = $region181
    $region180: #{topotein_forward.3} parent=1 // pred_region
      %s265 = ssub.s32 16, 16
      %266 = vsyncadd [#allocation14], %s265
      %s268 = sshll.u32 [#allocation15], 4
      %s269 = int_to_ptr.vmem [resolvable:$true] %s268
      %271 = dma.hbm_to_vmem [thread:$0]  %s89, 16, %s269, [#allocation14]
    $region181: #{topotein_forward.3} parent=1 // pred_fallthru
      _
    // Predicated region
    $region182: #{topotein_forward.3} parent=1 // pred_check
      _
    $region183: #{topotein_forward.3} parent=1 // pred_check_branch
      %273 = sbr.rel (0) target = $region185
    $region184: #{topotein_forward.3} parent=1 // pred_region
      _
    $region185: #{topotein_forward.3} parent=1 // pred_fallthru
      _
    // Predicated region
    $region186: #{topotein_forward.3} parent=1 // pred_check
      _
    $region187: #{topotein_forward.3} parent=1 // pred_check_branch
      %275 = sbr.rel (0) target = $region189
    $region188: #{topotein_forward.3} parent=1 // pred_region
      _
    $region189: #{topotein_forward.3} parent=1 // pred_fallthru
      _
    // Predicated region
    $region190: #{topotein_forward.3} parent=1 // pred_check
      _
    $region191: #{topotein_forward.3} parent=1 // pred_check_branch
      %277 = sbr.rel (0) target = $region193
    $region192: #{topotein_forward.3} parent=1 // pred_region
      _
    $region193: #{topotein_forward.3} parent=1 // pred_fallthru
      _
    // Predicated region
    $region194: #{topotein_forward.3} parent=1 // pred_check
      _
    $region195: #{topotein_forward.3} parent=1 // pred_check_branch
      %279 = sbr.rel (0) target = $region197
    $region196: #{topotein_forward.3} parent=1 // pred_region
      %280 = dma.done [#allocation3], 16
    $region197: #{topotein_forward.3} parent=1 // pred_fallthru
      _
    // Predicated region
    $region198: #{topotein_forward.3} parent=1 // pred_check
      _
    $region199: #{topotein_forward.3} parent=1 // pred_check_branch
      %282 = sbr.rel (0) target = $region201
    $region200: #{topotein_forward.3} parent=1 // pred_region
      %283 = dma.done [#allocation5], 16
    $region201: #{topotein_forward.3} parent=1 // pred_fallthru
      _
    // Predicated region
    $region202: #{topotein_forward.3} parent=1 // pred_check
      _
    $region203: #{topotein_forward.3} parent=1 // pred_check_branch
      %285 = sbr.rel (0) target = $region205
    $region204: #{topotein_forward.3} parent=1 // pred_region
      %286 = dma.done [#allocation5], 16
    $region205: #{topotein_forward.3} parent=1 // pred_fallthru
      _
    // Predicated region
    $region206: #{topotein_forward.3} parent=1 // pred_check
      _
    $region207: #{topotein_forward.3} parent=1 // pred_check_branch
      %288 = sbr.rel (0) target = $region209
    $region208: #{topotein_forward.3} parent=1 // pred_region
      %289 = dma.done [#allocation8], 16
    $region209: #{topotein_forward.3} parent=1 // pred_fallthru
      _
    // Predicated region
    $region210: #{topotein_forward.3} parent=1 // pred_check
      _
    $region211: #{topotein_forward.3} parent=1 // pred_check_branch
      %291 = sbr.rel (0) target = $region213
    $region212: #{topotein_forward.3} parent=1 // pred_region
      %292 = dma.done [#allocation8], 16
    $region213: #{topotein_forward.3} parent=1 // pred_fallthru
      _
    // Predicated region
    $region214: #{topotein_forward.3} parent=1 // pred_check
      _
    $region215: #{topotein_forward.3} parent=1 // pred_check_branch
      %294 = sbr.rel (0) target = $region217
    $region216: #{topotein_forward.3} parent=1 // pred_region
      %295 = dma.done [#allocation11], 16
    $region217: #{topotein_forward.3} parent=1 // pred_fallthru
      _
    // Predicated region
    $region218: #{topotein_forward.3} parent=1 // pred_check
      _
    $region219: #{topotein_forward.3} parent=1 // pred_check_branch
      %297 = sbr.rel (0) target = $region221
    $region220: #{topotein_forward.3} parent=1 // pred_region
      %298 = dma.done [#allocation11], 16
    $region221: #{topotein_forward.3} parent=1 // pred_fallthru
      _
    // Predicated region
    $region222: #{topotein_forward.3} parent=1 // pred_check
      _
    $region223: #{topotein_forward.3} parent=1 // pred_check_branch
      %300 = sbr.rel (0) target = $region225
    $region224: #{topotein_forward.3} parent=1 // pred_region
      %301 = dma.done [#allocation14], 16
    $region225: #{topotein_forward.3} parent=1 // pred_fallthru
      _
    // Predicated region
    $region226: #{topotein_forward.3} parent=1 // pred_check
      _
    $region227: #{topotein_forward.3} parent=1 // pred_check_branch
      %303 = sbr.rel (0) target = $region229
    $region228: #{topotein_forward.3} parent=1 // pred_region
      %304 = dma.done [#allocation14], 16
    $region229: #{topotein_forward.3} parent=1 // pred_fallthru
      _
    %v306 = vld [vmem:[%s1] sm:$0xff]
    %v307 = vld [vmem:[%s1 + $0x8] sm:$0xff]
    %v308 = vld [vmem:[%s3] sm:$0xff]
    %v309 = vld [vmem:[%s3 + $0x8] sm:$0xff]
    %v310 = vlaneseq
    %v311 = vshrl.u32 %v310, 7
    %v312 = vld [vmem:[%s7] sm:$0x1]
    %v313 = vlaneseq
    %v314 = vshrl.u32 %v313, 7
    %v315 = vsub.s32 0, %v314
    %v316 = vrot.slane %v312, %v315
    %vm317 = vcmp.eq.s32.totalorder %v311, %v316
    %v318 = vsel %vm317, 1, 0
    %v319 = vcvt.s32.f32 %v318
    %v320 = vlaneseq
    %v321 = vand.u32 %v320, 127
    %v322 = vld [vmem:[%s9] sm:$0xff]
    %v323 = vld [vmem:[%s9 + $0x8] sm:$0xff]
    %324 = vset.pattern.permute.xlu0 0
    %325 = vperm.xlu0 %324, %v322
    %v326 = vpop.permute.xlu0 %325
    %327 = vset.pattern.permute.xlu0 0
    %328 = vperm.xlu0 %327, %v323
    %v329 = vpop.permute.xlu0 %328
    %vm330 = vcmp.eq.s32.totalorder %v321, %v326
    %vm331 = vcmp.eq.s32.totalorder %v321, %v329
    %v332 = vsel %vm330, 1, 0
    %v333 = vsel %vm331, 1, 0
    %v334 = vcvt.s32.f32 %v332
    %v335 = vcvt.s32.f32 %v333
    %v336 = vld [vmem:[%s11] sm:$0x1]
    %v337 = vlaneseq
    %v338 = vshrl.u32 %v337, 7
    %v339 = vsub.s32 0, %v338
    %v340 = vrot.slane %v336, %v339
    %vm341 = vcmp.eq.s32.totalorder %v311, %v340
    %v342 = vsel %vm341, 1, 0
    %v343 = vcvt.s32.f32 %v342
    %v344 = vld [vmem:[%s13] sm:$0xff]
    %v345 = vld [vmem:[%s13 + $0x8] sm:$0xff]
    %346 = vset.pattern.permute.xlu0 0
    %347 = vperm.xlu0 %346, %v344
    %v348 = vpop.permute.xlu0 %347
    %349 = vset.pattern.permute.xlu0 0
    %350 = vperm.xlu0 %349, %v345
    %v351 = vpop.permute.xlu0 %350
    %vm352 = vcmp.eq.s32.totalorder %v321, %v348
    %vm353 = vcmp.eq.s32.totalorder %v321, %v351
    %v354 = vsel %vm352, 1, 0
    %v355 = vsel %vm353, 1, 0
    %v356 = vcvt.s32.f32 %v354
    %v357 = vcvt.s32.f32 %v355
    %v358 = vld [vmem:[%s15] sm:$0xff]
    %v359 = vld [vmem:[%s15 + $0x8] sm:$0xff]
    %v360 = vld [vmem:[%s15 + $0x10] sm:$0xff]
    %v361 = vld [vmem:[%s15 + $0x18] sm:$0xff]
    %362 = vset.pattern.permute.xlu0 0
    %363 = vperm.xlu0 %362, %v358
    %v364 = vpop.permute.xlu0 %363
    %365 = vset.pattern.permute.xlu0 0
    %366 = vperm.xlu0 %365, %v359
    %v367 = vpop.permute.xlu0 %366
    %368 = vset.pattern.permute.xlu0 0
    %369 = vperm.xlu0 %368, %v360
    %v370 = vpop.permute.xlu0 %369
    %371 = vset.pattern.permute.xlu0 0
    %372 = vperm.xlu0 %371, %v361
    %v373 = vpop.permute.xlu0 %372
    %vm374 = vcmp.eq.s32.totalorder %v321, %v364
    %vm375 = vcmp.eq.s32.totalorder %v321, %v367
    %vm376 = vcmp.eq.s32.totalorder %v321, %v370
    %vm377 = vcmp.eq.s32.totalorder %v321, %v373
    %v378 = vsel %vm374, 1, 0
    %v379 = vsel %vm375, 1, 0
    %v380 = vsel %vm376, 1, 0
    %v381 = vsel %vm377, 1, 0
    %v382 = vcvt.s32.f32 %v378
    %v383 = vcvt.s32.f32 %v379
    %v384 = vcvt.s32.f32 %v380
    %v385 = vcvt.s32.f32 %v381
    %v386 = vld [vmem:[%s17] sm:$0xff]
    %v387 = vld [vmem:[%s17 + $0x8] sm:$0xff]
    %v388 = vld [vmem:[%s17 + $0x10] sm:$0xff]
    %v389 = vld [vmem:[%s17 + $0x18] sm:$0xff]
    %390 = vset.pattern.permute.xlu0 0
    %391 = vperm.xlu0 %390, %v386
    %v392 = vpop.permute.xlu0 %391
    %393 = vset.pattern.permute.xlu0 0
    %394 = vperm.xlu0 %393, %v387
    %v395 = vpop.permute.xlu0 %394
    %396 = vset.pattern.permute.xlu0 0
    %397 = vperm.xlu0 %396, %v388
    %v398 = vpop.permute.xlu0 %397
    %399 = vset.pattern.permute.xlu0 0
    %400 = vperm.xlu0 %399, %v389
    %v401 = vpop.permute.xlu0 %400
    %vm402 = vcmp.eq.s32.totalorder %v321, %v392
    %vm403 = vcmp.eq.s32.totalorder %v321, %v395
    %vm404 = vcmp.eq.s32.totalorder %v321, %v398
    %vm405 = vcmp.eq.s32.totalorder %v321, %v401
    %v406 = vsel %vm402, 1, 0
    %v407 = vsel %vm403, 1, 0
    %v408 = vsel %vm404, 1, 0
    %v409 = vsel %vm405, 1, 0
    %v410 = vcvt.s32.f32 %v406
    %v411 = vcvt.s32.f32 %v407
    %v412 = vcvt.s32.f32 %v408
    %v413 = vcvt.s32.f32 %v409
    %v414 = vld [vmem:[%s19] sm:$0xf]
    %415 = vset.pattern.permute.xlu0 0
    %416 = vperm.xlu0 %415, %v414
    %v417 = vpop.permute.xlu0 %416
    %vm418 = vcmp.eq.s32.totalorder %v321, %v417
    %v419 = vsel %vm418, 1, 0
    %v420 = vcvt.s32.f32 %v419
    %v421 = vld [vmem:[%s21] sm:$0xf]
    %422 = vset.pattern.permute.xlu0 0
    %423 = vperm.xlu0 %422, %v421
    %v424 = vpop.permute.xlu0 %423
    %vm425 = vcmp.eq.s32.totalorder %v321, %v424
    %v426 = vsel %vm425, 1, 0
    %v427 = vcvt.s32.f32 %v426
    %v428 = vld [vmem:[%s23] sm:$0xf]
    %429 = vset.pattern.permute.xlu0 0
    %430 = vperm.xlu0 %429, %v428
    %v431 = vpop.permute.xlu0 %430
    %vm432 = vcmp.eq.s32.totalorder %v321, %v431
    %v433 = vsel %vm432, 1, 0
    %v434 = vcvt.s32.f32 %v433
    %vm435 = vcmask 123904
    %v436 = vsel %vm435, %v319, 0.0
    %437 = vadd.xlane.f32.xlu0 %v436
    %v438 = vpop.xlane.xlu0 %437
    %v439 = vmax.f32 %v438, 1.0
    %vm440 = vcmask 125952
    %v441 = vsel %vm440, %v343, 0.0
    %442 = vadd.xlane.f32.xlu0 %v441
    %v443 = vpop.xlane.xlu0 %442
    %v444 = vmax.f32 %v443, 1.0
    %v445 = vpack.c.bf16 %v307, %v306
    %v446 = vld [vmem:[%s47] sm:$0xf]
    %v447 = vld [vmem:[%s47 + $0x4] sm:$0xf]
    %v448 = vld [vmem:[%s45] sm:$0x1]
    %v450 = vlaneseq
    %v451 = vshrl.u32 %v450, 7
    %v452 = vsub.s32 0, %v451
    %v453 = vrot.slane %v448, %v452
    %v457 = vunpack.c.l.b16 %v446
    %v458 = vunpack.c.l.b16 %v447
    %v459 = vpack.c.b16 %v458, %v457
    %vm461 = vcmask 130048
    %v463 = vsel %vm461, %v445, 0
    %465 = vmatprep.subr.bf16.mxu0 0
    %466 = vmatpush1.bf16.msra.mxu0 0
    %467 = vmatprep.subr.bf16.mxu0 0
    %468 = vmatpush1.bf16.msra.mxu0 0
    %469 = vmatprep.subr.bf16.mxu0 0
    %470 = vmatpush1.bf16.msra.mxu0 0
    %471 = vmatprep.subr.bf16.mxu0 0
    %472 = vmatpush1.bf16.msra.mxu0 0
    %473 = vmatprep.subr.bf16.mxu0 0
    %474 = vmatpush1.bf16.msra.mxu0 0
    %475 = vmatprep.subr.bf16.mxu0 0
    %476 = vmatpush1.bf16.msra.mxu0 0
    %477 = vmatprep.subr.bf16.mxu0 0
    %478 = vmatpush1.bf16.msra.mxu0 0
    %479 = vmatprep.subr.bf16.mxu0 0
    %480 = vmatpush1.bf16.msra.mxu0 %v459
    %481 = vmatprep.subr.bf16.mxu0 0
    %482 = vmatpush2.bf16.msra.mxu0 0
    %483 = vmatprep.subr.bf16.mxu0 0
    %484 = vmatpush2.bf16.msra.mxu0 0
    %485 = vmatprep.subr.bf16.mxu0 0
    %486 = vmatpush2.bf16.msra.mxu0 0
    %487 = vmatprep.subr.bf16.mxu0 0
    %488 = vmatpush2.bf16.msra.mxu0 0
    %489 = vmatprep.subr.bf16.mxu0 0
    %490 = vmatpush2.bf16.msra.mxu0 0
    %491 = vmatprep.subr.bf16.mxu0 0
    %492 = vmatpush2.bf16.msra.mxu0 0
    %493 = vmatprep.subr.bf16.mxu0 0
    %494 = vmatpush2.bf16.msra.mxu0 0
    %495 = vmatprep.subr.bf16.mxu0 0
    %496 = vmatpush2.bf16.msra.mxu0 0
    %497 = vmatprep.mubr.bf16.mxu0 0
    %498 = vmatmul.mubr.bf16.gmra.mxu0 %v463
    %v499 = vpop.f32.mrf.mxu0
    %v500 = vadd.f32 %v453, %v499
    %v501 = vpop.f32.mrf.mxu0
    %v502 = vpop.f32.mrf.mxu0
    %v503 = vadd.f32 %v453, %v502
    %v504 = vpop.f32.mrf.mxu0
    %505 = vdwg.mxu0
    %v506 = vxor.u32 %v500, 2147483648
    %v507 = vxor.u32 %v503, 2147483648
    %v508 = vmul.f32 %v506, 1.442695
    %v509 = vpow.pop %v508
    %v510 = vmul.f32 %v507, 1.442695
    %v511 = vpow.pop %v510
    %v512 = vadd.f32 %v509, 1.0
    %v513 = vadd.f32 %v511, 1.0
    %v514 = vrcp.pop %v512
    %v515 = vmul.f32 1.0, %v514
    %v516 = vrcp.pop %v513
    %v517 = vmul.f32 1.0, %v516
    %v518 = vmul.f32 %v500, %v515
    %v519 = vmul.f32 %v503, %v517
    %v520 = vpack.c.bf16 %v519, %v518
    %v521 = vld [vmem:[%s39] sm:$0xf]
    %v522 = vld [vmem:[%s39 + $0x4] sm:$0xf]
    %v523 = vld [vmem:[%s39 + $0x8] sm:$0xf]
    %v524 = vld [vmem:[%s39 + $0xc] sm:$0xf]
    %v525 = vld [vmem:[%s37] sm:$0x1]
    %v527 = vlaneseq
    %v528 = vshrl.u32 %v527, 7
    %v529 = vsub.s32 0, %v528
    %v530 = vrot.slane %v525, %v529
    %v536 = vunpack.c.l.b16 %v521
    %v537 = vunpack.c.l.b16 %v522
    %v538 = vunpack.c.l.b16 %v523
    %v539 = vunpack.c.l.b16 %v524
    %v540 = vpack.c.b16 %v537, %v536
    %v541 = vpack.c.b16 %v539, %v538
    %vm544 = vcmask 261120
    %v546 = vsel %vm544, %v520, 0
    %548 = vmatprep.subr.bf16.mxu0 0
    %549 = vmatpush1.bf16.msra.mxu0 0
    %550 = vmatprep.subr.bf16.mxu0 0
    %551 = vmatpush1.bf16.msra.mxu0 0
    %552 = vmatprep.subr.bf16.mxu0 0
    %553 = vmatpush1.bf16.msra.mxu0 0
    %554 = vmatprep.subr.bf16.mxu0 0
    %555 = vmatpush1.bf16.msra.mxu0 0
    %556 = vmatprep.subr.bf16.mxu0 0
    %557 = vmatpush1.bf16.msra.mxu0 0
    %558 = vmatprep.subr.bf16.mxu0 0
    %559 = vmatpush1.bf16.msra.mxu0 0
    %560 = vmatprep.subr.bf16.mxu0 0
    %561 = vmatpush1.bf16.msra.mxu0 %v541
    %562 = vmatprep.subr.bf16.mxu0 0
    %563 = vmatpush1.bf16.msra.mxu0 %v540
    %564 = vmatprep.subr.bf16.mxu0 0
    %565 = vmatpush2.bf16.msra.mxu0 0
    %566 = vmatprep.subr.bf16.mxu0 0
    %567 = vmatpush2.bf16.msra.mxu0 0
    %568 = vmatprep.subr.bf16.mxu0 0
    %569 = vmatpush2.bf16.msra.mxu0 0
    %570 = vmatprep.subr.bf16.mxu0 0
    %571 = vmatpush2.bf16.msra.mxu0 0
    %572 = vmatprep.subr.bf16.mxu0 0
    %573 = vmatpush2.bf16.msra.mxu0 0
    %574 = vmatprep.subr.bf16.mxu0 0
    %575 = vmatpush2.bf16.msra.mxu0 0
    %576 = vmatprep.subr.bf16.mxu0 0
    %577 = vmatpush2.bf16.msra.mxu0 0
    %578 = vmatprep.subr.bf16.mxu0 0
    %579 = vmatpush2.bf16.msra.mxu0 0
    %580 = vmatprep.mubr.bf16.mxu0 0
    %581 = vmatmul.mubr.bf16.gmra.mxu0 %v546
    %v582 = vpop.f32.mrf.mxu0
    %v583 = vadd.f32 %v530, %v582
    %v584 = vpop.f32.mrf.mxu0
    %v585 = vpop.f32.mrf.mxu0
    %v586 = vadd.f32 %v530, %v585
    %v587 = vpop.f32.mrf.mxu0
    %588 = vdwg.mxu0
    %v589 = vxor.u32 %v583, 2147483648
    %v590 = vxor.u32 %v586, 2147483648
    %v591 = vmul.f32 %v589, 1.442695
    %v592 = vpow.pop %v591
    %v593 = vmul.f32 %v590, 1.442695
    %v594 = vpow.pop %v593
    %v595 = vadd.f32 %v592, 1.0
    %v596 = vadd.f32 %v594, 1.0
    %v597 = vrcp.pop %v595
    %v598 = vmul.f32 1.0, %v597
    %v599 = vrcp.pop %v596
    %v600 = vmul.f32 1.0, %v599
    %v601 = vmul.f32 %v583, %v598
    %v602 = vmul.f32 %v586, %v600
    %v603 = vld [vmem:[%s43] sm:$0xf]
    %v604 = vld [vmem:[%s43 + $0x4] sm:$0xf]
    %v605 = vld [vmem:[%s43 + $0x8] sm:$0xf]
    %v606 = vld [vmem:[%s43 + $0xc] sm:$0xf]
    %v607 = vld [vmem:[%s41] sm:$0x1]
    %v609 = vlaneseq
    %v610 = vshrl.u32 %v609, 7
    %v611 = vsub.s32 0, %v610
    %v612 = vrot.slane %v607, %v611
    %615 = vrot.lane.b32.xlu0 %v520, 96
    %v616 = vpop.permute.xlu0 %615
    %v621 = vunpack.c.l.b16 %v603
    %v622 = vunpack.c.l.b16 %v604
    %v623 = vunpack.c.l.b16 %v605
    %v624 = vunpack.c.l.b16 %v606
    %v625 = vpack.c.b16 %v622, %v621
    %v626 = vpack.c.b16 %v624, %v623
    %v630 = vsel %vm544, %v616, 0
    %632 = vmatprep.subr.bf16.mxu0 0
    %633 = vmatpush1.bf16.msra.mxu0 0
    %634 = vmatprep.subr.bf16.mxu0 0
    %635 = vmatpush1.bf16.msra.mxu0 0
    %636 = vmatprep.subr.bf16.mxu0 0
    %637 = vmatpush1.bf16.msra.mxu0 0
    %638 = vmatprep.subr.bf16.mxu0 0
    %639 = vmatpush1.bf16.msra.mxu0 0
    %640 = vmatprep.subr.bf16.mxu0 0
    %641 = vmatpush1.bf16.msra.mxu0 0
    %642 = vmatprep.subr.bf16.mxu0 0
    %643 = vmatpush1.bf16.msra.mxu0 0
    %644 = vmatprep.subr.bf16.mxu0 0
    %645 = vmatpush1.bf16.msra.mxu0 %v626
    %646 = vmatprep.subr.bf16.mxu0 0
    %647 = vmatpush1.bf16.msra.mxu0 %v625
    %648 = vmatprep.subr.bf16.mxu0 0
    %649 = vmatpush2.bf16.msra.mxu0 0
    %650 = vmatprep.subr.bf16.mxu0 0
    %651 = vmatpush2.bf16.msra.mxu0 0
    %652 = vmatprep.subr.bf16.mxu0 0
    %653 = vmatpush2.bf16.msra.mxu0 0
    %654 = vmatprep.subr.bf16.mxu0 0
    %655 = vmatpush2.bf16.msra.mxu0 0
    %656 = vmatprep.subr.bf16.mxu0 0
    %657 = vmatpush2.bf16.msra.mxu0 0
    %658 = vmatprep.subr.bf16.mxu0 0
    %659 = vmatpush2.bf16.msra.mxu0 0
    %660 = vmatprep.subr.bf16.mxu0 0
    %661 = vmatpush2.bf16.msra.mxu0 0
    %662 = vmatprep.subr.bf16.mxu0 0
    %663 = vmatpush2.bf16.msra.mxu0 0
    %664 = vmatprep.mubr.bf16.mxu0 0
    %665 = vmatmul.mubr.bf16.gmra.mxu0 %v630
    %v666 = vpop.f32.mrf.mxu0
    %v667 = vadd.f32 %v612, %v666
    %v668 = vpop.f32.mrf.mxu0
    %v669 = vpop.f32.mrf.mxu0
    %v670 = vadd.f32 %v612, %v669
    %v671 = vpop.f32.mrf.mxu0
    %672 = vdwg.mxu0
    %v673 = vxor.u32 %v667, 2147483648
    %v674 = vxor.u32 %v670, 2147483648
    %v675 = vmul.f32 %v673, 1.442695
    %v676 = vpow.pop %v675
    %v677 = vmul.f32 %v674, 1.442695
    %v678 = vpow.pop %v677
    %v679 = vadd.f32 %v676, 1.0
    %v680 = vadd.f32 %v678, 1.0
    %v681 = vrcp.pop %v679
    %v682 = vmul.f32 1.0, %v681
    %v683 = vrcp.pop %v680
    %v684 = vmul.f32 1.0, %v683
    %v685 = vmul.f32 %v667, %v682
    %v686 = vmul.f32 %v670, %v684
    %v687 = vld [vmem:[%s5] sm:$0xff]
    %v688 = vld [vmem:[%s5 + $0x8] sm:$0xff]
    %v689 = vpack.c.bf16 %v688, %v687
    %v690 = vld [vmem:[%s25] sm:$0x7]
    %vm691 = vcmask 48128
    %v693 = vsel %vm691, %v689, 0
    %vm695 = vcmask 1042432
    %v697 = vsel %vm695, %v690, 0
    %699 = vmatprep.subr.bf16.mxu0 0
    %700 = vmatpush1.bf16.msra.mxu0 0
    %701 = vmatprep.subr.bf16.mxu0 0
    %702 = vmatpush1.bf16.msra.mxu0 0
    %703 = vmatprep.subr.bf16.mxu0 0
    %704 = vmatpush1.bf16.msra.mxu0 0
    %705 = vmatprep.subr.bf16.mxu0 0
    %706 = vmatpush1.bf16.msra.mxu0 0
    %707 = vmatprep.subr.bf16.mxu0 0
    %708 = vmatpush1.bf16.msra.mxu0 0
    %709 = vmatprep.subr.bf16.mxu0 0
    %710 = vmatpush1.bf16.msra.mxu0 0
    %711 = vmatprep.subr.bf16.mxu0 0
    %712 = vmatpush1.bf16.msra.mxu0 0
    %713 = vmatprep.subr.bf16.mxu0 0
    %714 = vmatpush1.bf16.msra.mxu0 %v697
    %715 = vmatprep.subr.bf16.mxu0 0
    %716 = vmatpush2.bf16.msra.mxu0 0
    %717 = vmatprep.subr.bf16.mxu0 0
    %718 = vmatpush2.bf16.msra.mxu0 0
    %719 = vmatprep.subr.bf16.mxu0 0
    %720 = vmatpush2.bf16.msra.mxu0 0
    %721 = vmatprep.subr.bf16.mxu0 0
    %722 = vmatpush2.bf16.msra.mxu0 0
    %723 = vmatprep.subr.bf16.mxu0 0
    %724 = vmatpush2.bf16.msra.mxu0 0
    %725 = vmatprep.subr.bf16.mxu0 0
    %726 = vmatpush2.bf16.msra.mxu0 0
    %727 = vmatprep.subr.bf16.mxu0 0
    %728 = vmatpush2.bf16.msra.mxu0 0
    %729 = vmatprep.subr.bf16.mxu0 0
    %730 = vmatpush2.bf16.msra.mxu0 0
    %731 = vmatprep.mubr.bf16.mxu0 0
    %732 = vmatmul.mubr.bf16.gmra.mxu0 %v693
    %v733 = vpop.f32.mrf.mxu0
    %v734 = vadd.f32 0.0, %v733
    %v735 = vpop.f32.mrf.mxu0
    %v736 = vpop.f32.mrf.mxu0
    %v737 = vadd.f32 0.0, %v736
    %v738 = vpop.f32.mrf.mxu0
    %739 = vdwg.mxu0
    %742 = vrot.lane.b32.xlu0 %v685, 3
    %v743 = vpop.permute.xlu0 %742
    %744 = vrot.lane.b32.xlu0 %v686, 3
    %v745 = vpop.permute.xlu0 %744
    %vm748 = vcmask 23552
    %v749 = vsel %vm748, %v308, %v743
    %v750 = vsel %vm748, %v309, %v745
    %v752 = vsel %vm461, %v319, 0
    %754 = vmatprep.subr.mxu0 0.0
    %755 = vmatpush1.msra.mxu0 0.0
    %756 = vmatprep.subr.mxu0 0.0
    %757 = vmatpush1.msra.mxu0 0.0
    %758 = vmatprep.subr.mxu0 0.0
    %759 = vmatpush1.msra.mxu0 0.0
    %760 = vmatprep.subr.mxu0 0.0
    %761 = vmatpush1.msra.mxu0 0.0
    %762 = vmatprep.subr.mxu0 0.0
    %763 = vmatpush1.msra.mxu0 0.0
    %764 = vmatprep.subr.mxu0 0.0
    %765 = vmatpush1.msra.mxu0 0.0
    %766 = vmatprep.subr.mxu0 0.0
    %767 = vmatpush1.msra.mxu0 0.0
    %768 = vmatprep.subr.mxu0 0.0
    %769 = vmatpush1.msra.mxu0 0.0
    %770 = vmatprep.subr.mxu0 0.0
    %771 = vmatpush1.msra.mxu0 0.0
    %772 = vmatprep.subr.mxu0 0.0
    %773 = vmatpush1.msra.mxu0 0.0
    %774 = vmatprep.subr.mxu0 0.0
    %775 = vmatpush1.msra.mxu0 0.0
    %776 = vmatprep.subr.mxu0 0.0
    %777 = vmatpush1.msra.mxu0 0.0
    %778 = vmatprep.subr.mxu0 0.0
    %779 = vmatpush1.msra.mxu0 0.0
    %780 = vmatprep.subr.mxu0 0.0
    %781 = vmatpush1.msra.mxu0 0.0
    %782 = vmatprep.subr.mxu0 0.0
    %783 = vmatpush1.msra.mxu0 %v750
    %784 = vmatprep.subr.mxu0 0.0
    %785 = vmatpush1.msra.mxu0 %v749
    %786 = vmatprep.subr.mxu0 0.0
    %787 = vmatpush2.msra.mxu0 0.0
    %788 = vmatprep.subr.mxu0 0.0
    %789 = vmatpush2.msra.mxu0 0.0
    %790 = vmatprep.subr.mxu0 0.0
    %791 = vmatpush2.msra.mxu0 0.0
    %792 = vmatprep.subr.mxu0 0.0
    %793 = vmatpush2.msra.mxu0 0.0
    %794 = vmatprep.subr.mxu0 0.0
    %795 = vmatpush2.msra.mxu0 0.0
    %796 = vmatprep.subr.mxu0 0.0
    %797 = vmatpush2.msra.mxu0 0.0
    %798 = vmatprep.subr.mxu0 0.0
    %799 = vmatpush2.msra.mxu0 0.0
    %800 = vmatprep.subr.mxu0 0.0
    %801 = vmatpush2.msra.mxu0 0.0
    %802 = vmatprep.subr.mxu0 0.0
    %803 = vmatpush2.msra.mxu0 0.0
    %804 = vmatprep.subr.mxu0 0.0
    %805 = vmatpush2.msra.mxu0 0.0
    %806 = vmatprep.subr.mxu0 0.0
    %807 = vmatpush2.msra.mxu0 0.0
    %808 = vmatprep.subr.mxu0 0.0
    %809 = vmatpush2.msra.mxu0 0.0
    %810 = vmatprep.subr.mxu0 0.0
    %811 = vmatpush2.msra.mxu0 0.0
    %812 = vmatprep.subr.mxu0 0.0
    %813 = vmatpush2.msra.mxu0 0.0
    %814 = vmatprep.subr.mxu0 0.0
    %815 = vmatpush2.msra.mxu0 0.0
    %816 = vmatprep.subr.mxu0 0.0
    %817 = vmatpush2.msra.mxu0 0.0
    %818 = vmatprep.mubr.f32.mxu0 0.0
    %819 = vmatmul.mubr.f32.gmra.mxu0 %v752
    %v820 = vpop.f32.mrf.mxu0
    %v821 = vadd.f32 0.0, %v820
    %v822 = vpop.f32.mrf.mxu0
    %823 = vdwg.mxu0
    %v824 = vrcp.pop %v439
    %v825 = vmul.f32 %v821, %v824
    %vm826 = vcmask 15360
    %v828 = vsel %vm826, %v334, 0
    %v831 = vsel %vm826, %v335, 0
    %vm833 = vcmask 1041408
    %v835 = vsel %vm833, %v825, 0
    %837 = vmatprep.subr.mxu0 0.0
    %838 = vmatpush1.msra.mxu0 0.0
    %839 = vmatprep.subr.mxu0 0.0
    %840 = vmatpush1.msra.mxu0 0.0
    %841 = vmatprep.subr.mxu0 0.0
    %842 = vmatpush1.msra.mxu0 0.0
    %843 = vmatprep.subr.mxu0 0.0
    %844 = vmatpush1.msra.mxu0 0.0
    %845 = vmatprep.subr.mxu0 0.0
    %846 = vmatpush1.msra.mxu0 0.0
    %847 = vmatprep.subr.mxu0 0.0
    %848 = vmatpush1.msra.mxu0 0.0
    %849 = vmatprep.subr.mxu0 0.0
    %850 = vmatpush1.msra.mxu0 0.0
    %851 = vmatprep.subr.mxu0 0.0
    %852 = vmatpush1.msra.mxu0 0.0
    %853 = vmatprep.subr.mxu0 0.0
    %854 = vmatpush1.msra.mxu0 0.0
    %855 = vmatprep.subr.mxu0 0.0
    %856 = vmatpush1.msra.mxu0 0.0
    %857 = vmatprep.subr.mxu0 0.0
    %858 = vmatpush1.msra.mxu0 0.0
    %859 = vmatprep.subr.mxu0 0.0
    %860 = vmatpush1.msra.mxu0 0.0
    %861 = vmatprep.subr.mxu0 0.0
    %862 = vmatpush1.msra.mxu0 0.0
    %863 = vmatprep.subr.mxu0 0.0
    %864 = vmatpush1.msra.mxu0 0.0
    %865 = vmatprep.subr.mxu0 0.0
    %866 = vmatpush1.msra.mxu0 0.0
    %867 = vmatprep.subr.mxu0 0.0
    %868 = vmatpush1.msra.mxu0 %v835
    %869 = vmatprep.subr.mxu0 0.0
    %870 = vmatpush2.msra.mxu0 0.0
    %871 = vmatprep.subr.mxu0 0.0
    %872 = vmatpush2.msra.mxu0 0.0
    %873 = vmatprep.subr.mxu0 0.0
    %874 = vmatpush2.msra.mxu0 0.0
    %875 = vmatprep.subr.mxu0 0.0
    %876 = vmatpush2.msra.mxu0 0.0
    %877 = vmatprep.subr.mxu0 0.0
    %878 = vmatpush2.msra.mxu0 0.0
    %879 = vmatprep.subr.mxu0 0.0
    %880 = vmatpush2.msra.mxu0 0.0
    %881 = vmatprep.subr.mxu0 0.0
    %882 = vmatpush2.msra.mxu0 0.0
    %883 = vmatprep.subr.mxu0 0.0
    %884 = vmatpush2.msra.mxu0 0.0
    %885 = vmatprep.subr.mxu0 0.0
    %886 = vmatpush2.msra.mxu0 0.0
    %887 = vmatprep.subr.mxu0 0.0
    %888 = vmatpush2.msra.mxu0 0.0
    %889 = vmatprep.subr.mxu0 0.0
    %890 = vmatpush2.msra.mxu0 0.0
    %891 = vmatprep.subr.mxu0 0.0
    %892 = vmatpush2.msra.mxu0 0.0
    %893 = vmatprep.subr.mxu0 0.0
    %894 = vmatpush2.msra.mxu0 0.0
    %895 = vmatprep.subr.mxu0 0.0
    %896 = vmatpush2.msra.mxu0 0.0
    %897 = vmatprep.subr.mxu0 0.0
    %898 = vmatpush2.msra.mxu0 0.0
    %899 = vmatprep.subr.mxu0 0.0
    %900 = vmatpush2.msra.mxu0 0.0
    %901 = vmatprep.mubr.f32.mxu0 0.0
    %902 = vmatmul.mubr.f32.gmra.mxu0 %v828
    %v903 = vpop.f32.mrf.mxu0
    %v904 = vadd.f32 0.0, %v903
    %v905 = vpop.f32.mrf.mxu0
    %906 = vmatprep.mubr.f32.mxu0 0.0
    %907 = vmatmul.mubr.f32.gmra.mxu0 %v831
    %v908 = vpop.f32.mrf.mxu0
    %v909 = vadd.f32 0.0, %v908
    %v910 = vpop.f32.mrf.mxu0
    %911 = vdwg.mxu0
    %v912 = vsub.f32 %v308, %v904
    %v913 = vsub.f32 %v309, %v909
    %916 = vrot.lane.b32.xlu0 %v306, 3
    %v917 = vpop.permute.xlu0 %916
    %918 = vrot.lane.b32.xlu0 %v307, 3
    %v919 = vpop.permute.xlu0 %918
    %v922 = vsel %vm748, %v912, %v917
    %v923 = vsel %vm748, %v913, %v919
    %v925 = vsel %vm461, %v343, 0
    %927 = vmatprep.subr.mxu0 0.0
    %928 = vmatpush1.msra.mxu0 0.0
    %929 = vmatprep.subr.mxu0 0.0
    %930 = vmatpush1.msra.mxu0 0.0
    %931 = vmatprep.subr.mxu0 0.0
    %932 = vmatpush1.msra.mxu0 0.0
    %933 = vmatprep.subr.mxu0 0.0
    %934 = vmatpush1.msra.mxu0 0.0
    %935 = vmatprep.subr.mxu0 0.0
    %936 = vmatpush1.msra.mxu0 0.0
    %937 = vmatprep.subr.mxu0 0.0
    %938 = vmatpush1.msra.mxu0 0.0
    %939 = vmatprep.subr.mxu0 0.0
    %940 = vmatpush1.msra.mxu0 0.0
    %941 = vmatprep.subr.mxu0 0.0
    %942 = vmatpush1.msra.mxu0 0.0
    %943 = vmatprep.subr.mxu0 0.0
    %944 = vmatpush1.msra.mxu0 0.0
    %945 = vmatprep.subr.mxu0 0.0
    %946 = vmatpush1.msra.mxu0 0.0
    %947 = vmatprep.subr.mxu0 0.0
    %948 = vmatpush1.msra.mxu0 0.0
    %949 = vmatprep.subr.mxu0 0.0
    %950 = vmatpush1.msra.mxu0 0.0
    %951 = vmatprep.subr.mxu0 0.0
    %952 = vmatpush1.msra.mxu0 0.0
    %953 = vmatprep.subr.mxu0 0.0
    %954 = vmatpush1.msra.mxu0 0.0
    %955 = vmatprep.subr.mxu0 0.0
    %956 = vmatpush1.msra.mxu0 %v923
    %957 = vmatprep.subr.mxu0 0.0
    %958 = vmatpush1.msra.mxu0 %v922
    %959 = vmatprep.subr.mxu0 0.0
    %960 = vmatpush2.msra.mxu0 0.0
    %961 = vmatprep.subr.mxu0 0.0
    %962 = vmatpush2.msra.mxu0 0.0
    %963 = vmatprep.subr.mxu0 0.0
    %964 = vmatpush2.msra.mxu0 0.0
    %965 = vmatprep.subr.mxu0 0.0
    %966 = vmatpush2.msra.mxu0 0.0
    %967 = vmatprep.subr.mxu0 0.0
    %968 = vmatpush2.msra.mxu0 0.0
    %969 = vmatprep.subr.mxu0 0.0
    %970 = vmatpush2.msra.mxu0 0.0
    %971 = vmatprep.subr.mxu0 0.0
    %972 = vmatpush2.msra.mxu0 0.0
    %973 = vmatprep.subr.mxu0 0.0
    %974 = vmatpush2.msra.mxu0 0.0
    %975 = vmatprep.subr.mxu0 0.0
    %976 = vmatpush2.msra.mxu0 0.0
    %977 = vmatprep.subr.mxu0 0.0
    %978 = vmatpush2.msra.mxu0 0.0
    %979 = vmatprep.subr.mxu0 0.0
    %980 = vmatpush2.msra.mxu0 0.0
    %981 = vmatprep.subr.mxu0 0.0
    %982 = vmatpush2.msra.mxu0 0.0
    %983 = vmatprep.subr.mxu0 0.0
    %984 = vmatpush2.msra.mxu0 0.0
    %985 = vmatprep.subr.mxu0 0.0
    %986 = vmatpush2.msra.mxu0 0.0
    %987 = vmatprep.subr.mxu0 0.0
    %988 = vmatpush2.msra.mxu0 0.0
    %989 = vmatprep.subr.mxu0 0.0
    %990 = vmatpush2.msra.mxu0 0.0
    %991 = vmatprep.mubr.f32.mxu0 0.0
    %992 = vmatmul.mubr.f32.gmra.mxu0 %v925
    %v993 = vpop.f32.mrf.mxu0
    %v994 = vadd.f32 0.0, %v993
    %v995 = vpop.f32.mrf.mxu0
    %996 = vdwg.mxu0
    %v997 = vrcp.pop %v444
    %v998 = vmul.f32 %v994, %v997
    %v1000 = vsel %vm461, %v427, 0
    %1002 = vmatprep.subr.mxu0 0.0
    %1003 = vmatpush1.msra.mxu0 0.0
    %1004 = vmatprep.subr.mxu0 0.0
    %1005 = vmatpush1.msra.mxu0 0.0
    %1006 = vmatprep.subr.mxu0 0.0
    %1007 = vmatpush1.msra.mxu0 0.0
    %1008 = vmatprep.subr.mxu0 0.0
    %1009 = vmatpush1.msra.mxu0 0.0
    %1010 = vmatprep.subr.mxu0 0.0
    %1011 = vmatpush1.msra.mxu0 0.0
    %1012 = vmatprep.subr.mxu0 0.0
    %1013 = vmatpush1.msra.mxu0 0.0
    %1014 = vmatprep.subr.mxu0 0.0
    %1015 = vmatpush1.msra.mxu0 0.0
    %1016 = vmatprep.subr.mxu0 0.0
    %1017 = vmatpush1.msra.mxu0 0.0
    %1018 = vmatprep.subr.mxu0 0.0
    %1019 = vmatpush1.msra.mxu0 0.0
    %1020 = vmatprep.subr.mxu0 0.0
    %1021 = vmatpush1.msra.mxu0 0.0
    %1022 = vmatprep.subr.mxu0 0.0
    %1023 = vmatpush1.msra.mxu0 0.0
    %1024 = vmatprep.subr.mxu0 0.0
    %1025 = vmatpush1.msra.mxu0 0.0
    %1026 = vmatprep.subr.mxu0 0.0
    %1027 = vmatpush1.msra.mxu0 0.0
    %1028 = vmatprep.subr.mxu0 0.0
    %1029 = vmatpush1.msra.mxu0 0.0
    %1030 = vmatprep.subr.mxu0 0.0
    %1031 = vmatpush1.msra.mxu0 %v913
    %1032 = vmatprep.subr.mxu0 0.0
    %1033 = vmatpush1.msra.mxu0 %v912
    %1034 = vmatprep.subr.mxu0 0.0
    %1035 = vmatpush2.msra.mxu0 0.0
    %1036 = vmatprep.subr.mxu0 0.0
    %1037 = vmatpush2.msra.mxu0 0.0
    %1038 = vmatprep.subr.mxu0 0.0
    %1039 = vmatpush2.msra.mxu0 0.0
    %1040 = vmatprep.subr.mxu0 0.0
    %1041 = vmatpush2.msra.mxu0 0.0
    %1042 = vmatprep.subr.mxu0 0.0
    %1043 = vmatpush2.msra.mxu0 0.0
    %1044 = vmatprep.subr.mxu0 0.0
    %1045 = vmatpush2.msra.mxu0 0.0
    %1046 = vmatprep.subr.mxu0 0.0
    %1047 = vmatpush2.msra.mxu0 0.0
    %1048 = vmatprep.subr.mxu0 0.0
    %1049 = vmatpush2.msra.mxu0 0.0
    %1050 = vmatprep.subr.mxu0 0.0
    %1051 = vmatpush2.msra.mxu0 0.0
    %1052 = vmatprep.subr.mxu0 0.0
    %1053 = vmatpush2.msra.mxu0 0.0
    %1054 = vmatprep.subr.mxu0 0.0
    %1055 = vmatpush2.msra.mxu0 0.0
    %1056 = vmatprep.subr.mxu0 0.0
    %1057 = vmatpush2.msra.mxu0 0.0
    %1058 = vmatprep.subr.mxu0 0.0
    %1059 = vmatpush2.msra.mxu0 0.0
    %1060 = vmatprep.subr.mxu0 0.0
    %1061 = vmatpush2.msra.mxu0 0.0
    %1062 = vmatprep.subr.mxu0 0.0
    %1063 = vmatpush2.msra.mxu0 0.0
    %1064 = vmatprep.subr.mxu0 0.0
    %1065 = vmatpush2.msra.mxu0 0.0
    %1066 = vmatprep.mubr.f32.mxu0 0.0
    %1067 = vmatmul.mubr.f32.gmra.mxu0 %v1000
    %v1068 = vpop.f32.mrf.mxu0
    %v1069 = vadd.f32 0.0, %v1068
    %v1070 = vpop.f32.mrf.mxu0
    %1071 = vdwg.mxu0
    %v1072 = vsub.f32 %v1069, %v998
    %v1074 = vsel %vm461, %v434, 0
    %1076 = vmatprep.subr.mxu0 0.0
    %1077 = vmatpush1.msra.mxu0 0.0
    %1078 = vmatprep.subr.mxu0 0.0
    %1079 = vmatpush1.msra.mxu0 0.0
    %1080 = vmatprep.subr.mxu0 0.0
    %1081 = vmatpush1.msra.mxu0 0.0
    %1082 = vmatprep.subr.mxu0 0.0
    %1083 = vmatpush1.msra.mxu0 0.0
    %1084 = vmatprep.subr.mxu0 0.0
    %1085 = vmatpush1.msra.mxu0 0.0
    %1086 = vmatprep.subr.mxu0 0.0
    %1087 = vmatpush1.msra.mxu0 0.0
    %1088 = vmatprep.subr.mxu0 0.0
    %1089 = vmatpush1.msra.mxu0 0.0
    %1090 = vmatprep.subr.mxu0 0.0
    %1091 = vmatpush1.msra.mxu0 0.0
    %1092 = vmatprep.subr.mxu0 0.0
    %1093 = vmatpush1.msra.mxu0 0.0
    %1094 = vmatprep.subr.mxu0 0.0
    %1095 = vmatpush1.msra.mxu0 0.0
    %1096 = vmatprep.subr.mxu0 0.0
    %1097 = vmatpush1.msra.mxu0 0.0
    %1098 = vmatprep.subr.mxu0 0.0
    %1099 = vmatpush1.msra.mxu0 0.0
    %1100 = vmatprep.subr.mxu0 0.0
    %1101 = vmatpush1.msra.mxu0 0.0
    %1102 = vmatprep.subr.mxu0 0.0
    %1103 = vmatpush1.msra.mxu0 0.0
    %1104 = vmatprep.subr.mxu0 0.0
    %1105 = vmatpush1.msra.mxu0 %v913
    %1106 = vmatprep.subr.mxu0 0.0
    %1107 = vmatpush1.msra.mxu0 %v912
    %1108 = vmatprep.subr.mxu0 0.0
    %1109 = vmatpush2.msra.mxu0 0.0
    %1110 = vmatprep.subr.mxu0 0.0
    %1111 = vmatpush2.msra.mxu0 0.0
    %1112 = vmatprep.subr.mxu0 0.0
    %1113 = vmatpush2.msra.mxu0 0.0
    %1114 = vmatprep.subr.mxu0 0.0
    %1115 = vmatpush2.msra.mxu0 0.0
    %1116 = vmatprep.subr.mxu0 0.0
    %1117 = vmatpush2.msra.mxu0 0.0
    %1118 = vmatprep.subr.mxu0 0.0
    %1119 = vmatpush2.msra.mxu0 0.0
    %1120 = vmatprep.subr.mxu0 0.0
    %1121 = vmatpush2.msra.mxu0 0.0
    %1122 = vmatprep.subr.mxu0 0.0
    %1123 = vmatpush2.msra.mxu0 0.0
    %1124 = vmatprep.subr.mxu0 0.0
    %1125 = vmatpush2.msra.mxu0 0.0
    %1126 = vmatprep.subr.mxu0 0.0
    %1127 = vmatpush2.msra.mxu0 0.0
    %1128 = vmatprep.subr.mxu0 0.0
    %1129 = vmatpush2.msra.mxu0 0.0
    %1130 = vmatprep.subr.mxu0 0.0
    %1131 = vmatpush2.msra.mxu0 0.0
    %1132 = vmatprep.subr.mxu0 0.0
    %1133 = vmatpush2.msra.mxu0 0.0
    %1134 = vmatprep.subr.mxu0 0.0
    %1135 = vmatpush2.msra.mxu0 0.0
    %1136 = vmatprep.subr.mxu0 0.0
    %1137 = vmatpush2.msra.mxu0 0.0
    %1138 = vmatprep.subr.mxu0 0.0
    %1139 = vmatpush2.msra.mxu0 0.0
    %1140 = vmatprep.mubr.f32.mxu0 0.0
    %1141 = vmatmul.mubr.f32.gmra.mxu0 %v1074
    %v1142 = vpop.f32.mrf.mxu0
    %v1143 = vadd.f32 0.0, %v1142
    %v1144 = vpop.f32.mrf.mxu0
    %1145 = vdwg.mxu0
    %v1146 = vsub.f32 %v1143, %v998
    %v1147 = vmul.f32 %v1072, %v1072
    %vm1148 = vcmask 19456
    %v1149 = vsel %vm1148, %v1147, 0.0
    %1150 = vadd.xlane.f32.xlu0 %v1149
    %v1151 = vpop.xlane.xlu0 %1150
    %v1152 = vrsqrt.pop %v1151
    %v1153 = vmul.f32 %v1151, %v1152
    %vm1154 = vcmp.eq.f32.partialorder %v1151, inf
    %v1155 = vsel %vm1154, %v1151, %v1153
    %vm1156 = vcmp.eq.f32.partialorder %v1151, 0.0
    %v1157 = vand.u32 %v1151, 2147483648
    %v1158 = vsel %vm1156, %v1157, %v1155
    %v1159 = vadd.f32 %v1158, 1e-08
    %v1160 = vrcp.pop %v1159
    %v1161 = vmul.f32 %v1072, %v1160
    %v1162 = vmul.f32 %v1146, %v1161
    %v1163 = vsel %vm1148, %v1162, 0.0
    %1164 = vadd.xlane.f32.xlu0 %v1163
    %v1165 = vpop.xlane.xlu0 %1164
    %v1166 = vmul.f32 %v1165, %v1161
    %v1167 = vsub.f32 %v1146, %v1166
    %v1168 = vmul.f32 %v1167, %v1167
    %v1169 = vsel %vm1148, %v1168, 0.0
    %1170 = vadd.xlane.f32.xlu0 %v1169
    %v1171 = vpop.xlane.xlu0 %1170
    %v1172 = vrsqrt.pop %v1171
    %v1173 = vmul.f32 %v1171, %v1172
    %vm1174 = vcmp.eq.f32.partialorder %v1171, inf
    %v1175 = vsel %vm1174, %v1171, %v1173
    %vm1176 = vcmp.eq.f32.partialorder %v1171, 0.0
    %v1177 = vand.u32 %v1171, 2147483648
    %v1178 = vsel %vm1176, %v1177, %v1175
    %v1179 = vadd.f32 %v1178, 1e-08
    %v1180 = vrcp.pop %v1179
    %v1181 = vmul.f32 %v1167, %v1180
    %1183 = vrot.lane.b32.xlu0 %v1181, 127
    %v1184 = vpop.permute.xlu0 %1183
    %v1186 = vmul.f32 %v1161, %v1184
    %1187 = vrot.lane.b32.xlu0 %v1181, 1
    %v1188 = vpop.permute.xlu0 %1187
    %v1190 = vmul.f32 %v1161, %v1188
    %1192 = vrot.lane.b32.xlu0 %v1190, 127
    %v1193 = vpop.permute.xlu0 %1192
    %v1195 = vsub.f32 %v1186, %v1193
    %1196 = vrot.lane.b32.xlu0 %v1181, 2
    %v1197 = vpop.permute.xlu0 %1196
    %v1199 = vmul.f32 %v1161, %v1197
    %1200 = vrot.lane.b32.xlu0 %v1181, 126
    %v1201 = vpop.permute.xlu0 %1200
    %v1203 = vmul.f32 %v1161, %v1201
    %1205 = vrot.lane.b32.xlu0 %v1203, 2
    %v1206 = vpop.permute.xlu0 %1205
    %v1208 = vsub.f32 %v1199, %v1206
    %1210 = vrot.lane.b32.xlu0 %v1195, 127
    %v1211 = vpop.permute.xlu0 %1210
    %1214 = vrot.lane.b32.xlu0 %v1208, 127
    %v1215 = vpop.permute.xlu0 %1214
    %1217 = vrot.lane.b32.xlu0 %v1195, 2
    %v1218 = vpop.permute.xlu0 %1217
    %vm1220 = vcmask 7168
    %v1221 = vsel %vm1220, %v1211, %v1215
    %v1222 = vsel %vm826, %v1221, %v1218
    %1224 = vrot.lane.b32.xlu0 %v1146, 3
    %v1225 = vpop.permute.xlu0 %1224
    %v1227 = vsel %vm748, %v1072, %v1225
    %v1228 = vld [vmem:[%s31] sm:$0xf]
    %v1229 = vld [vmem:[%s31 + $0x4] sm:$0xf]
    %v1232 = vunpack.c.l.b16 %v1228
    %v1233 = vunpack.c.l.b16 %v1229
    %v1234 = vpack.c.b16 %v1233, %v1232
    %1236 = vmatprep.subr.bf16.mxu0 0
    %1237 = vmatpush1.bf16.msra.mxu0 0
    %1238 = vmatprep.subr.bf16.mxu0 0
    %1239 = vmatpush1.bf16.msra.mxu0 0
    %1240 = vmatprep.subr.bf16.mxu0 0
    %1241 = vmatpush1.bf16.msra.mxu0 0
    %1242 = vmatprep.subr.bf16.mxu0 0
    %1243 = vmatpush1.bf16.msra.mxu0 0
    %1244 = vmatprep.subr.bf16.mxu0 0
    %1245 = vmatpush1.bf16.msra.mxu0 0
    %1246 = vmatprep.subr.bf16.mxu0 0
    %1247 = vmatpush1.bf16.msra.mxu0 0
    %1248 = vmatprep.subr.bf16.mxu0 0
    %1249 = vmatpush1.bf16.msra.mxu0 0
    %1250 = vmatprep.subr.bf16.mxu0 0
    %1251 = vmatpush1.bf16.msra.mxu0 %v1234
    %1252 = vmatprep.subr.bf16.mxu0 0
    %1253 = vmatpush2.bf16.msra.mxu0 0
    %1254 = vmatprep.subr.bf16.mxu0 0
    %1255 = vmatpush2.bf16.msra.mxu0 0
    %1256 = vmatprep.subr.bf16.mxu0 0
    %1257 = vmatpush2.bf16.msra.mxu0 0
    %1258 = vmatprep.subr.bf16.mxu0 0
    %1259 = vmatpush2.bf16.msra.mxu0 0
    %1260 = vmatprep.subr.bf16.mxu0 0
    %1261 = vmatpush2.bf16.msra.mxu0 0
    %1262 = vmatprep.subr.bf16.mxu0 0
    %1263 = vmatpush2.bf16.msra.mxu0 0
    %1264 = vmatprep.subr.bf16.mxu0 0
    %1265 = vmatpush2.bf16.msra.mxu0 0
    %1266 = vmatprep.subr.bf16.mxu0 0
    %1267 = vmatpush2.bf16.msra.mxu0 0
    %1268 = vmatprep.mubr.bf16.mxu0 0
    %1269 = vmatmul.mubr.bf16.gmra.mxu0 %v463
    %v1270 = vpop.f32.mrf.mxu0
    %v1271 = vadd.f32 0.0, %v1270
    %v1272 = vpop.f32.mrf.mxu0
    %v1273 = vpop.f32.mrf.mxu0
    %v1274 = vadd.f32 0.0, %v1273
    %v1275 = vpop.f32.mrf.mxu0
    %1276 = vdwg.mxu0
    %v1277 = vld [vmem:[%s33] sm:$0xf]
    %v1278 = vld [vmem:[%s33 + $0x4] sm:$0xf]
    %v1281 = vunpack.c.l.b16 %v1277
    %v1282 = vunpack.c.l.b16 %v1278
    %v1283 = vpack.c.b16 %v1282, %v1281
    %1285 = vmatprep.subr.bf16.mxu0 0
    %1286 = vmatpush1.bf16.msra.mxu0 0
    %1287 = vmatprep.subr.bf16.mxu0 0
    %1288 = vmatpush1.bf16.msra.mxu0 0
    %1289 = vmatprep.subr.bf16.mxu0 0
    %1290 = vmatpush1.bf16.msra.mxu0 0
    %1291 = vmatprep.subr.bf16.mxu0 0
    %1292 = vmatpush1.bf16.msra.mxu0 0
    %1293 = vmatprep.subr.bf16.mxu0 0
    %1294 = vmatpush1.bf16.msra.mxu0 0
    %1295 = vmatprep.subr.bf16.mxu0 0
    %1296 = vmatpush1.bf16.msra.mxu0 0
    %1297 = vmatprep.subr.bf16.mxu0 0
    %1298 = vmatpush1.bf16.msra.mxu0 0
    %1299 = vmatprep.subr.bf16.mxu0 0
    %1300 = vmatpush1.bf16.msra.mxu0 %v1283
    %1301 = vmatprep.subr.bf16.mxu0 0
    %1302 = vmatpush2.bf16.msra.mxu0 0
    %1303 = vmatprep.subr.bf16.mxu0 0
    %1304 = vmatpush2.bf16.msra.mxu0 0
    %1305 = vmatprep.subr.bf16.mxu0 0
    %1306 = vmatpush2.bf16.msra.mxu0 0
    %1307 = vmatprep.subr.bf16.mxu0 0
    %1308 = vmatpush2.bf16.msra.mxu0 0
    %1309 = vmatprep.subr.bf16.mxu0 0
    %1310 = vmatpush2.bf16.msra.mxu0 0
    %1311 = vmatprep.subr.bf16.mxu0 0
    %1312 = vmatpush2.bf16.msra.mxu0 0
    %1313 = vmatprep.subr.bf16.mxu0 0
    %1314 = vmatpush2.bf16.msra.mxu0 0
    %1315 = vmatprep.subr.bf16.mxu0 0
    %1316 = vmatpush2.bf16.msra.mxu0 0
    %1317 = vmatprep.mubr.bf16.mxu0 0
    %1318 = vmatmul.mubr.bf16.gmra.mxu0 %v463
    %v1319 = vpop.f32.mrf.mxu0
    %v1320 = vadd.f32 0.0, %v1319
    %v1321 = vpop.f32.mrf.mxu0
    %v1322 = vpop.f32.mrf.mxu0
    %v1323 = vadd.f32 0.0, %v1322
    %v1324 = vpop.f32.mrf.mxu0
    %1325 = vdwg.mxu0
    %v1327 = vsel %vm461, %v410, 0
    %v1330 = vsel %vm461, %v411, 0
    %v1333 = vsel %vm461, %v412, 0
    %v1336 = vsel %vm461, %v413, 0
    %1338 = vmatprep.subr.mxu0 0.0
    %1339 = vmatpush1.msra.mxu0 0.0
    %1340 = vmatprep.subr.mxu0 0.0
    %1341 = vmatpush1.msra.mxu0 0.0
    %1342 = vmatprep.subr.mxu0 0.0
    %1343 = vmatpush1.msra.mxu0 0.0
    %1344 = vmatprep.subr.mxu0 0.0
    %1345 = vmatpush1.msra.mxu0 0.0
    %1346 = vmatprep.subr.mxu0 0.0
    %1347 = vmatpush1.msra.mxu0 0.0
    %1348 = vmatprep.subr.mxu0 0.0
    %1349 = vmatpush1.msra.mxu0 0.0
    %1350 = vmatprep.subr.mxu0 0.0
    %1351 = vmatpush1.msra.mxu0 0.0
    %1352 = vmatprep.subr.mxu0 0.0
    %1353 = vmatpush1.msra.mxu0 0.0
    %1354 = vmatprep.subr.mxu0 0.0
    %1355 = vmatpush1.msra.mxu0 0.0
    %1356 = vmatprep.subr.mxu0 0.0
    %1357 = vmatpush1.msra.mxu0 0.0
    %1358 = vmatprep.subr.mxu0 0.0
    %1359 = vmatpush1.msra.mxu0 0.0
    %1360 = vmatprep.subr.mxu0 0.0
    %1361 = vmatpush1.msra.mxu0 0.0
    %1362 = vmatprep.subr.mxu0 0.0
    %1363 = vmatpush1.msra.mxu0 0.0
    %1364 = vmatprep.subr.mxu0 0.0
    %1365 = vmatpush1.msra.mxu0 0.0
    %1366 = vmatprep.subr.mxu0 0.0
    %1367 = vmatpush1.msra.mxu0 %v1323
    %1368 = vmatprep.subr.mxu0 0.0
    %1369 = vmatpush1.msra.mxu0 %v1320
    %1370 = vmatprep.subr.mxu0 0.0
    %1371 = vmatpush2.msra.mxu0 0.0
    %1372 = vmatprep.subr.mxu0 0.0
    %1373 = vmatpush2.msra.mxu0 0.0
    %1374 = vmatprep.subr.mxu0 0.0
    %1375 = vmatpush2.msra.mxu0 0.0
    %1376 = vmatprep.subr.mxu0 0.0
    %1377 = vmatpush2.msra.mxu0 0.0
    %1378 = vmatprep.subr.mxu0 0.0
    %1379 = vmatpush2.msra.mxu0 0.0
    %1380 = vmatprep.subr.mxu0 0.0
    %1381 = vmatpush2.msra.mxu0 0.0
    %1382 = vmatprep.subr.mxu0 0.0
    %1383 = vmatpush2.msra.mxu0 0.0
    %1384 = vmatprep.subr.mxu0 0.0
    %1385 = vmatpush2.msra.mxu0 0.0
    %1386 = vmatprep.subr.mxu0 0.0
    %1387 = vmatpush2.msra.mxu0 0.0
    %1388 = vmatprep.subr.mxu0 0.0
    %1389 = vmatpush2.msra.mxu0 0.0
    %1390 = vmatprep.subr.mxu0 0.0
    %1391 = vmatpush2.msra.mxu0 0.0
    %1392 = vmatprep.subr.mxu0 0.0
    %1393 = vmatpush2.msra.mxu0 0.0
    %1394 = vmatprep.subr.mxu0 0.0
    %1395 = vmatpush2.msra.mxu0 0.0
    %1396 = vmatprep.subr.mxu0 0.0
    %1397 = vmatpush2.msra.mxu0 0.0
    %1398 = vmatprep.subr.mxu0 0.0
    %1399 = vmatpush2.msra.mxu0 0.0
    %1400 = vmatprep.subr.mxu0 0.0
    %1401 = vmatpush2.msra.mxu0 0.0
    %1402 = vmatprep.mubr.f32.mxu0 0.0
    %1403 = vmatmul.mubr.f32.gmra.mxu0 %v1327
    %v1404 = vpop.f32.mrf.mxu0
    %v1405 = vadd.f32 0.0, %v1404
    %v1406 = vpop.f32.mrf.mxu0
    %1407 = vmatprep.mubr.f32.mxu0 0.0
    %1408 = vmatmul.mubr.f32.gmra.mxu0 %v1330
    %v1409 = vpop.f32.mrf.mxu0
    %v1410 = vadd.f32 0.0, %v1409
    %v1411 = vpop.f32.mrf.mxu0
    %1412 = vmatprep.mubr.f32.mxu0 0.0
    %1413 = vmatmul.mubr.f32.gmra.mxu0 %v1333
    %v1414 = vpop.f32.mrf.mxu0
    %v1415 = vadd.f32 0.0, %v1414
    %v1416 = vpop.f32.mrf.mxu0
    %1417 = vmatprep.mubr.f32.mxu0 0.0
    %1418 = vmatmul.mubr.f32.gmra.mxu0 %v1336
    %v1419 = vpop.f32.mrf.mxu0
    %v1420 = vadd.f32 0.0, %v1419
    %v1421 = vpop.f32.mrf.mxu0
    %1422 = vdwg.mxu0
    %v1424 = vsel %vm461, %v382, 0
    %v1427 = vsel %vm461, %v383, 0
    %v1430 = vsel %vm461, %v384, 0
    %v1433 = vsel %vm461, %v385, 0
    %1435 = vmatprep.subr.mxu0 0.0
    %1436 = vmatpush1.msra.mxu0 0.0
    %1437 = vmatprep.subr.mxu0 0.0
    %1438 = vmatpush1.msra.mxu0 0.0
    %1439 = vmatprep.subr.mxu0 0.0
    %1440 = vmatpush1.msra.mxu0 0.0
    %1441 = vmatprep.subr.mxu0 0.0
    %1442 = vmatpush1.msra.mxu0 0.0
    %1443 = vmatprep.subr.mxu0 0.0
    %1444 = vmatpush1.msra.mxu0 0.0
    %1445 = vmatprep.subr.mxu0 0.0
    %1446 = vmatpush1.msra.mxu0 0.0
    %1447 = vmatprep.subr.mxu0 0.0
    %1448 = vmatpush1.msra.mxu0 0.0
    %1449 = vmatprep.subr.mxu0 0.0
    %1450 = vmatpush1.msra.mxu0 0.0
    %1451 = vmatprep.subr.mxu0 0.0
    %1452 = vmatpush1.msra.mxu0 0.0
    %1453 = vmatprep.subr.mxu0 0.0
    %1454 = vmatpush1.msra.mxu0 0.0
    %1455 = vmatprep.subr.mxu0 0.0
    %1456 = vmatpush1.msra.mxu0 0.0
    %1457 = vmatprep.subr.mxu0 0.0
    %1458 = vmatpush1.msra.mxu0 0.0
    %1459 = vmatprep.subr.mxu0 0.0
    %1460 = vmatpush1.msra.mxu0 0.0
    %1461 = vmatprep.subr.mxu0 0.0
    %1462 = vmatpush1.msra.mxu0 0.0
    %1463 = vmatprep.subr.mxu0 0.0
    %1464 = vmatpush1.msra.mxu0 %v1274
    %1465 = vmatprep.subr.mxu0 0.0
    %1466 = vmatpush1.msra.mxu0 %v1271
    %1467 = vmatprep.subr.mxu0 0.0
    %1468 = vmatpush2.msra.mxu0 0.0
    %1469 = vmatprep.subr.mxu0 0.0
    %1470 = vmatpush2.msra.mxu0 0.0
    %1471 = vmatprep.subr.mxu0 0.0
    %1472 = vmatpush2.msra.mxu0 0.0
    %1473 = vmatprep.subr.mxu0 0.0
    %1474 = vmatpush2.msra.mxu0 0.0
    %1475 = vmatprep.subr.mxu0 0.0
    %1476 = vmatpush2.msra.mxu0 0.0
    %1477 = vmatprep.subr.mxu0 0.0
    %1478 = vmatpush2.msra.mxu0 0.0
    %1479 = vmatprep.subr.mxu0 0.0
    %1480 = vmatpush2.msra.mxu0 0.0
    %1481 = vmatprep.subr.mxu0 0.0
    %1482 = vmatpush2.msra.mxu0 0.0
    %1483 = vmatprep.subr.mxu0 0.0
    %1484 = vmatpush2.msra.mxu0 0.0
    %1485 = vmatprep.subr.mxu0 0.0
    %1486 = vmatpush2.msra.mxu0 0.0
    %1487 = vmatprep.subr.mxu0 0.0
    %1488 = vmatpush2.msra.mxu0 0.0
    %1489 = vmatprep.subr.mxu0 0.0
    %1490 = vmatpush2.msra.mxu0 0.0
    %1491 = vmatprep.subr.mxu0 0.0
    %1492 = vmatpush2.msra.mxu0 0.0
    %1493 = vmatprep.subr.mxu0 0.0
    %1494 = vmatpush2.msra.mxu0 0.0
    %1495 = vmatprep.subr.mxu0 0.0
    %1496 = vmatpush2.msra.mxu0 0.0
    %1497 = vmatprep.subr.mxu0 0.0
    %1498 = vmatpush2.msra.mxu0 0.0
    %1499 = vmatprep.mubr.f32.mxu0 0.0
    %1500 = vmatmul.mubr.f32.gmra.mxu0 %v1424
    %v1501 = vpop.f32.mrf.mxu0
    %v1502 = vadd.f32 %v1405, %v1501
    %v1503 = vpop.f32.mrf.mxu0
    %1504 = vmatprep.mubr.f32.mxu0 0.0
    %1505 = vmatmul.mubr.f32.gmra.mxu0 %v1427
    %v1506 = vpop.f32.mrf.mxu0
    %v1507 = vadd.f32 %v1410, %v1506
    %v1508 = vpop.f32.mrf.mxu0
    %1509 = vmatprep.mubr.f32.mxu0 0.0
    %1510 = vmatmul.mubr.f32.gmra.mxu0 %v1430
    %v1511 = vpop.f32.mrf.mxu0
    %v1512 = vadd.f32 %v1415, %v1511
    %v1513 = vpop.f32.mrf.mxu0
    %1514 = vmatprep.mubr.f32.mxu0 0.0
    %1515 = vmatmul.mubr.f32.gmra.mxu0 %v1433
    %v1516 = vpop.f32.mrf.mxu0
    %v1517 = vadd.f32 %v1420, %v1516
    %v1518 = vpop.f32.mrf.mxu0
    %1519 = vdwg.mxu0
    %v1520 = vld [vmem:[%s27] sm:$0x1]
    %v1522 = vlaneseq
    %v1523 = vshrl.u32 %v1522, 7
    %v1524 = vsub.s32 0, %v1523
    %v1525 = vrot.slane %v1520, %v1524
    %v1527 = vadd.f32 %v1502, %v1525
    %v1528 = vadd.f32 %v1507, %v1525
    %v1529 = vadd.f32 %v1512, %v1525
    %v1530 = vadd.f32 %v1517, %v1525
    %v1531 = vxor.u32 %v1527, 2147483648
    %v1532 = vxor.u32 %v1528, 2147483648
    %v1533 = vxor.u32 %v1529, 2147483648
    %v1534 = vxor.u32 %v1530, 2147483648
    %v1535 = vmul.f32 %v1531, 1.442695
    %v1536 = vpow.pop %v1535
    %v1537 = vmul.f32 %v1532, 1.442695
    %v1538 = vpow.pop %v1537
    %v1539 = vmul.f32 %v1533, 1.442695
    %v1540 = vpow.pop %v1539
    %v1541 = vmul.f32 %v1534, 1.442695
    %v1542 = vpow.pop %v1541
    %v1543 = vadd.f32 %v1536, 1.0
    %v1544 = vadd.f32 %v1538, 1.0
    %v1545 = vadd.f32 %v1540, 1.0
    %v1546 = vadd.f32 %v1542, 1.0
    %v1547 = vrcp.pop %v1543
    %v1548 = vmul.f32 1.0, %v1547
    %v1549 = vrcp.pop %v1544
    %v1550 = vmul.f32 1.0, %v1549
    %v1551 = vrcp.pop %v1545
    %v1552 = vmul.f32 1.0, %v1551
    %v1553 = vrcp.pop %v1546
    %v1554 = vmul.f32 1.0, %v1553
    %v1555 = vmul.f32 %v1527, %v1548
    %v1556 = vmul.f32 %v1528, %v1550
    %v1557 = vmul.f32 %v1529, %v1552
    %v1558 = vmul.f32 %v1530, %v1554
    %v1559 = vpack.c.bf16 %v1556, %v1555
    %v1560 = vpack.c.bf16 %v1558, %v1557
    %v1561 = vld [vmem:[%s35] sm:$0xf]
    %v1562 = vld [vmem:[%s35 + $0x4] sm:$0xf]
    %v1563 = vld [vmem:[%s29] sm:$0x1]
    %v1565 = vlaneseq
    %v1566 = vshrl.u32 %v1565, 7
    %v1567 = vsub.s32 0, %v1566
    %v1568 = vrot.slane %v1563, %v1567
    %v1572 = vunpack.c.l.b16 %v1561
    %v1573 = vunpack.c.l.b16 %v1562
    %v1574 = vpack.c.b16 %v1573, %v1572
    %v1577 = vsel %vm461, %v1559, 0
    %v1580 = vsel %vm461, %v1560, 0
    %1582 = vmatprep.subr.bf16.mxu0 0
    %1583 = vmatpush1.bf16.msra.mxu0 0
    %1584 = vmatprep.subr.bf16.mxu0 0
    %1585 = vmatpush1.bf16.msra.mxu0 0
    %1586 = vmatprep.subr.bf16.mxu0 0
    %1587 = vmatpush1.bf16.msra.mxu0 0
    %1588 = vmatprep.subr.bf16.mxu0 0
    %1589 = vmatpush1.bf16.msra.mxu0 0
    %1590 = vmatprep.subr.bf16.mxu0 0
    %1591 = vmatpush1.bf16.msra.mxu0 0
    %1592 = vmatprep.subr.bf16.mxu0 0
    %1593 = vmatpush1.bf16.msra.mxu0 0
    %1594 = vmatprep.subr.bf16.mxu0 0
    %1595 = vmatpush1.bf16.msra.mxu0 0
    %1596 = vmatprep.subr.bf16.mxu0 0
    %1597 = vmatpush1.bf16.msra.mxu0 %v1574
    %1598 = vmatprep.subr.bf16.mxu0 0
    %1599 = vmatpush2.bf16.msra.mxu0 0
    %1600 = vmatprep.subr.bf16.mxu0 0
    %1601 = vmatpush2.bf16.msra.mxu0 0
    %1602 = vmatprep.subr.bf16.mxu0 0
    %1603 = vmatpush2.bf16.msra.mxu0 0
    %1604 = vmatprep.subr.bf16.mxu0 0
    %1605 = vmatpush2.bf16.msra.mxu0 0
    %1606 = vmatprep.subr.bf16.mxu0 0
    %1607 = vmatpush2.bf16.msra.mxu0 0
    %1608 = vmatprep.subr.bf16.mxu0 0
    %1609 = vmatpush2.bf16.msra.mxu0 0
    %1610 = vmatprep.subr.bf16.mxu0 0
    %1611 = vmatpush2.bf16.msra.mxu0 0
    %1612 = vmatprep.subr.bf16.mxu0 0
    %1613 = vmatpush2.bf16.msra.mxu0 0
    %1614 = vmatprep.mubr.bf16.mxu0 0
    %1615 = vmatmul.mubr.bf16.gmra.mxu0 %v1577
    %v1616 = vpop.f32.mrf.mxu0
    %v1617 = vadd.f32 %v1568, %v1616
    %v1618 = vpop.f32.mrf.mxu0
    %v1619 = vpop.f32.mrf.mxu0
    %v1620 = vadd.f32 %v1568, %v1619
    %v1621 = vpop.f32.mrf.mxu0
    %1622 = vmatprep.mubr.bf16.mxu0 0
    %1623 = vmatmul.mubr.bf16.gmra.mxu0 %v1580
    %v1624 = vpop.f32.mrf.mxu0
    %v1625 = vadd.f32 %v1568, %v1624
    %v1626 = vpop.f32.mrf.mxu0
    %v1627 = vpop.f32.mrf.mxu0
    %v1628 = vadd.f32 %v1568, %v1627
    %v1629 = vpop.f32.mrf.mxu0
    %1630 = vdwg.mxu0
    %v1631 = vxor.u32 %v1617, 2147483648
    %v1632 = vxor.u32 %v1620, 2147483648
    %v1633 = vxor.u32 %v1625, 2147483648
    %v1634 = vxor.u32 %v1628, 2147483648
    %v1635 = vmul.f32 %v1631, 1.442695
    %v1636 = vpow.pop %v1635
    %v1637 = vmul.f32 %v1632, 1.442695
    %v1638 = vpow.pop %v1637
    %v1639 = vmul.f32 %v1633, 1.442695
    %v1640 = vpow.pop %v1639
    %v1641 = vmul.f32 %v1634, 1.442695
    %v1642 = vpow.pop %v1641
    %v1643 = vadd.f32 %v1636, 1.0
    %v1644 = vadd.f32 %v1638, 1.0
    %v1645 = vadd.f32 %v1640, 1.0
    %v1646 = vadd.f32 %v1642, 1.0
    %v1647 = vrcp.pop %v1643
    %v1648 = vmul.f32 1.0, %v1647
    %v1649 = vrcp.pop %v1644
    %v1650 = vmul.f32 1.0, %v1649
    %v1651 = vrcp.pop %v1645
    %v1652 = vmul.f32 1.0, %v1651
    %v1653 = vrcp.pop %v1646
    %v1654 = vmul.f32 1.0, %v1653
    %v1655 = vmul.f32 %v1617, %v1648
    %v1656 = vmul.f32 %v1620, %v1650
    %v1657 = vmul.f32 %v1625, %v1652
    %v1658 = vmul.f32 %v1628, %v1654
    %v1659 = vsub.f32 %v382, %v410
    %v1660 = vsub.f32 %v383, %v411
    %v1661 = vsub.f32 %v384, %v412
    %v1662 = vsub.f32 %v385, %v413
    %v1664 = vsel %vm461, %v1659, 0
    %v1667 = vsel %vm461, %v1660, 0
    %v1670 = vsel %vm461, %v1661, 0
    %v1673 = vsel %vm461, %v1662, 0
    %1675 = vmatprep.subr.mxu0 0.0
    %1676 = vmatpush1.msra.mxu0 0.0
    %1677 = vmatprep.subr.mxu0 0.0
    %1678 = vmatpush1.msra.mxu0 0.0
    %1679 = vmatprep.subr.mxu0 0.0
    %1680 = vmatpush1.msra.mxu0 0.0
    %1681 = vmatprep.subr.mxu0 0.0
    %1682 = vmatpush1.msra.mxu0 0.0
    %1683 = vmatprep.subr.mxu0 0.0
    %1684 = vmatpush1.msra.mxu0 0.0
    %1685 = vmatprep.subr.mxu0 0.0
    %1686 = vmatpush1.msra.mxu0 0.0
    %1687 = vmatprep.subr.mxu0 0.0
    %1688 = vmatpush1.msra.mxu0 0.0
    %1689 = vmatprep.subr.mxu0 0.0
    %1690 = vmatpush1.msra.mxu0 0.0
    %1691 = vmatprep.subr.mxu0 0.0
    %1692 = vmatpush1.msra.mxu0 0.0
    %1693 = vmatprep.subr.mxu0 0.0
    %1694 = vmatpush1.msra.mxu0 0.0
    %1695 = vmatprep.subr.mxu0 0.0
    %1696 = vmatpush1.msra.mxu0 0.0
    %1697 = vmatprep.subr.mxu0 0.0
    %1698 = vmatpush1.msra.mxu0 0.0
    %1699 = vmatprep.subr.mxu0 0.0
    %1700 = vmatpush1.msra.mxu0 0.0
    %1701 = vmatprep.subr.mxu0 0.0
    %1702 = vmatpush1.msra.mxu0 0.0
    %1703 = vmatprep.subr.mxu0 0.0
    %1704 = vmatpush1.msra.mxu0 %v913
    %1705 = vmatprep.subr.mxu0 0.0
    %1706 = vmatpush1.msra.mxu0 %v912
    %1707 = vmatprep.subr.mxu0 0.0
    %1708 = vmatpush2.msra.mxu0 0.0
    %1709 = vmatprep.subr.mxu0 0.0
    %1710 = vmatpush2.msra.mxu0 0.0
    %1711 = vmatprep.subr.mxu0 0.0
    %1712 = vmatpush2.msra.mxu0 0.0
    %1713 = vmatprep.subr.mxu0 0.0
    %1714 = vmatpush2.msra.mxu0 0.0
    %1715 = vmatprep.subr.mxu0 0.0
    %1716 = vmatpush2.msra.mxu0 0.0
    %1717 = vmatprep.subr.mxu0 0.0
    %1718 = vmatpush2.msra.mxu0 0.0
    %1719 = vmatprep.subr.mxu0 0.0
    %1720 = vmatpush2.msra.mxu0 0.0
    %1721 = vmatprep.subr.mxu0 0.0
    %1722 = vmatpush2.msra.mxu0 0.0
    %1723 = vmatprep.subr.mxu0 0.0
    %1724 = vmatpush2.msra.mxu0 0.0
    %1725 = vmatprep.subr.mxu0 0.0
    %1726 = vmatpush2.msra.mxu0 0.0
    %1727 = vmatprep.subr.mxu0 0.0
    %1728 = vmatpush2.msra.mxu0 0.0
    %1729 = vmatprep.subr.mxu0 0.0
    %1730 = vmatpush2.msra.mxu0 0.0
    %1731 = vmatprep.subr.mxu0 0.0
    %1732 = vmatpush2.msra.mxu0 0.0
    %1733 = vmatprep.subr.mxu0 0.0
    %1734 = vmatpush2.msra.mxu0 0.0
    %1735 = vmatprep.subr.mxu0 0.0
    %1736 = vmatpush2.msra.mxu0 0.0
    %1737 = vmatprep.subr.mxu0 0.0
    %1738 = vmatpush2.msra.mxu0 0.0
    %1739 = vmatprep.mubr.f32.mxu0 0.0
    %1740 = vmatmul.mubr.f32.gmra.mxu0 %v1664
    %v1741 = vpop.f32.mrf.mxu0
    %v1742 = vadd.f32 0.0, %v1741
    %v1743 = vpop.f32.mrf.mxu0
    %1744 = vmatprep.mubr.f32.mxu0 0.0
    %1745 = vmatmul.mubr.f32.gmra.mxu0 %v1667
    %v1746 = vpop.f32.mrf.mxu0
    %v1747 = vadd.f32 0.0, %v1746
    %v1748 = vpop.f32.mrf.mxu0
    %1749 = vmatprep.mubr.f32.mxu0 0.0
    %1750 = vmatmul.mubr.f32.gmra.mxu0 %v1670
    %v1751 = vpop.f32.mrf.mxu0
    %v1752 = vadd.f32 0.0, %v1751
    %v1753 = vpop.f32.mrf.mxu0
    %1754 = vmatprep.mubr.f32.mxu0 0.0
    %1755 = vmatmul.mubr.f32.gmra.mxu0 %v1673
    %v1756 = vpop.f32.mrf.mxu0
    %v1757 = vadd.f32 0.0, %v1756
    %v1758 = vpop.f32.mrf.mxu0
    %1759 = vdwg.mxu0
    %v1760 = vpack.c.bf16 %v1747, %v1742
    %v1761 = vpack.c.bf16 %v1757, %v1752
    %v1762 = vld [vmem:[%s49] sm:$0x3]
    %v1764 = vsel %vm748, %v1760, 0
    %v1767 = vsel %vm748, %v1761, 0
    %vm1769 = vcmask 1040384
    %v1770 = vsel %vm1769, 4294967295, 65535
    %v1771 = vsel %vm833, %v1770, 0
    %v1773 = vand.u32 %v1762, %v1771
    %1775 = vmatprep.subr.bf16.mxu0 0
    %1776 = vmatpush1.bf16.msra.mxu0 0
    %1777 = vmatprep.subr.bf16.mxu0 0
    %1778 = vmatpush1.bf16.msra.mxu0 0
    %1779 = vmatprep.subr.bf16.mxu0 0
    %1780 = vmatpush1.bf16.msra.mxu0 0
    %1781 = vmatprep.subr.bf16.mxu0 0
    %1782 = vmatpush1.bf16.msra.mxu0 0
    %1783 = vmatprep.subr.bf16.mxu0 0
    %1784 = vmatpush1.bf16.msra.mxu0 0
    %1785 = vmatprep.subr.bf16.mxu0 0
    %1786 = vmatpush1.bf16.msra.mxu0 0
    %1787 = vmatprep.subr.bf16.mxu0 0
    %1788 = vmatpush1.bf16.msra.mxu0 0
    %1789 = vmatprep.subr.bf16.mxu0 0
    %1790 = vmatpush1.bf16.msra.mxu0 %v1773
    %1791 = vmatprep.subr.bf16.mxu0 0
    %1792 = vmatpush2.bf16.msra.mxu0 0
    %1793 = vmatprep.subr.bf16.mxu0 0
    %1794 = vmatpush2.bf16.msra.mxu0 0
    %1795 = vmatprep.subr.bf16.mxu0 0
    %1796 = vmatpush2.bf16.msra.mxu0 0
    %1797 = vmatprep.subr.bf16.mxu0 0
    %1798 = vmatpush2.bf16.msra.mxu0 0
    %1799 = vmatprep.subr.bf16.mxu0 0
    %1800 = vmatpush2.bf16.msra.mxu0 0
    %1801 = vmatprep.subr.bf16.mxu0 0
    %1802 = vmatpush2.bf16.msra.mxu0 0
    %1803 = vmatprep.subr.bf16.mxu0 0
    %1804 = vmatpush2.bf16.msra.mxu0 0
    %1805 = vmatprep.subr.bf16.mxu0 0
    %1806 = vmatpush2.bf16.msra.mxu0 0
    %1807 = vmatprep.mubr.bf16.mxu0 0
    %1808 = vmatmul.mubr.bf16.gmra.mxu0 %v1764
    %v1809 = vpop.f32.mrf.mxu0
    %v1810 = vadd.f32 0.0, %v1809
    %v1811 = vpop.f32.mrf.mxu0
    %v1812 = vpop.f32.mrf.mxu0
    %v1813 = vadd.f32 0.0, %v1812
    %v1814 = vpop.f32.mrf.mxu0
    %1815 = vmatprep.mubr.bf16.mxu0 0
    %1816 = vmatmul.mubr.bf16.gmra.mxu0 %v1767
    %v1817 = vpop.f32.mrf.mxu0
    %v1818 = vadd.f32 0.0, %v1817
    %v1819 = vpop.f32.mrf.mxu0
    %v1820 = vpop.f32.mrf.mxu0
    %v1821 = vadd.f32 0.0, %v1820
    %v1822 = vpop.f32.mrf.mxu0
    %1823 = vdwg.mxu0
    %v1824 = vmul.f32 %v1810, %v1810
    %v1825 = vmul.f32 %v1813, %v1813
    %v1826 = vmul.f32 %v1818, %v1818
    %v1827 = vmul.f32 %v1821, %v1821
    %v1828 = vsel %vm748, %v1824, 0.0
    %1829 = vadd.xlane.f32.xlu0 %v1828
    %v1830 = vpop.xlane.xlu0 %1829
    %v1831 = vsel %vm748, %v1825, 0.0
    %1832 = vadd.xlane.f32.xlu0 %v1831
    %v1833 = vpop.xlane.xlu0 %1832
    %v1834 = vsel %vm748, %v1826, 0.0
    %1835 = vadd.xlane.f32.xlu0 %v1834
    %v1836 = vpop.xlane.xlu0 %1835
    %v1837 = vsel %vm748, %v1827, 0.0
    %1838 = vadd.xlane.f32.xlu0 %v1837
    %v1839 = vpop.xlane.xlu0 %1838
    %v1840 = vadd.f32 %v1830, 1e-08
    %v1841 = vadd.f32 %v1833, 1e-08
    %v1842 = vadd.f32 %v1836, 1e-08
    %v1843 = vadd.f32 %v1839, 1e-08
    %v1844 = vrsqrt.pop %v1840
    %v1845 = vmul.f32 %v1840, %v1844
    %vm1846 = vcmp.eq.f32.partialorder %v1840, inf
    %v1847 = vsel %vm1846, %v1840, %v1845
    %vm1848 = vcmp.eq.f32.partialorder %v1840, 0.0
    %v1849 = vand.u32 %v1840, 2147483648
    %v1850 = vsel %vm1848, %v1849, %v1847
    %v1851 = vrsqrt.pop %v1841
    %v1852 = vmul.f32 %v1841, %v1851
    %vm1853 = vcmp.eq.f32.partialorder %v1841, inf
    %v1854 = vsel %vm1853, %v1841, %v1852
    %vm1855 = vcmp.eq.f32.partialorder %v1841, 0.0
    %v1856 = vand.u32 %v1841, 2147483648
    %v1857 = vsel %vm1855, %v1856, %v1854
    %v1858 = vrsqrt.pop %v1842
    %v1859 = vmul.f32 %v1842, %v1858
    %vm1860 = vcmp.eq.f32.partialorder %v1842, inf
    %v1861 = vsel %vm1860, %v1842, %v1859
    %vm1862 = vcmp.eq.f32.partialorder %v1842, 0.0
    %v1863 = vand.u32 %v1842, 2147483648
    %v1864 = vsel %vm1862, %v1863, %v1861
    %v1865 = vrsqrt.pop %v1843
    %v1866 = vmul.f32 %v1843, %v1865
    %vm1867 = vcmp.eq.f32.partialorder %v1843, inf
    %v1868 = vsel %vm1867, %v1843, %v1866
    %vm1869 = vcmp.eq.f32.partialorder %v1843, 0.0
    %v1870 = vand.u32 %v1843, 2147483648
    %v1871 = vsel %vm1869, %v1870, %v1868
    %1876 = vrot.lane.b32.xlu0 %v1824, 125
    %v1877 = vpop.permute.xlu0 %1876
    %1878 = vrot.lane.b32.xlu0 %v1825, 125
    %v1879 = vpop.permute.xlu0 %1878
    %1880 = vrot.lane.b32.xlu0 %v1826, 125
    %v1881 = vpop.permute.xlu0 %1880
    %1882 = vrot.lane.b32.xlu0 %v1827, 125
    %v1883 = vpop.permute.xlu0 %1882
    %v1888 = vsel %vm748, %v1877, 0.0
    %1889 = vadd.xlane.f32.xlu0 %v1888
    %v1890 = vpop.xlane.xlu0 %1889
    %v1891 = vsel %vm748, %v1879, 0.0
    %1892 = vadd.xlane.f32.xlu0 %v1891
    %v1893 = vpop.xlane.xlu0 %1892
    %v1894 = vsel %vm748, %v1881, 0.0
    %1895 = vadd.xlane.f32.xlu0 %v1894
    %v1896 = vpop.xlane.xlu0 %1895
    %v1897 = vsel %vm748, %v1883, 0.0
    %1898 = vadd.xlane.f32.xlu0 %v1897
    %v1899 = vpop.xlane.xlu0 %1898
    %v1900 = vadd.f32 %v1890, 1e-08
    %v1901 = vadd.f32 %v1893, 1e-08
    %v1902 = vadd.f32 %v1896, 1e-08
    %v1903 = vadd.f32 %v1899, 1e-08
    %v1904 = vrsqrt.pop %v1900
    %v1905 = vmul.f32 %v1900, %v1904
    %vm1906 = vcmp.eq.f32.partialorder %v1900, inf
    %v1907 = vsel %vm1906, %v1900, %v1905
    %vm1908 = vcmp.eq.f32.partialorder %v1900, 0.0
    %v1909 = vand.u32 %v1900, 2147483648
    %v1910 = vsel %vm1908, %v1909, %v1907
    %v1911 = vrsqrt.pop %v1901
    %v1912 = vmul.f32 %v1901, %v1911
    %vm1913 = vcmp.eq.f32.partialorder %v1901, inf
    %v1914 = vsel %vm1913, %v1901, %v1912
    %vm1915 = vcmp.eq.f32.partialorder %v1901, 0.0
    %v1916 = vand.u32 %v1901, 2147483648
    %v1917 = vsel %vm1915, %v1916, %v1914
    %v1918 = vrsqrt.pop %v1902
    %v1919 = vmul.f32 %v1902, %v1918
    %vm1920 = vcmp.eq.f32.partialorder %v1902, inf
    %v1921 = vsel %vm1920, %v1902, %v1919
    %vm1922 = vcmp.eq.f32.partialorder %v1902, 0.0
    %v1923 = vand.u32 %v1902, 2147483648
    %v1924 = vsel %vm1922, %v1923, %v1921
    %v1925 = vrsqrt.pop %v1903
    %v1926 = vmul.f32 %v1903, %v1925
    %vm1927 = vcmp.eq.f32.partialorder %v1903, inf
    %v1928 = vsel %vm1927, %v1903, %v1926
    %vm1929 = vcmp.eq.f32.partialorder %v1903, 0.0
    %v1930 = vand.u32 %v1903, 2147483648
    %v1931 = vsel %vm1929, %v1930, %v1928
    %v1932 = vsel %vm1220, %v1850, %v1910
    %v1933 = vsel %vm1220, %v1857, %v1917
    %v1934 = vsel %vm1220, %v1864, %v1924
    %v1935 = vsel %vm1220, %v1871, %v1931
    %v1936 = vpack.c.bf16 %v998, %v998
    %v1937 = vld [vmem:[%s91] sm:$0xf]
    %v1938 = vld [vmem:[%s91 + $0x4] sm:$0xf]
    %v1939 = vld [vmem:[#allocation13] sm:$0x1]
    %v1941 = vlaneseq
    %v1942 = vshrl.u32 %v1941, 7
    %v1943 = vsub.s32 0, %v1942
    %v1944 = vrot.slane %v1939, %v1943
    %1947 = vrot.lane.b32.xlu0 %v1936, 125
    %v1948 = vpop.permute.xlu0 %1947
    %v1951 = vunpack.c.l.b16 %v1937
    %v1952 = vunpack.c.l.b16 %v1938
    %v1953 = vpack.c.b16 %v1952, %v1951
    %v1956 = vsel %vm461, %v1948, 0
    %1958 = vmatprep.subr.bf16.mxu0 0
    %1959 = vmatpush1.bf16.msra.mxu0 0
    %1960 = vmatprep.subr.bf16.mxu0 0
    %1961 = vmatpush1.bf16.msra.mxu0 0
    %1962 = vmatprep.subr.bf16.mxu0 0
    %1963 = vmatpush1.bf16.msra.mxu0 0
    %1964 = vmatprep.subr.bf16.mxu0 0
    %1965 = vmatpush1.bf16.msra.mxu0 0
    %1966 = vmatprep.subr.bf16.mxu0 0
    %1967 = vmatpush1.bf16.msra.mxu0 0
    %1968 = vmatprep.subr.bf16.mxu0 0
    %1969 = vmatpush1.bf16.msra.mxu0 0
    %1970 = vmatprep.subr.bf16.mxu0 0
    %1971 = vmatpush1.bf16.msra.mxu0 0
    %1972 = vmatprep.subr.bf16.mxu0 0
    %1973 = vmatpush1.bf16.msra.mxu0 %v1953
    %1974 = vmatprep.subr.bf16.mxu0 0
    %1975 = vmatpush2.bf16.msra.mxu0 0
    %1976 = vmatprep.subr.bf16.mxu0 0
    %1977 = vmatpush2.bf16.msra.mxu0 0
    %1978 = vmatprep.subr.bf16.mxu0 0
    %1979 = vmatpush2.bf16.msra.mxu0 0
    %1980 = vmatprep.subr.bf16.mxu0 0
    %1981 = vmatpush2.bf16.msra.mxu0 0
    %1982 = vmatprep.subr.bf16.mxu0 0
    %1983 = vmatpush2.bf16.msra.mxu0 0
    %1984 = vmatprep.subr.bf16.mxu0 0
    %1985 = vmatpush2.bf16.msra.mxu0 0
    %1986 = vmatprep.subr.bf16.mxu0 0
    %1987 = vmatpush2.bf16.msra.mxu0 0
    %1988 = vmatprep.subr.bf16.mxu0 0
    %1989 = vmatpush2.bf16.msra.mxu0 0
    %1990 = vmatprep.mubr.bf16.mxu0 0
    %1991 = vmatmul.mubr.bf16.gmra.mxu0 %v1956
    %v1992 = vpop.f32.mrf.mxu0
    %v1993 = vadd.f32 %v1944, %v1992
    %v1994 = vpop.f32.mrf.mxu0
    %v1995 = vpop.f32.mrf.mxu0
    %v1996 = vpop.f32.mrf.mxu0
    %1997 = vdwg.mxu0
    %v1998 = vxor.u32 %v1993, 2147483648
    %v1999 = vmul.f32 %v1998, 1.442695
    %v2000 = vpow.pop %v1999
    %v2001 = vadd.f32 %v2000, 1.0
    %v2002 = vrcp.pop %v2001
    %v2003 = vmul.f32 1.0, %v2002
    %v2004 = vmul.f32 %v1993, %v2003
    %v2005 = vpack.c.bf16 %v2004, %v2004
    %v2006 = vld [vmem:[%s93] sm:$0xf]
    %v2007 = vld [vmem:[%s93 + $0x4] sm:$0xf]
    %v2008 = vld [vmem:[#allocation15] sm:$0x1]
    %v2010 = vlaneseq
    %v2011 = vshrl.u32 %v2010, 7
    %v2012 = vsub.s32 0, %v2011
    %v2013 = vrot.slane %v2008, %v2012
    %v2017 = vunpack.c.l.b16 %v2006
    %v2018 = vunpack.c.l.b16 %v2007
    %v2019 = vpack.c.b16 %v2018, %v2017
    %v2022 = vsel %vm461, %v2005, 0
    %2024 = vmatprep.subr.bf16.mxu0 0
    %2025 = vmatpush1.bf16.msra.mxu0 0
    %2026 = vmatprep.subr.bf16.mxu0 0
    %2027 = vmatpush1.bf16.msra.mxu0 0
    %2028 = vmatprep.subr.bf16.mxu0 0
    %2029 = vmatpush1.bf16.msra.mxu0 0
    %2030 = vmatprep.subr.bf16.mxu0 0
    %2031 = vmatpush1.bf16.msra.mxu0 0
    %2032 = vmatprep.subr.bf16.mxu0 0
    %2033 = vmatpush1.bf16.msra.mxu0 0
    %2034 = vmatprep.subr.bf16.mxu0 0
    %2035 = vmatpush1.bf16.msra.mxu0 0
    %2036 = vmatprep.subr.bf16.mxu0 0
    %2037 = vmatpush1.bf16.msra.mxu0 0
    %2038 = vmatprep.subr.bf16.mxu0 0
    %2039 = vmatpush1.bf16.msra.mxu0 %v2019
    %2040 = vmatprep.subr.bf16.mxu0 0
    %2041 = vmatpush2.bf16.msra.mxu0 0
    %2042 = vmatprep.subr.bf16.mxu0 0
    %2043 = vmatpush2.bf16.msra.mxu0 0
    %2044 = vmatprep.subr.bf16.mxu0 0
    %2045 = vmatpush2.bf16.msra.mxu0 0
    %2046 = vmatprep.subr.bf16.mxu0 0
    %2047 = vmatpush2.bf16.msra.mxu0 0
    %2048 = vmatprep.subr.bf16.mxu0 0
    %2049 = vmatpush2.bf16.msra.mxu0 0
    %2050 = vmatprep.subr.bf16.mxu0 0
    %2051 = vmatpush2.bf16.msra.mxu0 0
    %2052 = vmatprep.subr.bf16.mxu0 0
    %2053 = vmatpush2.bf16.msra.mxu0 0
    %2054 = vmatprep.subr.bf16.mxu0 0
    %2055 = vmatpush2.bf16.msra.mxu0 0
    %2056 = vmatprep.mubr.bf16.mxu0 0
    %2057 = vmatmul.mubr.bf16.gmra.mxu0 %v2022
    %v2058 = vpop.f32.mrf.mxu0
    %v2059 = vadd.f32 %v2013, %v2058
    %v2060 = vpop.f32.mrf.mxu0
    %v2061 = vpop.f32.mrf.mxu0
    %v2062 = vpop.f32.mrf.mxu0
    %2063 = vdwg.mxu0
    %v2064 = vxor.u32 %v2059, 2147483648
    %v2065 = vmul.f32 %v2064, 1.442695
    %v2066 = vpow.pop %v2065
    %v2067 = vadd.f32 %v2066, 1.0
    %v2068 = vrcp.pop %v2067
    %v2069 = vmul.f32 1.0, %v2068
    %v2070 = vmul.f32 %v2059, %v2069
    %v2071 = vpack.c.bf16 %v1227, %v1227
    %v2072 = vld [vmem:[%s95] sm:$0x7]
    %v2074 = vsel %vm691, %v2071, 0
    %v2077 = vsel %vm695, %v2072, 0
    %2079 = vmatprep.subr.bf16.mxu0 0
    %2080 = vmatpush1.bf16.msra.mxu0 0
    %2081 = vmatprep.subr.bf16.mxu0 0
    %2082 = vmatpush1.bf16.msra.mxu0 0
    %2083 = vmatprep.subr.bf16.mxu0 0
    %2084 = vmatpush1.bf16.msra.mxu0 0
    %2085 = vmatprep.subr.bf16.mxu0 0
    %2086 = vmatpush1.bf16.msra.mxu0 0
    %2087 = vmatprep.subr.bf16.mxu0 0
    %2088 = vmatpush1.bf16.msra.mxu0 0
    %2089 = vmatprep.subr.bf16.mxu0 0
    %2090 = vmatpush1.bf16.msra.mxu0 0
    %2091 = vmatprep.subr.bf16.mxu0 0
    %2092 = vmatpush1.bf16.msra.mxu0 0
    %2093 = vmatprep.subr.bf16.mxu0 0
    %2094 = vmatpush1.bf16.msra.mxu0 %v2077
    %2095 = vmatprep.subr.bf16.mxu0 0
    %2096 = vmatpush2.bf16.msra.mxu0 0
    %2097 = vmatprep.subr.bf16.mxu0 0
    %2098 = vmatpush2.bf16.msra.mxu0 0
    %2099 = vmatprep.subr.bf16.mxu0 0
    %2100 = vmatpush2.bf16.msra.mxu0 0
    %2101 = vmatprep.subr.bf16.mxu0 0
    %2102 = vmatpush2.bf16.msra.mxu0 0
    %2103 = vmatprep.subr.bf16.mxu0 0
    %2104 = vmatpush2.bf16.msra.mxu0 0
    %2105 = vmatprep.subr.bf16.mxu0 0
    %2106 = vmatpush2.bf16.msra.mxu0 0
    %2107 = vmatprep.subr.bf16.mxu0 0
    %2108 = vmatpush2.bf16.msra.mxu0 0
    %2109 = vmatprep.subr.bf16.mxu0 0
    %2110 = vmatpush2.bf16.msra.mxu0 0
    %2111 = vmatprep.mubr.bf16.mxu0 0
    %2112 = vmatmul.mubr.bf16.gmra.mxu0 %v2074
    %v2113 = vpop.f32.mrf.mxu0
    %v2114 = vadd.f32 0.0, %v2113
    %v2115 = vpop.f32.mrf.mxu0
    %v2116 = vpop.f32.mrf.mxu0
    %v2117 = vpop.f32.mrf.mxu0
    %2118 = vdwg.mxu0
    %2119 = vrot.lane.b32.xlu0 %v825, 125
    %v2120 = vpop.permute.xlu0 %2119
    %v2122 = vsel %vm826, %v420, 0
    %v2124 = vsel %vm833, %v2120, 0
    %2126 = vmatprep.subr.mxu0 0.0
    %2127 = vmatpush1.msra.mxu0 0.0
    %2128 = vmatprep.subr.mxu0 0.0
    %2129 = vmatpush1.msra.mxu0 0.0
    %2130 = vmatprep.subr.mxu0 0.0
    %2131 = vmatpush1.msra.mxu0 0.0
    %2132 = vmatprep.subr.mxu0 0.0
    %2133 = vmatpush1.msra.mxu0 0.0
    %2134 = vmatprep.subr.mxu0 0.0
    %2135 = vmatpush1.msra.mxu0 0.0
    %2136 = vmatprep.subr.mxu0 0.0
    %2137 = vmatpush1.msra.mxu0 0.0
    %2138 = vmatprep.subr.mxu0 0.0
    %2139 = vmatpush1.msra.mxu0 0.0
    %2140 = vmatprep.subr.mxu0 0.0
    %2141 = vmatpush1.msra.mxu0 0.0
    %2142 = vmatprep.subr.mxu0 0.0
    %2143 = vmatpush1.msra.mxu0 0.0
    %2144 = vmatprep.subr.mxu0 0.0
    %2145 = vmatpush1.msra.mxu0 0.0
    %2146 = vmatprep.subr.mxu0 0.0
    %2147 = vmatpush1.msra.mxu0 0.0
    %2148 = vmatprep.subr.mxu0 0.0
    %2149 = vmatpush1.msra.mxu0 0.0
    %2150 = vmatprep.subr.mxu0 0.0
    %2151 = vmatpush1.msra.mxu0 0.0
    %2152 = vmatprep.subr.mxu0 0.0
    %2153 = vmatpush1.msra.mxu0 0.0
    %2154 = vmatprep.subr.mxu0 0.0
    %2155 = vmatpush1.msra.mxu0 0.0
    %2156 = vmatprep.subr.mxu0 0.0
    %2157 = vmatpush1.msra.mxu0 %v2124
    %2158 = vmatprep.subr.mxu0 0.0
    %2159 = vmatpush2.msra.mxu0 0.0
    %2160 = vmatprep.subr.mxu0 0.0
    %2161 = vmatpush2.msra.mxu0 0.0
    %2162 = vmatprep.subr.mxu0 0.0
    %2163 = vmatpush2.msra.mxu0 0.0
    %2164 = vmatprep.subr.mxu0 0.0
    %2165 = vmatpush2.msra.mxu0 0.0
    %2166 = vmatprep.subr.mxu0 0.0
    %2167 = vmatpush2.msra.mxu0 0.0
    %2168 = vmatprep.subr.mxu0 0.0
    %2169 = vmatpush2.msra.mxu0 0.0
    %2170 = vmatprep.subr.mxu0 0.0
    %2171 = vmatpush2.msra.mxu0 0.0
    %2172 = vmatprep.subr.mxu0 0.0
    %2173 = vmatpush2.msra.mxu0 0.0
    %2174 = vmatprep.subr.mxu0 0.0
    %2175 = vmatpush2.msra.mxu0 0.0
    %2176 = vmatprep.subr.mxu0 0.0
    %2177 = vmatpush2.msra.mxu0 0.0
    %2178 = vmatprep.subr.mxu0 0.0
    %2179 = vmatpush2.msra.mxu0 0.0
    %2180 = vmatprep.subr.mxu0 0.0
    %2181 = vmatpush2.msra.mxu0 0.0
    %2182 = vmatprep.subr.mxu0 0.0
    %2183 = vmatpush2.msra.mxu0 0.0
    %2184 = vmatprep.subr.mxu0 0.0
    %2185 = vmatpush2.msra.mxu0 0.0
    %2186 = vmatprep.subr.mxu0 0.0
    %2187 = vmatpush2.msra.mxu0 0.0
    %2188 = vmatprep.subr.mxu0 0.0
    %2189 = vmatpush2.msra.mxu0 0.0
    %2190 = vmatprep.mubr.f32.mxu0 0.0
    %2191 = vmatmul.mubr.f32.gmra.mxu0 %v2122
    %v2192 = vpop.f32.mrf.mxu0
    %v2193 = vadd.f32 0.0, %v2192
    %v2194 = vpop.f32.mrf.mxu0
    %2195 = vdwg.mxu0
    %v2196 = vpack.c.bf16 %v2193, %v2193
    %v2197 = vld [vmem:[%s65] sm:$0xf]
    %v2198 = vld [vmem:[%s65 + $0x4] sm:$0xf]
    %v2199 = vld [vmem:[%s65 + $0x8] sm:$0xf]
    %v2200 = vld [vmem:[%s65 + $0xc] sm:$0xf]
    %v2201 = vld [vmem:[#allocation4] sm:$0x1]
    %v2203 = vlaneseq
    %v2204 = vshrl.u32 %v2203, 7
    %v2205 = vsub.s32 0, %v2204
    %v2206 = vrot.slane %v2201, %v2205
    %v2212 = vunpack.c.l.b16 %v2197
    %v2213 = vunpack.c.l.b16 %v2198
    %v2214 = vunpack.c.l.b16 %v2199
    %v2215 = vunpack.c.l.b16 %v2200
    %v2216 = vpack.c.b16 %v2213, %v2212
    %v2217 = vpack.c.b16 %v2215, %v2214
    %v2221 = vsel %vm544, %v2196, 0
    %2223 = vmatprep.subr.bf16.mxu0 0
    %2224 = vmatpush1.bf16.msra.mxu0 0
    %2225 = vmatprep.subr.bf16.mxu0 0
    %2226 = vmatpush1.bf16.msra.mxu0 0
    %2227 = vmatprep.subr.bf16.mxu0 0
    %2228 = vmatpush1.bf16.msra.mxu0 0
    %2229 = vmatprep.subr.bf16.mxu0 0
    %2230 = vmatpush1.bf16.msra.mxu0 0
    %2231 = vmatprep.subr.bf16.mxu0 0
    %2232 = vmatpush1.bf16.msra.mxu0 0
    %2233 = vmatprep.subr.bf16.mxu0 0
    %2234 = vmatpush1.bf16.msra.mxu0 0
    %2235 = vmatprep.subr.bf16.mxu0 0
    %2236 = vmatpush1.bf16.msra.mxu0 %v2217
    %2237 = vmatprep.subr.bf16.mxu0 0
    %2238 = vmatpush1.bf16.msra.mxu0 %v2216
    %2239 = vmatprep.subr.bf16.mxu0 0
    %2240 = vmatpush2.bf16.msra.mxu0 0
    %2241 = vmatprep.subr.bf16.mxu0 0
    %2242 = vmatpush2.bf16.msra.mxu0 0
    %2243 = vmatprep.subr.bf16.mxu0 0
    %2244 = vmatpush2.bf16.msra.mxu0 0
    %2245 = vmatprep.subr.bf16.mxu0 0
    %2246 = vmatpush2.bf16.msra.mxu0 0
    %2247 = vmatprep.subr.bf16.mxu0 0
    %2248 = vmatpush2.bf16.msra.mxu0 0
    %2249 = vmatprep.subr.bf16.mxu0 0
    %2250 = vmatpush2.bf16.msra.mxu0 0
    %2251 = vmatprep.subr.bf16.mxu0 0
    %2252 = vmatpush2.bf16.msra.mxu0 0
    %2253 = vmatprep.subr.bf16.mxu0 0
    %2254 = vmatpush2.bf16.msra.mxu0 0
    %2255 = vmatprep.mubr.bf16.mxu0 0
    %2256 = vmatmul.mubr.bf16.gmra.mxu0 %v2221
    %v2257 = vpop.f32.mrf.mxu0
    %v2258 = vadd.f32 %v2206, %v2257
    %v2259 = vpop.f32.mrf.mxu0
    %v2260 = vpop.f32.mrf.mxu0
    %v2261 = vpop.f32.mrf.mxu0
    %2262 = vdwg.mxu0
    %v2263 = vxor.u32 %v2258, 2147483648
    %v2264 = vmul.f32 %v2263, 1.442695
    %v2265 = vpow.pop %v2264
    %v2266 = vadd.f32 %v2265, 1.0
    %v2267 = vrcp.pop %v2266
    %v2268 = vmul.f32 1.0, %v2267
    %v2269 = vmul.f32 %v2258, %v2268
    %v2270 = vpack.c.bf16 %v2269, %v2269
    %v2271 = vld [vmem:[%s67] sm:$0xf]
    %v2272 = vld [vmem:[%s67 + $0x4] sm:$0xf]
    %v2273 = vld [vmem:[#allocation6] sm:$0x1]
    %v2275 = vlaneseq
    %v2276 = vshrl.u32 %v2275, 7
    %v2277 = vsub.s32 0, %v2276
    %v2278 = vrot.slane %v2273, %v2277
    %v2282 = vunpack.c.l.b16 %v2271
    %v2283 = vunpack.c.l.b16 %v2272
    %v2284 = vpack.c.b16 %v2283, %v2282
    %v2287 = vsel %vm461, %v2270, 0
    %2289 = vmatprep.subr.bf16.mxu0 0
    %2290 = vmatpush1.bf16.msra.mxu0 0
    %2291 = vmatprep.subr.bf16.mxu0 0
    %2292 = vmatpush1.bf16.msra.mxu0 0
    %2293 = vmatprep.subr.bf16.mxu0 0
    %2294 = vmatpush1.bf16.msra.mxu0 0
    %2295 = vmatprep.subr.bf16.mxu0 0
    %2296 = vmatpush1.bf16.msra.mxu0 0
    %2297 = vmatprep.subr.bf16.mxu0 0
    %2298 = vmatpush1.bf16.msra.mxu0 0
    %2299 = vmatprep.subr.bf16.mxu0 0
    %2300 = vmatpush1.bf16.msra.mxu0 0
    %2301 = vmatprep.subr.bf16.mxu0 0
    %2302 = vmatpush1.bf16.msra.mxu0 0
    %2303 = vmatprep.subr.bf16.mxu0 0
    %2304 = vmatpush1.bf16.msra.mxu0 %v2284
    %2305 = vmatprep.subr.bf16.mxu0 0
    %2306 = vmatpush2.bf16.msra.mxu0 0
    %2307 = vmatprep.subr.bf16.mxu0 0
    %2308 = vmatpush2.bf16.msra.mxu0 0
    %2309 = vmatprep.subr.bf16.mxu0 0
    %2310 = vmatpush2.bf16.msra.mxu0 0
    %2311 = vmatprep.subr.bf16.mxu0 0
    %2312 = vmatpush2.bf16.msra.mxu0 0
    %2313 = vmatprep.subr.bf16.mxu0 0
    %2314 = vmatpush2.bf16.msra.mxu0 0
    %2315 = vmatprep.subr.bf16.mxu0 0
    %2316 = vmatpush2.bf16.msra.mxu0 0
    %2317 = vmatprep.subr.bf16.mxu0 0
    %2318 = vmatpush2.bf16.msra.mxu0 0
    %2319 = vmatprep.subr.bf16.mxu0 0
    %2320 = vmatpush2.bf16.msra.mxu0 0
    %2321 = vmatprep.mubr.bf16.mxu0 0
    %2322 = vmatmul.mubr.bf16.gmra.mxu0 %v2287
    %v2323 = vpop.f32.mrf.mxu0
    %v2324 = vadd.f32 %v2278, %v2323
    %v2325 = vpop.f32.mrf.mxu0
    %v2326 = vpop.f32.mrf.mxu0
    %v2327 = vpop.f32.mrf.mxu0
    %2328 = vdwg.mxu0
    %v2329 = vxor.u32 %v2324, 2147483648
    %v2330 = vmul.f32 %v2329, 1.442695
    %v2331 = vpow.pop %v2330
    %v2332 = vadd.f32 %v2331, 1.0
    %v2333 = vrcp.pop %v2332
    %v2334 = vmul.f32 1.0, %v2333
    %v2335 = vmul.f32 %v2324, %v2334
    %v2336 = vpack.c.bf16 %v2070, %v2070
    %v2337 = vld [vmem:[%s55] sm:$0xf]
    %v2338 = vld [vmem:[%s55 + $0x4] sm:$0xf]
    %v2339 = vpack.c.bf16 %v2335, %v2335
    %v2340 = vld [vmem:[%s57] sm:$0xf]
    %v2341 = vld [vmem:[%s57 + $0x4] sm:$0xf]
    %v2344 = vunpack.c.l.b16 %v2340
    %v2345 = vunpack.c.l.b16 %v2341
    %v2346 = vpack.c.b16 %v2345, %v2344
    %v2349 = vsel %vm461, %v2339, 0
    %2351 = vmatprep.subr.bf16.mxu0 0
    %2352 = vmatpush1.bf16.msra.mxu0 0
    %2353 = vmatprep.subr.bf16.mxu0 0
    %2354 = vmatpush1.bf16.msra.mxu0 0
    %2355 = vmatprep.subr.bf16.mxu0 0
    %2356 = vmatpush1.bf16.msra.mxu0 0
    %2357 = vmatprep.subr.bf16.mxu0 0
    %2358 = vmatpush1.bf16.msra.mxu0 0
    %2359 = vmatprep.subr.bf16.mxu0 0
    %2360 = vmatpush1.bf16.msra.mxu0 0
    %2361 = vmatprep.subr.bf16.mxu0 0
    %2362 = vmatpush1.bf16.msra.mxu0 0
    %2363 = vmatprep.subr.bf16.mxu0 0
    %2364 = vmatpush1.bf16.msra.mxu0 0
    %2365 = vmatprep.subr.bf16.mxu0 0
    %2366 = vmatpush1.bf16.msra.mxu0 %v2346
    %2367 = vmatprep.subr.bf16.mxu0 0
    %2368 = vmatpush2.bf16.msra.mxu0 0
    %2369 = vmatprep.subr.bf16.mxu0 0
    %2370 = vmatpush2.bf16.msra.mxu0 0
    %2371 = vmatprep.subr.bf16.mxu0 0
    %2372 = vmatpush2.bf16.msra.mxu0 0
    %2373 = vmatprep.subr.bf16.mxu0 0
    %2374 = vmatpush2.bf16.msra.mxu0 0
    %2375 = vmatprep.subr.bf16.mxu0 0
    %2376 = vmatpush2.bf16.msra.mxu0 0
    %2377 = vmatprep.subr.bf16.mxu0 0
    %2378 = vmatpush2.bf16.msra.mxu0 0
    %2379 = vmatprep.subr.bf16.mxu0 0
    %2380 = vmatpush2.bf16.msra.mxu0 0
    %2381 = vmatprep.subr.bf16.mxu0 0
    %2382 = vmatpush2.bf16.msra.mxu0 0
    %2383 = vmatprep.mubr.bf16.mxu0 0
    %2384 = vmatmul.mubr.bf16.gmra.mxu0 %v2349
    %v2385 = vpop.f32.mrf.mxu0
    %v2386 = vadd.f32 0.0, %v2385
    %v2387 = vpop.f32.mrf.mxu0
    %v2388 = vpop.f32.mrf.mxu0
    %v2389 = vpop.f32.mrf.mxu0
    %2390 = vdwg.mxu0
    %v2393 = vunpack.c.l.b16 %v2337
    %v2394 = vunpack.c.l.b16 %v2338
    %v2395 = vpack.c.b16 %v2394, %v2393
    %v2398 = vsel %vm461, %v2336, 0
    %2400 = vmatprep.subr.bf16.mxu0 0
    %2401 = vmatpush1.bf16.msra.mxu0 0
    %2402 = vmatprep.subr.bf16.mxu0 0
    %2403 = vmatpush1.bf16.msra.mxu0 0
    %2404 = vmatprep.subr.bf16.mxu0 0
    %2405 = vmatpush1.bf16.msra.mxu0 0
    %2406 = vmatprep.subr.bf16.mxu0 0
    %2407 = vmatpush1.bf16.msra.mxu0 0
    %2408 = vmatprep.subr.bf16.mxu0 0
    %2409 = vmatpush1.bf16.msra.mxu0 0
    %2410 = vmatprep.subr.bf16.mxu0 0
    %2411 = vmatpush1.bf16.msra.mxu0 0
    %2412 = vmatprep.subr.bf16.mxu0 0
    %2413 = vmatpush1.bf16.msra.mxu0 0
    %2414 = vmatprep.subr.bf16.mxu0 0
    %2415 = vmatpush1.bf16.msra.mxu0 %v2395
    %2416 = vmatprep.subr.bf16.mxu0 0
    %2417 = vmatpush2.bf16.msra.mxu0 0
    %2418 = vmatprep.subr.bf16.mxu0 0
    %2419 = vmatpush2.bf16.msra.mxu0 0
    %2420 = vmatprep.subr.bf16.mxu0 0
    %2421 = vmatpush2.bf16.msra.mxu0 0
    %2422 = vmatprep.subr.bf16.mxu0 0
    %2423 = vmatpush2.bf16.msra.mxu0 0
    %2424 = vmatprep.subr.bf16.mxu0 0
    %2425 = vmatpush2.bf16.msra.mxu0 0
    %2426 = vmatprep.subr.bf16.mxu0 0
    %2427 = vmatpush2.bf16.msra.mxu0 0
    %2428 = vmatprep.subr.bf16.mxu0 0
    %2429 = vmatpush2.bf16.msra.mxu0 0
    %2430 = vmatprep.subr.bf16.mxu0 0
    %2431 = vmatpush2.bf16.msra.mxu0 0
    %2432 = vmatprep.mubr.bf16.mxu0 0
    %2433 = vmatmul.mubr.bf16.gmra.mxu0 %v2398
    %v2434 = vpop.f32.mrf.mxu0
    %v2435 = vadd.f32 %v2386, %v2434
    %v2436 = vpop.f32.mrf.mxu0
    %v2437 = vpop.f32.mrf.mxu0
    %v2438 = vpop.f32.mrf.mxu0
    %2439 = vdwg.mxu0
    %v2440 = vld [vmem:[%s51] sm:$0x1]
    %v2442 = vlaneseq
    %v2443 = vshrl.u32 %v2442, 7
    %v2444 = vsub.s32 0, %v2443
    %v2445 = vrot.slane %v2440, %v2444
    %v2447 = vadd.f32 %v2435, %v2445
    %v2448 = vxor.u32 %v2447, 2147483648
    %v2449 = vmul.f32 %v2448, 1.442695
    %v2450 = vpow.pop %v2449
    %v2451 = vadd.f32 %v2450, 1.0
    %v2452 = vrcp.pop %v2451
    %v2453 = vmul.f32 1.0, %v2452
    %v2454 = vmul.f32 %v2447, %v2453
    %v2455 = vpack.c.bf16 %v2454, %v2454
    %v2456 = vld [vmem:[%s59] sm:$0xf]
    %v2457 = vld [vmem:[%s59 + $0x4] sm:$0xf]
    %v2458 = vld [vmem:[#allocation2] sm:$0x1]
    %v2460 = vlaneseq
    %v2461 = vshrl.u32 %v2460, 7
    %v2462 = vsub.s32 0, %v2461
    %v2463 = vrot.slane %v2458, %v2462
    %v2467 = vunpack.c.l.b16 %v2456
    %v2468 = vunpack.c.l.b16 %v2457
    %v2469 = vpack.c.b16 %v2468, %v2467
    %v2472 = vsel %vm461, %v2455, 0
    %2474 = vmatprep.subr.bf16.mxu0 0
    %2475 = vmatpush1.bf16.msra.mxu0 0
    %2476 = vmatprep.subr.bf16.mxu0 0
    %2477 = vmatpush1.bf16.msra.mxu0 0
    %2478 = vmatprep.subr.bf16.mxu0 0
    %2479 = vmatpush1.bf16.msra.mxu0 0
    %2480 = vmatprep.subr.bf16.mxu0 0
    %2481 = vmatpush1.bf16.msra.mxu0 0
    %2482 = vmatprep.subr.bf16.mxu0 0
    %2483 = vmatpush1.bf16.msra.mxu0 0
    %2484 = vmatprep.subr.bf16.mxu0 0
    %2485 = vmatpush1.bf16.msra.mxu0 0
    %2486 = vmatprep.subr.bf16.mxu0 0
    %2487 = vmatpush1.bf16.msra.mxu0 0
    %2488 = vmatprep.subr.bf16.mxu0 0
    %2489 = vmatpush1.bf16.msra.mxu0 %v2469
    %2490 = vmatprep.subr.bf16.mxu0 0
    %2491 = vmatpush2.bf16.msra.mxu0 0
    %2492 = vmatprep.subr.bf16.mxu0 0
    %2493 = vmatpush2.bf16.msra.mxu0 0
    %2494 = vmatprep.subr.bf16.mxu0 0
    %2495 = vmatpush2.bf16.msra.mxu0 0
    %2496 = vmatprep.subr.bf16.mxu0 0
    %2497 = vmatpush2.bf16.msra.mxu0 0
    %2498 = vmatprep.subr.bf16.mxu0 0
    %2499 = vmatpush2.bf16.msra.mxu0 0
    %2500 = vmatprep.subr.bf16.mxu0 0
    %2501 = vmatpush2.bf16.msra.mxu0 0
    %2502 = vmatprep.subr.bf16.mxu0 0
    %2503 = vmatpush2.bf16.msra.mxu0 0
    %2504 = vmatprep.subr.bf16.mxu0 0
    %2505 = vmatpush2.bf16.msra.mxu0 0
    %2506 = vmatprep.mubr.bf16.mxu0 0
    %2507 = vmatmul.mubr.bf16.gmra.mxu0 %v2472
    %v2508 = vpop.f32.mrf.mxu0
    %v2509 = vadd.f32 %v2463, %v2508
    %v2510 = vpop.f32.mrf.mxu0
    %v2511 = vpop.f32.mrf.mxu0
    %v2512 = vpop.f32.mrf.mxu0
    %2513 = vdwg.mxu0
    %v2514 = vxor.u32 %v2509, 2147483648
    %v2515 = vmul.f32 %v2514, 1.442695
    %v2516 = vpow.pop %v2515
    %v2517 = vadd.f32 %v2516, 1.0
    %v2518 = vrcp.pop %v2517
    %v2519 = vmul.f32 1.0, %v2518
    %v2520 = vmul.f32 %v2509, %v2519
    %v2521 = vld [vmem:[%s83] sm:$0xf]
    %v2522 = vld [vmem:[%s83 + $0x4] sm:$0xf]
    %v2523 = vld [vmem:[%s83 + $0x8] sm:$0xf]
    %v2524 = vld [vmem:[%s83 + $0xc] sm:$0xf]
    %v2525 = vld [vmem:[#allocation10] sm:$0x1]
    %v2527 = vlaneseq
    %v2528 = vshrl.u32 %v2527, 7
    %v2529 = vsub.s32 0, %v2528
    %v2530 = vrot.slane %v2525, %v2529
    %v2536 = vunpack.c.l.b16 %v2521
    %v2537 = vunpack.c.l.b16 %v2522
    %v2538 = vunpack.c.l.b16 %v2523
    %v2539 = vunpack.c.l.b16 %v2524
    %v2540 = vpack.c.b16 %v2537, %v2536
    %v2541 = vpack.c.b16 %v2539, %v2538
    %2544 = vmatprep.subr.bf16.mxu0 0
    %2545 = vmatpush1.bf16.msra.mxu0 0
    %2546 = vmatprep.subr.bf16.mxu0 0
    %2547 = vmatpush1.bf16.msra.mxu0 0
    %2548 = vmatprep.subr.bf16.mxu0 0
    %2549 = vmatpush1.bf16.msra.mxu0 0
    %2550 = vmatprep.subr.bf16.mxu0 0
    %2551 = vmatpush1.bf16.msra.mxu0 0
    %2552 = vmatprep.subr.bf16.mxu0 0
    %2553 = vmatpush1.bf16.msra.mxu0 0
    %2554 = vmatprep.subr.bf16.mxu0 0
    %2555 = vmatpush1.bf16.msra.mxu0 0
    %2556 = vmatprep.subr.bf16.mxu0 0
    %2557 = vmatpush1.bf16.msra.mxu0 %v2541
    %2558 = vmatprep.subr.bf16.mxu0 0
    %2559 = vmatpush1.bf16.msra.mxu0 %v2540
    %2560 = vmatprep.subr.bf16.mxu0 0
    %2561 = vmatpush2.bf16.msra.mxu0 0
    %2562 = vmatprep.subr.bf16.mxu0 0
    %2563 = vmatpush2.bf16.msra.mxu0 0
    %2564 = vmatprep.subr.bf16.mxu0 0
    %2565 = vmatpush2.bf16.msra.mxu0 0
    %2566 = vmatprep.subr.bf16.mxu0 0
    %2567 = vmatpush2.bf16.msra.mxu0 0
    %2568 = vmatprep.subr.bf16.mxu0 0
    %2569 = vmatpush2.bf16.msra.mxu0 0
    %2570 = vmatprep.subr.bf16.mxu0 0
    %2571 = vmatpush2.bf16.msra.mxu0 0
    %2572 = vmatprep.subr.bf16.mxu0 0
    %2573 = vmatpush2.bf16.msra.mxu0 0
    %2574 = vmatprep.subr.bf16.mxu0 0
    %2575 = vmatpush2.bf16.msra.mxu0 0
    %2576 = vmatprep.mubr.bf16.mxu0 0
    %2577 = vmatmul.mubr.bf16.gmra.mxu0 %v2221
    %v2578 = vpop.f32.mrf.mxu0
    %v2579 = vadd.f32 %v2530, %v2578
    %v2580 = vpop.f32.mrf.mxu0
    %v2581 = vpop.f32.mrf.mxu0
    %v2582 = vpop.f32.mrf.mxu0
    %2583 = vdwg.mxu0
    %v2584 = vxor.u32 %v2579, 2147483648
    %v2585 = vmul.f32 %v2584, 1.442695
    %v2586 = vpow.pop %v2585
    %v2587 = vadd.f32 %v2586, 1.0
    %v2588 = vrcp.pop %v2587
    %v2589 = vmul.f32 1.0, %v2588
    %v2590 = vmul.f32 %v2579, %v2589
    %v2591 = vpack.c.bf16 %v2590, %v2590
    %v2592 = vld [vmem:[%s85] sm:$0xf]
    %v2593 = vld [vmem:[%s85 + $0x4] sm:$0x3]
    %v2594 = vld [vmem:[#allocation12] sm:$0x1]
    %v2596 = vlaneseq
    %v2597 = vshrl.u32 %v2596, 7
    %v2598 = vsub.s32 0, %v2597
    %v2599 = vrot.slane %v2594, %v2598
    %v2603 = vunpack.c.l.b16 %v2592
    %v2604 = vunpack.c.l.b16 %v2593
    %v2605 = vpack.c.b16 %v2604, %v2603
    %vm2606 = vcmask 97280
    %v2608 = vsel %vm2606, %v2591, 0
    %vm2610 = vcmask 1045504
    %v2612 = vsel %vm2610, %v2605, 0
    %2614 = vmatprep.subr.bf16.mxu0 0
    %2615 = vmatpush1.bf16.msra.mxu0 0
    %2616 = vmatprep.subr.bf16.mxu0 0
    %2617 = vmatpush1.bf16.msra.mxu0 0
    %2618 = vmatprep.subr.bf16.mxu0 0
    %2619 = vmatpush1.bf16.msra.mxu0 0
    %2620 = vmatprep.subr.bf16.mxu0 0
    %2621 = vmatpush1.bf16.msra.mxu0 0
    %2622 = vmatprep.subr.bf16.mxu0 0
    %2623 = vmatpush1.bf16.msra.mxu0 0
    %2624 = vmatprep.subr.bf16.mxu0 0
    %2625 = vmatpush1.bf16.msra.mxu0 0
    %2626 = vmatprep.subr.bf16.mxu0 0
    %2627 = vmatpush1.bf16.msra.mxu0 0
    %2628 = vmatprep.subr.bf16.mxu0 0
    %2629 = vmatpush1.bf16.msra.mxu0 %v2612
    %2630 = vmatprep.subr.bf16.mxu0 0
    %2631 = vmatpush2.bf16.msra.mxu0 0
    %2632 = vmatprep.subr.bf16.mxu0 0
    %2633 = vmatpush2.bf16.msra.mxu0 0
    %2634 = vmatprep.subr.bf16.mxu0 0
    %2635 = vmatpush2.bf16.msra.mxu0 0
    %2636 = vmatprep.subr.bf16.mxu0 0
    %2637 = vmatpush2.bf16.msra.mxu0 0
    %2638 = vmatprep.subr.bf16.mxu0 0
    %2639 = vmatpush2.bf16.msra.mxu0 0
    %2640 = vmatprep.subr.bf16.mxu0 0
    %2641 = vmatpush2.bf16.msra.mxu0 0
    %2642 = vmatprep.subr.bf16.mxu0 0
    %2643 = vmatpush2.bf16.msra.mxu0 0
    %2644 = vmatprep.subr.bf16.mxu0 0
    %2645 = vmatpush2.bf16.msra.mxu0 0
    %2646 = vmatprep.mubr.bf16.mxu0 0
    %2647 = vmatmul.mubr.bf16.gmra.mxu0 %v2608
    %v2648 = vpop.f32.mrf.mxu0
    %v2649 = vadd.f32 %v2599, %v2648
    %v2650 = vpop.f32.mrf.mxu0
    %v2651 = vpop.f32.mrf.mxu0
    %v2652 = vpop.f32.mrf.mxu0
    %2653 = vdwg.mxu0
    %v2654 = vxor.u32 %v2649, 2147483648
    %v2655 = vmul.f32 %v2654, 1.442695
    %v2656 = vpow.pop %v2655
    %v2657 = vadd.f32 %v2656, 1.0
    %v2658 = vrcp.pop %v2657
    %v2659 = vmul.f32 1.0, %v2658
    %v2660 = vmul.f32 %v2649, %v2659
    %2662 = vset.pattern.permute.xlu0 0
    %2663 = vperm.xlu0 %2662, %v2660
    %v2664 = vpop.permute.xlu0 %2663
    %v2666 = vmul.f32 %v2664, %v1161
    %2667 = vset.pattern.permute.xlu0 1
    %2668 = vperm.xlu0 %2667, %v2660
    %v2669 = vpop.permute.xlu0 %2668
    %v2671 = vmul.f32 %v2669, %v1181
    %v2672 = vadd.f32 %v2666, %v2671
    %2673 = vset.pattern.permute.xlu0 2
    %2674 = vperm.xlu0 %2673, %v2660
    %v2675 = vpop.permute.xlu0 %2674
    %v2677 = vmul.f32 %v2675, %v1222
    %v2678 = vadd.f32 %v2672, %v2677
    %2679 = vset.pattern.permute.xlu0 3
    %2680 = vperm.xlu0 %2679, %v2660
    %v2681 = vpop.permute.xlu0 %2680
    %v2683 = vmul.f32 %v2681, %v1161
    %2684 = vset.pattern.permute.xlu0 4
    %2685 = vperm.xlu0 %2684, %v2660
    %v2686 = vpop.permute.xlu0 %2685
    %v2688 = vmul.f32 %v2686, %v1181
    %v2689 = vadd.f32 %v2683, %v2688
    %2690 = vset.pattern.permute.xlu0 5
    %2691 = vperm.xlu0 %2690, %v2660
    %v2692 = vpop.permute.xlu0 %2691
    %v2694 = vmul.f32 %v2692, %v1222
    %v2695 = vadd.f32 %v2689, %v2694
    %2696 = vset.pattern.permute.xlu0 6
    %2697 = vperm.xlu0 %2696, %v2660
    %v2698 = vpop.permute.xlu0 %2697
    %v2700 = vmul.f32 %v2698, %v1161
    %2701 = vset.pattern.permute.xlu0 7
    %2702 = vperm.xlu0 %2701, %v2660
    %v2703 = vpop.permute.xlu0 %2702
    %v2705 = vmul.f32 %v2703, %v1181
    %v2706 = vadd.f32 %v2700, %v2705
    %2707 = vset.pattern.permute.xlu0 8
    %2708 = vperm.xlu0 %2707, %v2660
    %v2709 = vpop.permute.xlu0 %2708
    %v2711 = vmul.f32 %v2709, %v1222
    %v2712 = vadd.f32 %v2706, %v2711
    %2713 = vset.pattern.permute.xlu0 9
    %2714 = vperm.xlu0 %2713, %v2660
    %v2715 = vpop.permute.xlu0 %2714
    %v2717 = vmul.f32 %v2715, %v1161
    %2718 = vset.pattern.permute.xlu0 10
    %2719 = vperm.xlu0 %2718, %v2660
    %v2720 = vpop.permute.xlu0 %2719
    %v2722 = vmul.f32 %v2720, %v1181
    %v2723 = vadd.f32 %v2717, %v2722
    %2724 = vset.pattern.permute.xlu0 11
    %2725 = vperm.xlu0 %2724, %v2660
    %v2726 = vpop.permute.xlu0 %2725
    %v2728 = vmul.f32 %v2726, %v1222
    %v2729 = vadd.f32 %v2723, %v2728
    %2731 = vrot.lane.b32.xlu0 %v2695, 3
    %v2732 = vpop.permute.xlu0 %2731
    %2735 = vrot.lane.b32.xlu0 %v2712, 6
    %v2736 = vpop.permute.xlu0 %2735
    %2739 = vrot.lane.b32.xlu0 %v2729, 9
    %v2740 = vpop.permute.xlu0 %2739
    %v2742 = vsel %vm748, %v2678, %v2732
    %v2743 = vsel %vm691, %v2742, %v2736
    %vm2744 = vcmask 72704
    %v2745 = vsel %vm2744, %v2743, %v2740
    %v2746 = vpack.c.bf16 %v2745, %v2745
    %v2747 = vld [vmem:[%s73] sm:$0xf]
    %v2748 = vld [vmem:[%s73 + $0x4] sm:$0x3]
    %v2749 = vpack.c.bf16 %v2114, %v2114
    %v2750 = vld [vmem:[%s75] sm:$0xf]
    %v2751 = vld [vmem:[%s75 + $0x4] sm:$0x3]
    %v2754 = vunpack.c.l.b16 %v2750
    %v2755 = vunpack.c.l.b16 %v2751
    %v2756 = vpack.c.b16 %v2755, %v2754
    %v2758 = vsel %vm2606, %v2749, 0
    %v2761 = vsel %vm2610, %v2756, 0
    %2763 = vmatprep.subr.bf16.mxu0 0
    %2764 = vmatpush1.bf16.msra.mxu0 0
    %2765 = vmatprep.subr.bf16.mxu0 0
    %2766 = vmatpush1.bf16.msra.mxu0 0
    %2767 = vmatprep.subr.bf16.mxu0 0
    %2768 = vmatpush1.bf16.msra.mxu0 0
    %2769 = vmatprep.subr.bf16.mxu0 0
    %2770 = vmatpush1.bf16.msra.mxu0 0
    %2771 = vmatprep.subr.bf16.mxu0 0
    %2772 = vmatpush1.bf16.msra.mxu0 0
    %2773 = vmatprep.subr.bf16.mxu0 0
    %2774 = vmatpush1.bf16.msra.mxu0 0
    %2775 = vmatprep.subr.bf16.mxu0 0
    %2776 = vmatpush1.bf16.msra.mxu0 0
    %2777 = vmatprep.subr.bf16.mxu0 0
    %2778 = vmatpush1.bf16.msra.mxu0 %v2761
    %2779 = vmatprep.subr.bf16.mxu0 0
    %2780 = vmatpush2.bf16.msra.mxu0 0
    %2781 = vmatprep.subr.bf16.mxu0 0
    %2782 = vmatpush2.bf16.msra.mxu0 0
    %2783 = vmatprep.subr.bf16.mxu0 0
    %2784 = vmatpush2.bf16.msra.mxu0 0
    %2785 = vmatprep.subr.bf16.mxu0 0
    %2786 = vmatpush2.bf16.msra.mxu0 0
    %2787 = vmatprep.subr.bf16.mxu0 0
    %2788 = vmatpush2.bf16.msra.mxu0 0
    %2789 = vmatprep.subr.bf16.mxu0 0
    %2790 = vmatpush2.bf16.msra.mxu0 0
    %2791 = vmatprep.subr.bf16.mxu0 0
    %2792 = vmatpush2.bf16.msra.mxu0 0
    %2793 = vmatprep.subr.bf16.mxu0 0
    %2794 = vmatpush2.bf16.msra.mxu0 0
    %2795 = vmatprep.mubr.bf16.mxu0 0
    %2796 = vmatmul.mubr.bf16.gmra.mxu0 %v2758
    %v2797 = vpop.f32.mrf.mxu0
    %v2798 = vadd.f32 0.0, %v2797
    %v2799 = vpop.f32.mrf.mxu0
    %v2800 = vpop.f32.mrf.mxu0
    %v2801 = vpop.f32.mrf.mxu0
    %2802 = vdwg.mxu0
    %v2805 = vunpack.c.l.b16 %v2747
    %v2806 = vunpack.c.l.b16 %v2748
    %v2807 = vpack.c.b16 %v2806, %v2805
    %v2809 = vsel %vm2606, %v2746, 0
    %v2812 = vsel %vm2610, %v2807, 0
    %2814 = vmatprep.subr.bf16.mxu0 0
    %2815 = vmatpush1.bf16.msra.mxu0 0
    %2816 = vmatprep.subr.bf16.mxu0 0
    %2817 = vmatpush1.bf16.msra.mxu0 0
    %2818 = vmatprep.subr.bf16.mxu0 0
    %2819 = vmatpush1.bf16.msra.mxu0 0
    %2820 = vmatprep.subr.bf16.mxu0 0
    %2821 = vmatpush1.bf16.msra.mxu0 0
    %2822 = vmatprep.subr.bf16.mxu0 0
    %2823 = vmatpush1.bf16.msra.mxu0 0
    %2824 = vmatprep.subr.bf16.mxu0 0
    %2825 = vmatpush1.bf16.msra.mxu0 0
    %2826 = vmatprep.subr.bf16.mxu0 0
    %2827 = vmatpush1.bf16.msra.mxu0 0
    %2828 = vmatprep.subr.bf16.mxu0 0
    %2829 = vmatpush1.bf16.msra.mxu0 %v2812
    %2830 = vmatprep.subr.bf16.mxu0 0
    %2831 = vmatpush2.bf16.msra.mxu0 0
    %2832 = vmatprep.subr.bf16.mxu0 0
    %2833 = vmatpush2.bf16.msra.mxu0 0
    %2834 = vmatprep.subr.bf16.mxu0 0
    %2835 = vmatpush2.bf16.msra.mxu0 0
    %2836 = vmatprep.subr.bf16.mxu0 0
    %2837 = vmatpush2.bf16.msra.mxu0 0
    %2838 = vmatprep.subr.bf16.mxu0 0
    %2839 = vmatpush2.bf16.msra.mxu0 0
    %2840 = vmatprep.subr.bf16.mxu0 0
    %2841 = vmatpush2.bf16.msra.mxu0 0
    %2842 = vmatprep.subr.bf16.mxu0 0
    %2843 = vmatpush2.bf16.msra.mxu0 0
    %2844 = vmatprep.subr.bf16.mxu0 0
    %2845 = vmatpush2.bf16.msra.mxu0 0
    %2846 = vmatprep.mubr.bf16.mxu0 0
    %2847 = vmatmul.mubr.bf16.gmra.mxu0 %v2809
    %v2848 = vpop.f32.mrf.mxu0
    %v2849 = vadd.f32 %v2798, %v2848
    %v2850 = vpop.f32.mrf.mxu0
    %v2851 = vpop.f32.mrf.mxu0
    %v2852 = vpop.f32.mrf.mxu0
    %2853 = vdwg.mxu0
    %v2854 = vld [vmem:[#allocation7] sm:$0x1]
    %v2856 = vlaneseq
    %v2857 = vshrl.u32 %v2856, 7
    %v2858 = vsub.s32 0, %v2857
    %v2859 = vrot.slane %v2854, %v2858
    %v2861 = vadd.f32 %v2849, %v2859
    %v2862 = vxor.u32 %v2861, 2147483648
    %v2863 = vmul.f32 %v2862, 1.442695
    %v2864 = vpow.pop %v2863
    %v2865 = vadd.f32 %v2864, 1.0
    %v2866 = vrcp.pop %v2865
    %v2867 = vmul.f32 1.0, %v2866
    %v2868 = vmul.f32 %v2861, %v2867
    %v2869 = vpack.c.bf16 %v2868, %v2868
    %v2870 = vld [vmem:[%s77] sm:$0xf]
    %v2871 = vld [vmem:[%s77 + $0x4] sm:$0x3]
    %v2872 = vld [vmem:[#allocation9] sm:$0x1]
    %v2874 = vlaneseq
    %v2875 = vshrl.u32 %v2874, 7
    %v2876 = vsub.s32 0, %v2875
    %v2877 = vrot.slane %v2872, %v2876
    %v2881 = vunpack.c.l.b16 %v2870
    %v2882 = vunpack.c.l.b16 %v2871
    %v2883 = vpack.c.b16 %v2882, %v2881
    %v2885 = vsel %vm2606, %v2869, 0
    %v2888 = vsel %vm2610, %v2883, 0
    %2890 = vmatprep.subr.bf16.mxu0 0
    %2891 = vmatpush1.bf16.msra.mxu0 0
    %2892 = vmatprep.subr.bf16.mxu0 0
    %2893 = vmatpush1.bf16.msra.mxu0 0
    %2894 = vmatprep.subr.bf16.mxu0 0
    %2895 = vmatpush1.bf16.msra.mxu0 0
    %2896 = vmatprep.subr.bf16.mxu0 0
    %2897 = vmatpush1.bf16.msra.mxu0 0
    %2898 = vmatprep.subr.bf16.mxu0 0
    %2899 = vmatpush1.bf16.msra.mxu0 0
    %2900 = vmatprep.subr.bf16.mxu0 0
    %2901 = vmatpush1.bf16.msra.mxu0 0
    %2902 = vmatprep.subr.bf16.mxu0 0
    %2903 = vmatpush1.bf16.msra.mxu0 0
    %2904 = vmatprep.subr.bf16.mxu0 0
    %2905 = vmatpush1.bf16.msra.mxu0 %v2888
    %2906 = vmatprep.subr.bf16.mxu0 0
    %2907 = vmatpush2.bf16.msra.mxu0 0
    %2908 = vmatprep.subr.bf16.mxu0 0
    %2909 = vmatpush2.bf16.msra.mxu0 0
    %2910 = vmatprep.subr.bf16.mxu0 0
    %2911 = vmatpush2.bf16.msra.mxu0 0
    %2912 = vmatprep.subr.bf16.mxu0 0
    %2913 = vmatpush2.bf16.msra.mxu0 0
    %2914 = vmatprep.subr.bf16.mxu0 0
    %2915 = vmatpush2.bf16.msra.mxu0 0
    %2916 = vmatprep.subr.bf16.mxu0 0
    %2917 = vmatpush2.bf16.msra.mxu0 0
    %2918 = vmatprep.subr.bf16.mxu0 0
    %2919 = vmatpush2.bf16.msra.mxu0 0
    %2920 = vmatprep.subr.bf16.mxu0 0
    %2921 = vmatpush2.bf16.msra.mxu0 0
    %2922 = vmatprep.mubr.bf16.mxu0 0
    %2923 = vmatmul.mubr.bf16.gmra.mxu0 %v2885
    %v2924 = vpop.f32.mrf.mxu0
    %v2925 = vadd.f32 %v2877, %v2924
    %v2926 = vpop.f32.mrf.mxu0
    %v2927 = vpop.f32.mrf.mxu0
    %v2928 = vpop.f32.mrf.mxu0
    %2929 = vdwg.mxu0
    %v2930 = vxor.u32 %v2925, 2147483648
    %v2931 = vmul.f32 %v2930, 1.442695
    %v2932 = vpow.pop %v2931
    %v2933 = vadd.f32 %v2932, 1.0
    %v2934 = vrcp.pop %v2933
    %v2935 = vmul.f32 1.0, %v2934
    %v2936 = vmul.f32 %v2925, %v2935
    %v2937 = vmul.f32 %v2936, %v2936
    %v2938 = vsel %vm1148, %v2937, 0.0
    %2939 = vadd.xlane.f32.xlu0 %v2938
    %v2940 = vpop.xlane.xlu0 %2939
    %v2941 = vadd.f32 %v2940, 1e-08
    %v2942 = vrsqrt.pop %v2941
    %v2943 = vmul.f32 %v2941, %v2942
    %vm2944 = vcmp.eq.f32.partialorder %v2941, inf
    %v2945 = vsel %vm2944, %v2941, %v2943
    %vm2946 = vcmp.eq.f32.partialorder %v2941, 0.0
    %v2947 = vand.u32 %v2941, 2147483648
    %v2948 = vsel %vm2946, %v2947, %v2945
    %2950 = vrot.lane.b32.xlu0 %v2937, 125
    %v2951 = vpop.permute.xlu0 %2950
    %v2953 = vsel %vm1148, %v2951, 0.0
    %2954 = vadd.xlane.f32.xlu0 %v2953
    %v2955 = vpop.xlane.xlu0 %2954
    %v2956 = vadd.f32 %v2955, 1e-08
    %v2957 = vrsqrt.pop %v2956
    %v2958 = vmul.f32 %v2956, %v2957
    %vm2959 = vcmp.eq.f32.partialorder %v2956, inf
    %v2960 = vsel %vm2959, %v2956, %v2958
    %vm2961 = vcmp.eq.f32.partialorder %v2956, 0.0
    %v2962 = vand.u32 %v2956, 2147483648
    %v2963 = vsel %vm2961, %v2962, %v2960
    %2964 = vrot.lane.b32.xlu0 %v2937, 122
    %v2965 = vpop.permute.xlu0 %2964
    %v2967 = vsel %vm1148, %v2965, 0.0
    %2968 = vadd.xlane.f32.xlu0 %v2967
    %v2969 = vpop.xlane.xlu0 %2968
    %v2970 = vadd.f32 %v2969, 1e-08
    %v2971 = vrsqrt.pop %v2970
    %v2972 = vmul.f32 %v2970, %v2971
    %vm2973 = vcmp.eq.f32.partialorder %v2970, inf
    %v2974 = vsel %vm2973, %v2970, %v2972
    %vm2975 = vcmp.eq.f32.partialorder %v2970, 0.0
    %v2976 = vand.u32 %v2970, 2147483648
    %v2977 = vsel %vm2975, %v2976, %v2974
    %2978 = vrot.lane.b32.xlu0 %v2937, 119
    %v2979 = vpop.permute.xlu0 %2978
    %v2981 = vsel %vm1148, %v2979, 0.0
    %2982 = vadd.xlane.f32.xlu0 %v2981
    %v2983 = vpop.xlane.xlu0 %2982
    %v2984 = vadd.f32 %v2983, 1e-08
    %v2985 = vrsqrt.pop %v2984
    %v2986 = vmul.f32 %v2984, %v2985
    %vm2987 = vcmp.eq.f32.partialorder %v2984, inf
    %v2988 = vsel %vm2987, %v2984, %v2986
    %vm2989 = vcmp.eq.f32.partialorder %v2984, 0.0
    %v2990 = vand.u32 %v2984, 2147483648
    %v2991 = vsel %vm2989, %v2990, %v2988
    %v2992 = vsel %vm1220, %v2948, %v2963
    %v2993 = vsel %vm826, %v2992, %v2977
    %v2994 = vsel %vm748, %v2993, %v2991
    %2996 = vrot.lane.b32.xlu0 %v2994, 16
    %v2997 = vpop.permute.xlu0 %2996
    %v2999 = vsel %vm461, %v2520, %v2997
    %vm3000 = vcmask 31744
    %v3002 = vsel %vm3000, %v356, 0
    %v3005 = vsel %vm3000, %v357, 0
    %vm3007 = vcmask 1043456
    %v3009 = vsel %vm3007, %v2999, 0
    %3011 = vmatprep.subr.mxu0 0.0
    %3012 = vmatpush1.msra.mxu0 0.0
    %3013 = vmatprep.subr.mxu0 0.0
    %3014 = vmatpush1.msra.mxu0 0.0
    %3015 = vmatprep.subr.mxu0 0.0
    %3016 = vmatpush1.msra.mxu0 0.0
    %3017 = vmatprep.subr.mxu0 0.0
    %3018 = vmatpush1.msra.mxu0 0.0
    %3019 = vmatprep.subr.mxu0 0.0
    %3020 = vmatpush1.msra.mxu0 0.0
    %3021 = vmatprep.subr.mxu0 0.0
    %3022 = vmatpush1.msra.mxu0 0.0
    %3023 = vmatprep.subr.mxu0 0.0
    %3024 = vmatpush1.msra.mxu0 0.0
    %3025 = vmatprep.subr.mxu0 0.0
    %3026 = vmatpush1.msra.mxu0 0.0
    %3027 = vmatprep.subr.mxu0 0.0
    %3028 = vmatpush1.msra.mxu0 0.0
    %3029 = vmatprep.subr.mxu0 0.0
    %3030 = vmatpush1.msra.mxu0 0.0
    %3031 = vmatprep.subr.mxu0 0.0
    %3032 = vmatpush1.msra.mxu0 0.0
    %3033 = vmatprep.subr.mxu0 0.0
    %3034 = vmatpush1.msra.mxu0 0.0
    %3035 = vmatprep.subr.mxu0 0.0
    %3036 = vmatpush1.msra.mxu0 0.0
    %3037 = vmatprep.subr.mxu0 0.0
    %3038 = vmatpush1.msra.mxu0 0.0
    %3039 = vmatprep.subr.mxu0 0.0
    %3040 = vmatpush1.msra.mxu0 0.0
    %3041 = vmatprep.subr.mxu0 0.0
    %3042 = vmatpush1.msra.mxu0 %v3009
    %3043 = vmatprep.subr.mxu0 0.0
    %3044 = vmatpush2.msra.mxu0 0.0
    %3045 = vmatprep.subr.mxu0 0.0
    %3046 = vmatpush2.msra.mxu0 0.0
    %3047 = vmatprep.subr.mxu0 0.0
    %3048 = vmatpush2.msra.mxu0 0.0
    %3049 = vmatprep.subr.mxu0 0.0
    %3050 = vmatpush2.msra.mxu0 0.0
    %3051 = vmatprep.subr.mxu0 0.0
    %3052 = vmatpush2.msra.mxu0 0.0
    %3053 = vmatprep.subr.mxu0 0.0
    %3054 = vmatpush2.msra.mxu0 0.0
    %3055 = vmatprep.subr.mxu0 0.0
    %3056 = vmatpush2.msra.mxu0 0.0
    %3057 = vmatprep.subr.mxu0 0.0
    %3058 = vmatpush2.msra.mxu0 0.0
    %3059 = vmatprep.subr.mxu0 0.0
    %3060 = vmatpush2.msra.mxu0 0.0
    %3061 = vmatprep.subr.mxu0 0.0
    %3062 = vmatpush2.msra.mxu0 0.0
    %3063 = vmatprep.subr.mxu0 0.0
    %3064 = vmatpush2.msra.mxu0 0.0
    %3065 = vmatprep.subr.mxu0 0.0
    %3066 = vmatpush2.msra.mxu0 0.0
    %3067 = vmatprep.subr.mxu0 0.0
    %3068 = vmatpush2.msra.mxu0 0.0
    %3069 = vmatprep.subr.mxu0 0.0
    %3070 = vmatpush2.msra.mxu0 0.0
    %3071 = vmatprep.subr.mxu0 0.0
    %3072 = vmatpush2.msra.mxu0 0.0
    %3073 = vmatprep.subr.mxu0 0.0
    %3074 = vmatpush2.msra.mxu0 0.0
    %3075 = vmatprep.mubr.f32.mxu0 0.0
    %3076 = vmatmul.mubr.f32.gmra.mxu0 %v3002
    %v3077 = vpop.f32.mrf.mxu0
    %v3078 = vadd.f32 0.0, %v3077
    %v3079 = vpop.f32.mrf.mxu0
    %3080 = vmatprep.mubr.f32.mxu0 0.0
    %3081 = vmatmul.mubr.f32.gmra.mxu0 %v3005
    %v3082 = vpop.f32.mrf.mxu0
    %v3083 = vadd.f32 0.0, %v3082
    %v3084 = vpop.f32.mrf.mxu0
    %3085 = vdwg.mxu0
    %3088 = vrot.lane.b32.xlu0 %v734, 32
    %v3089 = vpop.permute.xlu0 %3088
    %3090 = vrot.lane.b32.xlu0 %v737, 32
    %v3091 = vpop.permute.xlu0 %3090
    %3096 = vrot.lane.b32.xlu0 %v3078, 44
    %v3097 = vpop.permute.xlu0 %3096
    %3098 = vrot.lane.b32.xlu0 %v3083, 44
    %v3099 = vpop.permute.xlu0 %3098
    %v3102 = vsel %vm544, %v601, %v3089
    %v3103 = vsel %vm544, %v602, %v3091
    %vm3104 = vcmask 359424
    %v3105 = vsel %vm3104, %v3102, %v3097
    %v3106 = vsel %vm3104, %v3103, %v3099
    %vm3107 = vcmask 523264
    %3108 = vst.msk [vmem:[%s97] sm:$0xff] %vm3107, %v3105
    %3109 = vst.msk [vmem:[%s97 + $0x8] sm:$0xff] %vm3107, %v3106
    %3114 = vrot.lane.b32.xlu0 %v1932, 16
    %v3115 = vpop.permute.xlu0 %3114
    %3116 = vrot.lane.b32.xlu0 %v1933, 16
    %v3117 = vpop.permute.xlu0 %3116
    %3118 = vrot.lane.b32.xlu0 %v1934, 16
    %v3119 = vpop.permute.xlu0 %3118
    %3120 = vrot.lane.b32.xlu0 %v1935, 16
    %v3121 = vpop.permute.xlu0 %3120
    %v3126 = vsel %vm461, %v1655, %v3115
    %v3127 = vsel %vm461, %v1656, %v3117
    %v3128 = vsel %vm461, %v1657, %v3119
    %v3129 = vsel %vm461, %v1658, %v3121
    %vm3130 = vcmask 146432
    %3131 = vst.msk [vmem:[%s99] sm:$0xff] %vm3130, %v3126
    %3132 = vst.msk [vmem:[%s99 + $0x8] sm:$0xff] %vm3130, %v3127
    %3133 = vst.msk [vmem:[%s99 + $0x10] sm:$0xff] %vm3130, %v3128
    %3134 = vst.msk [vmem:[%s99 + $0x18] sm:$0xff] %vm3130, %v3129
    // Predicated region
    $region230: #{topotein_forward.3} parent=1 // pred_check
      _
    $region231: #{topotein_forward.3} parent=1 // pred_check_branch
      %3136 = sbr.rel (0) target = $region233
    $region232: #{topotein_forward.3} parent=1 // pred_region
      _
    $region233: #{topotein_forward.3} parent=1 // pred_fallthru
      _
    // Predicated region
    $region234: #{topotein_forward.3} parent=1 // pred_check
      _
    $region235: #{topotein_forward.3} parent=1 // pred_check_branch
      %3138 = sbr.rel (0) target = $region237
    $region236: #{topotein_forward.3} parent=1 // pred_region
      _
    $region237: #{topotein_forward.3} parent=1 // pred_fallthru
      _
    // Predicated region
    $region238: #{topotein_forward.3} parent=1 // pred_check
      _
    $region239: #{topotein_forward.3} parent=1 // pred_check_branch
      %3140 = sbr.rel (0) target = $region241
    $region240: #{topotein_forward.3} parent=1 // pred_region
      _
    $region241: #{topotein_forward.3} parent=1 // pred_fallthru
      _
    // Predicated region
    $region242: #{topotein_forward.3} parent=1 // pred_check
      _
    $region243: #{topotein_forward.3} parent=1 // pred_check_branch
      %3142 = sbr.rel (0) target = $region245
    $region244: #{topotein_forward.3} parent=1 // pred_region
      _
    $region245: #{topotein_forward.3} parent=1 // pred_fallthru
      _
    %3143 = vsyncpa [#allocation3], 1
    %3144 = vsyncpa [#allocation5], 1
    %3145 = vsyncpa [#allocation8], 1
    %3146 = vsyncpa [#allocation11], 1
    %3147 = vsyncpa [#allocation14], 1

</llo_original>
